<compile_context>
chip_gen: v5e
topology: v5e:2x2
jax: 0.10.0
libtpu: 0.0.40
codegen_flags: <defaults>
</compile_context>

<pallas_src>
import math
import jax
import jax.numpy as jnp
from jax.experimental import pallas as pl
from jax.experimental.pallas import tpu as pltpu

INNER_DIM = 24
K_PAD = 128                       # neck padded to a full lane width
HIDDEN = 128
# Head order matches torch.cat([n2d, theta, roughness, diffuse, specular], dim=1)
OUT_WIDTHS = (2, 1, 2, 3, 3)
OUT_OFFSETS = (0, 2, 3, 5, 8)     # contiguous packing of the 11 real columns
TOTAL_OUT = sum(OUT_WIDTHS)       # 11
OUT_SLAB = 128                    # lane-dense output width (cols 0..10 real)

PS_RANGE = 5.0
AXAY_RANGE = 0.497
ALBEDO_SCALAR = 1.0               # nn.Parameter(torch.ones(1)), non-trainable

# post-sigmoid affine per head (scale, offset), mirroring pred_params():
HEAD_SCALE = (1.0, 2.0 * math.pi, AXAY_RANGE, ALBEDO_SCALAR, PS_RANGE * ALBEDO_SCALAR)
HEAD_OFFSET = (0.0, 0.0, 0.006, 0.0, 0.0)


# ----------------------------- Pallas kernel ---------------------------------

def latent_mlp_kernel(x_ref, w0_ref, b0_ref, w1_ref, b1_ref,
                      w2_ref, b2_ref, w3_ref, b3_ref,
                      scale_ref, offset_ref, out_ref):
    """Fused 5-head MLP. bf16 matmuls / f32 accumulation; f32 elementwise."""
    x = x_ref[...]                                              # (tn, 128) bf16
    # Layer 0 fused across heads: one wide matmul instead of 5 K=24 matmuls.
    h0 = jnp.dot(x, w0_ref[...], preferred_element_type=jnp.float32)
    h0 = jnp.maximum(h0 + b0_ref[...], 0.0)                     # (tn, 640) f32

    hs = []
    for m in range(5):                                          # static unroll
        h = h0[:, m * HIDDEN:(m + 1) * HIDDEN].astype(jnp.bfloat16)
        h = jnp.dot(h, w1_ref[m], preferred_element_type=jnp.float32) + b1_ref[m]
        h = jnp.maximum(h, 0.0).astype(jnp.bfloat16)
        h = jnp.dot(h, w2_ref[m], preferred_element_type=jnp.float32) + b2_ref[m]
        hs.append(jnp.maximum(h, 0.0).astype(jnp.bfloat16))

    # 128-aligned lane concat (free), then one block-diagonal final matmul
    # producing the whole lane-dense output slab at once (real cols = 0..10).
    h_all = jnp.concatenate(hs, axis=1)                         # (tn, 640) bf16
    logits = jnp.dot(h_all, w3_ref[...],
                     preferred_element_type=jnp.float32) + b3_ref[...]  # (tn,128)

    # sigmoid via EUP exp + approx reciprocal, then one fused 128-lane affine.
    sig = pl.reciprocal(1.0 + jnp.exp(-logits), approx=True)
    out_ref[...] = sig * scale_ref[...] + offset_ref[...]


def _round_up(x, m):
    return (x + m - 1) // m * m


def pred_params_pallas(neck, packed, *, tn=512):
    """neck: (N, INNER_DIM) f32; packed: dict from pack_weights(). -> (N, 11)."""
    N = neck.shape[0]
    tn = min(tn, _round_up(max(N, 1), 8))     # shrink tile for small N
    n_pad = (-N) % tn
    Np = N + n_pad

    # Pre-cast to bf16 (halves input DMA) and zero-pad rows + lanes in one op.
    x = jnp.pad(neck.astype(jnp.bfloat16), ((0, n_pad), (0, K_PAD - INNER_DIM)))

    def _const_spec(arr):
        nd = arr.ndim
        return pl.BlockSpec(arr.shape, lambda i, _nd=nd: (0,) * _nd)

    args = [x,
            packed["w0"], packed["b0"],
            packed["w1"], packed["b1"],
            packed["w2"], packed["b2"],
            packed["w3"], packed["b3"],
            packed["scale"], packed["offset"]]

    in_specs = [pl.BlockSpec((tn, K_PAD), lambda i: (i, 0))]
    in_specs += [_const_spec(a) for a in args[1:]]

    grid_spec = pltpu.PrefetchScalarGridSpec(
        num_scalar_prefetch=0,
        grid=(Np // tn,),
        in_specs=in_specs,
        out_specs=pl.BlockSpec((tn, OUT_SLAB), lambda i: (i, 0)),
    )

    out = pl.pallas_call(
        latent_mlp_kernel,
        out_shape=jax.ShapeDtypeStruct((Np, OUT_SLAB), jnp.float32),
        grid_spec=grid_spec,
        compiler_params=pltpu.CompilerParams(
            dimension_semantics=("parallel",)),
    )(*args)

    # Real outputs are packed contiguously in columns 0..10: a cheap static
    # slice (no gather), plus dropping any padded rows.
    return out[:N, :TOTAL_OUT]


# ---------------- plain-JAX glue (params, packing, texture sampling) ---------

def init_weights(key):
    """Per-head f32 parameters matching MLPModel([24,128,128,128,w])."""
    ks = jax.random.split(key, 5 * 8)
    s0 = 1.0 / math.sqrt(INNER_DIM)
    sH = 1.0 / math.sqrt(HIDDEN)
    w = {k: [] for k in ("w0", "b0", "w1", "b1", "w2", "b2", "w3", "b3")}
    for m in range(5):
        kk = ks[m * 8:(m + 1) * 8]
        w["w0"].append(jax.random.uniform(kk[0], (INNER_DIM, HIDDEN), jnp.float32, -s0, s0))
        w["b0"].append(jax.random.uniform(kk[1], (1, HIDDEN), jnp.float32, -s0, s0))
        w["w1"].append(jax.random.uniform(kk[2], (HIDDEN, HIDDEN), jnp.float32, -sH, sH))
        w["b1"].append(jax.random.uniform(kk[3], (1, HIDDEN), jnp.float32, -sH, sH))
        w["w2"].append(jax.random.uniform(kk[4], (HIDDEN, HIDDEN), jnp.float32, -sH, sH))
        w["b2"].append(jax.random.uniform(kk[5], (1, HIDDEN), jnp.float32, -sH, sH))
        wd = OUT_WIDTHS[m]
        w["w3"].append(jax.random.uniform(kk[6], (HIDDEN, wd), jnp.float32, -sH, sH))
        w["b3"].append(jax.random.uniform(kk[7], (1, wd), jnp.float32, -sH, sH))
    return w


def pack_weights(w):
    """Pack per-head f32 params into the fused / bf16 layout the kernel uses."""
    W0 = jnp.zeros((K_PAD, 5 * HIDDEN), jnp.float32)
    B0 = jnp.zeros((1, 5 * HIDDEN), jnp.float32)
    W3 = jnp.zeros((5 * HIDDEN, OUT_SLAB), jnp.float32)
    B3 = jnp.zeros((1, OUT_SLAB), jnp.float32)
    scale = jnp.zeros((1, OUT_SLAB), jnp.float32)
    offset = jnp.zeros((1, OUT_SLAB), jnp.float32)
    for m in range(5):
        W0 = W0.at[:INNER_DIM, m * HIDDEN:(m + 1) * HIDDEN].set(w["w0"][m])
        B0 = B0.at[:, m * HIDDEN:(m + 1) * HIDDEN].set(w["b0"][m])
        wd = OUT_WIDTHS[m]
        c0 = OUT_OFFSETS[m]
        W3 = W3.at[m * HIDDEN:(m + 1) * HIDDEN, c0:c0 + wd].set(w["w3"][m])
        B3 = B3.at[:, c0:c0 + wd].set(w["b3"][m])
        scale = scale.at[:, c0:c0 + wd].set(HEAD_SCALE[m])
        offset = offset.at[:, c0:c0 + wd].set(HEAD_OFFSET[m])
    return {
        "w0": W0.astype(jnp.bfloat16), "b0": B0,
        "w1": jnp.stack(w["w1"]).astype(jnp.bfloat16), "b1": jnp.stack(w["b1"]),
        "w2": jnp.stack(w["w2"]).astype(jnp.bfloat16), "b2": jnp.stack(w["b2"]),
        "w3": W3.astype(jnp.bfloat16), "b3": B3,
        "scale": scale, "offset": offset,
    }


def sample_texture(tex, uvs):
    """Bilinear texture lookup (Texture.__call__ equivalent).
    tex: (H, W, C) f32, uvs: (N, 2) in [0, 1]  -> (N, C)."""
    H, W, _ = tex.shape
    u = uvs[:, 0] * (W - 1)
    v = uvs[:, 1] * (H - 1)
    x0 = jnp.clip(jnp.floor(u).astype(jnp.int32), 0, W - 1)
    y0 = jnp.clip(jnp.floor(v).astype(jnp.int32), 0, H - 1)
    x1 = jnp.clip(x0 + 1, 0, W - 1)
    y1 = jnp.clip(y0 + 1, 0, H - 1)
    wx = (u - x0.astype(jnp.float32))[:, None]
    wy = (v - y0.astype(jnp.float32))[:, None]
    c00 = tex[y0, x0]
    c01 = tex[y0, x1]
    c10 = tex[y1, x0]
    c11 = tex[y1, x1]
    return (c00 * (1 - wx) * (1 - wy) + c01 * wx * (1 - wy)
            + c10 * (1 - wx) * wy + c11 * wx * wy)


def pred_params_reference(neck, w):
    """Pure-JAX f32 reference (original module semantics)."""
    outs = []
    for m in range(5):
        h = jnp.maximum(neck @ w["w0"][m] + w["b0"][m], 0.0)
        h = jnp.maximum(h @ w["w1"][m] + w["b1"][m], 0.0)
        h = jnp.maximum(h @ w["w2"][m] + w["b2"][m], 0.0)
        o = jax.nn.sigmoid(h @ w["w3"][m] + w["b3"][m])
        outs.append(o * HEAD_SCALE[m] + HEAD_OFFSET[m])
    return jnp.concatenate(outs, axis=1)


if __name__ == "__main__":
    key = jax.random.PRNGKey(0)
    k_w, k_tex, k_pos, k_uv = jax.random.split(key, 4)

    resolution = 32          # texture_resolution (small for the demo)
    N = 1024                 # UV query points: 2 tiles of 512 -> both v7x TCs busy
    TN = 512

    raw_weights = init_weights(k_w)
    packed = pack_weights(raw_weights)

    # param_encoding: learnable latent texture (res, res, inner_dim)
    param_tex = jax.random.normal(k_tex, (resolution, resolution, INNER_DIM),
                                  jnp.float32) * 0.1
    # pos_texture: fixed world-position texture (res, res, 3), flipud per channel
    pos_tex = jax.random.normal(k_pos, (resolution, resolution, 3), jnp.float32)
    pos_tex = pos_tex[::-1, :, :]

    uvs = jax.random.uniform(k_uv, (N, 2), jnp.float32)

    # forward (pred_params + get_position); rendering step not translated
    neck = sample_texture(param_tex, uvs)                   # (N, 24)
    pred_params = pred_params_pallas(neck, packed, tn=TN)   # (N, 11) via Pallas
    point_pos = sample_texture(pos_tex, uvs)                # (N, 3)

    pred_params = jax.block_until_ready(pred_params)
    point_pos = jax.block_until_ready(point_pos)

    ref = pred_params_reference(neck, raw_weights)
    assert pred_params.shape == (N, TOTAL_OUT)
    max_err = float(jnp.max(jnp.abs(pred_params - ref)))
    # bf16 matmuls -> relaxed tolerance vs the f32 reference
    assert jnp.allclose(pred_params, ref, atol=2e-2, rtol=2e-2), max_err
    print("KERNEL_OK")
</pallas_src>

<mosaic_0001>
module attributes {stable_mosaic.version = 11 : i64} {
  func.func @latent_mlp_kernel(%arg0: i32, %arg1: memref<512x128xbf16, #tpu.memory_space<vmem>>, %arg2: memref<128x640xbf16, #tpu.memory_space<vmem>>, %arg3: memref<1x640xf32, #tpu.memory_space<vmem>>, %arg4: memref<5x128x128xbf16, #tpu.memory_space<vmem>>, %arg5: memref<5x1x128xf32, #tpu.memory_space<vmem>>, %arg6: memref<5x128x128xbf16, #tpu.memory_space<vmem>>, %arg7: memref<5x1x128xf32, #tpu.memory_space<vmem>>, %arg8: memref<640x128xbf16, #tpu.memory_space<vmem>>, %arg9: memref<1x128xf32, #tpu.memory_space<vmem>>, %arg10: memref<1x128xf32, #tpu.memory_space<vmem>>, %arg11: memref<1x128xf32, #tpu.memory_space<vmem>>, %arg12: memref<512x128xf32, #tpu.memory_space<vmem>>) attributes {dimension_semantics = [#tpu.dimension_semantics<parallel>], iteration_bounds = array<i64: 2>, scalar_prefetch = 0 : i64, scratch_operands = 0 : i64, tpu.core_type = #tpu.core_type<tc>, window_params = [{transform_indices = @transform_0, window_bounds = array<i64: 512, 128>}, {pipeline_mode = #tpu.pipeline_mode<synchronous>, transform_indices = @transform_1, window_bounds = array<i64: 128, 640>}, {pipeline_mode = #tpu.pipeline_mode<synchronous>, transform_indices = @transform_2, window_bounds = array<i64: 1, 640>}, {pipeline_mode = #tpu.pipeline_mode<synchronous>, transform_indices = @transform_3, window_bounds = array<i64: 5, 128, 128>}, {pipeline_mode = #tpu.pipeline_mode<synchronous>, transform_indices = @transform_4, window_bounds = array<i64: 5, 1, 128>}, {pipeline_mode = #tpu.pipeline_mode<synchronous>, transform_indices = @transform_5, window_bounds = array<i64: 5, 128, 128>}, {pipeline_mode = #tpu.pipeline_mode<synchronous>, transform_indices = @transform_6, window_bounds = array<i64: 5, 1, 128>}, {pipeline_mode = #tpu.pipeline_mode<synchronous>, transform_indices = @transform_7, window_bounds = array<i64: 640, 128>}, {pipeline_mode = #tpu.pipeline_mode<synchronous>, transform_indices = @transform_8, window_bounds = array<i64: 1, 128>}, {pipeline_mode = #tpu.pipeline_mode<synchronous>, transform_indices = @transform_9, window_bounds = array<i64: 1, 128>}, {pipeline_mode = #tpu.pipeline_mode<synchronous>, transform_indices = @transform_10, window_bounds = array<i64: 1, 128>}, {transform_indices = @transform_11, window_bounds = array<i64: 512, 128>}]} {
    %c0 = arith.constant 0 : index
    %c0_0 = arith.constant 0 : index
    %0 = vector.load %arg1[%c0, %c0_0] : memref<512x128xbf16, #tpu.memory_space<vmem>>, vector<512x128xbf16>
    %c0_1 = arith.constant 0 : index
    %c0_2 = arith.constant 0 : index
    %1 = vector.load %arg2[%c0_1, %c0_2] : memref<128x640xbf16, #tpu.memory_space<vmem>>, vector<128x640xbf16>
    %cst = arith.constant dense<0.000000e+00> : vector<512x640xf32>
    %2 = tpu.matmul %0, %1, %cst {dimension_numbers = #tpu.dot_dimension_numbers<[1], [0], [0], [1], [0, 0, 1, 1], [], []>} : vector<512x128xbf16>, vector<128x640xbf16>, vector<512x640xf32> -> vector<512x640xf32>
    %c0_3 = arith.constant 0 : index
    %c0_4 = arith.constant 0 : index
    %3 = vector.load %arg3[%c0_3, %c0_4] : memref<1x640xf32, #tpu.memory_space<vmem>>, vector<1x640xf32>
    %4 = vector.broadcast %3 : vector<1x640xf32> to vector<512x640xf32>
    %5 = arith.addf %2, %4 : vector<512x640xf32>
    %cst_5 = arith.constant 0.000000e+00 : f32
    %6 = vector.broadcast %cst_5 : f32 to vector<512x640xf32>
    %7 = arith.maximumf %5, %6 : vector<512x640xf32>
    %8 = vector.extract_strided_slice %7 {offsets = [0, 0], sizes = [512, 128], strides = [1, 1]} : vector<512x640xf32> to vector<512x128xf32>
    %9 = arith.truncf %8 : vector<512x128xf32> to vector<512x128xbf16>
    %c0_6 = arith.constant 0 : index
    %c0_7 = arith.constant 0 : index
    %c0_8 = arith.constant 0 : index
    %10 = vector.load %arg4[%c0_6, %c0_7, %c0_8] : memref<5x128x128xbf16, #tpu.memory_space<vmem>>, vector<1x128x128xbf16>
    %11 = vector.shape_cast %10 : vector<1x128x128xbf16> to vector<128x128xbf16>
    %cst_9 = arith.constant dense<0.000000e+00> : vector<512x128xf32>
    %12 = tpu.matmul %9, %11, %cst_9 {dimension_numbers = #tpu.dot_dimension_numbers<[1], [0], [0], [1], [0, 0, 1, 1], [], []>} : vector<512x128xbf16>, vector<128x128xbf16>, vector<512x128xf32> -> vector<512x128xf32>
    %c0_10 = arith.constant 0 : index
    %c0_11 = arith.constant 0 : index
    %c0_12 = arith.constant 0 : index
    %13 = vector.load %arg5[%c0_10, %c0_11, %c0_12] : memref<5x1x128xf32, #tpu.memory_space<vmem>>, vector<1x1x128xf32>
    %14 = vector.shape_cast %13 : vector<1x1x128xf32> to vector<1x128xf32>
    %15 = vector.broadcast %14 : vector<1x128xf32> to vector<512x128xf32>
    %16 = arith.addf %12, %15 : vector<512x128xf32>
    %cst_13 = arith.constant 0.000000e+00 : f32
    %17 = vector.broadcast %cst_13 : f32 to vector<512x128xf32>
    %18 = arith.maximumf %16, %17 : vector<512x128xf32>
    %19 = arith.truncf %18 : vector<512x128xf32> to vector<512x128xbf16>
    %c0_14 = arith.constant 0 : index
    %c0_15 = arith.constant 0 : index
    %c0_16 = arith.constant 0 : index
    %20 = vector.load %arg6[%c0_14, %c0_15, %c0_16] : memref<5x128x128xbf16, #tpu.memory_space<vmem>>, vector<1x128x128xbf16>
    %21 = vector.shape_cast %20 : vector<1x128x128xbf16> to vector<128x128xbf16>
    %cst_17 = arith.constant dense<0.000000e+00> : vector<512x128xf32>
    %22 = tpu.matmul %19, %21, %cst_17 {dimension_numbers = #tpu.dot_dimension_numbers<[1], [0], [0], [1], [0, 0, 1, 1], [], []>} : vector<512x128xbf16>, vector<128x128xbf16>, vector<512x128xf32> -> vector<512x128xf32>
    %c0_18 = arith.constant 0 : index
    %c0_19 = arith.constant 0 : index
    %c0_20 = arith.constant 0 : index
    %23 = vector.load %arg7[%c0_18, %c0_19, %c0_20] : memref<5x1x128xf32, #tpu.memory_space<vmem>>, vector<1x1x128xf32>
    %24 = vector.shape_cast %23 : vector<1x1x128xf32> to vector<1x128xf32>
    %25 = vector.broadcast %24 : vector<1x128xf32> to vector<512x128xf32>
    %26 = arith.addf %22, %25 : vector<512x128xf32>
    %cst_21 = arith.constant 0.000000e+00 : f32
    %27 = vector.broadcast %cst_21 : f32 to vector<512x128xf32>
    %28 = arith.maximumf %26, %27 : vector<512x128xf32>
    %29 = arith.truncf %28 : vector<512x128xf32> to vector<512x128xbf16>
    %30 = vector.extract_strided_slice %7 {offsets = [0, 128], sizes = [512, 128], strides = [1, 1]} : vector<512x640xf32> to vector<512x128xf32>
    %31 = arith.truncf %30 : vector<512x128xf32> to vector<512x128xbf16>
    %c1 = arith.constant 1 : index
    %c0_22 = arith.constant 0 : index
    %c0_23 = arith.constant 0 : index
    %32 = vector.load %arg4[%c1, %c0_22, %c0_23] : memref<5x128x128xbf16, #tpu.memory_space<vmem>>, vector<1x128x128xbf16>
    %33 = vector.shape_cast %32 : vector<1x128x128xbf16> to vector<128x128xbf16>
    %cst_24 = arith.constant dense<0.000000e+00> : vector<512x128xf32>
    %34 = tpu.matmul %31, %33, %cst_24 {dimension_numbers = #tpu.dot_dimension_numbers<[1], [0], [0], [1], [0, 0, 1, 1], [], []>} : vector<512x128xbf16>, vector<128x128xbf16>, vector<512x128xf32> -> vector<512x128xf32>
    %c1_25 = arith.constant 1 : index
    %c0_26 = arith.constant 0 : index
    %c0_27 = arith.constant 0 : index
    %35 = vector.load %arg5[%c1_25, %c0_26, %c0_27] : memref<5x1x128xf32, #tpu.memory_space<vmem>>, vector<1x1x128xf32>
    %36 = vector.shape_cast %35 : vector<1x1x128xf32> to vector<1x128xf32>
    %37 = vector.broadcast %36 : vector<1x128xf32> to vector<512x128xf32>
    %38 = arith.addf %34, %37 : vector<512x128xf32>
    %cst_28 = arith.constant 0.000000e+00 : f32
    %39 = vector.broadcast %cst_28 : f32 to vector<512x128xf32>
    %40 = arith.maximumf %38, %39 : vector<512x128xf32>
    %41 = arith.truncf %40 : vector<512x128xf32> to vector<512x128xbf16>
    %c1_29 = arith.constant 1 : index
    %c0_30 = arith.constant 0 : index
    %c0_31 = arith.constant 0 : index
    %42 = vector.load %arg6[%c1_29, %c0_30, %c0_31] : memref<5x128x128xbf16, #tpu.memory_space<vmem>>, vector<1x128x128xbf16>
    %43 = vector.shape_cast %42 : vector<1x128x128xbf16> to vector<128x128xbf16>
    %cst_32 = arith.constant dense<0.000000e+00> : vector<512x128xf32>
    %44 = tpu.matmul %41, %43, %cst_32 {dimension_numbers = #tpu.dot_dimension_numbers<[1], [0], [0], [1], [0, 0, 1, 1], [], []>} : vector<512x128xbf16>, vector<128x128xbf16>, vector<512x128xf32> -> vector<512x128xf32>
    %c1_33 = arith.constant 1 : index
    %c0_34 = arith.constant 0 : index
    %c0_35 = arith.constant 0 : index
    %45 = vector.load %arg7[%c1_33, %c0_34, %c0_35] : memref<5x1x128xf32, #tpu.memory_space<vmem>>, vector<1x1x128xf32>
    %46 = vector.shape_cast %45 : vector<1x1x128xf32> to vector<1x128xf32>
    %47 = vector.broadcast %46 : vector<1x128xf32> to vector<512x128xf32>
    %48 = arith.addf %44, %47 : vector<512x128xf32>
    %cst_36 = arith.constant 0.000000e+00 : f32
    %49 = vector.broadcast %cst_36 : f32 to vector<512x128xf32>
    %50 = arith.maximumf %48, %49 : vector<512x128xf32>
    %51 = arith.truncf %50 : vector<512x128xf32> to vector<512x128xbf16>
    %52 = vector.extract_strided_slice %7 {offsets = [0, 256], sizes = [512, 128], strides = [1, 1]} : vector<512x640xf32> to vector<512x128xf32>
    %53 = arith.truncf %52 : vector<512x128xf32> to vector<512x128xbf16>
    %c2 = arith.constant 2 : index
    %c0_37 = arith.constant 0 : index
    %c0_38 = arith.constant 0 : index
    %54 = vector.load %arg4[%c2, %c0_37, %c0_38] : memref<5x128x128xbf16, #tpu.memory_space<vmem>>, vector<1x128x128xbf16>
    %55 = vector.shape_cast %54 : vector<1x128x128xbf16> to vector<128x128xbf16>
    %cst_39 = arith.constant dense<0.000000e+00> : vector<512x128xf32>
    %56 = tpu.matmul %53, %55, %cst_39 {dimension_numbers = #tpu.dot_dimension_numbers<[1], [0], [0], [1], [0, 0, 1, 1], [], []>} : vector<512x128xbf16>, vector<128x128xbf16>, vector<512x128xf32> -> vector<512x128xf32>
    %c2_40 = arith.constant 2 : index
    %c0_41 = arith.constant 0 : index
    %c0_42 = arith.constant 0 : index
    %57 = vector.load %arg5[%c2_40, %c0_41, %c0_42] : memref<5x1x128xf32, #tpu.memory_space<vmem>>, vector<1x1x128xf32>
    %58 = vector.shape_cast %57 : vector<1x1x128xf32> to vector<1x128xf32>
    %59 = vector.broadcast %58 : vector<1x128xf32> to vector<512x128xf32>
    %60 = arith.addf %56, %59 : vector<512x128xf32>
    %cst_43 = arith.constant 0.000000e+00 : f32
    %61 = vector.broadcast %cst_43 : f32 to vector<512x128xf32>
    %62 = arith.maximumf %60, %61 : vector<512x128xf32>
    %63 = arith.truncf %62 : vector<512x128xf32> to vector<512x128xbf16>
    %c2_44 = arith.constant 2 : index
    %c0_45 = arith.constant 0 : index
    %c0_46 = arith.constant 0 : index
    %64 = vector.load %arg6[%c2_44, %c0_45, %c0_46] : memref<5x128x128xbf16, #tpu.memory_space<vmem>>, vector<1x128x128xbf16>
    %65 = vector.shape_cast %64 : vector<1x128x128xbf16> to vector<128x128xbf16>
    %cst_47 = arith.constant dense<0.000000e+00> : vector<512x128xf32>
    %66 = tpu.matmul %63, %65, %cst_47 {dimension_numbers = #tpu.dot_dimension_numbers<[1], [0], [0], [1], [0, 0, 1, 1], [], []>} : vector<512x128xbf16>, vector<128x128xbf16>, vector<512x128xf32> -> vector<512x128xf32>
    %c2_48 = arith.constant 2 : index
    %c0_49 = arith.constant 0 : index
    %c0_50 = arith.constant 0 : index
    %67 = vector.load %arg7[%c2_48, %c0_49, %c0_50] : memref<5x1x128xf32, #tpu.memory_space<vmem>>, vector<1x1x128xf32>
    %68 = vector.shape_cast %67 : vector<1x1x128xf32> to vector<1x128xf32>
    %69 = vector.broadcast %68 : vector<1x128xf32> to vector<512x128xf32>
    %70 = arith.addf %66, %69 : vector<512x128xf32>
    %cst_51 = arith.constant 0.000000e+00 : f32
    %71 = vector.broadcast %cst_51 : f32 to vector<512x128xf32>
    %72 = arith.maximumf %70, %71 : vector<512x128xf32>
    %73 = arith.truncf %72 : vector<512x128xf32> to vector<512x128xbf16>
    %74 = vector.extract_strided_slice %7 {offsets = [0, 384], sizes = [512, 128], strides = [1, 1]} : vector<512x640xf32> to vector<512x128xf32>
    %75 = arith.truncf %74 : vector<512x128xf32> to vector<512x128xbf16>
    %c3 = arith.constant 3 : index
    %c0_52 = arith.constant 0 : index
    %c0_53 = arith.constant 0 : index
    %76 = vector.load %arg4[%c3, %c0_52, %c0_53] : memref<5x128x128xbf16, #tpu.memory_space<vmem>>, vector<1x128x128xbf16>
    %77 = vector.shape_cast %76 : vector<1x128x128xbf16> to vector<128x128xbf16>
    %cst_54 = arith.constant dense<0.000000e+00> : vector<512x128xf32>
    %78 = tpu.matmul %75, %77, %cst_54 {dimension_numbers = #tpu.dot_dimension_numbers<[1], [0], [0], [1], [0, 0, 1, 1], [], []>} : vector<512x128xbf16>, vector<128x128xbf16>, vector<512x128xf32> -> vector<512x128xf32>
    %c3_55 = arith.constant 3 : index
    %c0_56 = arith.constant 0 : index
    %c0_57 = arith.constant 0 : index
    %79 = vector.load %arg5[%c3_55, %c0_56, %c0_57] : memref<5x1x128xf32, #tpu.memory_space<vmem>>, vector<1x1x128xf32>
    %80 = vector.shape_cast %79 : vector<1x1x128xf32> to vector<1x128xf32>
    %81 = vector.broadcast %80 : vector<1x128xf32> to vector<512x128xf32>
    %82 = arith.addf %78, %81 : vector<512x128xf32>
    %cst_58 = arith.constant 0.000000e+00 : f32
    %83 = vector.broadcast %cst_58 : f32 to vector<512x128xf32>
    %84 = arith.maximumf %82, %83 : vector<512x128xf32>
    %85 = arith.truncf %84 : vector<512x128xf32> to vector<512x128xbf16>
    %c3_59 = arith.constant 3 : index
    %c0_60 = arith.constant 0 : index
    %c0_61 = arith.constant 0 : index
    %86 = vector.load %arg6[%c3_59, %c0_60, %c0_61] : memref<5x128x128xbf16, #tpu.memory_space<vmem>>, vector<1x128x128xbf16>
    %87 = vector.shape_cast %86 : vector<1x128x128xbf16> to vector<128x128xbf16>
    %cst_62 = arith.constant dense<0.000000e+00> : vector<512x128xf32>
    %88 = tpu.matmul %85, %87, %cst_62 {dimension_numbers = #tpu.dot_dimension_numbers<[1], [0], [0], [1], [0, 0, 1, 1], [], []>} : vector<512x128xbf16>, vector<128x128xbf16>, vector<512x128xf32> -> vector<512x128xf32>
    %c3_63 = arith.constant 3 : index
    %c0_64 = arith.constant 0 : index
    %c0_65 = arith.constant 0 : index
    %89 = vector.load %arg7[%c3_63, %c0_64, %c0_65] : memref<5x1x128xf32, #tpu.memory_space<vmem>>, vector<1x1x128xf32>
    %90 = vector.shape_cast %89 : vector<1x1x128xf32> to vector<1x128xf32>
    %91 = vector.broadcast %90 : vector<1x128xf32> to vector<512x128xf32>
    %92 = arith.addf %88, %91 : vector<512x128xf32>
    %cst_66 = arith.constant 0.000000e+00 : f32
    %93 = vector.broadcast %cst_66 : f32 to vector<512x128xf32>
    %94 = arith.maximumf %92, %93 : vector<512x128xf32>
    %95 = arith.truncf %94 : vector<512x128xf32> to vector<512x128xbf16>
    %96 = vector.extract_strided_slice %7 {offsets = [0, 512], sizes = [512, 128], strides = [1, 1]} : vector<512x640xf32> to vector<512x128xf32>
    %97 = arith.truncf %96 : vector<512x128xf32> to vector<512x128xbf16>
    %c4 = arith.constant 4 : index
    %c0_67 = arith.constant 0 : index
    %c0_68 = arith.constant 0 : index
    %98 = vector.load %arg4[%c4, %c0_67, %c0_68] : memref<5x128x128xbf16, #tpu.memory_space<vmem>>, vector<1x128x128xbf16>
    %99 = vector.shape_cast %98 : vector<1x128x128xbf16> to vector<128x128xbf16>
    %cst_69 = arith.constant dense<0.000000e+00> : vector<512x128xf32>
    %100 = tpu.matmul %97, %99, %cst_69 {dimension_numbers = #tpu.dot_dimension_numbers<[1], [0], [0], [1], [0, 0, 1, 1], [], []>} : vector<512x128xbf16>, vector<128x128xbf16>, vector<512x128xf32> -> vector<512x128xf32>
    %c4_70 = arith.constant 4 : index
    %c0_71 = arith.constant 0 : index
    %c0_72 = arith.constant 0 : index
    %101 = vector.load %arg5[%c4_70, %c0_71, %c0_72] : memref<5x1x128xf32, #tpu.memory_space<vmem>>, vector<1x1x128xf32>
    %102 = vector.shape_cast %101 : vector<1x1x128xf32> to vector<1x128xf32>
    %103 = vector.broadcast %102 : vector<1x128xf32> to vector<512x128xf32>
    %104 = arith.addf %100, %103 : vector<512x128xf32>
    %cst_73 = arith.constant 0.000000e+00 : f32
    %105 = vector.broadcast %cst_73 : f32 to vector<512x128xf32>
    %106 = arith.maximumf %104, %105 : vector<512x128xf32>
    %107 = arith.truncf %106 : vector<512x128xf32> to vector<512x128xbf16>
    %c4_74 = arith.constant 4 : index
    %c0_75 = arith.constant 0 : index
    %c0_76 = arith.constant 0 : index
    %108 = vector.load %arg6[%c4_74, %c0_75, %c0_76] : memref<5x128x128xbf16, #tpu.memory_space<vmem>>, vector<1x128x128xbf16>
    %109 = vector.shape_cast %108 : vector<1x128x128xbf16> to vector<128x128xbf16>
    %cst_77 = arith.constant dense<0.000000e+00> : vector<512x128xf32>
    %110 = tpu.matmul %107, %109, %cst_77 {dimension_numbers = #tpu.dot_dimension_numbers<[1], [0], [0], [1], [0, 0, 1, 1], [], []>} : vector<512x128xbf16>, vector<128x128xbf16>, vector<512x128xf32> -> vector<512x128xf32>
    %c4_78 = arith.constant 4 : index
    %c0_79 = arith.constant 0 : index
    %c0_80 = arith.constant 0 : index
    %111 = vector.load %arg7[%c4_78, %c0_79, %c0_80] : memref<5x1x128xf32, #tpu.memory_space<vmem>>, vector<1x1x128xf32>
    %112 = vector.shape_cast %111 : vector<1x1x128xf32> to vector<1x128xf32>
    %113 = vector.broadcast %112 : vector<1x128xf32> to vector<512x128xf32>
    %114 = arith.addf %110, %113 : vector<512x128xf32>
    %cst_81 = arith.constant 0.000000e+00 : f32
    %115 = vector.broadcast %cst_81 : f32 to vector<512x128xf32>
    %116 = arith.maximumf %114, %115 : vector<512x128xf32>
    %117 = arith.truncf %116 : vector<512x128xf32> to vector<512x128xbf16>
    %118 = tpu.concatenate %29, %51, %73, %95, %117 in 1 : vector<512x128xbf16>, vector<512x128xbf16>, vector<512x128xbf16>, vector<512x128xbf16>, vector<512x128xbf16> -> vector<512x640xbf16>
    %c0_82 = arith.constant 0 : index
    %c0_83 = arith.constant 0 : index
    %119 = vector.load %arg8[%c0_82, %c0_83] : memref<640x128xbf16, #tpu.memory_space<vmem>>, vector<640x128xbf16>
    %cst_84 = arith.constant dense<0.000000e+00> : vector<512x128xf32>
    %120 = tpu.matmul %118, %119, %cst_84 {dimension_numbers = #tpu.dot_dimension_numbers<[1], [0], [0], [1], [0, 0, 1, 1], [], []>} : vector<512x640xbf16>, vector<640x128xbf16>, vector<512x128xf32> -> vector<512x128xf32>
    %c0_85 = arith.constant 0 : index
    %c0_86 = arith.constant 0 : index
    %121 = vector.load %arg9[%c0_85, %c0_86] : memref<1x128xf32, #tpu.memory_space<vmem>>, vector<1x128xf32>
    %122 = vector.broadcast %121 : vector<1x128xf32> to vector<512x128xf32>
    %123 = arith.addf %120, %122 : vector<512x128xf32>
    %cst_87 = arith.constant 0.000000e+00 : f32
    %124 = vector.broadcast %cst_87 : f32 to vector<512x128xf32>
    %125 = arith.subf %124, %123 : vector<512x128xf32>
    %126 = math.exp %125 : vector<512x128xf32>
    %cst_88 = arith.constant 1.000000e+00 : f32
    %127 = vector.broadcast %cst_88 : f32 to vector<512x128xf32>
    %128 = arith.addf %127, %126 : vector<512x128xf32>
    %129 = tpu.reciprocal %128 {approx = true} : vector<512x128xf32> -> vector<512x128xf32>
    %c0_89 = arith.constant 0 : index
    %c0_90 = arith.constant 0 : index
    %130 = vector.load %arg10[%c0_89, %c0_90] : memref<1x128xf32, #tpu.memory_space<vmem>>, vector<1x128xf32>
    %131 = vector.broadcast %130 : vector<1x128xf32> to vector<512x128xf32>
    %132 = arith.mulf %129, %131 : vector<512x128xf32>
    %c0_91 = arith.constant 0 : index
    %c0_92 = arith.constant 0 : index
    %133 = vector.load %arg11[%c0_91, %c0_92] : memref<1x128xf32, #tpu.memory_space<vmem>>, vector<1x128xf32>
    %134 = vector.broadcast %133 : vector<1x128xf32> to vector<512x128xf32>
    %135 = arith.addf %132, %134 : vector<512x128xf32>
    %c0_93 = arith.constant 0 : index
    %c0_94 = arith.constant 0 : index
    %136 = vector.load %arg12[%c0_93, %c0_94] : memref<512x128xf32, #tpu.memory_space<vmem>>, vector<512x128xf32>
    tpu.vector_store %arg12[%c0_93, %c0_94], %135 {strides = array<i32>} : memref<512x128xf32, #tpu.memory_space<vmem>>, vector<512x128xf32>,
    return
  }
  func.func @transform_0(%arg0: i32) -> (i32, i32) {
    %c0_i32 = arith.constant 0 : i32
    %c0_i32_0 = arith.constant 0 : i32
    return %arg0, %c0_i32 : i32, i32
  }
  func.func @transform_1(%arg0: i32) -> (i32, i32) {
    %c0_i32 = arith.constant 0 : i32
    %c0_i32_0 = arith.constant 0 : i32
    %c0_i32_1 = arith.constant 0 : i32
    return %c0_i32, %c0_i32_0 : i32, i32
  }
  func.func @transform_2(%arg0: i32) -> (i32, i32) {
    %c0_i32 = arith.constant 0 : i32
    %c0_i32_0 = arith.constant 0 : i32
    %c0_i32_1 = arith.constant 0 : i32
    return %c0_i32, %c0_i32_0 : i32, i32
  }
  func.func @transform_3(%arg0: i32) -> (i32, i32, i32) {
    %c0_i32 = arith.constant 0 : i32
    %c0_i32_0 = arith.constant 0 : i32
    %c0_i32_1 = arith.constant 0 : i32
    %c0_i32_2 = arith.constant 0 : i32
    return %c0_i32, %c0_i32_0, %c0_i32_1 : i32, i32, i32
  }
  func.func @transform_4(%arg0: i32) -> (i32, i32, i32) {
    %c0_i32 = arith.constant 0 : i32
    %c0_i32_0 = arith.constant 0 : i32
    %c0_i32_1 = arith.constant 0 : i32
    %c0_i32_2 = arith.constant 0 : i32
    return %c0_i32, %c0_i32_0, %c0_i32_1 : i32, i32, i32
  }
  func.func @transform_5(%arg0: i32) -> (i32, i32, i32) {
    %c0_i32 = arith.constant 0 : i32
    %c0_i32_0 = arith.constant 0 : i32
    %c0_i32_1 = arith.constant 0 : i32
    %c0_i32_2 = arith.constant 0 : i32
    return %c0_i32, %c0_i32_0, %c0_i32_1 : i32, i32, i32
  }
  func.func @transform_6(%arg0: i32) -> (i32, i32, i32) {
    %c0_i32 = arith.constant 0 : i32
    %c0_i32_0 = arith.constant 0 : i32
    %c0_i32_1 = arith.constant 0 : i32
    %c0_i32_2 = arith.constant 0 : i32
    return %c0_i32, %c0_i32_0, %c0_i32_1 : i32, i32, i32
  }
  func.func @transform_7(%arg0: i32) -> (i32, i32) {
    %c0_i32 = arith.constant 0 : i32
    %c0_i32_0 = arith.constant 0 : i32
    %c0_i32_1 = arith.constant 0 : i32
    return %c0_i32, %c0_i32_0 : i32, i32
  }
  func.func @transform_8(%arg0: i32) -> (i32, i32) {
    %c0_i32 = arith.constant 0 : i32
    %c0_i32_0 = arith.constant 0 : i32
    %c0_i32_1 = arith.constant 0 : i32
    return %c0_i32, %c0_i32_0 : i32, i32
  }
  func.func @transform_9(%arg0: i32) -> (i32, i32) {
    %c0_i32 = arith.constant 0 : i32
    %c0_i32_0 = arith.constant 0 : i32
    %c0_i32_1 = arith.constant 0 : i32
    return %c0_i32, %c0_i32_0 : i32, i32
  }
  func.func @transform_10(%arg0: i32) -> (i32, i32) {
    %c0_i32 = arith.constant 0 : i32
    %c0_i32_0 = arith.constant 0 : i32
    %c0_i32_1 = arith.constant 0 : i32
    return %c0_i32, %c0_i32_0 : i32, i32
  }
  func.func @transform_11(%arg0: i32) -> (i32, i32) {
    %c0_i32 = arith.constant 0 : i32
    %c0_i32_0 = arith.constant 0 : i32
    return %arg0, %c0_i32 : i32, i32
  }
}

</mosaic_0001>

<llo_original>
// kernel: tpu_custom_call.1
$region0: #{tpu_custom_call.1}
  #allocation0 [shape = 'u32[]', space=smem, size = 0x4, offset = 0x4, fixed_abs, tag = 'smem constant byte address 0x4 - core index']
  #allocation1 [shape = 'u32[72,128]{1,0:T(1,128)}', space=vmem, size = 0x9000, scoped, tag = 'internal scratch']
  %s0 = inlined_call_operand.hbm [shape: bf16[1024,128], index: 0, kind: input, shape index: {}]
  %s1 = inlined_call_operand.hbm [shape: bf16[128,640], index: 1, kind: input, shape index: {}]
  %s2 = inlined_call_operand.hbm [shape: f32[1,640], index: 2, kind: input, shape index: {}]
  %s3 = inlined_call_operand.hbm [shape: bf16[5,128,128], index: 3, kind: input, shape index: {}]
  %s4 = inlined_call_operand.hbm [shape: f32[5,1,128], index: 4, kind: input, shape index: {}]
  %s5 = inlined_call_operand.hbm [shape: bf16[5,128,128], index: 5, kind: input, shape index: {}]
  %s6 = inlined_call_operand.vmem [shape: f32[5,1,128], index: 6, kind: input, shape index: {}]
  %s7 = inlined_call_operand.hbm [shape: bf16[640,128], index: 7, kind: input, shape index: {}]
  %s8 = inlined_call_operand.vmem [shape: f32[1,128], index: 8, kind: input, shape index: {}]
  %s9 = inlined_call_operand.vmem [shape: f32[1,128], index: 9, kind: input, shape index: {}]
  %s10 = inlined_call_operand.vmem [shape: f32[1,128], index: 10, kind: input, shape index: {}]
  %s11 = inlined_call_operand.hbm [shape: f32[1024,128], index: 11, kind: output, shape index: {}]
  %s12 = sld [smem:[#allocation0]]
  $region105: #{tpu_custom_call.1} parent=0
    _
  %s14 = ssub.s32 1, %s12
  %s15 = scalar_select 0, %s14, %s12
  $region1: #{tpu_custom_call.1} parent=0
    #allocation2 [shape = 'u8[262144]{0}', space=vmem, size = 0x40000, scoped, tag = 'input window, operand 0']
    #allocation3 [shape = 's32[2]{0}', space=sflag, size = 0x8, scoped, tag = 'scoped memory for tpu_custom_call.1']
    #allocation4 [shape = 's32[2]{0}', space=sflag, size = 0x8, scoped, tag = 'scoped memory for tpu_custom_call.1']
    #allocation5 [shape = 'u8[163840]{0}', space=vmem, size = 0x28000, scoped, tag = 'input window, operand 1, single buffered']
    #allocation6 [shape = 's32[1]{0}', space=sflag, size = 0x4, scoped, tag = 'scoped memory for tpu_custom_call.1']
    #allocation7 [shape = 'u8[2560]{0}', space=vmem, size = 0xc00, scoped, tag = 'input window, operand 2, single buffered']
    #allocation8 [shape = 'u8[163840]{0}', space=vmem, size = 0x28000, scoped, tag = 'input window, operand 3, single buffered']
    #allocation9 [shape = 's32[1]{0}', space=sflag, size = 0x4, scoped, tag = 'scoped memory for tpu_custom_call.1']
    #allocation10 [shape = 'u8[2560]{0}', space=vmem, size = 0xc00, scoped, tag = 'input window, operand 4, single buffered']
    #allocation11 [shape = 'u8[163840]{0}', space=vmem, size = 0x28000, scoped, tag = 'input window, operand 5, single buffered']
    #allocation12 [shape = 's32[1]{0}', space=sflag, size = 0x4, scoped, tag = 'scoped memory for tpu_custom_call.1']
    #allocation13 [shape = 'u8[163840]{0}', space=vmem, size = 0x28000, scoped, tag = 'input window, operand 7, single buffered']
    #allocation14 [shape = 'u8[524288]{0}', space=vmem, size = 0x80000, scoped, tag = 'output window, operand 0']
    %16 = vsyncpa [#allocation3], 0
    %s17 = scalar_lea.sflag [#allocation3], 1
    %18 = vsyncpa %s17, 0
    %19 = vsyncpa [#allocation6], 0
    %20 = vsyncpa [#allocation9], 0
    %21 = vsyncpa [#allocation12], 0
    %22 = vsyncpa [#allocation4], 0
    %s23 = scalar_lea.sflag [#allocation4], 1
    %24 = vsyncpa %s23, 0
    loop: start=0, step=1, limit=4
    $region2: #{tpu_custom_call.1} parent=1 // loop_pre_header
      _
    $region3: #{tpu_custom_call.1} parent=1 // loop_header
      %s26 = sphi 0, %s30
      %p27 = scmp.ge.s32.totalorder %s26, 4
      %s36 = sphi 0, %s38
      %s39 = sphi 0, %s36
      %s40 = sphi 0, %s39
      %s56 = sphi 0, %s40
      %s60 = sphi 0, %s60
      %s62 = sphi 0, %s60
      %s63 = sphi 0, %s62
      %s77 = sphi 0, %s63
      %s81 = sphi 0, %s81
      %s83 = sphi 0, %s81
      %s84 = sphi 0, %s83
      %s98 = sphi 0, %s84
      %s102 = sphi 0, %s102
      %s104 = sphi 0, %s102
      %s105 = sphi 0, %s104
      %s119 = sphi 0, %s105
      %s123 = sphi 0, %s123
      %s125 = sphi 0, %s123
      %s126 = sphi 0, %s125
      %s140 = sphi 0, %s126
      %s144 = sphi 0, %s144
      %s146 = sphi 0, %s144
      %s147 = sphi 0, %s146
      %s161 = sphi 0, %s147
      %s165 = sphi 0, %s165
      %s167 = sphi 0, %s165
      %s168 = sphi 0, %s167
      %s182 = sphi 0, %s168
      %s186 = sphi 0, %s186
      %s188 = sphi 0, %s186
      %s189 = sphi 0, %s188
      %s203 = sphi 0, %s189
      %s207 = sphi 0, %s207
      %s209 = sphi 0, %s207
      %s210 = sphi 0, %s209
      %s224 = sphi 0, %s210
      %s228 = sphi 0, %s228
      %s230 = sphi 0, %s228
      %s231 = sphi 0, %s230
      %s245 = sphi 0, %s231
      %s249 = sphi 0, %s249
      %s251 = sphi 0, %s249
      %s252 = sphi 0, %s251
      %s266 = sphi 0, %s252
      %s272 = sphi 0, %s274
      %s275 = sphi 0, %s272
      %s276 = sphi 0, %s275
      %s292 = sphi 0, %s276
    $region4: #{tpu_custom_call.1} parent=1 // loop_header_branch
      %29 = sbr.rel (%p27) target = $region8
    $region5: #{tpu_custom_call.1} parent=1 // loop_body
      %s31 = ssub.s32 %s26, 1
      %s32 = ssub.s32 %s26, 2
      %s33 = sadd.s32 %s26, 1
      %s34 = ssub.s32 %s26, %s33
      %p35 = scmp.eq.s32.totalorder %s34, 0
      %s37 = sadd.s32 %s36, 1
      %s38 = scalar_select %p35, %s36, %s37
      %p41 = pneg %p35
      %p42 = scmp.eq.s32.totalorder %s26, 1
      %p43 = por %p41, %p42
      %p44 = scmp.ne.s32.totalorder %s36, %s39
      %p45 = scmp.eq.s32.totalorder %s26, 0
      %p46 = por %p44, %p45
      %p47 = scmp.ne.s32.totalorder %s36, %s39
      %p48 = scmp.eq.s32.totalorder %s31, 1
      %p49 = por %p47, %p48
      %p50 = scmp.ne.s32.totalorder %s39, %s40
      %p51 = scmp.eq.s32.totalorder %s31, 0
      %p52 = por %p50, %p51
      %p53 = scmp.ne.s32.totalorder %s39, %s40
      %p54 = scmp.eq.s32.totalorder %s32, 1
      %p55 = por %p53, %p54
      %p57 = scmp.ne.s32.totalorder %s40, %s56
      %p58 = scmp.eq.s32.totalorder %s32, 0
      %p59 = por %p57, %p58
      %s61 = sadd.s32 %s60, 1
      %p64 = scmp.eq.s32.totalorder %s26, 1
      %p65 = scmp.ne.s32.totalorder %s60, %s62
      %p66 = scmp.eq.s32.totalorder %s26, 0
      %p67 = por %p65, %p66
      %p68 = scmp.ne.s32.totalorder %s60, %s62
      %p69 = scmp.eq.s32.totalorder %s31, 1
      %p70 = por %p68, %p69
      %p71 = scmp.ne.s32.totalorder %s62, %s63
      %p72 = scmp.eq.s32.totalorder %s31, 0
      %p73 = por %p71, %p72
      %p74 = scmp.ne.s32.totalorder %s62, %s63
      %p75 = scmp.eq.s32.totalorder %s32, 1
      %p76 = por %p74, %p75
      %p78 = scmp.ne.s32.totalorder %s63, %s77
      %p79 = scmp.eq.s32.totalorder %s32, 0
      %p80 = por %p78, %p79
      %s82 = sadd.s32 %s81, 1
      %p85 = scmp.eq.s32.totalorder %s26, 1
      %p86 = scmp.ne.s32.totalorder %s81, %s83
      %p87 = scmp.eq.s32.totalorder %s26, 0
      %p88 = por %p86, %p87
      %p89 = scmp.ne.s32.totalorder %s81, %s83
      %p90 = scmp.eq.s32.totalorder %s31, 1
      %p91 = por %p89, %p90
      %p92 = scmp.ne.s32.totalorder %s83, %s84
      %p93 = scmp.eq.s32.totalorder %s31, 0
      %p94 = por %p92, %p93
      %p95 = scmp.ne.s32.totalorder %s83, %s84
      %p96 = scmp.eq.s32.totalorder %s32, 1
      %p97 = por %p95, %p96
      %p99 = scmp.ne.s32.totalorder %s84, %s98
      %p100 = scmp.eq.s32.totalorder %s32, 0
      %p101 = por %p99, %p100
      %s103 = sadd.s32 %s102, 1
      %p106 = scmp.eq.s32.totalorder %s26, 1
      %p107 = scmp.ne.s32.totalorder %s102, %s104
      %p108 = scmp.eq.s32.totalorder %s26, 0
      %p109 = por %p107, %p108
      %p110 = scmp.ne.s32.totalorder %s102, %s104
      %p111 = scmp.eq.s32.totalorder %s31, 1
      %p112 = por %p110, %p111
      %p113 = scmp.ne.s32.totalorder %s104, %s105
      %p114 = scmp.eq.s32.totalorder %s31, 0
      %p115 = por %p113, %p114
      %p116 = scmp.ne.s32.totalorder %s104, %s105
      %p117 = scmp.eq.s32.totalorder %s32, 1
      %p118 = por %p116, %p117
      %p120 = scmp.ne.s32.totalorder %s105, %s119
      %p121 = scmp.eq.s32.totalorder %s32, 0
      %p122 = por %p120, %p121
      %s124 = sadd.s32 %s123, 1
      %p127 = scmp.eq.s32.totalorder %s26, 1
      %p128 = scmp.ne.s32.totalorder %s123, %s125
      %p129 = scmp.eq.s32.totalorder %s26, 0
      %p130 = por %p128, %p129
      %p131 = scmp.ne.s32.totalorder %s123, %s125
      %p132 = scmp.eq.s32.totalorder %s31, 1
      %p133 = por %p131, %p132
      %p134 = scmp.ne.s32.totalorder %s125, %s126
      %p135 = scmp.eq.s32.totalorder %s31, 0
      %p136 = por %p134, %p135
      %p137 = scmp.ne.s32.totalorder %s125, %s126
      %p138 = scmp.eq.s32.totalorder %s32, 1
      %p139 = por %p137, %p138
      %p141 = scmp.ne.s32.totalorder %s126, %s140
      %p142 = scmp.eq.s32.totalorder %s32, 0
      %p143 = por %p141, %p142
      %s145 = sadd.s32 %s144, 1
      %p148 = scmp.eq.s32.totalorder %s26, 1
      %p149 = scmp.ne.s32.totalorder %s144, %s146
      %p150 = scmp.eq.s32.totalorder %s26, 0
      %p151 = por %p149, %p150
      %p152 = scmp.ne.s32.totalorder %s144, %s146
      %p153 = scmp.eq.s32.totalorder %s31, 1
      %p154 = por %p152, %p153
      %p155 = scmp.ne.s32.totalorder %s146, %s147
      %p156 = scmp.eq.s32.totalorder %s31, 0
      %p157 = por %p155, %p156
      %p158 = scmp.ne.s32.totalorder %s146, %s147
      %p159 = scmp.eq.s32.totalorder %s32, 1
      %p160 = por %p158, %p159
      %p162 = scmp.ne.s32.totalorder %s147, %s161
      %p163 = scmp.eq.s32.totalorder %s32, 0
      %p164 = por %p162, %p163
      %s166 = sadd.s32 %s165, 1
      %p169 = scmp.eq.s32.totalorder %s26, 1
      %p170 = scmp.ne.s32.totalorder %s165, %s167
      %p171 = scmp.eq.s32.totalorder %s26, 0
      %p172 = por %p170, %p171
      %p173 = scmp.ne.s32.totalorder %s165, %s167
      %p174 = scmp.eq.s32.totalorder %s31, 1
      %p175 = por %p173, %p174
      %p176 = scmp.ne.s32.totalorder %s167, %s168
      %p177 = scmp.eq.s32.totalorder %s31, 0
      %p178 = por %p176, %p177
      %p179 = scmp.ne.s32.totalorder %s167, %s168
      %p180 = scmp.eq.s32.totalorder %s32, 1
      %p181 = por %p179, %p180
      %p183 = scmp.ne.s32.totalorder %s168, %s182
      %p184 = scmp.eq.s32.totalorder %s32, 0
      %p185 = por %p183, %p184
      %s187 = sadd.s32 %s186, 1
      %p190 = scmp.eq.s32.totalorder %s26, 1
      %p191 = scmp.ne.s32.totalorder %s186, %s188
      %p192 = scmp.eq.s32.totalorder %s26, 0
      %p193 = por %p191, %p192
      %p194 = scmp.ne.s32.totalorder %s186, %s188
      %p195 = scmp.eq.s32.totalorder %s31, 1
      %p196 = por %p194, %p195
      %p197 = scmp.ne.s32.totalorder %s188, %s189
      %p198 = scmp.eq.s32.totalorder %s31, 0
      %p199 = por %p197, %p198
      %p200 = scmp.ne.s32.totalorder %s188, %s189
      %p201 = scmp.eq.s32.totalorder %s32, 1
      %p202 = por %p200, %p201
      %p204 = scmp.ne.s32.totalorder %s189, %s203
      %p205 = scmp.eq.s32.totalorder %s32, 0
      %p206 = por %p204, %p205
      %s208 = sadd.s32 %s207, 1
      %p211 = scmp.eq.s32.totalorder %s26, 1
      %p212 = scmp.ne.s32.totalorder %s207, %s209
      %p213 = scmp.eq.s32.totalorder %s26, 0
      %p214 = por %p212, %p213
      %p215 = scmp.ne.s32.totalorder %s207, %s209
      %p216 = scmp.eq.s32.totalorder %s31, 1
      %p217 = por %p215, %p216
      %p218 = scmp.ne.s32.totalorder %s209, %s210
      %p219 = scmp.eq.s32.totalorder %s31, 0
      %p220 = por %p218, %p219
      %p221 = scmp.ne.s32.totalorder %s209, %s210
      %p222 = scmp.eq.s32.totalorder %s32, 1
      %p223 = por %p221, %p222
      %p225 = scmp.ne.s32.totalorder %s210, %s224
      %p226 = scmp.eq.s32.totalorder %s32, 0
      %p227 = por %p225, %p226
      %s229 = sadd.s32 %s228, 1
      %p232 = scmp.eq.s32.totalorder %s26, 1
      %p233 = scmp.ne.s32.totalorder %s228, %s230
      %p234 = scmp.eq.s32.totalorder %s26, 0
      %p235 = por %p233, %p234
      %p236 = scmp.ne.s32.totalorder %s228, %s230
      %p237 = scmp.eq.s32.totalorder %s31, 1
      %p238 = por %p236, %p237
      %p239 = scmp.ne.s32.totalorder %s230, %s231
      %p240 = scmp.eq.s32.totalorder %s31, 0
      %p241 = por %p239, %p240
      %p242 = scmp.ne.s32.totalorder %s230, %s231
      %p243 = scmp.eq.s32.totalorder %s32, 1
      %p244 = por %p242, %p243
      %p246 = scmp.ne.s32.totalorder %s231, %s245
      %p247 = scmp.eq.s32.totalorder %s32, 0
      %p248 = por %p246, %p247
      %s250 = sadd.s32 %s249, 1
      %p253 = scmp.eq.s32.totalorder %s26, 1
      %p254 = scmp.ne.s32.totalorder %s249, %s251
      %p255 = scmp.eq.s32.totalorder %s26, 0
      %p256 = por %p254, %p255
      %p257 = scmp.ne.s32.totalorder %s249, %s251
      %p258 = scmp.eq.s32.totalorder %s31, 1
      %p259 = por %p257, %p258
      %p260 = scmp.ne.s32.totalorder %s251, %s252
      %p261 = scmp.eq.s32.totalorder %s31, 0
      %p262 = por %p260, %p261
      %p263 = scmp.ne.s32.totalorder %s251, %s252
      %p264 = scmp.eq.s32.totalorder %s32, 1
      %p265 = por %p263, %p264
      %p267 = scmp.ne.s32.totalorder %s252, %s266
      %p268 = scmp.eq.s32.totalorder %s32, 0
      %p269 = por %p267, %p268
      %s270 = ssub.s32 %s26, %s33
      %p271 = scmp.eq.s32.totalorder %s270, 0
      %s273 = sadd.s32 %s272, 1
      %s274 = scalar_select %p271, %s272, %s273
      %p277 = pneg %p271
      %p278 = scmp.eq.s32.totalorder %s26, 1
      %p279 = por %p277, %p278
      %p280 = scmp.ne.s32.totalorder %s272, %s275
      %p281 = scmp.eq.s32.totalorder %s26, 0
      %p282 = por %p280, %p281
      %p283 = scmp.ne.s32.totalorder %s272, %s275
      %p284 = scmp.eq.s32.totalorder %s31, 1
      %p285 = por %p283, %p284
      %p286 = scmp.ne.s32.totalorder %s275, %s276
      %p287 = scmp.eq.s32.totalorder %s31, 0
      %p288 = por %p286, %p287
      %p289 = scmp.ne.s32.totalorder %s275, %s276
      %p290 = scmp.eq.s32.totalorder %s32, 1
      %p291 = por %p289, %p290
      %p293 = scmp.ne.s32.totalorder %s276, %s292
      %p294 = scmp.eq.s32.totalorder %s32, 0
      %p295 = por %p293, %p294
      %p296 = scmp.le.s32.totalorder 1, %s26
      %p297 = scmp.lt.s32.totalorder %s26, 3
      %p298 = pnand %p296, %p297
      %p299 = pneg %p298
      // Predicated region
      $region9: #{tpu_custom_call.1} parent=5 // pred_check
        _
      $region10: #{tpu_custom_call.1} parent=5 // pred_check_branch
        %301 = sbr.rel (%p298) target = $region12
      $region11: #{tpu_custom_call.1} parent=5 // pred_region
        %s302 = ssub.s32 %s26, 1
        // Predicated region
        $region13: #{tpu_custom_call.1} parent=11 // pred_check
          %p303 = pneg %p73
        $region14: #{tpu_custom_call.1} parent=11 // pred_check_branch
          %305 = sbr.rel (%p303) target = $region16
        $region15: #{tpu_custom_call.1} parent=11 // pred_region
          %307 = vsyncadd [#allocation6], 0
          %s308 = sshll.u32 %s1, 4
          %s309 = int_to_ptr.hbm [resolvable:$true] %s308
          %s310 = sshll.u32 [#allocation5], 4
          %s311 = int_to_ptr.vmem [resolvable:$true] %s310
          %316 = dma.hbm_to_vmem [thread:$0]  %s309, 5120, %s311, [#allocation6], 320, 320, 20
        $region16: #{tpu_custom_call.1} parent=11 // pred_fallthru
          _
        // Predicated region
        $region17: #{tpu_custom_call.1} parent=11 // pred_check
          %p317 = pneg %p94
        $region18: #{tpu_custom_call.1} parent=11 // pred_check_branch
          %319 = sbr.rel (%p317) target = $region20
        $region19: #{tpu_custom_call.1} parent=11 // pred_region
          %321 = vsyncadd [#allocation6], 0
          %s323 = sshll.u32 %s2, 4
          %s324 = int_to_ptr.hbm [resolvable:$true] %s323
          %s325 = sshll.u32 [#allocation7], 4
          %s326 = int_to_ptr.vmem [resolvable:$true] %s325
          %328 = dma.hbm_to_vmem [thread:$0]  %s324, 80, %s326, [#allocation6]
        $region20: #{tpu_custom_call.1} parent=11 // pred_fallthru
          _
        // Predicated region
        $region21: #{tpu_custom_call.1} parent=11 // pred_check
          %p329 = pneg %p115
        $region22: #{tpu_custom_call.1} parent=11 // pred_check_branch
          %331 = sbr.rel (%p329) target = $region24
        $region23: #{tpu_custom_call.1} parent=11 // pred_region
          %333 = vsyncadd [#allocation9], 0
          %s334 = sshll.u32 %s3, 4
          %s335 = int_to_ptr.hbm [resolvable:$true] %s334
          %s336 = sshll.u32 [#allocation8], 4
          %s337 = int_to_ptr.vmem [resolvable:$true] %s336
          %342 = dma.hbm_to_vmem [thread:$0]  %s335, 5120, %s337, [#allocation9], 64, 64, 4
        $region24: #{tpu_custom_call.1} parent=11 // pred_fallthru
          _
        // Predicated region
        $region25: #{tpu_custom_call.1} parent=11 // pred_check
          %p343 = pneg %p136
        $region26: #{tpu_custom_call.1} parent=11 // pred_check_branch
          %345 = sbr.rel (%p343) target = $region28
        $region27: #{tpu_custom_call.1} parent=11 // pred_region
          %347 = vsyncadd [#allocation9], 0
          %s348 = sshll.u32 %s4, 4
          %s349 = int_to_ptr.hbm [resolvable:$true] %s348
          %s350 = sshll.u32 [#allocation10], 4
          %s351 = int_to_ptr.vmem [resolvable:$true] %s350
          %356 = dma.hbm_to_vmem [thread:$0]  %s349, 80, %s351, [#allocation9], 16, 16, 1
        $region28: #{tpu_custom_call.1} parent=11 // pred_fallthru
          _
        // Predicated region
        $region29: #{tpu_custom_call.1} parent=11 // pred_check
          %p357 = pneg %p157
        $region30: #{tpu_custom_call.1} parent=11 // pred_check_branch
          %359 = sbr.rel (%p357) target = $region32
        $region31: #{tpu_custom_call.1} parent=11 // pred_region
          %361 = vsyncadd [#allocation12], 0
          %s362 = sshll.u32 %s5, 4
          %s363 = int_to_ptr.hbm [resolvable:$true] %s362
          %s364 = sshll.u32 [#allocation11], 4
          %s365 = int_to_ptr.vmem [resolvable:$true] %s364
          %370 = dma.hbm_to_vmem [thread:$0]  %s363, 5120, %s365, [#allocation12], 64, 64, 4
        $region32: #{tpu_custom_call.1} parent=11 // pred_fallthru
          _
        // Predicated region
        $region33: #{tpu_custom_call.1} parent=11 // pred_check
          %p371 = pneg %p178
        $region34: #{tpu_custom_call.1} parent=11 // pred_check_branch
          %373 = sbr.rel (%p371) target = $region36
        $region35: #{tpu_custom_call.1} parent=11 // pred_region
          _
        $region36: #{tpu_custom_call.1} parent=11 // pred_fallthru
          _
        // Predicated region
        $region37: #{tpu_custom_call.1} parent=11 // pred_check
          %p374 = pneg %p199
        $region38: #{tpu_custom_call.1} parent=11 // pred_check_branch
          %376 = sbr.rel (%p374) target = $region40
        $region39: #{tpu_custom_call.1} parent=11 // pred_region
          %378 = vsyncadd [#allocation12], 0
          %s379 = sshll.u32 %s7, 4
          %s380 = int_to_ptr.hbm [resolvable:$true] %s379
          %s381 = sshll.u32 [#allocation13], 4
          %s382 = int_to_ptr.vmem [resolvable:$true] %s381
          %387 = dma.hbm_to_vmem [thread:$0]  %s380, 5120, %s382, [#allocation12], 64, 64, 4
        $region40: #{tpu_custom_call.1} parent=11 // pred_fallthru
          _
        // Predicated region
        $region41: #{tpu_custom_call.1} parent=11 // pred_check
          %p388 = pneg %p220
        $region42: #{tpu_custom_call.1} parent=11 // pred_check_branch
          %390 = sbr.rel (%p388) target = $region44
        $region43: #{tpu_custom_call.1} parent=11 // pred_region
          _
        $region44: #{tpu_custom_call.1} parent=11 // pred_fallthru
          _
        // Predicated region
        $region45: #{tpu_custom_call.1} parent=11 // pred_check
          %p391 = pneg %p241
        $region46: #{tpu_custom_call.1} parent=11 // pred_check_branch
          %393 = sbr.rel (%p391) target = $region48
        $region47: #{tpu_custom_call.1} parent=11 // pred_region
          _
        $region48: #{tpu_custom_call.1} parent=11 // pred_fallthru
          _
        // Predicated region
        $region49: #{tpu_custom_call.1} parent=11 // pred_check
          %p394 = pneg %p262
        $region50: #{tpu_custom_call.1} parent=11 // pred_check_branch
          %396 = sbr.rel (%p394) target = $region52
        $region51: #{tpu_custom_call.1} parent=11 // pred_region
          _
        $region52: #{tpu_custom_call.1} parent=11 // pred_fallthru
          _
      $region12: #{tpu_custom_call.1} parent=5 // pred_fallthru
        _
      %p397 = scmp.lt.s32.totalorder %s26, 2
      // Predicated region
      $region53: #{tpu_custom_call.1} parent=5 // pred_check
        %p398 = pneg %p397
      $region54: #{tpu_custom_call.1} parent=5 // pred_check_branch
        %400 = sbr.rel (%p398) target = $region56
      $region55: #{tpu_custom_call.1} parent=5 // pred_region
        // Predicated region
        $region57: #{tpu_custom_call.1} parent=55 // pred_check
          %p401 = pneg %p46
        $region58: #{tpu_custom_call.1} parent=55 // pred_check_branch
          %403 = sbr.rel (%p401) target = $region60
        $region59: #{tpu_custom_call.1} parent=55 // pred_region
          %s404 = sand.u32 %s36, 1
          %s405 = scalar_lea.sflag [#allocation3], %s404
          %s406 = sand.u32 %s36, 1
          %s407 = smul.addr %s406, 256
          %s408 = scalar_lea.vmem [#allocation2], %s407
          %s409 = smul.u32 64, %s26
          %411 = vsyncadd %s405, 0
          %s412 = smul.addr %s409, 4
          %s413 = scalar_lea.hbm %s0, %s412
          %s414 = sshll.u32 %s413, 4
          %s415 = int_to_ptr.hbm [resolvable:$true] %s414
          %s416 = sshll.u32 %s408, 4
          %s417 = int_to_ptr.vmem [resolvable:$true] %s416
          %422 = dma.hbm_to_vmem [thread:$0]  %s415, 4096, %s417, %s405, 64, 64, 4
        $region60: #{tpu_custom_call.1} parent=55 // pred_fallthru
          _
      $region56: #{tpu_custom_call.1} parent=5 // pred_fallthru
        _
      %p423 = scmp.le.s32.totalorder 1, %s26
      %p424 = scmp.lt.s32.totalorder %s26, 3
      %p425 = pnand %p423, %p424
      %p426 = pneg %p425
      // Predicated region
      $region61: #{tpu_custom_call.1} parent=5 // pred_check
        _
      $region62: #{tpu_custom_call.1} parent=5 // pred_check_branch
        %428 = sbr.rel (%p425) target = $region64
      $region63: #{tpu_custom_call.1} parent=5 // pred_region
        %s429 = ssub.s32 %s26, 1
        %s430 = sand.u32 %s39, 1
        %s431 = scalar_lea.sflag [#allocation3], %s430
        %s432 = sand.u32 %s39, 1
        %s433 = smul.addr %s432, 256
        %s434 = scalar_lea.vmem [#allocation2], %s433
        // Predicated region
        $region65: #{tpu_custom_call.1} parent=63 // pred_check
          %p435 = pneg %p52
        $region66: #{tpu_custom_call.1} parent=63 // pred_check_branch
          %437 = sbr.rel (%p435) target = $region68
        $region67: #{tpu_custom_call.1} parent=63 // pred_region
          %439 = dma.done %s431, 4096
        $region68: #{tpu_custom_call.1} parent=63 // pred_fallthru
          _
        // Predicated region
        $region69: #{tpu_custom_call.1} parent=63 // pred_check
          %p440 = pneg %p73
        $region70: #{tpu_custom_call.1} parent=63 // pred_check_branch
          %442 = sbr.rel (%p440) target = $region72
        $region71: #{tpu_custom_call.1} parent=63 // pred_region
          %444 = dma.done [#allocation6], 5120
        $region72: #{tpu_custom_call.1} parent=63 // pred_fallthru
          _
        // Predicated region
        $region73: #{tpu_custom_call.1} parent=63 // pred_check
          %p445 = pneg %p94
        $region74: #{tpu_custom_call.1} parent=63 // pred_check_branch
          %447 = sbr.rel (%p445) target = $region76
        $region75: #{tpu_custom_call.1} parent=63 // pred_region
          %449 = dma.done [#allocation6], 80
        $region76: #{tpu_custom_call.1} parent=63 // pred_fallthru
          _
        // Predicated region
        $region77: #{tpu_custom_call.1} parent=63 // pred_check
          %p450 = pneg %p115
        $region78: #{tpu_custom_call.1} parent=63 // pred_check_branch
          %452 = sbr.rel (%p450) target = $region80
        $region79: #{tpu_custom_call.1} parent=63 // pred_region
          %454 = dma.done [#allocation9], 5120
        $region80: #{tpu_custom_call.1} parent=63 // pred_fallthru
          _
        // Predicated region
        $region81: #{tpu_custom_call.1} parent=63 // pred_check
          %p455 = pneg %p136
        $region82: #{tpu_custom_call.1} parent=63 // pred_check_branch
          %457 = sbr.rel (%p455) target = $region84
        $region83: #{tpu_custom_call.1} parent=63 // pred_region
          %459 = dma.done [#allocation9], 80
        $region84: #{tpu_custom_call.1} parent=63 // pred_fallthru
          _
        // Predicated region
        $region85: #{tpu_custom_call.1} parent=63 // pred_check
          %p460 = pneg %p157
        $region86: #{tpu_custom_call.1} parent=63 // pred_check_branch
          %462 = sbr.rel (%p460) target = $region88
        $region87: #{tpu_custom_call.1} parent=63 // pred_region
          %464 = dma.done [#allocation12], 5120
        $region88: #{tpu_custom_call.1} parent=63 // pred_fallthru
          _
        // Predicated region
        $region89: #{tpu_custom_call.1} parent=63 // pred_check
          %p465 = pneg %p199
        $region90: #{tpu_custom_call.1} parent=63 // pred_check_branch
          %467 = sbr.rel (%p465) target = $region92
        $region91: #{tpu_custom_call.1} parent=63 // pred_region
          %469 = dma.done [#allocation12], 5120
        $region92: #{tpu_custom_call.1} parent=63 // pred_fallthru
          _
        %s470 = sand.u32 %s39, 1
        %s471 = scalar_lea.sflag [#allocation3], %s470
        %s472 = sand.u32 %s39, 1
        %s473 = smul.addr %s472, 256
        %s474 = scalar_lea.vmem [#allocation2], %s473
        %p475 = pneg %p52
        %p476 = pneg %p49
        %p477 = pneg %p73
        %p478 = pneg %p70
        %p479 = pneg %p94
        %p480 = pneg %p91
        %p481 = pneg %p115
        %p482 = pneg %p112
        %p483 = pneg %p136
        %p484 = pneg %p133
        %p485 = pneg %p157
        %p486 = pneg %p154
        %p487 = pneg %p178
        %p488 = pneg %p175
        %p489 = pneg %p199
        %p490 = pneg %p196
        %p491 = pneg %p220
        %p492 = pneg %p217
        %p493 = pneg %p241
        %p494 = pneg %p238
        %p495 = pneg %p262
        %p496 = pneg %p259
        %p497 = pneg %p288
        %p498 = pneg %p285
        %s499 = sand.u32 %s275, 1
        %s500 = scalar_lea.sflag [#allocation4], %s499
        %s501 = sand.u32 %s275, 1
        %s502 = smul.addr %s501, 512
        %s503 = scalar_lea.vmem [#allocation14], %s502
        %s504 = smul.u32 64, %s31
        %s505 = smul.u32 64, %s31
        %v506 = vld [vmem:[%s434] sm:$0xf]
        %v507 = vld [vmem:[%s434 + $0x4] sm:$0xf]
        %v508 = vld [vmem:[%s434 + $0x8] sm:$0xf]
        %v509 = vld [vmem:[%s434 + $0xc] sm:$0xf]
        %v510 = vld [vmem:[%s434 + $0x10] sm:$0xf]
        %v511 = vld [vmem:[%s434 + $0x14] sm:$0xf]
        %v512 = vld [vmem:[%s434 + $0x18] sm:$0xf]
        %v513 = vld [vmem:[%s434 + $0x1c] sm:$0xf]
        %v514 = vld [vmem:[%s434 + $0x20] sm:$0xf]
        %v515 = vld [vmem:[%s434 + $0x24] sm:$0xf]
        %v516 = vld [vmem:[%s434 + $0x28] sm:$0xf]
        %v517 = vld [vmem:[%s434 + $0x2c] sm:$0xf]
        %v518 = vld [vmem:[%s434 + $0x30] sm:$0xf]
        %v519 = vld [vmem:[%s434 + $0x34] sm:$0xf]
        %v520 = vld [vmem:[%s434 + $0x38] sm:$0xf]
        %v521 = vld [vmem:[%s434 + $0x3c] sm:$0xf]
        %v522 = vld [vmem:[%s434 + $0x40] sm:$0xf]
        %v523 = vld [vmem:[%s434 + $0x44] sm:$0xf]
        %v524 = vld [vmem:[%s434 + $0x48] sm:$0xf]
        %v525 = vld [vmem:[%s434 + $0x4c] sm:$0xf]
        %v526 = vld [vmem:[%s434 + $0x50] sm:$0xf]
        %v527 = vld [vmem:[%s434 + $0x54] sm:$0xf]
        %v528 = vld [vmem:[%s434 + $0x58] sm:$0xf]
        %v529 = vld [vmem:[%s434 + $0x5c] sm:$0xf]
        %v530 = vld [vmem:[%s434 + $0x60] sm:$0xf]
        %v531 = vld [vmem:[%s434 + $0x64] sm:$0xf]
        %v532 = vld [vmem:[%s434 + $0x68] sm:$0xf]
        %v533 = vld [vmem:[%s434 + $0x6c] sm:$0xf]
        %v534 = vld [vmem:[%s434 + $0x70] sm:$0xf]
        %v535 = vld [vmem:[%s434 + $0x74] sm:$0xf]
        %v536 = vld [vmem:[%s434 + $0x78] sm:$0xf]
        %v537 = vld [vmem:[%s434 + $0x7c] sm:$0xf]
        %v538 = vld [vmem:[%s434 + $0x80] sm:$0xf]
        %v539 = vld [vmem:[%s434 + $0x84] sm:$0xf]
        %v540 = vld [vmem:[%s434 + $0x88] sm:$0xf]
        %v541 = vld [vmem:[%s434 + $0x8c] sm:$0xf]
        %v542 = vld [vmem:[%s434 + $0x90] sm:$0xf]
        %v543 = vld [vmem:[%s434 + $0x94] sm:$0xf]
        %v544 = vld [vmem:[%s434 + $0x98] sm:$0xf]
        %v545 = vld [vmem:[%s434 + $0x9c] sm:$0xf]
        %v546 = vld [vmem:[%s434 + $0xa0] sm:$0xf]
        %v547 = vld [vmem:[%s434 + $0xa4] sm:$0xf]
        %v548 = vld [vmem:[%s434 + $0xa8] sm:$0xf]
        %v549 = vld [vmem:[%s434 + $0xac] sm:$0xf]
        %v550 = vld [vmem:[%s434 + $0xb0] sm:$0xf]
        %v551 = vld [vmem:[%s434 + $0xb4] sm:$0xf]
        %v552 = vld [vmem:[%s434 + $0xb8] sm:$0xf]
        %v553 = vld [vmem:[%s434 + $0xbc] sm:$0xf]
        %v554 = vld [vmem:[%s434 + $0xc0] sm:$0xf]
        %v555 = vld [vmem:[%s434 + $0xc4] sm:$0xf]
        %v556 = vld [vmem:[%s434 + $0xc8] sm:$0xf]
        %v557 = vld [vmem:[%s434 + $0xcc] sm:$0xf]
        %v558 = vld [vmem:[%s434 + $0xd0] sm:$0xf]
        %v559 = vld [vmem:[%s434 + $0xd4] sm:$0xf]
        %v560 = vld [vmem:[%s434 + $0xd8] sm:$0xf]
        %v561 = vld [vmem:[%s434 + $0xdc] sm:$0xf]
        %v562 = vld [vmem:[%s434 + $0xe0] sm:$0xf]
        %v563 = vld [vmem:[%s434 + $0xe4] sm:$0xf]
        %v564 = vld [vmem:[%s434 + $0xe8] sm:$0xf]
        %v565 = vld [vmem:[%s434 + $0xec] sm:$0xf]
        %v566 = vld [vmem:[%s434 + $0xf0] sm:$0xf]
        %v567 = vld [vmem:[%s434 + $0xf4] sm:$0xf]
        %v568 = vld [vmem:[%s434 + $0xf8] sm:$0xf]
        %v569 = vld [vmem:[%s434 + $0xfc] sm:$0xf]
        %v570 = vld [vmem:[#allocation5] sm:$0xff]
        %v571 = vld [vmem:[#allocation5 + $0x8] sm:$0xff]
        %v572 = vld [vmem:[#allocation5 + $0x10] sm:$0xf]
        %v573 = vld [vmem:[#allocation5 + $0x14] sm:$0xff]
        %v574 = vld [vmem:[#allocation5 + $0x1c] sm:$0xff]
        %v575 = vld [vmem:[#allocation5 + $0x24] sm:$0xf]
        %v576 = vld [vmem:[#allocation5 + $0x28] sm:$0xff]
        %v577 = vld [vmem:[#allocation5 + $0x30] sm:$0xff]
        %v578 = vld [vmem:[#allocation5 + $0x38] sm:$0xf]
        %v579 = vld [vmem:[#allocation5 + $0x3c] sm:$0xff]
        %v580 = vld [vmem:[#allocation5 + $0x44] sm:$0xff]
        %v581 = vld [vmem:[#allocation5 + $0x4c] sm:$0xf]
        %v582 = vld [vmem:[#allocation5 + $0x50] sm:$0xff]
        %v583 = vld [vmem:[#allocation5 + $0x58] sm:$0xff]
        %v584 = vld [vmem:[#allocation5 + $0x60] sm:$0xf]
        %v585 = vld [vmem:[#allocation5 + $0x64] sm:$0xff]
        %v586 = vld [vmem:[#allocation5 + $0x6c] sm:$0xff]
        %v587 = vld [vmem:[#allocation5 + $0x74] sm:$0xf]
        %v588 = vld [vmem:[#allocation5 + $0x78] sm:$0xff]
        %v589 = vld [vmem:[#allocation5 + $0x80] sm:$0xff]
        %v590 = vld [vmem:[#allocation5 + $0x88] sm:$0xf]
        %v591 = vld [vmem:[#allocation5 + $0x8c] sm:$0xff]
        %v592 = vld [vmem:[#allocation5 + $0x94] sm:$0xff]
        %v593 = vld [vmem:[#allocation5 + $0x9c] sm:$0xf]
        %v594 = vld [vmem:[#allocation5 + $0xa0] sm:$0xff]
        %v595 = vld [vmem:[#allocation5 + $0xa8] sm:$0xff]
        %v596 = vld [vmem:[#allocation5 + $0xb0] sm:$0xf]
        %v597 = vld [vmem:[#allocation5 + $0xb4] sm:$0xff]
        %v598 = vld [vmem:[#allocation5 + $0xbc] sm:$0xff]
        %v599 = vld [vmem:[#allocation5 + $0xc4] sm:$0xf]
        %v600 = vld [vmem:[#allocation5 + $0xc8] sm:$0xff]
        %v601 = vld [vmem:[#allocation5 + $0xd0] sm:$0xff]
        %v602 = vld [vmem:[#allocation5 + $0xd8] sm:$0xf]
        %v603 = vld [vmem:[#allocation5 + $0xdc] sm:$0xff]
        %v604 = vld [vmem:[#allocation5 + $0xe4] sm:$0xff]
        %v605 = vld [vmem:[#allocation5 + $0xec] sm:$0xf]
        %v606 = vld [vmem:[#allocation5 + $0xf0] sm:$0xff]
        %v607 = vld [vmem:[#allocation5 + $0xf8] sm:$0xff]
        %v608 = vld [vmem:[#allocation5 + $0x100] sm:$0xf]
        %v609 = vld [vmem:[#allocation5 + $0x104] sm:$0xff]
        %v610 = vld [vmem:[#allocation5 + $0x10c] sm:$0xff]
        %v611 = vld [vmem:[#allocation5 + $0x114] sm:$0xf]
        %v612 = vld [vmem:[#allocation5 + $0x118] sm:$0xff]
        %v613 = vld [vmem:[#allocation5 + $0x120] sm:$0xff]
        %v614 = vld [vmem:[#allocation5 + $0x128] sm:$0xf]
        %v615 = vld [vmem:[#allocation5 + $0x12c] sm:$0xff]
        %v616 = vld [vmem:[#allocation5 + $0x134] sm:$0xff]
        %v617 = vld [vmem:[#allocation5 + $0x13c] sm:$0xf]
        %v618 = vld [vmem:[#allocation7] sm:$0x1f]
        %v620 = vperm.slane %v618, 0
        %v621 = vperm.slane %v618, 1
        %v622 = vperm.slane %v618, 2
        %v623 = vperm.slane %v618, 3
        %v624 = vperm.slane %v618, 4
        %v694 = vunpack.c.l.b16 %v506
        %v695 = vunpack.c.l.b16 %v507
        %v696 = vunpack.c.l.b16 %v508
        %v697 = vunpack.c.l.b16 %v509
        %v698 = vunpack.c.l.b16 %v510
        %v699 = vunpack.c.l.b16 %v511
        %v700 = vunpack.c.l.b16 %v512
        %v701 = vunpack.c.l.b16 %v513
        %v702 = vunpack.c.l.b16 %v514
        %v703 = vunpack.c.l.b16 %v515
        %v704 = vunpack.c.l.b16 %v516
        %v705 = vunpack.c.l.b16 %v517
        %v706 = vunpack.c.l.b16 %v518
        %v707 = vunpack.c.l.b16 %v519
        %v708 = vunpack.c.l.b16 %v520
        %v709 = vunpack.c.l.b16 %v521
        %v710 = vunpack.c.l.b16 %v522
        %v711 = vunpack.c.l.b16 %v523
        %v712 = vunpack.c.l.b16 %v524
        %v713 = vunpack.c.l.b16 %v525
        %v714 = vunpack.c.l.b16 %v526
        %v715 = vunpack.c.l.b16 %v527
        %v716 = vunpack.c.l.b16 %v528
        %v717 = vunpack.c.l.b16 %v529
        %v718 = vunpack.c.l.b16 %v530
        %v719 = vunpack.c.l.b16 %v531
        %v720 = vunpack.c.l.b16 %v532
        %v721 = vunpack.c.l.b16 %v533
        %v722 = vunpack.c.l.b16 %v534
        %v723 = vunpack.c.l.b16 %v535
        %v724 = vunpack.c.l.b16 %v536
        %v725 = vunpack.c.l.b16 %v537
        %v726 = vunpack.c.l.b16 %v538
        %v727 = vunpack.c.l.b16 %v539
        %v728 = vunpack.c.l.b16 %v540
        %v729 = vunpack.c.l.b16 %v541
        %v730 = vunpack.c.l.b16 %v542
        %v731 = vunpack.c.l.b16 %v543
        %v732 = vunpack.c.l.b16 %v544
        %v733 = vunpack.c.l.b16 %v545
        %v734 = vunpack.c.l.b16 %v546
        %v735 = vunpack.c.l.b16 %v547
        %v736 = vunpack.c.l.b16 %v548
        %v737 = vunpack.c.l.b16 %v549
        %v738 = vunpack.c.l.b16 %v550
        %v739 = vunpack.c.l.b16 %v551
        %v740 = vunpack.c.l.b16 %v552
        %v741 = vunpack.c.l.b16 %v553
        %v742 = vunpack.c.l.b16 %v554
        %v743 = vunpack.c.l.b16 %v555
        %v744 = vunpack.c.l.b16 %v556
        %v745 = vunpack.c.l.b16 %v557
        %v746 = vunpack.c.l.b16 %v558
        %v747 = vunpack.c.l.b16 %v559
        %v748 = vunpack.c.l.b16 %v560
        %v749 = vunpack.c.l.b16 %v561
        %v750 = vunpack.c.l.b16 %v562
        %v751 = vunpack.c.l.b16 %v563
        %v752 = vunpack.c.l.b16 %v564
        %v753 = vunpack.c.l.b16 %v565
        %v754 = vunpack.c.l.b16 %v566
        %v755 = vunpack.c.l.b16 %v567
        %v756 = vunpack.c.l.b16 %v568
        %v757 = vunpack.c.l.b16 %v569
        %v758 = vpack.c.b16 %v695, %v694
        %v759 = vpack.c.b16 %v697, %v696
        %v760 = vpack.c.b16 %v699, %v698
        %v761 = vpack.c.b16 %v701, %v700
        %v762 = vpack.c.b16 %v703, %v702
        %v763 = vpack.c.b16 %v705, %v704
        %v764 = vpack.c.b16 %v707, %v706
        %v765 = vpack.c.b16 %v709, %v708
        %v766 = vpack.c.b16 %v711, %v710
        %v767 = vpack.c.b16 %v713, %v712
        %v768 = vpack.c.b16 %v715, %v714
        %v769 = vpack.c.b16 %v717, %v716
        %v770 = vpack.c.b16 %v719, %v718
        %v771 = vpack.c.b16 %v721, %v720
        %v772 = vpack.c.b16 %v723, %v722
        %v773 = vpack.c.b16 %v725, %v724
        %v774 = vpack.c.b16 %v727, %v726
        %v775 = vpack.c.b16 %v729, %v728
        %v776 = vpack.c.b16 %v731, %v730
        %v777 = vpack.c.b16 %v733, %v732
        %v778 = vpack.c.b16 %v735, %v734
        %v779 = vpack.c.b16 %v737, %v736
        %v780 = vpack.c.b16 %v739, %v738
        %v781 = vpack.c.b16 %v741, %v740
        %v782 = vpack.c.b16 %v743, %v742
        %v783 = vpack.c.b16 %v745, %v744
        %v784 = vpack.c.b16 %v747, %v746
        %v785 = vpack.c.b16 %v749, %v748
        %v786 = vpack.c.b16 %v751, %v750
        %v787 = vpack.c.b16 %v753, %v752
        %v788 = vpack.c.b16 %v755, %v754
        %v789 = vpack.c.b16 %v757, %v756
        %v870 = vunpack.c.l.b16 %v570
        %v871 = vunpack.c.h.b16 %v570
        %v872 = vunpack.c.l.b16 %v571
        %v873 = vunpack.c.h.b16 %v571
        %v874 = vunpack.c.l.b16 %v572
        %v875 = vunpack.c.l.b16 %v573
        %v876 = vunpack.c.h.b16 %v573
        %v877 = vunpack.c.l.b16 %v574
        %v878 = vunpack.c.h.b16 %v574
        %v879 = vunpack.c.l.b16 %v575
        %v880 = vunpack.c.l.b16 %v576
        %v881 = vunpack.c.h.b16 %v576
        %v882 = vunpack.c.l.b16 %v577
        %v883 = vunpack.c.h.b16 %v577
        %v884 = vunpack.c.l.b16 %v578
        %v885 = vunpack.c.l.b16 %v579
        %v886 = vunpack.c.h.b16 %v579
        %v887 = vunpack.c.l.b16 %v580
        %v888 = vunpack.c.h.b16 %v580
        %v889 = vunpack.c.l.b16 %v581
        %v890 = vunpack.c.l.b16 %v582
        %v891 = vunpack.c.h.b16 %v582
        %v892 = vunpack.c.l.b16 %v583
        %v893 = vunpack.c.h.b16 %v583
        %v894 = vunpack.c.l.b16 %v584
        %v895 = vunpack.c.l.b16 %v585
        %v896 = vunpack.c.h.b16 %v585
        %v897 = vunpack.c.l.b16 %v586
        %v898 = vunpack.c.h.b16 %v586
        %v899 = vunpack.c.l.b16 %v587
        %v900 = vunpack.c.l.b16 %v588
        %v901 = vunpack.c.h.b16 %v588
        %v902 = vunpack.c.l.b16 %v589
        %v903 = vunpack.c.h.b16 %v589
        %v904 = vunpack.c.l.b16 %v590
        %v905 = vunpack.c.l.b16 %v591
        %v906 = vunpack.c.h.b16 %v591
        %v907 = vunpack.c.l.b16 %v592
        %v908 = vunpack.c.h.b16 %v592
        %v909 = vunpack.c.l.b16 %v593
        %v910 = vunpack.c.l.b16 %v594
        %v911 = vunpack.c.h.b16 %v594
        %v912 = vunpack.c.l.b16 %v595
        %v913 = vunpack.c.h.b16 %v595
        %v914 = vunpack.c.l.b16 %v596
        %v915 = vunpack.c.l.b16 %v597
        %v916 = vunpack.c.h.b16 %v597
        %v917 = vunpack.c.l.b16 %v598
        %v918 = vunpack.c.h.b16 %v598
        %v919 = vunpack.c.l.b16 %v599
        %v920 = vunpack.c.l.b16 %v600
        %v921 = vunpack.c.h.b16 %v600
        %v922 = vunpack.c.l.b16 %v601
        %v923 = vunpack.c.h.b16 %v601
        %v924 = vunpack.c.l.b16 %v602
        %v925 = vunpack.c.l.b16 %v603
        %v926 = vunpack.c.h.b16 %v603
        %v927 = vunpack.c.l.b16 %v604
        %v928 = vunpack.c.h.b16 %v604
        %v929 = vunpack.c.l.b16 %v605
        %v930 = vunpack.c.l.b16 %v606
        %v931 = vunpack.c.h.b16 %v606
        %v932 = vunpack.c.l.b16 %v607
        %v933 = vunpack.c.h.b16 %v607
        %v934 = vunpack.c.l.b16 %v608
        %v935 = vunpack.c.l.b16 %v609
        %v936 = vunpack.c.h.b16 %v609
        %v937 = vunpack.c.l.b16 %v610
        %v938 = vunpack.c.h.b16 %v610
        %v939 = vunpack.c.l.b16 %v611
        %v940 = vunpack.c.l.b16 %v612
        %v941 = vunpack.c.h.b16 %v612
        %v942 = vunpack.c.l.b16 %v613
        %v943 = vunpack.c.h.b16 %v613
        %v944 = vunpack.c.l.b16 %v614
        %v945 = vunpack.c.l.b16 %v615
        %v946 = vunpack.c.h.b16 %v615
        %v947 = vunpack.c.l.b16 %v616
        %v948 = vunpack.c.h.b16 %v616
        %v949 = vunpack.c.l.b16 %v617
        %v950 = vpack.c.b16 %v875, %v870
        %v951 = vpack.c.b16 %v876, %v871
        %v952 = vpack.c.b16 %v877, %v872
        %v953 = vpack.c.b16 %v878, %v873
        %v954 = vpack.c.b16 %v879, %v874
        %v955 = vpack.c.b16 %v885, %v880
        %v956 = vpack.c.b16 %v886, %v881
        %v957 = vpack.c.b16 %v887, %v882
        %v958 = vpack.c.b16 %v888, %v883
        %v959 = vpack.c.b16 %v889, %v884
        %v960 = vpack.c.b16 %v895, %v890
        %v961 = vpack.c.b16 %v896, %v891
        %v962 = vpack.c.b16 %v897, %v892
        %v963 = vpack.c.b16 %v898, %v893
        %v964 = vpack.c.b16 %v899, %v894
        %v965 = vpack.c.b16 %v905, %v900
        %v966 = vpack.c.b16 %v906, %v901
        %v967 = vpack.c.b16 %v907, %v902
        %v968 = vpack.c.b16 %v908, %v903
        %v969 = vpack.c.b16 %v909, %v904
        %v970 = vpack.c.b16 %v915, %v910
        %v971 = vpack.c.b16 %v916, %v911
        %v972 = vpack.c.b16 %v917, %v912
        %v973 = vpack.c.b16 %v918, %v913
        %v974 = vpack.c.b16 %v919, %v914
        %v975 = vpack.c.b16 %v925, %v920
        %v976 = vpack.c.b16 %v926, %v921
        %v977 = vpack.c.b16 %v927, %v922
        %v978 = vpack.c.b16 %v928, %v923
        %v979 = vpack.c.b16 %v929, %v924
        %v980 = vpack.c.b16 %v935, %v930
        %v981 = vpack.c.b16 %v936, %v931
        %v982 = vpack.c.b16 %v937, %v932
        %v983 = vpack.c.b16 %v938, %v933
        %v984 = vpack.c.b16 %v939, %v934
        %v985 = vpack.c.b16 %v945, %v940
        %v986 = vpack.c.b16 %v946, %v941
        %v987 = vpack.c.b16 %v947, %v942
        %v988 = vpack.c.b16 %v948, %v943
        %v989 = vpack.c.b16 %v949, %v944
        %1030 = vmatpush.bf16.msra.mxu0 %v985
        %1031 = vmatpush.bf16.msra.mxu0 %v980
        %1032 = vmatpush.bf16.msra.mxu0 %v975
        %1033 = vmatpush.bf16.msra.mxu0 %v970
        %1034 = vmatpush.bf16.msra.mxu0 %v965
        %1035 = vmatpush.bf16.msra.mxu0 %v960
        %1036 = vmatpush.bf16.msra.mxu0 %v955
        %1037 = vmatpush.bf16.msra.mxu0 %v950
        %1038 = vmatmul.bf16.gmra.mxu0 %v758
        %v1039 = vpop.f32.mrf.mxu0
        %v1040 = vadd.f32 %v620, %v1039
        %v1041 = vpop.f32.mrf.mxu0
        %v1042 = vadd.f32 %v620, %v1041
        %1043 = vmatmul.bf16.gmra.mxu0 %v759
        %v1044 = vpop.f32.mrf.mxu0
        %v1045 = vadd.f32 %v620, %v1044
        %v1046 = vpop.f32.mrf.mxu0
        %v1047 = vadd.f32 %v620, %v1046
        %1048 = vmatmul.bf16.gmra.mxu0 %v760
        %v1049 = vpop.f32.mrf.mxu0
        %v1050 = vadd.f32 %v620, %v1049
        %v1051 = vpop.f32.mrf.mxu0
        %v1052 = vadd.f32 %v620, %v1051
        %1053 = vmatmul.bf16.gmra.mxu0 %v761
        %v1054 = vpop.f32.mrf.mxu0
        %v1055 = vadd.f32 %v620, %v1054
        %v1056 = vpop.f32.mrf.mxu0
        %v1057 = vadd.f32 %v620, %v1056
        %1058 = vmatmul.bf16.gmra.mxu0 %v762
        %v1059 = vpop.f32.mrf.mxu0
        %v1060 = vadd.f32 %v620, %v1059
        %v1061 = vpop.f32.mrf.mxu0
        %v1062 = vadd.f32 %v620, %v1061
        %1063 = vmatmul.bf16.gmra.mxu0 %v763
        %v1064 = vpop.f32.mrf.mxu0
        %v1065 = vadd.f32 %v620, %v1064
        %v1066 = vpop.f32.mrf.mxu0
        %v1067 = vadd.f32 %v620, %v1066
        %1068 = vmatmul.bf16.gmra.mxu0 %v764
        %v1069 = vpop.f32.mrf.mxu0
        %v1070 = vadd.f32 %v620, %v1069
        %v1071 = vpop.f32.mrf.mxu0
        %v1072 = vadd.f32 %v620, %v1071
        %1073 = vmatmul.bf16.gmra.mxu0 %v765
        %v1074 = vpop.f32.mrf.mxu0
        %v1075 = vadd.f32 %v620, %v1074
        %v1076 = vpop.f32.mrf.mxu0
        %v1077 = vadd.f32 %v620, %v1076
        %1078 = vmatmul.bf16.gmra.mxu0 %v766
        %v1079 = vpop.f32.mrf.mxu0
        %v1080 = vadd.f32 %v620, %v1079
        %v1081 = vpop.f32.mrf.mxu0
        %v1082 = vadd.f32 %v620, %v1081
        %1083 = vmatmul.bf16.gmra.mxu0 %v767
        %v1084 = vpop.f32.mrf.mxu0
        %v1085 = vadd.f32 %v620, %v1084
        %v1086 = vpop.f32.mrf.mxu0
        %v1087 = vadd.f32 %v620, %v1086
        %1088 = vmatmul.bf16.gmra.mxu0 %v768
        %v1089 = vpop.f32.mrf.mxu0
        %v1090 = vadd.f32 %v620, %v1089
        %v1091 = vpop.f32.mrf.mxu0
        %v1092 = vadd.f32 %v620, %v1091
        %1093 = vmatmul.bf16.gmra.mxu0 %v769
        %v1094 = vpop.f32.mrf.mxu0
        %v1095 = vadd.f32 %v620, %v1094
        %v1096 = vpop.f32.mrf.mxu0
        %v1097 = vadd.f32 %v620, %v1096
        %1098 = vmatmul.bf16.gmra.mxu0 %v770
        %v1099 = vpop.f32.mrf.mxu0
        %v1100 = vadd.f32 %v620, %v1099
        %v1101 = vpop.f32.mrf.mxu0
        %v1102 = vadd.f32 %v620, %v1101
        %1103 = vmatmul.bf16.gmra.mxu0 %v771
        %v1104 = vpop.f32.mrf.mxu0
        %v1105 = vadd.f32 %v620, %v1104
        %v1106 = vpop.f32.mrf.mxu0
        %v1107 = vadd.f32 %v620, %v1106
        %1108 = vmatmul.bf16.gmra.mxu0 %v772
        %v1109 = vpop.f32.mrf.mxu0
        %v1110 = vadd.f32 %v620, %v1109
        %v1111 = vpop.f32.mrf.mxu0
        %v1112 = vadd.f32 %v620, %v1111
        %1113 = vmatmul.bf16.gmra.mxu0 %v773
        %v1114 = vpop.f32.mrf.mxu0
        %v1115 = vadd.f32 %v620, %v1114
        %v1116 = vpop.f32.mrf.mxu0
        %v1117 = vadd.f32 %v620, %v1116
        %1118 = vmatmul.bf16.gmra.mxu0 %v774
        %v1119 = vpop.f32.mrf.mxu0
        %v1120 = vadd.f32 %v620, %v1119
        %v1121 = vpop.f32.mrf.mxu0
        %v1122 = vadd.f32 %v620, %v1121
        %1123 = vmatmul.bf16.gmra.mxu0 %v775
        %v1124 = vpop.f32.mrf.mxu0
        %v1125 = vadd.f32 %v620, %v1124
        %v1126 = vpop.f32.mrf.mxu0
        %v1127 = vadd.f32 %v620, %v1126
        %1128 = vmatmul.bf16.gmra.mxu0 %v776
        %v1129 = vpop.f32.mrf.mxu0
        %v1130 = vadd.f32 %v620, %v1129
        %v1131 = vpop.f32.mrf.mxu0
        %v1132 = vadd.f32 %v620, %v1131
        %1133 = vmatmul.bf16.gmra.mxu0 %v777
        %v1134 = vpop.f32.mrf.mxu0
        %v1135 = vadd.f32 %v620, %v1134
        %v1136 = vpop.f32.mrf.mxu0
        %v1137 = vadd.f32 %v620, %v1136
        %1138 = vmatmul.bf16.gmra.mxu0 %v778
        %v1139 = vpop.f32.mrf.mxu0
        %v1140 = vadd.f32 %v620, %v1139
        %v1141 = vpop.f32.mrf.mxu0
        %v1142 = vadd.f32 %v620, %v1141
        %1143 = vmatmul.bf16.gmra.mxu0 %v779
        %v1144 = vpop.f32.mrf.mxu0
        %v1145 = vadd.f32 %v620, %v1144
        %v1146 = vpop.f32.mrf.mxu0
        %v1147 = vadd.f32 %v620, %v1146
        %1148 = vmatmul.bf16.gmra.mxu0 %v780
        %v1149 = vpop.f32.mrf.mxu0
        %v1150 = vadd.f32 %v620, %v1149
        %v1151 = vpop.f32.mrf.mxu0
        %v1152 = vadd.f32 %v620, %v1151
        %1153 = vmatmul.bf16.gmra.mxu0 %v781
        %v1154 = vpop.f32.mrf.mxu0
        %v1155 = vadd.f32 %v620, %v1154
        %v1156 = vpop.f32.mrf.mxu0
        %v1157 = vadd.f32 %v620, %v1156
        %1158 = vmatmul.bf16.gmra.mxu0 %v782
        %v1159 = vpop.f32.mrf.mxu0
        %v1160 = vadd.f32 %v620, %v1159
        %v1161 = vpop.f32.mrf.mxu0
        %v1162 = vadd.f32 %v620, %v1161
        %1163 = vmatmul.bf16.gmra.mxu0 %v783
        %v1164 = vpop.f32.mrf.mxu0
        %v1165 = vadd.f32 %v620, %v1164
        %v1166 = vpop.f32.mrf.mxu0
        %v1167 = vadd.f32 %v620, %v1166
        %1168 = vmatmul.bf16.gmra.mxu0 %v784
        %v1169 = vpop.f32.mrf.mxu0
        %v1170 = vadd.f32 %v620, %v1169
        %v1171 = vpop.f32.mrf.mxu0
        %v1172 = vadd.f32 %v620, %v1171
        %1173 = vmatmul.bf16.gmra.mxu0 %v785
        %v1174 = vpop.f32.mrf.mxu0
        %v1175 = vadd.f32 %v620, %v1174
        %v1176 = vpop.f32.mrf.mxu0
        %v1177 = vadd.f32 %v620, %v1176
        %1178 = vmatmul.bf16.gmra.mxu0 %v786
        %v1179 = vpop.f32.mrf.mxu0
        %v1180 = vadd.f32 %v620, %v1179
        %v1181 = vpop.f32.mrf.mxu0
        %v1182 = vadd.f32 %v620, %v1181
        %1183 = vmatmul.bf16.gmra.mxu0 %v787
        %v1184 = vpop.f32.mrf.mxu0
        %v1185 = vadd.f32 %v620, %v1184
        %v1186 = vpop.f32.mrf.mxu0
        %v1187 = vadd.f32 %v620, %v1186
        %1188 = vmatmul.bf16.gmra.mxu0 %v788
        %v1189 = vpop.f32.mrf.mxu0
        %v1190 = vadd.f32 %v620, %v1189
        %v1191 = vpop.f32.mrf.mxu0
        %v1192 = vadd.f32 %v620, %v1191
        %1193 = vmatmul.bf16.gmra.mxu0 %v789
        %v1194 = vpop.f32.mrf.mxu0
        %v1195 = vadd.f32 %v620, %v1194
        %v1196 = vpop.f32.mrf.mxu0
        %v1197 = vadd.f32 %v620, %v1196
        %1198 = vdwg.mxu0
        %1199 = vmatpush.bf16.msra.mxu0 %v986
        %1200 = vmatpush.bf16.msra.mxu0 %v981
        %1201 = vmatpush.bf16.msra.mxu0 %v976
        %1202 = vmatpush.bf16.msra.mxu0 %v971
        %1203 = vmatpush.bf16.msra.mxu0 %v966
        %1204 = vmatpush.bf16.msra.mxu0 %v961
        %1205 = vmatpush.bf16.msra.mxu0 %v956
        %1206 = vmatpush.bf16.msra.mxu0 %v951
        %1207 = vmatmul.bf16.gmra.mxu0 %v758
        %v1208 = vpop.f32.mrf.mxu0
        %v1209 = vadd.f32 %v621, %v1208
        %v1210 = vpop.f32.mrf.mxu0
        %v1211 = vadd.f32 %v621, %v1210
        %1212 = vmatmul.bf16.gmra.mxu0 %v759
        %v1213 = vpop.f32.mrf.mxu0
        %v1214 = vadd.f32 %v621, %v1213
        %v1215 = vpop.f32.mrf.mxu0
        %v1216 = vadd.f32 %v621, %v1215
        %1217 = vmatmul.bf16.gmra.mxu0 %v760
        %v1218 = vpop.f32.mrf.mxu0
        %v1219 = vadd.f32 %v621, %v1218
        %v1220 = vpop.f32.mrf.mxu0
        %v1221 = vadd.f32 %v621, %v1220
        %1222 = vmatmul.bf16.gmra.mxu0 %v761
        %v1223 = vpop.f32.mrf.mxu0
        %v1224 = vadd.f32 %v621, %v1223
        %v1225 = vpop.f32.mrf.mxu0
        %v1226 = vadd.f32 %v621, %v1225
        %1227 = vmatmul.bf16.gmra.mxu0 %v762
        %v1228 = vpop.f32.mrf.mxu0
        %v1229 = vadd.f32 %v621, %v1228
        %v1230 = vpop.f32.mrf.mxu0
        %v1231 = vadd.f32 %v621, %v1230
        %1232 = vmatmul.bf16.gmra.mxu0 %v763
        %v1233 = vpop.f32.mrf.mxu0
        %v1234 = vadd.f32 %v621, %v1233
        %v1235 = vpop.f32.mrf.mxu0
        %v1236 = vadd.f32 %v621, %v1235
        %1237 = vmatmul.bf16.gmra.mxu0 %v764
        %v1238 = vpop.f32.mrf.mxu0
        %v1239 = vadd.f32 %v621, %v1238
        %v1240 = vpop.f32.mrf.mxu0
        %v1241 = vadd.f32 %v621, %v1240
        %1242 = vmatmul.bf16.gmra.mxu0 %v765
        %v1243 = vpop.f32.mrf.mxu0
        %v1244 = vadd.f32 %v621, %v1243
        %v1245 = vpop.f32.mrf.mxu0
        %v1246 = vadd.f32 %v621, %v1245
        %1247 = vmatmul.bf16.gmra.mxu0 %v766
        %v1248 = vpop.f32.mrf.mxu0
        %v1249 = vadd.f32 %v621, %v1248
        %v1250 = vpop.f32.mrf.mxu0
        %v1251 = vadd.f32 %v621, %v1250
        %1252 = vmatmul.bf16.gmra.mxu0 %v767
        %v1253 = vpop.f32.mrf.mxu0
        %v1254 = vadd.f32 %v621, %v1253
        %v1255 = vpop.f32.mrf.mxu0
        %v1256 = vadd.f32 %v621, %v1255
        %1257 = vmatmul.bf16.gmra.mxu0 %v768
        %v1258 = vpop.f32.mrf.mxu0
        %v1259 = vadd.f32 %v621, %v1258
        %v1260 = vpop.f32.mrf.mxu0
        %v1261 = vadd.f32 %v621, %v1260
        %1262 = vmatmul.bf16.gmra.mxu0 %v769
        %v1263 = vpop.f32.mrf.mxu0
        %v1264 = vadd.f32 %v621, %v1263
        %v1265 = vpop.f32.mrf.mxu0
        %v1266 = vadd.f32 %v621, %v1265
        %1267 = vmatmul.bf16.gmra.mxu0 %v770
        %v1268 = vpop.f32.mrf.mxu0
        %v1269 = vadd.f32 %v621, %v1268
        %v1270 = vpop.f32.mrf.mxu0
        %v1271 = vadd.f32 %v621, %v1270
        %1272 = vmatmul.bf16.gmra.mxu0 %v771
        %v1273 = vpop.f32.mrf.mxu0
        %v1274 = vadd.f32 %v621, %v1273
        %v1275 = vpop.f32.mrf.mxu0
        %v1276 = vadd.f32 %v621, %v1275
        %1277 = vmatmul.bf16.gmra.mxu0 %v772
        %v1278 = vpop.f32.mrf.mxu0
        %v1279 = vadd.f32 %v621, %v1278
        %v1280 = vpop.f32.mrf.mxu0
        %v1281 = vadd.f32 %v621, %v1280
        %1282 = vmatmul.bf16.gmra.mxu0 %v773
        %v1283 = vpop.f32.mrf.mxu0
        %v1284 = vadd.f32 %v621, %v1283
        %v1285 = vpop.f32.mrf.mxu0
        %v1286 = vadd.f32 %v621, %v1285
        %1287 = vmatmul.bf16.gmra.mxu0 %v774
        %v1288 = vpop.f32.mrf.mxu0
        %v1289 = vadd.f32 %v621, %v1288
        %v1290 = vpop.f32.mrf.mxu0
        %v1291 = vadd.f32 %v621, %v1290
        %1292 = vmatmul.bf16.gmra.mxu0 %v775
        %v1293 = vpop.f32.mrf.mxu0
        %v1294 = vadd.f32 %v621, %v1293
        %v1295 = vpop.f32.mrf.mxu0
        %v1296 = vadd.f32 %v621, %v1295
        %1297 = vmatmul.bf16.gmra.mxu0 %v776
        %v1298 = vpop.f32.mrf.mxu0
        %v1299 = vadd.f32 %v621, %v1298
        %v1300 = vpop.f32.mrf.mxu0
        %v1301 = vadd.f32 %v621, %v1300
        %1302 = vmatmul.bf16.gmra.mxu0 %v777
        %v1303 = vpop.f32.mrf.mxu0
        %v1304 = vadd.f32 %v621, %v1303
        %v1305 = vpop.f32.mrf.mxu0
        %v1306 = vadd.f32 %v621, %v1305
        %1307 = vmatmul.bf16.gmra.mxu0 %v778
        %v1308 = vpop.f32.mrf.mxu0
        %v1309 = vadd.f32 %v621, %v1308
        %v1310 = vpop.f32.mrf.mxu0
        %v1311 = vadd.f32 %v621, %v1310
        %1312 = vmatmul.bf16.gmra.mxu0 %v779
        %v1313 = vpop.f32.mrf.mxu0
        %v1314 = vadd.f32 %v621, %v1313
        %v1315 = vpop.f32.mrf.mxu0
        %v1316 = vadd.f32 %v621, %v1315
        %1317 = vmatmul.bf16.gmra.mxu0 %v780
        %v1318 = vpop.f32.mrf.mxu0
        %v1319 = vadd.f32 %v621, %v1318
        %v1320 = vpop.f32.mrf.mxu0
        %v1321 = vadd.f32 %v621, %v1320
        %1322 = vmatmul.bf16.gmra.mxu0 %v781
        %v1323 = vpop.f32.mrf.mxu0
        %v1324 = vadd.f32 %v621, %v1323
        %v1325 = vpop.f32.mrf.mxu0
        %v1326 = vadd.f32 %v621, %v1325
        %1327 = vmatmul.bf16.gmra.mxu0 %v782
        %v1328 = vpop.f32.mrf.mxu0
        %v1329 = vadd.f32 %v621, %v1328
        %v1330 = vpop.f32.mrf.mxu0
        %v1331 = vadd.f32 %v621, %v1330
        %1332 = vmatmul.bf16.gmra.mxu0 %v783
        %v1333 = vpop.f32.mrf.mxu0
        %v1334 = vadd.f32 %v621, %v1333
        %v1335 = vpop.f32.mrf.mxu0
        %v1336 = vadd.f32 %v621, %v1335
        %1337 = vmatmul.bf16.gmra.mxu0 %v784
        %v1338 = vpop.f32.mrf.mxu0
        %v1339 = vadd.f32 %v621, %v1338
        %v1340 = vpop.f32.mrf.mxu0
        %v1341 = vadd.f32 %v621, %v1340
        %1342 = vmatmul.bf16.gmra.mxu0 %v785
        %v1343 = vpop.f32.mrf.mxu0
        %v1344 = vadd.f32 %v621, %v1343
        %v1345 = vpop.f32.mrf.mxu0
        %v1346 = vadd.f32 %v621, %v1345
        %1347 = vmatmul.bf16.gmra.mxu0 %v786
        %v1348 = vpop.f32.mrf.mxu0
        %v1349 = vadd.f32 %v621, %v1348
        %v1350 = vpop.f32.mrf.mxu0
        %v1351 = vadd.f32 %v621, %v1350
        %1352 = vmatmul.bf16.gmra.mxu0 %v787
        %v1353 = vpop.f32.mrf.mxu0
        %v1354 = vadd.f32 %v621, %v1353
        %v1355 = vpop.f32.mrf.mxu0
        %v1356 = vadd.f32 %v621, %v1355
        %1357 = vmatmul.bf16.gmra.mxu0 %v788
        %v1358 = vpop.f32.mrf.mxu0
        %v1359 = vadd.f32 %v621, %v1358
        %v1360 = vpop.f32.mrf.mxu0
        %v1361 = vadd.f32 %v621, %v1360
        %1362 = vmatmul.bf16.gmra.mxu0 %v789
        %v1363 = vpop.f32.mrf.mxu0
        %v1364 = vadd.f32 %v621, %v1363
        %v1365 = vpop.f32.mrf.mxu0
        %v1366 = vadd.f32 %v621, %v1365
        %1367 = vdwg.mxu0
        %1368 = vmatpush.bf16.msra.mxu0 %v987
        %1369 = vmatpush.bf16.msra.mxu0 %v982
        %1370 = vmatpush.bf16.msra.mxu0 %v977
        %1371 = vmatpush.bf16.msra.mxu0 %v972
        %1372 = vmatpush.bf16.msra.mxu0 %v967
        %1373 = vmatpush.bf16.msra.mxu0 %v962
        %1374 = vmatpush.bf16.msra.mxu0 %v957
        %1375 = vmatpush.bf16.msra.mxu0 %v952
        %1376 = vmatmul.bf16.gmra.mxu0 %v758
        %v1377 = vpop.f32.mrf.mxu0
        %v1378 = vadd.f32 %v622, %v1377
        %v1379 = vpop.f32.mrf.mxu0
        %v1380 = vadd.f32 %v622, %v1379
        %1381 = vmatmul.bf16.gmra.mxu0 %v759
        %v1382 = vpop.f32.mrf.mxu0
        %v1383 = vadd.f32 %v622, %v1382
        %v1384 = vpop.f32.mrf.mxu0
        %v1385 = vadd.f32 %v622, %v1384
        %1386 = vmatmul.bf16.gmra.mxu0 %v760
        %v1387 = vpop.f32.mrf.mxu0
        %v1388 = vadd.f32 %v622, %v1387
        %v1389 = vpop.f32.mrf.mxu0
        %v1390 = vadd.f32 %v622, %v1389
        %1391 = vmatmul.bf16.gmra.mxu0 %v761
        %v1392 = vpop.f32.mrf.mxu0
        %v1393 = vadd.f32 %v622, %v1392
        %v1394 = vpop.f32.mrf.mxu0
        %v1395 = vadd.f32 %v622, %v1394
        %1396 = vmatmul.bf16.gmra.mxu0 %v762
        %v1397 = vpop.f32.mrf.mxu0
        %v1398 = vadd.f32 %v622, %v1397
        %v1399 = vpop.f32.mrf.mxu0
        %v1400 = vadd.f32 %v622, %v1399
        %1401 = vmatmul.bf16.gmra.mxu0 %v763
        %v1402 = vpop.f32.mrf.mxu0
        %v1403 = vadd.f32 %v622, %v1402
        %v1404 = vpop.f32.mrf.mxu0
        %v1405 = vadd.f32 %v622, %v1404
        %1406 = vmatmul.bf16.gmra.mxu0 %v764
        %v1407 = vpop.f32.mrf.mxu0
        %v1408 = vadd.f32 %v622, %v1407
        %v1409 = vpop.f32.mrf.mxu0
        %v1410 = vadd.f32 %v622, %v1409
        %1411 = vmatmul.bf16.gmra.mxu0 %v765
        %v1412 = vpop.f32.mrf.mxu0
        %v1413 = vadd.f32 %v622, %v1412
        %v1414 = vpop.f32.mrf.mxu0
        %v1415 = vadd.f32 %v622, %v1414
        %1416 = vmatmul.bf16.gmra.mxu0 %v766
        %v1417 = vpop.f32.mrf.mxu0
        %v1418 = vadd.f32 %v622, %v1417
        %v1419 = vpop.f32.mrf.mxu0
        %v1420 = vadd.f32 %v622, %v1419
        %1421 = vmatmul.bf16.gmra.mxu0 %v767
        %v1422 = vpop.f32.mrf.mxu0
        %v1423 = vadd.f32 %v622, %v1422
        %v1424 = vpop.f32.mrf.mxu0
        %v1425 = vadd.f32 %v622, %v1424
        %1426 = vmatmul.bf16.gmra.mxu0 %v768
        %v1427 = vpop.f32.mrf.mxu0
        %v1428 = vadd.f32 %v622, %v1427
        %v1429 = vpop.f32.mrf.mxu0
        %v1430 = vadd.f32 %v622, %v1429
        %1431 = vmatmul.bf16.gmra.mxu0 %v769
        %v1432 = vpop.f32.mrf.mxu0
        %v1433 = vadd.f32 %v622, %v1432
        %v1434 = vpop.f32.mrf.mxu0
        %v1435 = vadd.f32 %v622, %v1434
        %1436 = vmatmul.bf16.gmra.mxu0 %v770
        %v1437 = vpop.f32.mrf.mxu0
        %v1438 = vadd.f32 %v622, %v1437
        %v1439 = vpop.f32.mrf.mxu0
        %v1440 = vadd.f32 %v622, %v1439
        %1441 = vmatmul.bf16.gmra.mxu0 %v771
        %v1442 = vpop.f32.mrf.mxu0
        %v1443 = vadd.f32 %v622, %v1442
        %v1444 = vpop.f32.mrf.mxu0
        %v1445 = vadd.f32 %v622, %v1444
        %1446 = vmatmul.bf16.gmra.mxu0 %v772
        %v1447 = vpop.f32.mrf.mxu0
        %v1448 = vadd.f32 %v622, %v1447
        %v1449 = vpop.f32.mrf.mxu0
        %v1450 = vadd.f32 %v622, %v1449
        %1451 = vmatmul.bf16.gmra.mxu0 %v773
        %v1452 = vpop.f32.mrf.mxu0
        %v1453 = vadd.f32 %v622, %v1452
        %v1454 = vpop.f32.mrf.mxu0
        %v1455 = vadd.f32 %v622, %v1454
        %1456 = vmatmul.bf16.gmra.mxu0 %v774
        %v1457 = vpop.f32.mrf.mxu0
        %v1458 = vadd.f32 %v622, %v1457
        %v1459 = vpop.f32.mrf.mxu0
        %v1460 = vadd.f32 %v622, %v1459
        %1461 = vmatmul.bf16.gmra.mxu0 %v775
        %v1462 = vpop.f32.mrf.mxu0
        %v1463 = vadd.f32 %v622, %v1462
        %v1464 = vpop.f32.mrf.mxu0
        %v1465 = vadd.f32 %v622, %v1464
        %1466 = vmatmul.bf16.gmra.mxu0 %v776
        %v1467 = vpop.f32.mrf.mxu0
        %v1468 = vadd.f32 %v622, %v1467
        %v1469 = vpop.f32.mrf.mxu0
        %v1470 = vadd.f32 %v622, %v1469
        %1471 = vmatmul.bf16.gmra.mxu0 %v777
        %v1472 = vpop.f32.mrf.mxu0
        %v1473 = vadd.f32 %v622, %v1472
        %v1474 = vpop.f32.mrf.mxu0
        %v1475 = vadd.f32 %v622, %v1474
        %1476 = vmatmul.bf16.gmra.mxu0 %v778
        %v1477 = vpop.f32.mrf.mxu0
        %v1478 = vadd.f32 %v622, %v1477
        %v1479 = vpop.f32.mrf.mxu0
        %v1480 = vadd.f32 %v622, %v1479
        %1481 = vmatmul.bf16.gmra.mxu0 %v779
        %v1482 = vpop.f32.mrf.mxu0
        %v1483 = vadd.f32 %v622, %v1482
        %v1484 = vpop.f32.mrf.mxu0
        %v1485 = vadd.f32 %v622, %v1484
        %1486 = vmatmul.bf16.gmra.mxu0 %v780
        %v1487 = vpop.f32.mrf.mxu0
        %v1488 = vadd.f32 %v622, %v1487
        %v1489 = vpop.f32.mrf.mxu0
        %v1490 = vadd.f32 %v622, %v1489
        %1491 = vmatmul.bf16.gmra.mxu0 %v781
        %v1492 = vpop.f32.mrf.mxu0
        %v1493 = vadd.f32 %v622, %v1492
        %v1494 = vpop.f32.mrf.mxu0
        %v1495 = vadd.f32 %v622, %v1494
        %1496 = vmatmul.bf16.gmra.mxu0 %v782
        %v1497 = vpop.f32.mrf.mxu0
        %v1498 = vadd.f32 %v622, %v1497
        %v1499 = vpop.f32.mrf.mxu0
        %v1500 = vadd.f32 %v622, %v1499
        %1501 = vmatmul.bf16.gmra.mxu0 %v783
        %v1502 = vpop.f32.mrf.mxu0
        %v1503 = vadd.f32 %v622, %v1502
        %v1504 = vpop.f32.mrf.mxu0
        %v1505 = vadd.f32 %v622, %v1504
        %1506 = vmatmul.bf16.gmra.mxu0 %v784
        %v1507 = vpop.f32.mrf.mxu0
        %v1508 = vadd.f32 %v622, %v1507
        %v1509 = vpop.f32.mrf.mxu0
        %v1510 = vadd.f32 %v622, %v1509
        %1511 = vmatmul.bf16.gmra.mxu0 %v785
        %v1512 = vpop.f32.mrf.mxu0
        %v1513 = vadd.f32 %v622, %v1512
        %v1514 = vpop.f32.mrf.mxu0
        %v1515 = vadd.f32 %v622, %v1514
        %1516 = vmatmul.bf16.gmra.mxu0 %v786
        %v1517 = vpop.f32.mrf.mxu0
        %v1518 = vadd.f32 %v622, %v1517
        %v1519 = vpop.f32.mrf.mxu0
        %v1520 = vadd.f32 %v622, %v1519
        %1521 = vmatmul.bf16.gmra.mxu0 %v787
        %v1522 = vpop.f32.mrf.mxu0
        %v1523 = vadd.f32 %v622, %v1522
        %v1524 = vpop.f32.mrf.mxu0
        %v1525 = vadd.f32 %v622, %v1524
        %1526 = vmatmul.bf16.gmra.mxu0 %v788
        %v1527 = vpop.f32.mrf.mxu0
        %v1528 = vadd.f32 %v622, %v1527
        %v1529 = vpop.f32.mrf.mxu0
        %v1530 = vadd.f32 %v622, %v1529
        %1531 = vmatmul.bf16.gmra.mxu0 %v789
        %v1532 = vpop.f32.mrf.mxu0
        %v1533 = vadd.f32 %v622, %v1532
        %v1534 = vpop.f32.mrf.mxu0
        %v1535 = vadd.f32 %v622, %v1534
        %1536 = vdwg.mxu0
        %1537 = vmatpush.bf16.msra.mxu0 %v988
        %1538 = vmatpush.bf16.msra.mxu0 %v983
        %1539 = vmatpush.bf16.msra.mxu0 %v978
        %1540 = vmatpush.bf16.msra.mxu0 %v973
        %1541 = vmatpush.bf16.msra.mxu0 %v968
        %1542 = vmatpush.bf16.msra.mxu0 %v963
        %1543 = vmatpush.bf16.msra.mxu0 %v958
        %1544 = vmatpush.bf16.msra.mxu0 %v953
        %1545 = vmatmul.bf16.gmra.mxu0 %v758
        %v1546 = vpop.f32.mrf.mxu0
        %v1547 = vadd.f32 %v623, %v1546
        %v1548 = vpop.f32.mrf.mxu0
        %v1549 = vadd.f32 %v623, %v1548
        %1550 = vmatmul.bf16.gmra.mxu0 %v759
        %v1551 = vpop.f32.mrf.mxu0
        %v1552 = vadd.f32 %v623, %v1551
        %v1553 = vpop.f32.mrf.mxu0
        %v1554 = vadd.f32 %v623, %v1553
        %1555 = vmatmul.bf16.gmra.mxu0 %v760
        %v1556 = vpop.f32.mrf.mxu0
        %v1557 = vadd.f32 %v623, %v1556
        %v1558 = vpop.f32.mrf.mxu0
        %v1559 = vadd.f32 %v623, %v1558
        %1560 = vmatmul.bf16.gmra.mxu0 %v761
        %v1561 = vpop.f32.mrf.mxu0
        %v1562 = vadd.f32 %v623, %v1561
        %v1563 = vpop.f32.mrf.mxu0
        %v1564 = vadd.f32 %v623, %v1563
        %1565 = vmatmul.bf16.gmra.mxu0 %v762
        %v1566 = vpop.f32.mrf.mxu0
        %v1567 = vadd.f32 %v623, %v1566
        %v1568 = vpop.f32.mrf.mxu0
        %v1569 = vadd.f32 %v623, %v1568
        %1570 = vmatmul.bf16.gmra.mxu0 %v763
        %v1571 = vpop.f32.mrf.mxu0
        %v1572 = vadd.f32 %v623, %v1571
        %v1573 = vpop.f32.mrf.mxu0
        %v1574 = vadd.f32 %v623, %v1573
        %1575 = vmatmul.bf16.gmra.mxu0 %v764
        %v1576 = vpop.f32.mrf.mxu0
        %v1577 = vadd.f32 %v623, %v1576
        %v1578 = vpop.f32.mrf.mxu0
        %v1579 = vadd.f32 %v623, %v1578
        %1580 = vmatmul.bf16.gmra.mxu0 %v765
        %v1581 = vpop.f32.mrf.mxu0
        %v1582 = vadd.f32 %v623, %v1581
        %v1583 = vpop.f32.mrf.mxu0
        %v1584 = vadd.f32 %v623, %v1583
        %1585 = vmatmul.bf16.gmra.mxu0 %v766
        %v1586 = vpop.f32.mrf.mxu0
        %v1587 = vadd.f32 %v623, %v1586
        %v1588 = vpop.f32.mrf.mxu0
        %v1589 = vadd.f32 %v623, %v1588
        %1590 = vmatmul.bf16.gmra.mxu0 %v767
        %v1591 = vpop.f32.mrf.mxu0
        %v1592 = vadd.f32 %v623, %v1591
        %v1593 = vpop.f32.mrf.mxu0
        %v1594 = vadd.f32 %v623, %v1593
        %1595 = vmatmul.bf16.gmra.mxu0 %v768
        %v1596 = vpop.f32.mrf.mxu0
        %v1597 = vadd.f32 %v623, %v1596
        %v1598 = vpop.f32.mrf.mxu0
        %v1599 = vadd.f32 %v623, %v1598
        %1600 = vmatmul.bf16.gmra.mxu0 %v769
        %v1601 = vpop.f32.mrf.mxu0
        %v1602 = vadd.f32 %v623, %v1601
        %v1603 = vpop.f32.mrf.mxu0
        %v1604 = vadd.f32 %v623, %v1603
        %1605 = vmatmul.bf16.gmra.mxu0 %v770
        %v1606 = vpop.f32.mrf.mxu0
        %v1607 = vadd.f32 %v623, %v1606
        %v1608 = vpop.f32.mrf.mxu0
        %v1609 = vadd.f32 %v623, %v1608
        %1610 = vmatmul.bf16.gmra.mxu0 %v771
        %v1611 = vpop.f32.mrf.mxu0
        %v1612 = vadd.f32 %v623, %v1611
        %v1613 = vpop.f32.mrf.mxu0
        %v1614 = vadd.f32 %v623, %v1613
        %1615 = vmatmul.bf16.gmra.mxu0 %v772
        %v1616 = vpop.f32.mrf.mxu0
        %v1617 = vadd.f32 %v623, %v1616
        %v1618 = vpop.f32.mrf.mxu0
        %v1619 = vadd.f32 %v623, %v1618
        %1620 = vmatmul.bf16.gmra.mxu0 %v773
        %v1621 = vpop.f32.mrf.mxu0
        %v1622 = vadd.f32 %v623, %v1621
        %v1623 = vpop.f32.mrf.mxu0
        %v1624 = vadd.f32 %v623, %v1623
        %1625 = vmatmul.bf16.gmra.mxu0 %v774
        %v1626 = vpop.f32.mrf.mxu0
        %v1627 = vadd.f32 %v623, %v1626
        %v1628 = vpop.f32.mrf.mxu0
        %v1629 = vadd.f32 %v623, %v1628
        %1630 = vmatmul.bf16.gmra.mxu0 %v775
        %v1631 = vpop.f32.mrf.mxu0
        %v1632 = vadd.f32 %v623, %v1631
        %v1633 = vpop.f32.mrf.mxu0
        %v1634 = vadd.f32 %v623, %v1633
        %1635 = vmatmul.bf16.gmra.mxu0 %v776
        %v1636 = vpop.f32.mrf.mxu0
        %v1637 = vadd.f32 %v623, %v1636
        %v1638 = vpop.f32.mrf.mxu0
        %v1639 = vadd.f32 %v623, %v1638
        %1640 = vmatmul.bf16.gmra.mxu0 %v777
        %v1641 = vpop.f32.mrf.mxu0
        %v1642 = vadd.f32 %v623, %v1641
        %v1643 = vpop.f32.mrf.mxu0
        %v1644 = vadd.f32 %v623, %v1643
        %1645 = vmatmul.bf16.gmra.mxu0 %v778
        %v1646 = vpop.f32.mrf.mxu0
        %v1647 = vadd.f32 %v623, %v1646
        %v1648 = vpop.f32.mrf.mxu0
        %v1649 = vadd.f32 %v623, %v1648
        %1650 = vmatmul.bf16.gmra.mxu0 %v779
        %v1651 = vpop.f32.mrf.mxu0
        %v1652 = vadd.f32 %v623, %v1651
        %v1653 = vpop.f32.mrf.mxu0
        %v1654 = vadd.f32 %v623, %v1653
        %1655 = vmatmul.bf16.gmra.mxu0 %v780
        %v1656 = vpop.f32.mrf.mxu0
        %v1657 = vadd.f32 %v623, %v1656
        %v1658 = vpop.f32.mrf.mxu0
        %v1659 = vadd.f32 %v623, %v1658
        %1660 = vmatmul.bf16.gmra.mxu0 %v781
        %v1661 = vpop.f32.mrf.mxu0
        %v1662 = vadd.f32 %v623, %v1661
        %v1663 = vpop.f32.mrf.mxu0
        %v1664 = vadd.f32 %v623, %v1663
        %1665 = vmatmul.bf16.gmra.mxu0 %v782
        %v1666 = vpop.f32.mrf.mxu0
        %v1667 = vadd.f32 %v623, %v1666
        %v1668 = vpop.f32.mrf.mxu0
        %v1669 = vadd.f32 %v623, %v1668
        %1670 = vmatmul.bf16.gmra.mxu0 %v783
        %v1671 = vpop.f32.mrf.mxu0
        %v1672 = vadd.f32 %v623, %v1671
        %v1673 = vpop.f32.mrf.mxu0
        %v1674 = vadd.f32 %v623, %v1673
        %1675 = vmatmul.bf16.gmra.mxu0 %v784
        %v1676 = vpop.f32.mrf.mxu0
        %v1677 = vadd.f32 %v623, %v1676
        %v1678 = vpop.f32.mrf.mxu0
        %v1679 = vadd.f32 %v623, %v1678
        %1680 = vmatmul.bf16.gmra.mxu0 %v785
        %v1681 = vpop.f32.mrf.mxu0
        %v1682 = vadd.f32 %v623, %v1681
        %v1683 = vpop.f32.mrf.mxu0
        %v1684 = vadd.f32 %v623, %v1683
        %1685 = vmatmul.bf16.gmra.mxu0 %v786
        %v1686 = vpop.f32.mrf.mxu0
        %v1687 = vadd.f32 %v623, %v1686
        %v1688 = vpop.f32.mrf.mxu0
        %v1689 = vadd.f32 %v623, %v1688
        %1690 = vmatmul.bf16.gmra.mxu0 %v787
        %v1691 = vpop.f32.mrf.mxu0
        %v1692 = vadd.f32 %v623, %v1691
        %v1693 = vpop.f32.mrf.mxu0
        %v1694 = vadd.f32 %v623, %v1693
        %1695 = vmatmul.bf16.gmra.mxu0 %v788
        %v1696 = vpop.f32.mrf.mxu0
        %v1697 = vadd.f32 %v623, %v1696
        %v1698 = vpop.f32.mrf.mxu0
        %v1699 = vadd.f32 %v623, %v1698
        %1700 = vmatmul.bf16.gmra.mxu0 %v789
        %v1701 = vpop.f32.mrf.mxu0
        %v1702 = vadd.f32 %v623, %v1701
        %v1703 = vpop.f32.mrf.mxu0
        %v1704 = vadd.f32 %v623, %v1703
        %1705 = vdwg.mxu0
        %1706 = vmatpush.bf16.msra.mxu0 %v989
        %1707 = vmatpush.bf16.msra.mxu0 %v984
        %1708 = vmatpush.bf16.msra.mxu0 %v979
        %1709 = vmatpush.bf16.msra.mxu0 %v974
        %1710 = vmatpush.bf16.msra.mxu0 %v969
        %1711 = vmatpush.bf16.msra.mxu0 %v964
        %1712 = vmatpush.bf16.msra.mxu0 %v959
        %1713 = vmatpush.bf16.msra.mxu0 %v954
        %1714 = vmatmul.bf16.gmra.mxu0 %v758
        %v1715 = vpop.f32.mrf.mxu0
        %v1716 = vadd.f32 %v624, %v1715
        %v1717 = vpop.f32.mrf.mxu0
        %v1718 = vadd.f32 %v624, %v1717
        %1719 = vmatmul.bf16.gmra.mxu0 %v759
        %v1720 = vpop.f32.mrf.mxu0
        %v1721 = vadd.f32 %v624, %v1720
        %v1722 = vpop.f32.mrf.mxu0
        %v1723 = vadd.f32 %v624, %v1722
        %1724 = vmatmul.bf16.gmra.mxu0 %v760
        %v1725 = vpop.f32.mrf.mxu0
        %v1726 = vadd.f32 %v624, %v1725
        %v1727 = vpop.f32.mrf.mxu0
        %v1728 = vadd.f32 %v624, %v1727
        %1729 = vmatmul.bf16.gmra.mxu0 %v761
        %v1730 = vpop.f32.mrf.mxu0
        %v1731 = vadd.f32 %v624, %v1730
        %v1732 = vpop.f32.mrf.mxu0
        %v1733 = vadd.f32 %v624, %v1732
        %1734 = vmatmul.bf16.gmra.mxu0 %v762
        %v1735 = vpop.f32.mrf.mxu0
        %v1736 = vadd.f32 %v624, %v1735
        %v1737 = vpop.f32.mrf.mxu0
        %v1738 = vadd.f32 %v624, %v1737
        %1739 = vmatmul.bf16.gmra.mxu0 %v763
        %v1740 = vpop.f32.mrf.mxu0
        %v1741 = vadd.f32 %v624, %v1740
        %v1742 = vpop.f32.mrf.mxu0
        %v1743 = vadd.f32 %v624, %v1742
        %1744 = vmatmul.bf16.gmra.mxu0 %v764
        %v1745 = vpop.f32.mrf.mxu0
        %v1746 = vadd.f32 %v624, %v1745
        %v1747 = vpop.f32.mrf.mxu0
        %v1748 = vadd.f32 %v624, %v1747
        %1749 = vmatmul.bf16.gmra.mxu0 %v765
        %v1750 = vpop.f32.mrf.mxu0
        %v1751 = vadd.f32 %v624, %v1750
        %v1752 = vpop.f32.mrf.mxu0
        %v1753 = vadd.f32 %v624, %v1752
        %1754 = vmatmul.bf16.gmra.mxu0 %v766
        %v1755 = vpop.f32.mrf.mxu0
        %v1756 = vadd.f32 %v624, %v1755
        %v1757 = vpop.f32.mrf.mxu0
        %v1758 = vadd.f32 %v624, %v1757
        %1759 = vmatmul.bf16.gmra.mxu0 %v767
        %v1760 = vpop.f32.mrf.mxu0
        %v1761 = vadd.f32 %v624, %v1760
        %v1762 = vpop.f32.mrf.mxu0
        %v1763 = vadd.f32 %v624, %v1762
        %1764 = vmatmul.bf16.gmra.mxu0 %v768
        %v1765 = vpop.f32.mrf.mxu0
        %v1766 = vadd.f32 %v624, %v1765
        %v1767 = vpop.f32.mrf.mxu0
        %v1768 = vadd.f32 %v624, %v1767
        %1769 = vmatmul.bf16.gmra.mxu0 %v769
        %v1770 = vpop.f32.mrf.mxu0
        %v1771 = vadd.f32 %v624, %v1770
        %v1772 = vpop.f32.mrf.mxu0
        %v1773 = vadd.f32 %v624, %v1772
        %1774 = vmatmul.bf16.gmra.mxu0 %v770
        %v1775 = vpop.f32.mrf.mxu0
        %v1776 = vadd.f32 %v624, %v1775
        %v1777 = vpop.f32.mrf.mxu0
        %v1778 = vadd.f32 %v624, %v1777
        %1779 = vmatmul.bf16.gmra.mxu0 %v771
        %v1780 = vpop.f32.mrf.mxu0
        %v1781 = vadd.f32 %v624, %v1780
        %v1782 = vpop.f32.mrf.mxu0
        %v1783 = vadd.f32 %v624, %v1782
        %1784 = vmatmul.bf16.gmra.mxu0 %v772
        %v1785 = vpop.f32.mrf.mxu0
        %v1786 = vadd.f32 %v624, %v1785
        %v1787 = vpop.f32.mrf.mxu0
        %v1788 = vadd.f32 %v624, %v1787
        %1789 = vmatmul.bf16.gmra.mxu0 %v773
        %v1790 = vpop.f32.mrf.mxu0
        %v1791 = vadd.f32 %v624, %v1790
        %v1792 = vpop.f32.mrf.mxu0
        %v1793 = vadd.f32 %v624, %v1792
        %1794 = vmatmul.bf16.gmra.mxu0 %v774
        %v1795 = vpop.f32.mrf.mxu0
        %v1796 = vadd.f32 %v624, %v1795
        %v1797 = vpop.f32.mrf.mxu0
        %v1798 = vadd.f32 %v624, %v1797
        %1799 = vmatmul.bf16.gmra.mxu0 %v775
        %v1800 = vpop.f32.mrf.mxu0
        %v1801 = vadd.f32 %v624, %v1800
        %v1802 = vpop.f32.mrf.mxu0
        %v1803 = vadd.f32 %v624, %v1802
        %1804 = vmatmul.bf16.gmra.mxu0 %v776
        %v1805 = vpop.f32.mrf.mxu0
        %v1806 = vadd.f32 %v624, %v1805
        %v1807 = vpop.f32.mrf.mxu0
        %v1808 = vadd.f32 %v624, %v1807
        %1809 = vmatmul.bf16.gmra.mxu0 %v777
        %v1810 = vpop.f32.mrf.mxu0
        %v1811 = vadd.f32 %v624, %v1810
        %v1812 = vpop.f32.mrf.mxu0
        %v1813 = vadd.f32 %v624, %v1812
        %1814 = vmatmul.bf16.gmra.mxu0 %v778
        %v1815 = vpop.f32.mrf.mxu0
        %v1816 = vadd.f32 %v624, %v1815
        %v1817 = vpop.f32.mrf.mxu0
        %v1818 = vadd.f32 %v624, %v1817
        %1819 = vmatmul.bf16.gmra.mxu0 %v779
        %v1820 = vpop.f32.mrf.mxu0
        %v1821 = vadd.f32 %v624, %v1820
        %v1822 = vpop.f32.mrf.mxu0
        %v1823 = vadd.f32 %v624, %v1822
        %1824 = vmatmul.bf16.gmra.mxu0 %v780
        %v1825 = vpop.f32.mrf.mxu0
        %v1826 = vadd.f32 %v624, %v1825
        %v1827 = vpop.f32.mrf.mxu0
        %v1828 = vadd.f32 %v624, %v1827
        %1829 = vmatmul.bf16.gmra.mxu0 %v781
        %v1830 = vpop.f32.mrf.mxu0
        %v1831 = vadd.f32 %v624, %v1830
        %v1832 = vpop.f32.mrf.mxu0
        %v1833 = vadd.f32 %v624, %v1832
        %1834 = vmatmul.bf16.gmra.mxu0 %v782
        %v1835 = vpop.f32.mrf.mxu0
        %v1836 = vadd.f32 %v624, %v1835
        %v1837 = vpop.f32.mrf.mxu0
        %v1838 = vadd.f32 %v624, %v1837
        %1839 = vmatmul.bf16.gmra.mxu0 %v783
        %v1840 = vpop.f32.mrf.mxu0
        %v1841 = vadd.f32 %v624, %v1840
        %v1842 = vpop.f32.mrf.mxu0
        %v1843 = vadd.f32 %v624, %v1842
        %1844 = vmatmul.bf16.gmra.mxu0 %v784
        %v1845 = vpop.f32.mrf.mxu0
        %v1846 = vadd.f32 %v624, %v1845
        %v1847 = vpop.f32.mrf.mxu0
        %v1848 = vadd.f32 %v624, %v1847
        %1849 = vmatmul.bf16.gmra.mxu0 %v785
        %v1850 = vpop.f32.mrf.mxu0
        %v1851 = vadd.f32 %v624, %v1850
        %v1852 = vpop.f32.mrf.mxu0
        %v1853 = vadd.f32 %v624, %v1852
        %1854 = vmatmul.bf16.gmra.mxu0 %v786
        %v1855 = vpop.f32.mrf.mxu0
        %v1856 = vadd.f32 %v624, %v1855
        %v1857 = vpop.f32.mrf.mxu0
        %v1858 = vadd.f32 %v624, %v1857
        %1859 = vmatmul.bf16.gmra.mxu0 %v787
        %v1860 = vpop.f32.mrf.mxu0
        %v1861 = vadd.f32 %v624, %v1860
        %v1862 = vpop.f32.mrf.mxu0
        %v1863 = vadd.f32 %v624, %v1862
        %1864 = vmatmul.bf16.gmra.mxu0 %v788
        %v1865 = vpop.f32.mrf.mxu0
        %v1866 = vadd.f32 %v624, %v1865
        %v1867 = vpop.f32.mrf.mxu0
        %v1868 = vadd.f32 %v624, %v1867
        %1869 = vmatmul.bf16.gmra.mxu0 %v789
        %v1870 = vpop.f32.mrf.mxu0
        %v1871 = vadd.f32 %v624, %v1870
        %v1872 = vpop.f32.mrf.mxu0
        %v1873 = vadd.f32 %v624, %v1872
        %1874 = vdwg.mxu0
        %v1875 = vmax.f32 %v1040, 0.0
        %v1876 = vmax.f32 %v1209, 0.0
        %v1877 = vmax.f32 %v1378, 0.0
        %v1878 = vmax.f32 %v1547, 0.0
        %v1879 = vmax.f32 %v1716, 0.0
        %v1880 = vmax.f32 %v1042, 0.0
        %v1881 = vmax.f32 %v1211, 0.0
        %v1882 = vmax.f32 %v1380, 0.0
        %v1883 = vmax.f32 %v1549, 0.0
        %v1884 = vmax.f32 %v1718, 0.0
        %v1885 = vmax.f32 %v1045, 0.0
        %v1886 = vmax.f32 %v1214, 0.0
        %v1887 = vmax.f32 %v1383, 0.0
        %v1888 = vmax.f32 %v1552, 0.0
        %v1889 = vmax.f32 %v1721, 0.0
        %v1890 = vmax.f32 %v1047, 0.0
        %v1891 = vmax.f32 %v1216, 0.0
        %v1892 = vmax.f32 %v1385, 0.0
        %v1893 = vmax.f32 %v1554, 0.0
        %v1894 = vmax.f32 %v1723, 0.0
        %v1895 = vmax.f32 %v1050, 0.0
        %v1896 = vmax.f32 %v1219, 0.0
        %v1897 = vmax.f32 %v1388, 0.0
        %v1898 = vmax.f32 %v1557, 0.0
        %v1899 = vmax.f32 %v1726, 0.0
        %v1900 = vmax.f32 %v1052, 0.0
        %v1901 = vmax.f32 %v1221, 0.0
        %v1902 = vmax.f32 %v1390, 0.0
        %v1903 = vmax.f32 %v1559, 0.0
        %v1904 = vmax.f32 %v1728, 0.0
        %v1905 = vmax.f32 %v1055, 0.0
        %v1906 = vmax.f32 %v1224, 0.0
        %v1907 = vmax.f32 %v1393, 0.0
        %v1908 = vmax.f32 %v1562, 0.0
        %v1909 = vmax.f32 %v1731, 0.0
        %v1910 = vmax.f32 %v1057, 0.0
        %v1911 = vmax.f32 %v1226, 0.0
        %v1912 = vmax.f32 %v1395, 0.0
        %v1913 = vmax.f32 %v1564, 0.0
        %v1914 = vmax.f32 %v1733, 0.0
        %v1915 = vmax.f32 %v1060, 0.0
        %v1916 = vmax.f32 %v1229, 0.0
        %v1917 = vmax.f32 %v1398, 0.0
        %v1918 = vmax.f32 %v1567, 0.0
        %v1919 = vmax.f32 %v1736, 0.0
        %v1920 = vmax.f32 %v1062, 0.0
        %v1921 = vmax.f32 %v1231, 0.0
        %v1922 = vmax.f32 %v1400, 0.0
        %v1923 = vmax.f32 %v1569, 0.0
        %v1924 = vmax.f32 %v1738, 0.0
        %v1925 = vmax.f32 %v1065, 0.0
        %v1926 = vmax.f32 %v1234, 0.0
        %v1927 = vmax.f32 %v1403, 0.0
        %v1928 = vmax.f32 %v1572, 0.0
        %v1929 = vmax.f32 %v1741, 0.0
        %v1930 = vmax.f32 %v1067, 0.0
        %v1931 = vmax.f32 %v1236, 0.0
        %v1932 = vmax.f32 %v1405, 0.0
        %v1933 = vmax.f32 %v1574, 0.0
        %v1934 = vmax.f32 %v1743, 0.0
        %v1935 = vmax.f32 %v1070, 0.0
        %v1936 = vmax.f32 %v1239, 0.0
        %v1937 = vmax.f32 %v1408, 0.0
        %v1938 = vmax.f32 %v1577, 0.0
        %v1939 = vmax.f32 %v1746, 0.0
        %v1940 = vmax.f32 %v1072, 0.0
        %v1941 = vmax.f32 %v1241, 0.0
        %v1942 = vmax.f32 %v1410, 0.0
        %v1943 = vmax.f32 %v1579, 0.0
        %v1944 = vmax.f32 %v1748, 0.0
        %v1945 = vmax.f32 %v1075, 0.0
        %v1946 = vmax.f32 %v1244, 0.0
        %v1947 = vmax.f32 %v1413, 0.0
        %v1948 = vmax.f32 %v1582, 0.0
        %v1949 = vmax.f32 %v1751, 0.0
        %v1950 = vmax.f32 %v1077, 0.0
        %v1951 = vmax.f32 %v1246, 0.0
        %v1952 = vmax.f32 %v1415, 0.0
        %v1953 = vmax.f32 %v1584, 0.0
        %v1954 = vmax.f32 %v1753, 0.0
        %v1955 = vmax.f32 %v1080, 0.0
        %v1956 = vmax.f32 %v1249, 0.0
        %v1957 = vmax.f32 %v1418, 0.0
        %v1958 = vmax.f32 %v1587, 0.0
        %v1959 = vmax.f32 %v1756, 0.0
        %v1960 = vmax.f32 %v1082, 0.0
        %v1961 = vmax.f32 %v1251, 0.0
        %v1962 = vmax.f32 %v1420, 0.0
        %v1963 = vmax.f32 %v1589, 0.0
        %v1964 = vmax.f32 %v1758, 0.0
        %v1965 = vmax.f32 %v1085, 0.0
        %v1966 = vmax.f32 %v1254, 0.0
        %v1967 = vmax.f32 %v1423, 0.0
        %v1968 = vmax.f32 %v1592, 0.0
        %v1969 = vmax.f32 %v1761, 0.0
        %v1970 = vmax.f32 %v1087, 0.0
        %v1971 = vmax.f32 %v1256, 0.0
        %v1972 = vmax.f32 %v1425, 0.0
        %v1973 = vmax.f32 %v1594, 0.0
        %v1974 = vmax.f32 %v1763, 0.0
        %v1975 = vmax.f32 %v1090, 0.0
        %v1976 = vmax.f32 %v1259, 0.0
        %v1977 = vmax.f32 %v1428, 0.0
        %v1978 = vmax.f32 %v1597, 0.0
        %v1979 = vmax.f32 %v1766, 0.0
        %v1980 = vmax.f32 %v1092, 0.0
        %v1981 = vmax.f32 %v1261, 0.0
        %v1982 = vmax.f32 %v1430, 0.0
        %v1983 = vmax.f32 %v1599, 0.0
        %v1984 = vmax.f32 %v1768, 0.0
        %v1985 = vmax.f32 %v1095, 0.0
        %v1986 = vmax.f32 %v1264, 0.0
        %v1987 = vmax.f32 %v1433, 0.0
        %v1988 = vmax.f32 %v1602, 0.0
        %v1989 = vmax.f32 %v1771, 0.0
        %v1990 = vmax.f32 %v1097, 0.0
        %v1991 = vmax.f32 %v1266, 0.0
        %v1992 = vmax.f32 %v1435, 0.0
        %v1993 = vmax.f32 %v1604, 0.0
        %v1994 = vmax.f32 %v1773, 0.0
        %v1995 = vmax.f32 %v1100, 0.0
        %v1996 = vmax.f32 %v1269, 0.0
        %v1997 = vmax.f32 %v1438, 0.0
        %v1998 = vmax.f32 %v1607, 0.0
        %v1999 = vmax.f32 %v1776, 0.0
        %v2000 = vmax.f32 %v1102, 0.0
        %v2001 = vmax.f32 %v1271, 0.0
        %v2002 = vmax.f32 %v1440, 0.0
        %v2003 = vmax.f32 %v1609, 0.0
        %v2004 = vmax.f32 %v1778, 0.0
        %v2005 = vmax.f32 %v1105, 0.0
        %v2006 = vmax.f32 %v1274, 0.0
        %v2007 = vmax.f32 %v1443, 0.0
        %v2008 = vmax.f32 %v1612, 0.0
        %v2009 = vmax.f32 %v1781, 0.0
        %v2010 = vmax.f32 %v1107, 0.0
        %v2011 = vmax.f32 %v1276, 0.0
        %v2012 = vmax.f32 %v1445, 0.0
        %v2013 = vmax.f32 %v1614, 0.0
        %v2014 = vmax.f32 %v1783, 0.0
        %v2015 = vmax.f32 %v1110, 0.0
        %v2016 = vmax.f32 %v1279, 0.0
        %v2017 = vmax.f32 %v1448, 0.0
        %v2018 = vmax.f32 %v1617, 0.0
        %v2019 = vmax.f32 %v1786, 0.0
        %v2020 = vmax.f32 %v1112, 0.0
        %v2021 = vmax.f32 %v1281, 0.0
        %v2022 = vmax.f32 %v1450, 0.0
        %v2023 = vmax.f32 %v1619, 0.0
        %v2024 = vmax.f32 %v1788, 0.0
        %v2025 = vmax.f32 %v1115, 0.0
        %v2026 = vmax.f32 %v1284, 0.0
        %v2027 = vmax.f32 %v1453, 0.0
        %v2028 = vmax.f32 %v1622, 0.0
        %v2029 = vmax.f32 %v1791, 0.0
        %v2030 = vmax.f32 %v1117, 0.0
        %v2031 = vmax.f32 %v1286, 0.0
        %v2032 = vmax.f32 %v1455, 0.0
        %v2033 = vmax.f32 %v1624, 0.0
        %v2034 = vmax.f32 %v1793, 0.0
        %v2035 = vmax.f32 %v1120, 0.0
        %v2036 = vmax.f32 %v1289, 0.0
        %v2037 = vmax.f32 %v1458, 0.0
        %v2038 = vmax.f32 %v1627, 0.0
        %v2039 = vmax.f32 %v1796, 0.0
        %v2040 = vmax.f32 %v1122, 0.0
        %v2041 = vmax.f32 %v1291, 0.0
        %v2042 = vmax.f32 %v1460, 0.0
        %v2043 = vmax.f32 %v1629, 0.0
        %v2044 = vmax.f32 %v1798, 0.0
        %v2045 = vmax.f32 %v1125, 0.0
        %v2046 = vmax.f32 %v1294, 0.0
        %v2047 = vmax.f32 %v1463, 0.0
        %v2048 = vmax.f32 %v1632, 0.0
        %v2049 = vmax.f32 %v1801, 0.0
        %v2050 = vmax.f32 %v1127, 0.0
        %v2051 = vmax.f32 %v1296, 0.0
        %v2052 = vmax.f32 %v1465, 0.0
        %v2053 = vmax.f32 %v1634, 0.0
        %v2054 = vmax.f32 %v1803, 0.0
        %v2055 = vmax.f32 %v1130, 0.0
        %v2056 = vmax.f32 %v1299, 0.0
        %v2057 = vmax.f32 %v1468, 0.0
        %v2058 = vmax.f32 %v1637, 0.0
        %v2059 = vmax.f32 %v1806, 0.0
        %v2060 = vmax.f32 %v1132, 0.0
        %v2061 = vmax.f32 %v1301, 0.0
        %v2062 = vmax.f32 %v1470, 0.0
        %v2063 = vmax.f32 %v1639, 0.0
        %v2064 = vmax.f32 %v1808, 0.0
        %v2065 = vmax.f32 %v1135, 0.0
        %v2066 = vmax.f32 %v1304, 0.0
        %v2067 = vmax.f32 %v1473, 0.0
        %v2068 = vmax.f32 %v1642, 0.0
        %v2069 = vmax.f32 %v1811, 0.0
        %v2070 = vmax.f32 %v1137, 0.0
        %v2071 = vmax.f32 %v1306, 0.0
        %v2072 = vmax.f32 %v1475, 0.0
        %v2073 = vmax.f32 %v1644, 0.0
        %v2074 = vmax.f32 %v1813, 0.0
        %v2075 = vmax.f32 %v1140, 0.0
        %v2076 = vmax.f32 %v1309, 0.0
        %v2077 = vmax.f32 %v1478, 0.0
        %v2078 = vmax.f32 %v1647, 0.0
        %v2079 = vmax.f32 %v1816, 0.0
        %v2080 = vmax.f32 %v1142, 0.0
        %v2081 = vmax.f32 %v1311, 0.0
        %v2082 = vmax.f32 %v1480, 0.0
        %v2083 = vmax.f32 %v1649, 0.0
        %v2084 = vmax.f32 %v1818, 0.0
        %v2085 = vmax.f32 %v1145, 0.0
        %v2086 = vmax.f32 %v1314, 0.0
        %v2087 = vmax.f32 %v1483, 0.0
        %v2088 = vmax.f32 %v1652, 0.0
        %v2089 = vmax.f32 %v1821, 0.0
        %v2090 = vmax.f32 %v1147, 0.0
        %v2091 = vmax.f32 %v1316, 0.0
        %v2092 = vmax.f32 %v1485, 0.0
        %v2093 = vmax.f32 %v1654, 0.0
        %v2094 = vmax.f32 %v1823, 0.0
        %v2095 = vmax.f32 %v1150, 0.0
        %v2096 = vmax.f32 %v1319, 0.0
        %v2097 = vmax.f32 %v1488, 0.0
        %v2098 = vmax.f32 %v1657, 0.0
        %v2099 = vmax.f32 %v1826, 0.0
        %v2100 = vmax.f32 %v1152, 0.0
        %v2101 = vmax.f32 %v1321, 0.0
        %v2102 = vmax.f32 %v1490, 0.0
        %v2103 = vmax.f32 %v1659, 0.0
        %v2104 = vmax.f32 %v1828, 0.0
        %v2105 = vmax.f32 %v1155, 0.0
        %v2106 = vmax.f32 %v1324, 0.0
        %v2107 = vmax.f32 %v1493, 0.0
        %v2108 = vmax.f32 %v1662, 0.0
        %v2109 = vmax.f32 %v1831, 0.0
        %v2110 = vmax.f32 %v1157, 0.0
        %v2111 = vmax.f32 %v1326, 0.0
        %v2112 = vmax.f32 %v1495, 0.0
        %v2113 = vmax.f32 %v1664, 0.0
        %v2114 = vmax.f32 %v1833, 0.0
        %v2115 = vmax.f32 %v1160, 0.0
        %v2116 = vmax.f32 %v1329, 0.0
        %v2117 = vmax.f32 %v1498, 0.0
        %v2118 = vmax.f32 %v1667, 0.0
        %v2119 = vmax.f32 %v1836, 0.0
        %v2120 = vmax.f32 %v1162, 0.0
        %v2121 = vmax.f32 %v1331, 0.0
        %v2122 = vmax.f32 %v1500, 0.0
        %v2123 = vmax.f32 %v1669, 0.0
        %v2124 = vmax.f32 %v1838, 0.0
        %v2125 = vmax.f32 %v1165, 0.0
        %v2126 = vmax.f32 %v1334, 0.0
        %v2127 = vmax.f32 %v1503, 0.0
        %v2128 = vmax.f32 %v1672, 0.0
        %v2129 = vmax.f32 %v1841, 0.0
        %v2130 = vmax.f32 %v1167, 0.0
        %v2131 = vmax.f32 %v1336, 0.0
        %v2132 = vmax.f32 %v1505, 0.0
        %v2133 = vmax.f32 %v1674, 0.0
        %v2134 = vmax.f32 %v1843, 0.0
        %v2135 = vmax.f32 %v1170, 0.0
        %v2136 = vmax.f32 %v1339, 0.0
        %v2137 = vmax.f32 %v1508, 0.0
        %v2138 = vmax.f32 %v1677, 0.0
        %v2139 = vmax.f32 %v1846, 0.0
        %v2140 = vmax.f32 %v1172, 0.0
        %v2141 = vmax.f32 %v1341, 0.0
        %v2142 = vmax.f32 %v1510, 0.0
        %v2143 = vmax.f32 %v1679, 0.0
        %v2144 = vmax.f32 %v1848, 0.0
        %v2145 = vmax.f32 %v1175, 0.0
        %v2146 = vmax.f32 %v1344, 0.0
        %v2147 = vmax.f32 %v1513, 0.0
        %v2148 = vmax.f32 %v1682, 0.0
        %v2149 = vmax.f32 %v1851, 0.0
        %v2150 = vmax.f32 %v1177, 0.0
        %v2151 = vmax.f32 %v1346, 0.0
        %v2152 = vmax.f32 %v1515, 0.0
        %v2153 = vmax.f32 %v1684, 0.0
        %v2154 = vmax.f32 %v1853, 0.0
        %v2155 = vmax.f32 %v1180, 0.0
        %v2156 = vmax.f32 %v1349, 0.0
        %v2157 = vmax.f32 %v1518, 0.0
        %v2158 = vmax.f32 %v1687, 0.0
        %v2159 = vmax.f32 %v1856, 0.0
        %v2160 = vmax.f32 %v1182, 0.0
        %v2161 = vmax.f32 %v1351, 0.0
        %v2162 = vmax.f32 %v1520, 0.0
        %v2163 = vmax.f32 %v1689, 0.0
        %v2164 = vmax.f32 %v1858, 0.0
        %v2165 = vmax.f32 %v1185, 0.0
        %v2166 = vmax.f32 %v1354, 0.0
        %v2167 = vmax.f32 %v1523, 0.0
        %v2168 = vmax.f32 %v1692, 0.0
        %v2169 = vmax.f32 %v1861, 0.0
        %v2170 = vmax.f32 %v1187, 0.0
        %v2171 = vmax.f32 %v1356, 0.0
        %v2172 = vmax.f32 %v1525, 0.0
        %v2173 = vmax.f32 %v1694, 0.0
        %v2174 = vmax.f32 %v1863, 0.0
        %v2175 = vmax.f32 %v1190, 0.0
        %v2176 = vmax.f32 %v1359, 0.0
        %v2177 = vmax.f32 %v1528, 0.0
        %v2178 = vmax.f32 %v1697, 0.0
        %v2179 = vmax.f32 %v1866, 0.0
        %v2180 = vmax.f32 %v1192, 0.0
        %v2181 = vmax.f32 %v1361, 0.0
        %v2182 = vmax.f32 %v1530, 0.0
        %v2183 = vmax.f32 %v1699, 0.0
        %v2184 = vmax.f32 %v1868, 0.0
        %v2185 = vmax.f32 %v1195, 0.0
        %v2186 = vmax.f32 %v1364, 0.0
        %v2187 = vmax.f32 %v1533, 0.0
        %v2188 = vmax.f32 %v1702, 0.0
        %v2189 = vmax.f32 %v1871, 0.0
        %v2190 = vmax.f32 %v1197, 0.0
        %v2191 = vmax.f32 %v1366, 0.0
        %v2192 = vmax.f32 %v1535, 0.0
        %v2193 = vmax.f32 %v1704, 0.0
        %v2194 = vmax.f32 %v1873, 0.0
        %v2195 = vpack.c.bf16 %v1880, %v1875
        %v2196 = vpack.c.bf16 %v1890, %v1885
        %v2197 = vpack.c.bf16 %v1900, %v1895
        %v2198 = vpack.c.bf16 %v1910, %v1905
        %v2199 = vpack.c.bf16 %v1920, %v1915
        %v2200 = vpack.c.bf16 %v1930, %v1925
        %v2201 = vpack.c.bf16 %v1940, %v1935
        %v2202 = vpack.c.bf16 %v1950, %v1945
        %v2203 = vpack.c.bf16 %v1960, %v1955
        %v2204 = vpack.c.bf16 %v1970, %v1965
        %v2205 = vpack.c.bf16 %v1980, %v1975
        %v2206 = vpack.c.bf16 %v1990, %v1985
        %v2207 = vpack.c.bf16 %v2000, %v1995
        %v2208 = vpack.c.bf16 %v2010, %v2005
        %v2209 = vpack.c.bf16 %v2020, %v2015
        %v2210 = vpack.c.bf16 %v2030, %v2025
        %v2211 = vpack.c.bf16 %v2040, %v2035
        %v2212 = vpack.c.bf16 %v2050, %v2045
        %v2213 = vpack.c.bf16 %v2060, %v2055
        %v2214 = vpack.c.bf16 %v2070, %v2065
        %v2215 = vpack.c.bf16 %v2080, %v2075
        %v2216 = vpack.c.bf16 %v2090, %v2085
        %v2217 = vpack.c.bf16 %v2100, %v2095
        %v2218 = vpack.c.bf16 %v2110, %v2105
        %v2219 = vpack.c.bf16 %v2120, %v2115
        %v2220 = vpack.c.bf16 %v2130, %v2125
        %v2221 = vpack.c.bf16 %v2140, %v2135
        %v2222 = vpack.c.bf16 %v2150, %v2145
        %v2223 = vpack.c.bf16 %v2160, %v2155
        %v2224 = vpack.c.bf16 %v2170, %v2165
        %v2225 = vpack.c.bf16 %v2180, %v2175
        %v2226 = vpack.c.bf16 %v2190, %v2185
        %v2227 = vld [vmem:[#allocation8] sm:$0xf]
        %v2228 = vld [vmem:[#allocation8 + $0x4] sm:$0xf]
        %v2229 = vld [vmem:[#allocation8 + $0x8] sm:$0xf]
        %v2230 = vld [vmem:[#allocation8 + $0xc] sm:$0xf]
        %v2231 = vld [vmem:[#allocation8 + $0x10] sm:$0xf]
        %v2232 = vld [vmem:[#allocation8 + $0x14] sm:$0xf]
        %v2233 = vld [vmem:[#allocation8 + $0x18] sm:$0xf]
        %v2234 = vld [vmem:[#allocation8 + $0x1c] sm:$0xf]
        %v2235 = vld [vmem:[#allocation8 + $0x20] sm:$0xf]
        %v2236 = vld [vmem:[#allocation8 + $0x24] sm:$0xf]
        %v2237 = vld [vmem:[#allocation8 + $0x28] sm:$0xf]
        %v2238 = vld [vmem:[#allocation8 + $0x2c] sm:$0xf]
        %v2239 = vld [vmem:[#allocation8 + $0x30] sm:$0xf]
        %v2240 = vld [vmem:[#allocation8 + $0x34] sm:$0xf]
        %v2241 = vld [vmem:[#allocation8 + $0x38] sm:$0xf]
        %v2242 = vld [vmem:[#allocation8 + $0x3c] sm:$0xf]
        %v2243 = vld [vmem:[#allocation10] sm:$0x1]
        %v2245 = vperm.slane %v2243, 0
        %v2263 = vunpack.c.l.b16 %v2227
        %v2264 = vunpack.c.l.b16 %v2228
        %v2265 = vunpack.c.l.b16 %v2229
        %v2266 = vunpack.c.l.b16 %v2230
        %v2267 = vunpack.c.l.b16 %v2231
        %v2268 = vunpack.c.l.b16 %v2232
        %v2269 = vunpack.c.l.b16 %v2233
        %v2270 = vunpack.c.l.b16 %v2234
        %v2271 = vunpack.c.l.b16 %v2235
        %v2272 = vunpack.c.l.b16 %v2236
        %v2273 = vunpack.c.l.b16 %v2237
        %v2274 = vunpack.c.l.b16 %v2238
        %v2275 = vunpack.c.l.b16 %v2239
        %v2276 = vunpack.c.l.b16 %v2240
        %v2277 = vunpack.c.l.b16 %v2241
        %v2278 = vunpack.c.l.b16 %v2242
        %v2279 = vpack.c.b16 %v2264, %v2263
        %v2280 = vpack.c.b16 %v2266, %v2265
        %v2281 = vpack.c.b16 %v2268, %v2267
        %v2282 = vpack.c.b16 %v2270, %v2269
        %v2283 = vpack.c.b16 %v2272, %v2271
        %v2284 = vpack.c.b16 %v2274, %v2273
        %v2285 = vpack.c.b16 %v2276, %v2275
        %v2286 = vpack.c.b16 %v2278, %v2277
        %2295 = vmatpush.bf16.msra.mxu0 %v2286
        %2296 = vmatpush.bf16.msra.mxu0 %v2285
        %2297 = vmatpush.bf16.msra.mxu0 %v2284
        %2298 = vmatpush.bf16.msra.mxu0 %v2283
        %2299 = vmatpush.bf16.msra.mxu0 %v2282
        %2300 = vmatpush.bf16.msra.mxu0 %v2281
        %2301 = vmatpush.bf16.msra.mxu0 %v2280
        %2302 = vmatpush.bf16.msra.mxu0 %v2279
        %2303 = vmatmul.bf16.gmra.mxu0 %v2195
        %v2304 = vpop.f32.mrf.mxu0
        %v2305 = vadd.f32 %v2245, %v2304
        %v2306 = vpop.f32.mrf.mxu0
        %v2307 = vadd.f32 %v2245, %v2306
        %2308 = vmatmul.bf16.gmra.mxu0 %v2196
        %v2309 = vpop.f32.mrf.mxu0
        %v2310 = vadd.f32 %v2245, %v2309
        %v2311 = vpop.f32.mrf.mxu0
        %v2312 = vadd.f32 %v2245, %v2311
        %2313 = vmatmul.bf16.gmra.mxu0 %v2197
        %v2314 = vpop.f32.mrf.mxu0
        %v2315 = vadd.f32 %v2245, %v2314
        %v2316 = vpop.f32.mrf.mxu0
        %v2317 = vadd.f32 %v2245, %v2316
        %2318 = vmatmul.bf16.gmra.mxu0 %v2198
        %v2319 = vpop.f32.mrf.mxu0
        %v2320 = vadd.f32 %v2245, %v2319
        %v2321 = vpop.f32.mrf.mxu0
        %v2322 = vadd.f32 %v2245, %v2321
        %2323 = vmatmul.bf16.gmra.mxu0 %v2199
        %v2324 = vpop.f32.mrf.mxu0
        %v2325 = vadd.f32 %v2245, %v2324
        %v2326 = vpop.f32.mrf.mxu0
        %v2327 = vadd.f32 %v2245, %v2326
        %2328 = vmatmul.bf16.gmra.mxu0 %v2200
        %v2329 = vpop.f32.mrf.mxu0
        %v2330 = vadd.f32 %v2245, %v2329
        %v2331 = vpop.f32.mrf.mxu0
        %v2332 = vadd.f32 %v2245, %v2331
        %2333 = vmatmul.bf16.gmra.mxu0 %v2201
        %v2334 = vpop.f32.mrf.mxu0
        %v2335 = vadd.f32 %v2245, %v2334
        %v2336 = vpop.f32.mrf.mxu0
        %v2337 = vadd.f32 %v2245, %v2336
        %2338 = vmatmul.bf16.gmra.mxu0 %v2202
        %v2339 = vpop.f32.mrf.mxu0
        %v2340 = vadd.f32 %v2245, %v2339
        %v2341 = vpop.f32.mrf.mxu0
        %v2342 = vadd.f32 %v2245, %v2341
        %2343 = vmatmul.bf16.gmra.mxu0 %v2203
        %v2344 = vpop.f32.mrf.mxu0
        %v2345 = vadd.f32 %v2245, %v2344
        %v2346 = vpop.f32.mrf.mxu0
        %v2347 = vadd.f32 %v2245, %v2346
        %2348 = vmatmul.bf16.gmra.mxu0 %v2204
        %v2349 = vpop.f32.mrf.mxu0
        %v2350 = vadd.f32 %v2245, %v2349
        %v2351 = vpop.f32.mrf.mxu0
        %v2352 = vadd.f32 %v2245, %v2351
        %2353 = vmatmul.bf16.gmra.mxu0 %v2205
        %v2354 = vpop.f32.mrf.mxu0
        %v2355 = vadd.f32 %v2245, %v2354
        %v2356 = vpop.f32.mrf.mxu0
        %v2357 = vadd.f32 %v2245, %v2356
        %2358 = vmatmul.bf16.gmra.mxu0 %v2206
        %v2359 = vpop.f32.mrf.mxu0
        %v2360 = vadd.f32 %v2245, %v2359
        %v2361 = vpop.f32.mrf.mxu0
        %v2362 = vadd.f32 %v2245, %v2361
        %2363 = vmatmul.bf16.gmra.mxu0 %v2207
        %v2364 = vpop.f32.mrf.mxu0
        %v2365 = vadd.f32 %v2245, %v2364
        %v2366 = vpop.f32.mrf.mxu0
        %v2367 = vadd.f32 %v2245, %v2366
        %2368 = vmatmul.bf16.gmra.mxu0 %v2208
        %v2369 = vpop.f32.mrf.mxu0
        %v2370 = vadd.f32 %v2245, %v2369
        %v2371 = vpop.f32.mrf.mxu0
        %v2372 = vadd.f32 %v2245, %v2371
        %2373 = vmatmul.bf16.gmra.mxu0 %v2209
        %v2374 = vpop.f32.mrf.mxu0
        %v2375 = vadd.f32 %v2245, %v2374
        %v2376 = vpop.f32.mrf.mxu0
        %v2377 = vadd.f32 %v2245, %v2376
        %2378 = vmatmul.bf16.gmra.mxu0 %v2210
        %v2379 = vpop.f32.mrf.mxu0
        %v2380 = vadd.f32 %v2245, %v2379
        %v2381 = vpop.f32.mrf.mxu0
        %v2382 = vadd.f32 %v2245, %v2381
        %2383 = vmatmul.bf16.gmra.mxu0 %v2211
        %v2384 = vpop.f32.mrf.mxu0
        %v2385 = vadd.f32 %v2245, %v2384
        %v2386 = vpop.f32.mrf.mxu0
        %v2387 = vadd.f32 %v2245, %v2386
        %2388 = vmatmul.bf16.gmra.mxu0 %v2212
        %v2389 = vpop.f32.mrf.mxu0
        %v2390 = vadd.f32 %v2245, %v2389
        %v2391 = vpop.f32.mrf.mxu0
        %v2392 = vadd.f32 %v2245, %v2391
        %2393 = vmatmul.bf16.gmra.mxu0 %v2213
        %v2394 = vpop.f32.mrf.mxu0
        %v2395 = vadd.f32 %v2245, %v2394
        %v2396 = vpop.f32.mrf.mxu0
        %v2397 = vadd.f32 %v2245, %v2396
        %2398 = vmatmul.bf16.gmra.mxu0 %v2214
        %v2399 = vpop.f32.mrf.mxu0
        %v2400 = vadd.f32 %v2245, %v2399
        %v2401 = vpop.f32.mrf.mxu0
        %v2402 = vadd.f32 %v2245, %v2401
        %2403 = vmatmul.bf16.gmra.mxu0 %v2215
        %v2404 = vpop.f32.mrf.mxu0
        %v2405 = vadd.f32 %v2245, %v2404
        %v2406 = vpop.f32.mrf.mxu0
        %v2407 = vadd.f32 %v2245, %v2406
        %2408 = vmatmul.bf16.gmra.mxu0 %v2216
        %v2409 = vpop.f32.mrf.mxu0
        %v2410 = vadd.f32 %v2245, %v2409
        %v2411 = vpop.f32.mrf.mxu0
        %v2412 = vadd.f32 %v2245, %v2411
        %2413 = vmatmul.bf16.gmra.mxu0 %v2217
        %v2414 = vpop.f32.mrf.mxu0
        %v2415 = vadd.f32 %v2245, %v2414
        %v2416 = vpop.f32.mrf.mxu0
        %v2417 = vadd.f32 %v2245, %v2416
        %2418 = vmatmul.bf16.gmra.mxu0 %v2218
        %v2419 = vpop.f32.mrf.mxu0
        %v2420 = vadd.f32 %v2245, %v2419
        %v2421 = vpop.f32.mrf.mxu0
        %v2422 = vadd.f32 %v2245, %v2421
        %2423 = vmatmul.bf16.gmra.mxu0 %v2219
        %v2424 = vpop.f32.mrf.mxu0
        %v2425 = vadd.f32 %v2245, %v2424
        %v2426 = vpop.f32.mrf.mxu0
        %v2427 = vadd.f32 %v2245, %v2426
        %2428 = vmatmul.bf16.gmra.mxu0 %v2220
        %v2429 = vpop.f32.mrf.mxu0
        %v2430 = vadd.f32 %v2245, %v2429
        %v2431 = vpop.f32.mrf.mxu0
        %v2432 = vadd.f32 %v2245, %v2431
        %2433 = vmatmul.bf16.gmra.mxu0 %v2221
        %v2434 = vpop.f32.mrf.mxu0
        %v2435 = vadd.f32 %v2245, %v2434
        %v2436 = vpop.f32.mrf.mxu0
        %v2437 = vadd.f32 %v2245, %v2436
        %2438 = vmatmul.bf16.gmra.mxu0 %v2222
        %v2439 = vpop.f32.mrf.mxu0
        %v2440 = vadd.f32 %v2245, %v2439
        %v2441 = vpop.f32.mrf.mxu0
        %v2442 = vadd.f32 %v2245, %v2441
        %2443 = vmatmul.bf16.gmra.mxu0 %v2223
        %v2444 = vpop.f32.mrf.mxu0
        %v2445 = vadd.f32 %v2245, %v2444
        %v2446 = vpop.f32.mrf.mxu0
        %v2447 = vadd.f32 %v2245, %v2446
        %2448 = vmatmul.bf16.gmra.mxu0 %v2224
        %v2449 = vpop.f32.mrf.mxu0
        %v2450 = vadd.f32 %v2245, %v2449
        %v2451 = vpop.f32.mrf.mxu0
        %v2452 = vadd.f32 %v2245, %v2451
        %2453 = vmatmul.bf16.gmra.mxu0 %v2225
        %v2454 = vpop.f32.mrf.mxu0
        %v2455 = vadd.f32 %v2245, %v2454
        %v2456 = vpop.f32.mrf.mxu0
        %v2457 = vadd.f32 %v2245, %v2456
        %2458 = vmatmul.bf16.gmra.mxu0 %v2226
        %v2459 = vpop.f32.mrf.mxu0
        %v2460 = vadd.f32 %v2245, %v2459
        %v2461 = vpop.f32.mrf.mxu0
        %v2462 = vadd.f32 %v2245, %v2461
        %2463 = vdwg.mxu0
        %v2464 = vmax.f32 %v2305, 0.0
        %v2465 = vmax.f32 %v2307, 0.0
        %v2466 = vmax.f32 %v2310, 0.0
        %v2467 = vmax.f32 %v2312, 0.0
        %v2468 = vmax.f32 %v2315, 0.0
        %v2469 = vmax.f32 %v2317, 0.0
        %v2470 = vmax.f32 %v2320, 0.0
        %v2471 = vmax.f32 %v2322, 0.0
        %v2472 = vmax.f32 %v2325, 0.0
        %v2473 = vmax.f32 %v2327, 0.0
        %v2474 = vmax.f32 %v2330, 0.0
        %v2475 = vmax.f32 %v2332, 0.0
        %v2476 = vmax.f32 %v2335, 0.0
        %v2477 = vmax.f32 %v2337, 0.0
        %v2478 = vmax.f32 %v2340, 0.0
        %v2479 = vmax.f32 %v2342, 0.0
        %v2480 = vmax.f32 %v2345, 0.0
        %v2481 = vmax.f32 %v2347, 0.0
        %v2482 = vmax.f32 %v2350, 0.0
        %v2483 = vmax.f32 %v2352, 0.0
        %v2484 = vmax.f32 %v2355, 0.0
        %v2485 = vmax.f32 %v2357, 0.0
        %v2486 = vmax.f32 %v2360, 0.0
        %v2487 = vmax.f32 %v2362, 0.0
        %v2488 = vmax.f32 %v2365, 0.0
        %v2489 = vmax.f32 %v2367, 0.0
        %v2490 = vmax.f32 %v2370, 0.0
        %v2491 = vmax.f32 %v2372, 0.0
        %v2492 = vmax.f32 %v2375, 0.0
        %v2493 = vmax.f32 %v2377, 0.0
        %v2494 = vmax.f32 %v2380, 0.0
        %v2495 = vmax.f32 %v2382, 0.0
        %v2496 = vmax.f32 %v2385, 0.0
        %v2497 = vmax.f32 %v2387, 0.0
        %v2498 = vmax.f32 %v2390, 0.0
        %v2499 = vmax.f32 %v2392, 0.0
        %v2500 = vmax.f32 %v2395, 0.0
        %v2501 = vmax.f32 %v2397, 0.0
        %v2502 = vmax.f32 %v2400, 0.0
        %v2503 = vmax.f32 %v2402, 0.0
        %v2504 = vmax.f32 %v2405, 0.0
        %v2505 = vmax.f32 %v2407, 0.0
        %v2506 = vmax.f32 %v2410, 0.0
        %v2507 = vmax.f32 %v2412, 0.0
        %v2508 = vmax.f32 %v2415, 0.0
        %v2509 = vmax.f32 %v2417, 0.0
        %v2510 = vmax.f32 %v2420, 0.0
        %v2511 = vmax.f32 %v2422, 0.0
        %v2512 = vmax.f32 %v2425, 0.0
        %v2513 = vmax.f32 %v2427, 0.0
        %v2514 = vmax.f32 %v2430, 0.0
        %v2515 = vmax.f32 %v2432, 0.0
        %v2516 = vmax.f32 %v2435, 0.0
        %v2517 = vmax.f32 %v2437, 0.0
        %v2518 = vmax.f32 %v2440, 0.0
        %v2519 = vmax.f32 %v2442, 0.0
        %v2520 = vmax.f32 %v2445, 0.0
        %v2521 = vmax.f32 %v2447, 0.0
        %v2522 = vmax.f32 %v2450, 0.0
        %v2523 = vmax.f32 %v2452, 0.0
        %v2524 = vmax.f32 %v2455, 0.0
        %v2525 = vmax.f32 %v2457, 0.0
        %v2526 = vmax.f32 %v2460, 0.0
        %v2527 = vmax.f32 %v2462, 0.0
        %v2528 = vpack.c.bf16 %v2465, %v2464
        %v2529 = vpack.c.bf16 %v2467, %v2466
        %v2530 = vpack.c.bf16 %v2469, %v2468
        %v2531 = vpack.c.bf16 %v2471, %v2470
        %v2532 = vpack.c.bf16 %v2473, %v2472
        %v2533 = vpack.c.bf16 %v2475, %v2474
        %v2534 = vpack.c.bf16 %v2477, %v2476
        %v2535 = vpack.c.bf16 %v2479, %v2478
        %v2536 = vpack.c.bf16 %v2481, %v2480
        %v2537 = vpack.c.bf16 %v2483, %v2482
        %v2538 = vpack.c.bf16 %v2485, %v2484
        %v2539 = vpack.c.bf16 %v2487, %v2486
        %v2540 = vpack.c.bf16 %v2489, %v2488
        %v2541 = vpack.c.bf16 %v2491, %v2490
        %v2542 = vpack.c.bf16 %v2493, %v2492
        %v2543 = vpack.c.bf16 %v2495, %v2494
        %v2544 = vpack.c.bf16 %v2497, %v2496
        %v2545 = vpack.c.bf16 %v2499, %v2498
        %v2546 = vpack.c.bf16 %v2501, %v2500
        %v2547 = vpack.c.bf16 %v2503, %v2502
        %v2548 = vpack.c.bf16 %v2505, %v2504
        %v2549 = vpack.c.bf16 %v2507, %v2506
        %v2550 = vpack.c.bf16 %v2509, %v2508
        %v2551 = vpack.c.bf16 %v2511, %v2510
        %v2552 = vpack.c.bf16 %v2513, %v2512
        %v2553 = vpack.c.bf16 %v2515, %v2514
        %v2554 = vpack.c.bf16 %v2517, %v2516
        %v2555 = vpack.c.bf16 %v2519, %v2518
        %v2556 = vpack.c.bf16 %v2521, %v2520
        %v2557 = vpack.c.bf16 %v2523, %v2522
        %v2558 = vpack.c.bf16 %v2525, %v2524
        %v2559 = vpack.c.bf16 %v2527, %v2526
        %v2560 = vld [vmem:[#allocation11] sm:$0xf]
        %v2561 = vld [vmem:[#allocation11 + $0x4] sm:$0xf]
        %v2562 = vld [vmem:[#allocation11 + $0x8] sm:$0xf]
        %v2563 = vld [vmem:[#allocation11 + $0xc] sm:$0xf]
        %v2564 = vld [vmem:[#allocation11 + $0x10] sm:$0xf]
        %v2565 = vld [vmem:[#allocation11 + $0x14] sm:$0xf]
        %v2566 = vld [vmem:[#allocation11 + $0x18] sm:$0xf]
        %v2567 = vld [vmem:[#allocation11 + $0x1c] sm:$0xf]
        %v2568 = vld [vmem:[#allocation11 + $0x20] sm:$0xf]
        %v2569 = vld [vmem:[#allocation11 + $0x24] sm:$0xf]
        %v2570 = vld [vmem:[#allocation11 + $0x28] sm:$0xf]
        %v2571 = vld [vmem:[#allocation11 + $0x2c] sm:$0xf]
        %v2572 = vld [vmem:[#allocation11 + $0x30] sm:$0xf]
        %v2573 = vld [vmem:[#allocation11 + $0x34] sm:$0xf]
        %v2574 = vld [vmem:[#allocation11 + $0x38] sm:$0xf]
        %v2575 = vld [vmem:[#allocation11 + $0x3c] sm:$0xf]
        %v2576 = vld [vmem:[%s6] sm:$0x1]
        %v2578 = vperm.slane %v2576, 0
        %v2596 = vunpack.c.l.b16 %v2560
        %v2597 = vunpack.c.l.b16 %v2561
        %v2598 = vunpack.c.l.b16 %v2562
        %v2599 = vunpack.c.l.b16 %v2563
        %v2600 = vunpack.c.l.b16 %v2564
        %v2601 = vunpack.c.l.b16 %v2565
        %v2602 = vunpack.c.l.b16 %v2566
        %v2603 = vunpack.c.l.b16 %v2567
        %v2604 = vunpack.c.l.b16 %v2568
        %v2605 = vunpack.c.l.b16 %v2569
        %v2606 = vunpack.c.l.b16 %v2570
        %v2607 = vunpack.c.l.b16 %v2571
        %v2608 = vunpack.c.l.b16 %v2572
        %v2609 = vunpack.c.l.b16 %v2573
        %v2610 = vunpack.c.l.b16 %v2574
        %v2611 = vunpack.c.l.b16 %v2575
        %v2612 = vpack.c.b16 %v2597, %v2596
        %v2613 = vpack.c.b16 %v2599, %v2598
        %v2614 = vpack.c.b16 %v2601, %v2600
        %v2615 = vpack.c.b16 %v2603, %v2602
        %v2616 = vpack.c.b16 %v2605, %v2604
        %v2617 = vpack.c.b16 %v2607, %v2606
        %v2618 = vpack.c.b16 %v2609, %v2608
        %v2619 = vpack.c.b16 %v2611, %v2610
        %2628 = vmatpush.bf16.msra.mxu0 %v2619
        %2629 = vmatpush.bf16.msra.mxu0 %v2618
        %2630 = vmatpush.bf16.msra.mxu0 %v2617
        %2631 = vmatpush.bf16.msra.mxu0 %v2616
        %2632 = vmatpush.bf16.msra.mxu0 %v2615
        %2633 = vmatpush.bf16.msra.mxu0 %v2614
        %2634 = vmatpush.bf16.msra.mxu0 %v2613
        %2635 = vmatpush.bf16.msra.mxu0 %v2612
        %2636 = vmatmul.bf16.gmra.mxu0 %v2528
        %v2637 = vpop.f32.mrf.mxu0
        %v2638 = vadd.f32 %v2578, %v2637
        %v2639 = vpop.f32.mrf.mxu0
        %v2640 = vadd.f32 %v2578, %v2639
        %2641 = vmatmul.bf16.gmra.mxu0 %v2529
        %v2642 = vpop.f32.mrf.mxu0
        %v2643 = vadd.f32 %v2578, %v2642
        %v2644 = vpop.f32.mrf.mxu0
        %v2645 = vadd.f32 %v2578, %v2644
        %2646 = vmatmul.bf16.gmra.mxu0 %v2530
        %v2647 = vpop.f32.mrf.mxu0
        %v2648 = vadd.f32 %v2578, %v2647
        %v2649 = vpop.f32.mrf.mxu0
        %v2650 = vadd.f32 %v2578, %v2649
        %2651 = vmatmul.bf16.gmra.mxu0 %v2531
        %v2652 = vpop.f32.mrf.mxu0
        %v2653 = vadd.f32 %v2578, %v2652
        %v2654 = vpop.f32.mrf.mxu0
        %v2655 = vadd.f32 %v2578, %v2654
        %2656 = vmatmul.bf16.gmra.mxu0 %v2532
        %v2657 = vpop.f32.mrf.mxu0
        %v2658 = vadd.f32 %v2578, %v2657
        %v2659 = vpop.f32.mrf.mxu0
        %v2660 = vadd.f32 %v2578, %v2659
        %2661 = vmatmul.bf16.gmra.mxu0 %v2533
        %v2662 = vpop.f32.mrf.mxu0
        %v2663 = vadd.f32 %v2578, %v2662
        %v2664 = vpop.f32.mrf.mxu0
        %v2665 = vadd.f32 %v2578, %v2664
        %2666 = vmatmul.bf16.gmra.mxu0 %v2534
        %v2667 = vpop.f32.mrf.mxu0
        %v2668 = vadd.f32 %v2578, %v2667
        %v2669 = vpop.f32.mrf.mxu0
        %v2670 = vadd.f32 %v2578, %v2669
        %2671 = vmatmul.bf16.gmra.mxu0 %v2535
        %v2672 = vpop.f32.mrf.mxu0
        %v2673 = vadd.f32 %v2578, %v2672
        %v2674 = vpop.f32.mrf.mxu0
        %v2675 = vadd.f32 %v2578, %v2674
        %2676 = vmatmul.bf16.gmra.mxu0 %v2536
        %v2677 = vpop.f32.mrf.mxu0
        %v2678 = vadd.f32 %v2578, %v2677
        %v2679 = vpop.f32.mrf.mxu0
        %v2680 = vadd.f32 %v2578, %v2679
        %2681 = vmatmul.bf16.gmra.mxu0 %v2537
        %v2682 = vpop.f32.mrf.mxu0
        %v2683 = vadd.f32 %v2578, %v2682
        %v2684 = vpop.f32.mrf.mxu0
        %v2685 = vadd.f32 %v2578, %v2684
        %2686 = vmatmul.bf16.gmra.mxu0 %v2538
        %v2687 = vpop.f32.mrf.mxu0
        %v2688 = vadd.f32 %v2578, %v2687
        %v2689 = vpop.f32.mrf.mxu0
        %v2690 = vadd.f32 %v2578, %v2689
        %2691 = vmatmul.bf16.gmra.mxu0 %v2539
        %v2692 = vpop.f32.mrf.mxu0
        %v2693 = vadd.f32 %v2578, %v2692
        %v2694 = vpop.f32.mrf.mxu0
        %v2695 = vadd.f32 %v2578, %v2694
        %2696 = vmatmul.bf16.gmra.mxu0 %v2540
        %v2697 = vpop.f32.mrf.mxu0
        %v2698 = vadd.f32 %v2578, %v2697
        %v2699 = vpop.f32.mrf.mxu0
        %v2700 = vadd.f32 %v2578, %v2699
        %2701 = vmatmul.bf16.gmra.mxu0 %v2541
        %v2702 = vpop.f32.mrf.mxu0
        %v2703 = vadd.f32 %v2578, %v2702
        %v2704 = vpop.f32.mrf.mxu0
        %v2705 = vadd.f32 %v2578, %v2704
        %2706 = vmatmul.bf16.gmra.mxu0 %v2542
        %v2707 = vpop.f32.mrf.mxu0
        %v2708 = vadd.f32 %v2578, %v2707
        %v2709 = vpop.f32.mrf.mxu0
        %v2710 = vadd.f32 %v2578, %v2709
        %2711 = vmatmul.bf16.gmra.mxu0 %v2543
        %v2712 = vpop.f32.mrf.mxu0
        %v2713 = vadd.f32 %v2578, %v2712
        %v2714 = vpop.f32.mrf.mxu0
        %v2715 = vadd.f32 %v2578, %v2714
        %2716 = vmatmul.bf16.gmra.mxu0 %v2544
        %v2717 = vpop.f32.mrf.mxu0
        %v2718 = vadd.f32 %v2578, %v2717
        %v2719 = vpop.f32.mrf.mxu0
        %v2720 = vadd.f32 %v2578, %v2719
        %2721 = vmatmul.bf16.gmra.mxu0 %v2545
        %v2722 = vpop.f32.mrf.mxu0
        %v2723 = vadd.f32 %v2578, %v2722
        %v2724 = vpop.f32.mrf.mxu0
        %v2725 = vadd.f32 %v2578, %v2724
        %2726 = vmatmul.bf16.gmra.mxu0 %v2546
        %v2727 = vpop.f32.mrf.mxu0
        %v2728 = vadd.f32 %v2578, %v2727
        %v2729 = vpop.f32.mrf.mxu0
        %v2730 = vadd.f32 %v2578, %v2729
        %2731 = vmatmul.bf16.gmra.mxu0 %v2547
        %v2732 = vpop.f32.mrf.mxu0
        %v2733 = vadd.f32 %v2578, %v2732
        %v2734 = vpop.f32.mrf.mxu0
        %v2735 = vadd.f32 %v2578, %v2734
        %2736 = vmatmul.bf16.gmra.mxu0 %v2548
        %v2737 = vpop.f32.mrf.mxu0
        %v2738 = vadd.f32 %v2578, %v2737
        %v2739 = vpop.f32.mrf.mxu0
        %v2740 = vadd.f32 %v2578, %v2739
        %2741 = vmatmul.bf16.gmra.mxu0 %v2549
        %v2742 = vpop.f32.mrf.mxu0
        %v2743 = vadd.f32 %v2578, %v2742
        %v2744 = vpop.f32.mrf.mxu0
        %v2745 = vadd.f32 %v2578, %v2744
        %2746 = vmatmul.bf16.gmra.mxu0 %v2550
        %v2747 = vpop.f32.mrf.mxu0
        %v2748 = vadd.f32 %v2578, %v2747
        %v2749 = vpop.f32.mrf.mxu0
        %v2750 = vadd.f32 %v2578, %v2749
        %2751 = vmatmul.bf16.gmra.mxu0 %v2551
        %v2752 = vpop.f32.mrf.mxu0
        %v2753 = vadd.f32 %v2578, %v2752
        %v2754 = vpop.f32.mrf.mxu0
        %v2755 = vadd.f32 %v2578, %v2754
        %2756 = vmatmul.bf16.gmra.mxu0 %v2552
        %v2757 = vpop.f32.mrf.mxu0
        %v2758 = vadd.f32 %v2578, %v2757
        %v2759 = vpop.f32.mrf.mxu0
        %v2760 = vadd.f32 %v2578, %v2759
        %2761 = vmatmul.bf16.gmra.mxu0 %v2553
        %v2762 = vpop.f32.mrf.mxu0
        %v2763 = vadd.f32 %v2578, %v2762
        %v2764 = vpop.f32.mrf.mxu0
        %v2765 = vadd.f32 %v2578, %v2764
        %2766 = vmatmul.bf16.gmra.mxu0 %v2554
        %v2767 = vpop.f32.mrf.mxu0
        %v2768 = vadd.f32 %v2578, %v2767
        %v2769 = vpop.f32.mrf.mxu0
        %v2770 = vadd.f32 %v2578, %v2769
        %2771 = vmatmul.bf16.gmra.mxu0 %v2555
        %v2772 = vpop.f32.mrf.mxu0
        %v2773 = vadd.f32 %v2578, %v2772
        %v2774 = vpop.f32.mrf.mxu0
        %v2775 = vadd.f32 %v2578, %v2774
        %2776 = vmatmul.bf16.gmra.mxu0 %v2556
        %v2777 = vpop.f32.mrf.mxu0
        %v2778 = vadd.f32 %v2578, %v2777
        %v2779 = vpop.f32.mrf.mxu0
        %v2780 = vadd.f32 %v2578, %v2779
        %2781 = vmatmul.bf16.gmra.mxu0 %v2557
        %v2782 = vpop.f32.mrf.mxu0
        %v2783 = vadd.f32 %v2578, %v2782
        %v2784 = vpop.f32.mrf.mxu0
        %v2785 = vadd.f32 %v2578, %v2784
        %2786 = vmatmul.bf16.gmra.mxu0 %v2558
        %v2787 = vpop.f32.mrf.mxu0
        %v2788 = vadd.f32 %v2578, %v2787
        %v2789 = vpop.f32.mrf.mxu0
        %v2790 = vadd.f32 %v2578, %v2789
        %2791 = vmatmul.bf16.gmra.mxu0 %v2559
        %v2792 = vpop.f32.mrf.mxu0
        %v2793 = vadd.f32 %v2578, %v2792
        %v2794 = vpop.f32.mrf.mxu0
        %v2795 = vadd.f32 %v2578, %v2794
        %2796 = vdwg.mxu0
        %v2797 = vmax.f32 %v2638, 0.0
        %v2798 = vmax.f32 %v2640, 0.0
        %v2799 = vmax.f32 %v2643, 0.0
        %v2800 = vmax.f32 %v2645, 0.0
        %v2801 = vmax.f32 %v2648, 0.0
        %v2802 = vmax.f32 %v2650, 0.0
        %v2803 = vmax.f32 %v2653, 0.0
        %v2804 = vmax.f32 %v2655, 0.0
        %v2805 = vmax.f32 %v2658, 0.0
        %v2806 = vmax.f32 %v2660, 0.0
        %v2807 = vmax.f32 %v2663, 0.0
        %v2808 = vmax.f32 %v2665, 0.0
        %v2809 = vmax.f32 %v2668, 0.0
        %v2810 = vmax.f32 %v2670, 0.0
        %v2811 = vmax.f32 %v2673, 0.0
        %v2812 = vmax.f32 %v2675, 0.0
        %v2813 = vmax.f32 %v2678, 0.0
        %v2814 = vmax.f32 %v2680, 0.0
        %v2815 = vmax.f32 %v2683, 0.0
        %v2816 = vmax.f32 %v2685, 0.0
        %v2817 = vmax.f32 %v2688, 0.0
        %v2818 = vmax.f32 %v2690, 0.0
        %v2819 = vmax.f32 %v2693, 0.0
        %v2820 = vmax.f32 %v2695, 0.0
        %v2821 = vmax.f32 %v2698, 0.0
        %v2822 = vmax.f32 %v2700, 0.0
        %v2823 = vmax.f32 %v2703, 0.0
        %v2824 = vmax.f32 %v2705, 0.0
        %v2825 = vmax.f32 %v2708, 0.0
        %v2826 = vmax.f32 %v2710, 0.0
        %v2827 = vmax.f32 %v2713, 0.0
        %v2828 = vmax.f32 %v2715, 0.0
        %v2829 = vmax.f32 %v2718, 0.0
        %v2830 = vmax.f32 %v2720, 0.0
        %v2831 = vmax.f32 %v2723, 0.0
        %v2832 = vmax.f32 %v2725, 0.0
        %v2833 = vmax.f32 %v2728, 0.0
        %v2834 = vmax.f32 %v2730, 0.0
        %v2835 = vmax.f32 %v2733, 0.0
        %v2836 = vmax.f32 %v2735, 0.0
        %v2837 = vmax.f32 %v2738, 0.0
        %v2838 = vmax.f32 %v2740, 0.0
        %v2839 = vmax.f32 %v2743, 0.0
        %v2840 = vmax.f32 %v2745, 0.0
        %v2841 = vmax.f32 %v2748, 0.0
        %v2842 = vmax.f32 %v2750, 0.0
        %v2843 = vmax.f32 %v2753, 0.0
        %v2844 = vmax.f32 %v2755, 0.0
        %v2845 = vmax.f32 %v2758, 0.0
        %v2846 = vmax.f32 %v2760, 0.0
        %v2847 = vmax.f32 %v2763, 0.0
        %v2848 = vmax.f32 %v2765, 0.0
        %v2849 = vmax.f32 %v2768, 0.0
        %v2850 = vmax.f32 %v2770, 0.0
        %v2851 = vmax.f32 %v2773, 0.0
        %v2852 = vmax.f32 %v2775, 0.0
        %v2853 = vmax.f32 %v2778, 0.0
        %v2854 = vmax.f32 %v2780, 0.0
        %v2855 = vmax.f32 %v2783, 0.0
        %v2856 = vmax.f32 %v2785, 0.0
        %v2857 = vmax.f32 %v2788, 0.0
        %v2858 = vmax.f32 %v2790, 0.0
        %v2859 = vmax.f32 %v2793, 0.0
        %v2860 = vmax.f32 %v2795, 0.0
        %v2861 = vpack.c.bf16 %v2797, %v2797
        %v2862 = vpack.c.bf16 %v2798, %v2798
        %v2863 = vpack.c.bf16 %v2799, %v2799
        %v2864 = vpack.c.bf16 %v2800, %v2800
        %v2865 = vpack.c.bf16 %v2801, %v2801
        %v2866 = vpack.c.bf16 %v2802, %v2802
        %v2867 = vpack.c.bf16 %v2803, %v2803
        %v2868 = vpack.c.bf16 %v2804, %v2804
        %v2869 = vpack.c.bf16 %v2805, %v2805
        %v2870 = vpack.c.bf16 %v2806, %v2806
        %v2871 = vpack.c.bf16 %v2807, %v2807
        %v2872 = vpack.c.bf16 %v2808, %v2808
        %v2873 = vpack.c.bf16 %v2809, %v2809
        %v2874 = vpack.c.bf16 %v2810, %v2810
        %v2875 = vpack.c.bf16 %v2811, %v2811
        %v2876 = vpack.c.bf16 %v2812, %v2812
        %v2877 = vpack.c.bf16 %v2813, %v2813
        %v2878 = vpack.c.bf16 %v2814, %v2814
        %v2879 = vpack.c.bf16 %v2815, %v2815
        %v2880 = vpack.c.bf16 %v2816, %v2816
        %v2881 = vpack.c.bf16 %v2817, %v2817
        %v2882 = vpack.c.bf16 %v2818, %v2818
        %v2883 = vpack.c.bf16 %v2819, %v2819
        %v2884 = vpack.c.bf16 %v2820, %v2820
        %v2885 = vpack.c.bf16 %v2821, %v2821
        %v2886 = vpack.c.bf16 %v2822, %v2822
        %v2887 = vpack.c.bf16 %v2823, %v2823
        %v2888 = vpack.c.bf16 %v2824, %v2824
        %v2889 = vpack.c.bf16 %v2825, %v2825
        %v2890 = vpack.c.bf16 %v2826, %v2826
        %v2891 = vpack.c.bf16 %v2827, %v2827
        %v2892 = vpack.c.bf16 %v2828, %v2828
        %v2893 = vpack.c.bf16 %v2829, %v2829
        %v2894 = vpack.c.bf16 %v2830, %v2830
        %v2895 = vpack.c.bf16 %v2831, %v2831
        %v2896 = vpack.c.bf16 %v2832, %v2832
        %v2897 = vpack.c.bf16 %v2833, %v2833
        %v2898 = vpack.c.bf16 %v2834, %v2834
        %v2899 = vpack.c.bf16 %v2835, %v2835
        %v2900 = vpack.c.bf16 %v2836, %v2836
        %v2901 = vpack.c.bf16 %v2837, %v2837
        %v2902 = vpack.c.bf16 %v2838, %v2838
        %v2903 = vpack.c.bf16 %v2839, %v2839
        %v2904 = vpack.c.bf16 %v2840, %v2840
        %v2905 = vpack.c.bf16 %v2841, %v2841
        %v2906 = vpack.c.bf16 %v2842, %v2842
        %v2907 = vpack.c.bf16 %v2843, %v2843
        %v2908 = vpack.c.bf16 %v2844, %v2844
        %v2909 = vpack.c.bf16 %v2845, %v2845
        %v2910 = vpack.c.bf16 %v2846, %v2846
        %v2911 = vpack.c.bf16 %v2847, %v2847
        %v2912 = vpack.c.bf16 %v2848, %v2848
        %v2913 = vpack.c.bf16 %v2849, %v2849
        %v2914 = vpack.c.bf16 %v2850, %v2850
        %v2915 = vpack.c.bf16 %v2851, %v2851
        %v2916 = vpack.c.bf16 %v2852, %v2852
        %v2917 = vpack.c.bf16 %v2853, %v2853
        %v2918 = vpack.c.bf16 %v2854, %v2854
        %v2919 = vpack.c.bf16 %v2855, %v2855
        %v2920 = vpack.c.bf16 %v2856, %v2856
        %v2921 = vpack.c.bf16 %v2857, %v2857
        %v2922 = vpack.c.bf16 %v2858, %v2858
        %v2923 = vpack.c.bf16 %v2859, %v2859
        %v2924 = vpack.c.bf16 %v2860, %v2860
        %v2925 = vpack.c.bf16 %v1881, %v1876
        %v2926 = vpack.c.bf16 %v1891, %v1886
        %v2927 = vpack.c.bf16 %v1901, %v1896
        %v2928 = vpack.c.bf16 %v1911, %v1906
        %v2929 = vpack.c.bf16 %v1921, %v1916
        %v2930 = vpack.c.bf16 %v1931, %v1926
        %v2931 = vpack.c.bf16 %v1941, %v1936
        %v2932 = vpack.c.bf16 %v1951, %v1946
        %v2933 = vpack.c.bf16 %v1961, %v1956
        %v2934 = vpack.c.bf16 %v1971, %v1966
        %v2935 = vpack.c.bf16 %v1981, %v1976
        %v2936 = vpack.c.bf16 %v1991, %v1986
        %v2937 = vpack.c.bf16 %v2001, %v1996
        %v2938 = vpack.c.bf16 %v2011, %v2006
        %v2939 = vpack.c.bf16 %v2021, %v2016
        %v2940 = vpack.c.bf16 %v2031, %v2026
        %v2941 = vpack.c.bf16 %v2041, %v2036
        %v2942 = vpack.c.bf16 %v2051, %v2046
        %v2943 = vpack.c.bf16 %v2061, %v2056
        %v2944 = vpack.c.bf16 %v2071, %v2066
        %v2945 = vpack.c.bf16 %v2081, %v2076
        %v2946 = vpack.c.bf16 %v2091, %v2086
        %v2947 = vpack.c.bf16 %v2101, %v2096
        %v2948 = vpack.c.bf16 %v2111, %v2106
        %v2949 = vpack.c.bf16 %v2121, %v2116
        %v2950 = vpack.c.bf16 %v2131, %v2126
        %v2951 = vpack.c.bf16 %v2141, %v2136
        %v2952 = vpack.c.bf16 %v2151, %v2146
        %v2953 = vpack.c.bf16 %v2161, %v2156
        %v2954 = vpack.c.bf16 %v2171, %v2166
        %v2955 = vpack.c.bf16 %v2181, %v2176
        %v2956 = vpack.c.bf16 %v2191, %v2186
        %s2957 = scalar_lea.vmem [#allocation8], 64
        %v2958 = vld [vmem:[%s2957] sm:$0xf]
        %v2959 = vld [vmem:[%s2957 + $0x4] sm:$0xf]
        %v2960 = vld [vmem:[%s2957 + $0x8] sm:$0xf]
        %v2961 = vld [vmem:[%s2957 + $0xc] sm:$0xf]
        %v2962 = vld [vmem:[%s2957 + $0x10] sm:$0xf]
        %v2963 = vld [vmem:[%s2957 + $0x14] sm:$0xf]
        %v2964 = vld [vmem:[%s2957 + $0x18] sm:$0xf]
        %v2965 = vld [vmem:[%s2957 + $0x1c] sm:$0xf]
        %v2966 = vld [vmem:[%s2957 + $0x20] sm:$0xf]
        %v2967 = vld [vmem:[%s2957 + $0x24] sm:$0xf]
        %v2968 = vld [vmem:[%s2957 + $0x28] sm:$0xf]
        %v2969 = vld [vmem:[%s2957 + $0x2c] sm:$0xf]
        %v2970 = vld [vmem:[%s2957 + $0x30] sm:$0xf]
        %v2971 = vld [vmem:[%s2957 + $0x34] sm:$0xf]
        %v2972 = vld [vmem:[%s2957 + $0x38] sm:$0xf]
        %v2973 = vld [vmem:[%s2957 + $0x3c] sm:$0xf]
        %s2974 = scalar_lea.vmem [#allocation10], 1
        %v2975 = vld [vmem:[%s2974] sm:$0x1]
        %v2977 = vperm.slane %v2975, 0
        %v2995 = vunpack.c.l.b16 %v2958
        %v2996 = vunpack.c.l.b16 %v2959
        %v2997 = vunpack.c.l.b16 %v2960
        %v2998 = vunpack.c.l.b16 %v2961
        %v2999 = vunpack.c.l.b16 %v2962
        %v3000 = vunpack.c.l.b16 %v2963
        %v3001 = vunpack.c.l.b16 %v2964
        %v3002 = vunpack.c.l.b16 %v2965
        %v3003 = vunpack.c.l.b16 %v2966
        %v3004 = vunpack.c.l.b16 %v2967
        %v3005 = vunpack.c.l.b16 %v2968
        %v3006 = vunpack.c.l.b16 %v2969
        %v3007 = vunpack.c.l.b16 %v2970
        %v3008 = vunpack.c.l.b16 %v2971
        %v3009 = vunpack.c.l.b16 %v2972
        %v3010 = vunpack.c.l.b16 %v2973
        %v3011 = vpack.c.b16 %v2996, %v2995
        %v3012 = vpack.c.b16 %v2998, %v2997
        %v3013 = vpack.c.b16 %v3000, %v2999
        %v3014 = vpack.c.b16 %v3002, %v3001
        %v3015 = vpack.c.b16 %v3004, %v3003
        %v3016 = vpack.c.b16 %v3006, %v3005
        %v3017 = vpack.c.b16 %v3008, %v3007
        %v3018 = vpack.c.b16 %v3010, %v3009
        %3027 = vmatpush.bf16.msra.mxu0 %v3018
        %3028 = vmatpush.bf16.msra.mxu0 %v3017
        %3029 = vmatpush.bf16.msra.mxu0 %v3016
        %3030 = vmatpush.bf16.msra.mxu0 %v3015
        %3031 = vmatpush.bf16.msra.mxu0 %v3014
        %3032 = vmatpush.bf16.msra.mxu0 %v3013
        %3033 = vmatpush.bf16.msra.mxu0 %v3012
        %3034 = vmatpush.bf16.msra.mxu0 %v3011
        %3035 = vmatmul.bf16.gmra.mxu0 %v2925
        %v3036 = vpop.f32.mrf.mxu0
        %v3037 = vadd.f32 %v2977, %v3036
        %v3038 = vpop.f32.mrf.mxu0
        %v3039 = vadd.f32 %v2977, %v3038
        %3040 = vmatmul.bf16.gmra.mxu0 %v2926
        %v3041 = vpop.f32.mrf.mxu0
        %v3042 = vadd.f32 %v2977, %v3041
        %v3043 = vpop.f32.mrf.mxu0
        %v3044 = vadd.f32 %v2977, %v3043
        %3045 = vmatmul.bf16.gmra.mxu0 %v2927
        %v3046 = vpop.f32.mrf.mxu0
        %v3047 = vadd.f32 %v2977, %v3046
        %v3048 = vpop.f32.mrf.mxu0
        %v3049 = vadd.f32 %v2977, %v3048
        %3050 = vmatmul.bf16.gmra.mxu0 %v2928
        %v3051 = vpop.f32.mrf.mxu0
        %v3052 = vadd.f32 %v2977, %v3051
        %v3053 = vpop.f32.mrf.mxu0
        %v3054 = vadd.f32 %v2977, %v3053
        %3055 = vmatmul.bf16.gmra.mxu0 %v2929
        %v3056 = vpop.f32.mrf.mxu0
        %v3057 = vadd.f32 %v2977, %v3056
        %v3058 = vpop.f32.mrf.mxu0
        %v3059 = vadd.f32 %v2977, %v3058
        %3060 = vmatmul.bf16.gmra.mxu0 %v2930
        %v3061 = vpop.f32.mrf.mxu0
        %v3062 = vadd.f32 %v2977, %v3061
        %v3063 = vpop.f32.mrf.mxu0
        %v3064 = vadd.f32 %v2977, %v3063
        %3065 = vmatmul.bf16.gmra.mxu0 %v2931
        %v3066 = vpop.f32.mrf.mxu0
        %v3067 = vadd.f32 %v2977, %v3066
        %v3068 = vpop.f32.mrf.mxu0
        %v3069 = vadd.f32 %v2977, %v3068
        %3070 = vmatmul.bf16.gmra.mxu0 %v2932
        %v3071 = vpop.f32.mrf.mxu0
        %v3072 = vadd.f32 %v2977, %v3071
        %v3073 = vpop.f32.mrf.mxu0
        %v3074 = vadd.f32 %v2977, %v3073
        %3075 = vmatmul.bf16.gmra.mxu0 %v2933
        %v3076 = vpop.f32.mrf.mxu0
        %v3077 = vadd.f32 %v2977, %v3076
        %v3078 = vpop.f32.mrf.mxu0
        %v3079 = vadd.f32 %v2977, %v3078
        %3080 = vmatmul.bf16.gmra.mxu0 %v2934
        %v3081 = vpop.f32.mrf.mxu0
        %v3082 = vadd.f32 %v2977, %v3081
        %v3083 = vpop.f32.mrf.mxu0
        %v3084 = vadd.f32 %v2977, %v3083
        %3085 = vmatmul.bf16.gmra.mxu0 %v2935
        %v3086 = vpop.f32.mrf.mxu0
        %v3087 = vadd.f32 %v2977, %v3086
        %v3088 = vpop.f32.mrf.mxu0
        %v3089 = vadd.f32 %v2977, %v3088
        %3090 = vmatmul.bf16.gmra.mxu0 %v2936
        %v3091 = vpop.f32.mrf.mxu0
        %v3092 = vadd.f32 %v2977, %v3091
        %v3093 = vpop.f32.mrf.mxu0
        %v3094 = vadd.f32 %v2977, %v3093
        %3095 = vmatmul.bf16.gmra.mxu0 %v2937
        %v3096 = vpop.f32.mrf.mxu0
        %v3097 = vadd.f32 %v2977, %v3096
        %v3098 = vpop.f32.mrf.mxu0
        %v3099 = vadd.f32 %v2977, %v3098
        %3100 = vmatmul.bf16.gmra.mxu0 %v2938
        %v3101 = vpop.f32.mrf.mxu0
        %v3102 = vadd.f32 %v2977, %v3101
        %v3103 = vpop.f32.mrf.mxu0
        %v3104 = vadd.f32 %v2977, %v3103
        %3105 = vmatmul.bf16.gmra.mxu0 %v2939
        %v3106 = vpop.f32.mrf.mxu0
        %v3107 = vadd.f32 %v2977, %v3106
        %v3108 = vpop.f32.mrf.mxu0
        %v3109 = vadd.f32 %v2977, %v3108
        %3110 = vmatmul.bf16.gmra.mxu0 %v2940
        %v3111 = vpop.f32.mrf.mxu0
        %v3112 = vadd.f32 %v2977, %v3111
        %v3113 = vpop.f32.mrf.mxu0
        %v3114 = vadd.f32 %v2977, %v3113
        %3115 = vmatmul.bf16.gmra.mxu0 %v2941
        %v3116 = vpop.f32.mrf.mxu0
        %v3117 = vadd.f32 %v2977, %v3116
        %v3118 = vpop.f32.mrf.mxu0
        %v3119 = vadd.f32 %v2977, %v3118
        %3120 = vmatmul.bf16.gmra.mxu0 %v2942
        %v3121 = vpop.f32.mrf.mxu0
        %v3122 = vadd.f32 %v2977, %v3121
        %v3123 = vpop.f32.mrf.mxu0
        %v3124 = vadd.f32 %v2977, %v3123
        %3125 = vmatmul.bf16.gmra.mxu0 %v2943
        %v3126 = vpop.f32.mrf.mxu0
        %v3127 = vadd.f32 %v2977, %v3126
        %v3128 = vpop.f32.mrf.mxu0
        %v3129 = vadd.f32 %v2977, %v3128
        %3130 = vmatmul.bf16.gmra.mxu0 %v2944
        %v3131 = vpop.f32.mrf.mxu0
        %v3132 = vadd.f32 %v2977, %v3131
        %v3133 = vpop.f32.mrf.mxu0
        %v3134 = vadd.f32 %v2977, %v3133
        %3135 = vmatmul.bf16.gmra.mxu0 %v2945
        %v3136 = vpop.f32.mrf.mxu0
        %v3137 = vadd.f32 %v2977, %v3136
        %v3138 = vpop.f32.mrf.mxu0
        %v3139 = vadd.f32 %v2977, %v3138
        %3140 = vmatmul.bf16.gmra.mxu0 %v2946
        %v3141 = vpop.f32.mrf.mxu0
        %v3142 = vadd.f32 %v2977, %v3141
        %v3143 = vpop.f32.mrf.mxu0
        %v3144 = vadd.f32 %v2977, %v3143
        %3145 = vmatmul.bf16.gmra.mxu0 %v2947
        %v3146 = vpop.f32.mrf.mxu0
        %v3147 = vadd.f32 %v2977, %v3146
        %v3148 = vpop.f32.mrf.mxu0
        %v3149 = vadd.f32 %v2977, %v3148
        %3150 = vmatmul.bf16.gmra.mxu0 %v2948
        %v3151 = vpop.f32.mrf.mxu0
        %v3152 = vadd.f32 %v2977, %v3151
        %v3153 = vpop.f32.mrf.mxu0
        %v3154 = vadd.f32 %v2977, %v3153
        %3155 = vmatmul.bf16.gmra.mxu0 %v2949
        %v3156 = vpop.f32.mrf.mxu0
        %v3157 = vadd.f32 %v2977, %v3156
        %v3158 = vpop.f32.mrf.mxu0
        %v3159 = vadd.f32 %v2977, %v3158
        %3160 = vmatmul.bf16.gmra.mxu0 %v2950
        %v3161 = vpop.f32.mrf.mxu0
        %v3162 = vadd.f32 %v2977, %v3161
        %v3163 = vpop.f32.mrf.mxu0
        %v3164 = vadd.f32 %v2977, %v3163
        %3165 = vmatmul.bf16.gmra.mxu0 %v2951
        %v3166 = vpop.f32.mrf.mxu0
        %v3167 = vadd.f32 %v2977, %v3166
        %v3168 = vpop.f32.mrf.mxu0
        %v3169 = vadd.f32 %v2977, %v3168
        %3170 = vmatmul.bf16.gmra.mxu0 %v2952
        %v3171 = vpop.f32.mrf.mxu0
        %v3172 = vadd.f32 %v2977, %v3171
        %v3173 = vpop.f32.mrf.mxu0
        %v3174 = vadd.f32 %v2977, %v3173
        %3175 = vmatmul.bf16.gmra.mxu0 %v2953
        %v3176 = vpop.f32.mrf.mxu0
        %v3177 = vadd.f32 %v2977, %v3176
        %v3178 = vpop.f32.mrf.mxu0
        %v3179 = vadd.f32 %v2977, %v3178
        %3180 = vmatmul.bf16.gmra.mxu0 %v2954
        %v3181 = vpop.f32.mrf.mxu0
        %v3182 = vadd.f32 %v2977, %v3181
        %v3183 = vpop.f32.mrf.mxu0
        %v3184 = vadd.f32 %v2977, %v3183
        %3185 = vmatmul.bf16.gmra.mxu0 %v2955
        %v3186 = vpop.f32.mrf.mxu0
        %v3187 = vadd.f32 %v2977, %v3186
        %v3188 = vpop.f32.mrf.mxu0
        %v3189 = vadd.f32 %v2977, %v3188
        %3190 = vmatmul.bf16.gmra.mxu0 %v2956
        %v3191 = vpop.f32.mrf.mxu0
        %v3192 = vadd.f32 %v2977, %v3191
        %v3193 = vpop.f32.mrf.mxu0
        %v3194 = vadd.f32 %v2977, %v3193
        %3195 = vdwg.mxu0
        %v3196 = vmax.f32 %v3037, 0.0
        %v3197 = vmax.f32 %v3039, 0.0
        %v3198 = vmax.f32 %v3042, 0.0
        %v3199 = vmax.f32 %v3044, 0.0
        %v3200 = vmax.f32 %v3047, 0.0
        %v3201 = vmax.f32 %v3049, 0.0
        %v3202 = vmax.f32 %v3052, 0.0
        %v3203 = vmax.f32 %v3054, 0.0
        %v3204 = vmax.f32 %v3057, 0.0
        %v3205 = vmax.f32 %v3059, 0.0
        %v3206 = vmax.f32 %v3062, 0.0
        %v3207 = vmax.f32 %v3064, 0.0
        %v3208 = vmax.f32 %v3067, 0.0
        %v3209 = vmax.f32 %v3069, 0.0
        %v3210 = vmax.f32 %v3072, 0.0
        %v3211 = vmax.f32 %v3074, 0.0
        %v3212 = vmax.f32 %v3077, 0.0
        %v3213 = vmax.f32 %v3079, 0.0
        %v3214 = vmax.f32 %v3082, 0.0
        %v3215 = vmax.f32 %v3084, 0.0
        %v3216 = vmax.f32 %v3087, 0.0
        %v3217 = vmax.f32 %v3089, 0.0
        %v3218 = vmax.f32 %v3092, 0.0
        %v3219 = vmax.f32 %v3094, 0.0
        %v3220 = vmax.f32 %v3097, 0.0
        %v3221 = vmax.f32 %v3099, 0.0
        %v3222 = vmax.f32 %v3102, 0.0
        %v3223 = vmax.f32 %v3104, 0.0
        %v3224 = vmax.f32 %v3107, 0.0
        %v3225 = vmax.f32 %v3109, 0.0
        %v3226 = vmax.f32 %v3112, 0.0
        %v3227 = vmax.f32 %v3114, 0.0
        %v3228 = vmax.f32 %v3117, 0.0
        %v3229 = vmax.f32 %v3119, 0.0
        %v3230 = vmax.f32 %v3122, 0.0
        %v3231 = vmax.f32 %v3124, 0.0
        %v3232 = vmax.f32 %v3127, 0.0
        %v3233 = vmax.f32 %v3129, 0.0
        %v3234 = vmax.f32 %v3132, 0.0
        %v3235 = vmax.f32 %v3134, 0.0
        %v3236 = vmax.f32 %v3137, 0.0
        %v3237 = vmax.f32 %v3139, 0.0
        %v3238 = vmax.f32 %v3142, 0.0
        %v3239 = vmax.f32 %v3144, 0.0
        %v3240 = vmax.f32 %v3147, 0.0
        %v3241 = vmax.f32 %v3149, 0.0
        %v3242 = vmax.f32 %v3152, 0.0
        %v3243 = vmax.f32 %v3154, 0.0
        %v3244 = vmax.f32 %v3157, 0.0
        %v3245 = vmax.f32 %v3159, 0.0
        %v3246 = vmax.f32 %v3162, 0.0
        %v3247 = vmax.f32 %v3164, 0.0
        %v3248 = vmax.f32 %v3167, 0.0
        %v3249 = vmax.f32 %v3169, 0.0
        %v3250 = vmax.f32 %v3172, 0.0
        %v3251 = vmax.f32 %v3174, 0.0
        %v3252 = vmax.f32 %v3177, 0.0
        %v3253 = vmax.f32 %v3179, 0.0
        %v3254 = vmax.f32 %v3182, 0.0
        %v3255 = vmax.f32 %v3184, 0.0
        %v3256 = vmax.f32 %v3187, 0.0
        %v3257 = vmax.f32 %v3189, 0.0
        %v3258 = vmax.f32 %v3192, 0.0
        %v3259 = vmax.f32 %v3194, 0.0
        %v3260 = vpack.c.bf16 %v3197, %v3196
        %v3261 = vpack.c.bf16 %v3199, %v3198
        %v3262 = vpack.c.bf16 %v3201, %v3200
        %v3263 = vpack.c.bf16 %v3203, %v3202
        %v3264 = vpack.c.bf16 %v3205, %v3204
        %v3265 = vpack.c.bf16 %v3207, %v3206
        %v3266 = vpack.c.bf16 %v3209, %v3208
        %v3267 = vpack.c.bf16 %v3211, %v3210
        %v3268 = vpack.c.bf16 %v3213, %v3212
        %v3269 = vpack.c.bf16 %v3215, %v3214
        %v3270 = vpack.c.bf16 %v3217, %v3216
        %v3271 = vpack.c.bf16 %v3219, %v3218
        %v3272 = vpack.c.bf16 %v3221, %v3220
        %v3273 = vpack.c.bf16 %v3223, %v3222
        %v3274 = vpack.c.bf16 %v3225, %v3224
        %v3275 = vpack.c.bf16 %v3227, %v3226
        %v3276 = vpack.c.bf16 %v3229, %v3228
        %v3277 = vpack.c.bf16 %v3231, %v3230
        %v3278 = vpack.c.bf16 %v3233, %v3232
        %v3279 = vpack.c.bf16 %v3235, %v3234
        %v3280 = vpack.c.bf16 %v3237, %v3236
        %v3281 = vpack.c.bf16 %v3239, %v3238
        %v3282 = vpack.c.bf16 %v3241, %v3240
        %v3283 = vpack.c.bf16 %v3243, %v3242
        %v3284 = vpack.c.bf16 %v3245, %v3244
        %v3285 = vpack.c.bf16 %v3247, %v3246
        %v3286 = vpack.c.bf16 %v3249, %v3248
        %v3287 = vpack.c.bf16 %v3251, %v3250
        %v3288 = vpack.c.bf16 %v3253, %v3252
        %v3289 = vpack.c.bf16 %v3255, %v3254
        %v3290 = vpack.c.bf16 %v3257, %v3256
        %v3291 = vpack.c.bf16 %v3259, %v3258
        %s3292 = scalar_lea.vmem [#allocation11], 64
        %v3293 = vld [vmem:[%s3292] sm:$0xf]
        %v3294 = vld [vmem:[%s3292 + $0x4] sm:$0xf]
        %v3295 = vld [vmem:[%s3292 + $0x8] sm:$0xf]
        %v3296 = vld [vmem:[%s3292 + $0xc] sm:$0xf]
        %v3297 = vld [vmem:[%s3292 + $0x10] sm:$0xf]
        %v3298 = vld [vmem:[%s3292 + $0x14] sm:$0xf]
        %v3299 = vld [vmem:[%s3292 + $0x18] sm:$0xf]
        %v3300 = vld [vmem:[%s3292 + $0x1c] sm:$0xf]
        %v3301 = vld [vmem:[%s3292 + $0x20] sm:$0xf]
        %v3302 = vld [vmem:[%s3292 + $0x24] sm:$0xf]
        %v3303 = vld [vmem:[%s3292 + $0x28] sm:$0xf]
        %v3304 = vld [vmem:[%s3292 + $0x2c] sm:$0xf]
        %v3305 = vld [vmem:[%s3292 + $0x30] sm:$0xf]
        %v3306 = vld [vmem:[%s3292 + $0x34] sm:$0xf]
        %v3307 = vld [vmem:[%s3292 + $0x38] sm:$0xf]
        %v3308 = vld [vmem:[%s3292 + $0x3c] sm:$0xf]
        %s3309 = scalar_lea.vmem %s6, 1
        %v3310 = vld [vmem:[%s3309] sm:$0x1]
        %v3312 = vperm.slane %v3310, 0
        %v3330 = vunpack.c.l.b16 %v3293
        %v3331 = vunpack.c.l.b16 %v3294
        %v3332 = vunpack.c.l.b16 %v3295
        %v3333 = vunpack.c.l.b16 %v3296
        %v3334 = vunpack.c.l.b16 %v3297
        %v3335 = vunpack.c.l.b16 %v3298
        %v3336 = vunpack.c.l.b16 %v3299
        %v3337 = vunpack.c.l.b16 %v3300
        %v3338 = vunpack.c.l.b16 %v3301
        %v3339 = vunpack.c.l.b16 %v3302
        %v3340 = vunpack.c.l.b16 %v3303
        %v3341 = vunpack.c.l.b16 %v3304
        %v3342 = vunpack.c.l.b16 %v3305
        %v3343 = vunpack.c.l.b16 %v3306
        %v3344 = vunpack.c.l.b16 %v3307
        %v3345 = vunpack.c.l.b16 %v3308
        %v3346 = vpack.c.b16 %v3331, %v3330
        %v3347 = vpack.c.b16 %v3333, %v3332
        %v3348 = vpack.c.b16 %v3335, %v3334
        %v3349 = vpack.c.b16 %v3337, %v3336
        %v3350 = vpack.c.b16 %v3339, %v3338
        %v3351 = vpack.c.b16 %v3341, %v3340
        %v3352 = vpack.c.b16 %v3343, %v3342
        %v3353 = vpack.c.b16 %v3345, %v3344
        %3362 = vmatpush.bf16.msra.mxu0 %v3353
        %3363 = vmatpush.bf16.msra.mxu0 %v3352
        %3364 = vmatpush.bf16.msra.mxu0 %v3351
        %3365 = vmatpush.bf16.msra.mxu0 %v3350
        %3366 = vmatpush.bf16.msra.mxu0 %v3349
        %3367 = vmatpush.bf16.msra.mxu0 %v3348
        %3368 = vmatpush.bf16.msra.mxu0 %v3347
        %3369 = vmatpush.bf16.msra.mxu0 %v3346
        %3370 = vmatmul.bf16.gmra.mxu0 %v3260
        %v3371 = vpop.f32.mrf.mxu0
        %v3372 = vadd.f32 %v3312, %v3371
        %v3373 = vpop.f32.mrf.mxu0
        %v3374 = vadd.f32 %v3312, %v3373
        %3375 = vmatmul.bf16.gmra.mxu0 %v3261
        %v3376 = vpop.f32.mrf.mxu0
        %v3377 = vadd.f32 %v3312, %v3376
        %v3378 = vpop.f32.mrf.mxu0
        %v3379 = vadd.f32 %v3312, %v3378
        %3380 = vmatmul.bf16.gmra.mxu0 %v3262
        %v3381 = vpop.f32.mrf.mxu0
        %v3382 = vadd.f32 %v3312, %v3381
        %v3383 = vpop.f32.mrf.mxu0
        %v3384 = vadd.f32 %v3312, %v3383
        %3385 = vmatmul.bf16.gmra.mxu0 %v3263
        %v3386 = vpop.f32.mrf.mxu0
        %v3387 = vadd.f32 %v3312, %v3386
        %v3388 = vpop.f32.mrf.mxu0
        %v3389 = vadd.f32 %v3312, %v3388
        %3390 = vmatmul.bf16.gmra.mxu0 %v3264
        %v3391 = vpop.f32.mrf.mxu0
        %v3392 = vadd.f32 %v3312, %v3391
        %v3393 = vpop.f32.mrf.mxu0
        %v3394 = vadd.f32 %v3312, %v3393
        %3395 = vmatmul.bf16.gmra.mxu0 %v3265
        %v3396 = vpop.f32.mrf.mxu0
        %v3397 = vadd.f32 %v3312, %v3396
        %v3398 = vpop.f32.mrf.mxu0
        %v3399 = vadd.f32 %v3312, %v3398
        %3400 = vmatmul.bf16.gmra.mxu0 %v3266
        %v3401 = vpop.f32.mrf.mxu0
        %v3402 = vadd.f32 %v3312, %v3401
        %v3403 = vpop.f32.mrf.mxu0
        %v3404 = vadd.f32 %v3312, %v3403
        %3405 = vmatmul.bf16.gmra.mxu0 %v3267
        %v3406 = vpop.f32.mrf.mxu0
        %v3407 = vadd.f32 %v3312, %v3406
        %v3408 = vpop.f32.mrf.mxu0
        %v3409 = vadd.f32 %v3312, %v3408
        %3410 = vmatmul.bf16.gmra.mxu0 %v3268
        %v3411 = vpop.f32.mrf.mxu0
        %v3412 = vadd.f32 %v3312, %v3411
        %v3413 = vpop.f32.mrf.mxu0
        %v3414 = vadd.f32 %v3312, %v3413
        %3415 = vmatmul.bf16.gmra.mxu0 %v3269
        %v3416 = vpop.f32.mrf.mxu0
        %v3417 = vadd.f32 %v3312, %v3416
        %v3418 = vpop.f32.mrf.mxu0
        %v3419 = vadd.f32 %v3312, %v3418
        %3420 = vmatmul.bf16.gmra.mxu0 %v3270
        %v3421 = vpop.f32.mrf.mxu0
        %v3422 = vadd.f32 %v3312, %v3421
        %v3423 = vpop.f32.mrf.mxu0
        %v3424 = vadd.f32 %v3312, %v3423
        %3425 = vmatmul.bf16.gmra.mxu0 %v3271
        %v3426 = vpop.f32.mrf.mxu0
        %v3427 = vadd.f32 %v3312, %v3426
        %v3428 = vpop.f32.mrf.mxu0
        %v3429 = vadd.f32 %v3312, %v3428
        %3430 = vmatmul.bf16.gmra.mxu0 %v3272
        %v3431 = vpop.f32.mrf.mxu0
        %v3432 = vadd.f32 %v3312, %v3431
        %v3433 = vpop.f32.mrf.mxu0
        %v3434 = vadd.f32 %v3312, %v3433
        %3435 = vmatmul.bf16.gmra.mxu0 %v3273
        %v3436 = vpop.f32.mrf.mxu0
        %v3437 = vadd.f32 %v3312, %v3436
        %v3438 = vpop.f32.mrf.mxu0
        %v3439 = vadd.f32 %v3312, %v3438
        %3440 = vmatmul.bf16.gmra.mxu0 %v3274
        %v3441 = vpop.f32.mrf.mxu0
        %v3442 = vadd.f32 %v3312, %v3441
        %v3443 = vpop.f32.mrf.mxu0
        %v3444 = vadd.f32 %v3312, %v3443
        %3445 = vmatmul.bf16.gmra.mxu0 %v3275
        %v3446 = vpop.f32.mrf.mxu0
        %v3447 = vadd.f32 %v3312, %v3446
        %v3448 = vpop.f32.mrf.mxu0
        %v3449 = vadd.f32 %v3312, %v3448
        %3450 = vmatmul.bf16.gmra.mxu0 %v3276
        %v3451 = vpop.f32.mrf.mxu0
        %v3452 = vadd.f32 %v3312, %v3451
        %v3453 = vpop.f32.mrf.mxu0
        %v3454 = vadd.f32 %v3312, %v3453
        %3455 = vmatmul.bf16.gmra.mxu0 %v3277
        %v3456 = vpop.f32.mrf.mxu0
        %v3457 = vadd.f32 %v3312, %v3456
        %v3458 = vpop.f32.mrf.mxu0
        %v3459 = vadd.f32 %v3312, %v3458
        %3460 = vmatmul.bf16.gmra.mxu0 %v3278
        %v3461 = vpop.f32.mrf.mxu0
        %v3462 = vadd.f32 %v3312, %v3461
        %v3463 = vpop.f32.mrf.mxu0
        %v3464 = vadd.f32 %v3312, %v3463
        %3465 = vmatmul.bf16.gmra.mxu0 %v3279
        %v3466 = vpop.f32.mrf.mxu0
        %v3467 = vadd.f32 %v3312, %v3466
        %v3468 = vpop.f32.mrf.mxu0
        %v3469 = vadd.f32 %v3312, %v3468
        %3470 = vmatmul.bf16.gmra.mxu0 %v3280
        %v3471 = vpop.f32.mrf.mxu0
        %v3472 = vadd.f32 %v3312, %v3471
        %v3473 = vpop.f32.mrf.mxu0
        %v3474 = vadd.f32 %v3312, %v3473
        %3475 = vmatmul.bf16.gmra.mxu0 %v3281
        %v3476 = vpop.f32.mrf.mxu0
        %v3477 = vadd.f32 %v3312, %v3476
        %v3478 = vpop.f32.mrf.mxu0
        %v3479 = vadd.f32 %v3312, %v3478
        %3480 = vmatmul.bf16.gmra.mxu0 %v3282
        %v3481 = vpop.f32.mrf.mxu0
        %v3482 = vadd.f32 %v3312, %v3481
        %v3483 = vpop.f32.mrf.mxu0
        %v3484 = vadd.f32 %v3312, %v3483
        %3485 = vmatmul.bf16.gmra.mxu0 %v3283
        %v3486 = vpop.f32.mrf.mxu0
        %v3487 = vadd.f32 %v3312, %v3486
        %v3488 = vpop.f32.mrf.mxu0
        %v3489 = vadd.f32 %v3312, %v3488
        %3490 = vmatmul.bf16.gmra.mxu0 %v3284
        %v3491 = vpop.f32.mrf.mxu0
        %v3492 = vadd.f32 %v3312, %v3491
        %v3493 = vpop.f32.mrf.mxu0
        %v3494 = vadd.f32 %v3312, %v3493
        %3495 = vmatmul.bf16.gmra.mxu0 %v3285
        %v3496 = vpop.f32.mrf.mxu0
        %v3497 = vadd.f32 %v3312, %v3496
        %v3498 = vpop.f32.mrf.mxu0
        %v3499 = vadd.f32 %v3312, %v3498
        %3500 = vmatmul.bf16.gmra.mxu0 %v3286
        %v3501 = vpop.f32.mrf.mxu0
        %v3502 = vadd.f32 %v3312, %v3501
        %v3503 = vpop.f32.mrf.mxu0
        %v3504 = vadd.f32 %v3312, %v3503
        %3505 = vmatmul.bf16.gmra.mxu0 %v3287
        %v3506 = vpop.f32.mrf.mxu0
        %v3507 = vadd.f32 %v3312, %v3506
        %v3508 = vpop.f32.mrf.mxu0
        %v3509 = vadd.f32 %v3312, %v3508
        %3510 = vmatmul.bf16.gmra.mxu0 %v3288
        %v3511 = vpop.f32.mrf.mxu0
        %v3512 = vadd.f32 %v3312, %v3511
        %v3513 = vpop.f32.mrf.mxu0
        %v3514 = vadd.f32 %v3312, %v3513
        %3515 = vmatmul.bf16.gmra.mxu0 %v3289
        %v3516 = vpop.f32.mrf.mxu0
        %v3517 = vadd.f32 %v3312, %v3516
        %v3518 = vpop.f32.mrf.mxu0
        %v3519 = vadd.f32 %v3312, %v3518
        %3520 = vmatmul.bf16.gmra.mxu0 %v3290
        %v3521 = vpop.f32.mrf.mxu0
        %v3522 = vadd.f32 %v3312, %v3521
        %v3523 = vpop.f32.mrf.mxu0
        %v3524 = vadd.f32 %v3312, %v3523
        %3525 = vmatmul.bf16.gmra.mxu0 %v3291
        %v3526 = vpop.f32.mrf.mxu0
        %v3527 = vadd.f32 %v3312, %v3526
        %v3528 = vpop.f32.mrf.mxu0
        %v3529 = vadd.f32 %v3312, %v3528
        %3530 = vdwg.mxu0
        %v3531 = vmax.f32 %v3372, 0.0
        %v3532 = vmax.f32 %v3374, 0.0
        %v3533 = vmax.f32 %v3377, 0.0
        %v3534 = vmax.f32 %v3379, 0.0
        %v3535 = vmax.f32 %v3382, 0.0
        %v3536 = vmax.f32 %v3384, 0.0
        %v3537 = vmax.f32 %v3387, 0.0
        %v3538 = vmax.f32 %v3389, 0.0
        %v3539 = vmax.f32 %v3392, 0.0
        %v3540 = vmax.f32 %v3394, 0.0
        %v3541 = vmax.f32 %v3397, 0.0
        %v3542 = vmax.f32 %v3399, 0.0
        %v3543 = vmax.f32 %v3402, 0.0
        %v3544 = vmax.f32 %v3404, 0.0
        %v3545 = vmax.f32 %v3407, 0.0
        %v3546 = vmax.f32 %v3409, 0.0
        %v3547 = vmax.f32 %v3412, 0.0
        %v3548 = vmax.f32 %v3414, 0.0
        %v3549 = vmax.f32 %v3417, 0.0
        %v3550 = vmax.f32 %v3419, 0.0
        %v3551 = vmax.f32 %v3422, 0.0
        %v3552 = vmax.f32 %v3424, 0.0
        %v3553 = vmax.f32 %v3427, 0.0
        %v3554 = vmax.f32 %v3429, 0.0
        %v3555 = vmax.f32 %v3432, 0.0
        %v3556 = vmax.f32 %v3434, 0.0
        %v3557 = vmax.f32 %v3437, 0.0
        %v3558 = vmax.f32 %v3439, 0.0
        %v3559 = vmax.f32 %v3442, 0.0
        %v3560 = vmax.f32 %v3444, 0.0
        %v3561 = vmax.f32 %v3447, 0.0
        %v3562 = vmax.f32 %v3449, 0.0
        %v3563 = vmax.f32 %v3452, 0.0
        %v3564 = vmax.f32 %v3454, 0.0
        %v3565 = vmax.f32 %v3457, 0.0
        %v3566 = vmax.f32 %v3459, 0.0
        %v3567 = vmax.f32 %v3462, 0.0
        %v3568 = vmax.f32 %v3464, 0.0
        %v3569 = vmax.f32 %v3467, 0.0
        %v3570 = vmax.f32 %v3469, 0.0
        %v3571 = vmax.f32 %v3472, 0.0
        %v3572 = vmax.f32 %v3474, 0.0
        %v3573 = vmax.f32 %v3477, 0.0
        %v3574 = vmax.f32 %v3479, 0.0
        %v3575 = vmax.f32 %v3482, 0.0
        %v3576 = vmax.f32 %v3484, 0.0
        %v3577 = vmax.f32 %v3487, 0.0
        %v3578 = vmax.f32 %v3489, 0.0
        %v3579 = vmax.f32 %v3492, 0.0
        %v3580 = vmax.f32 %v3494, 0.0
        %v3581 = vmax.f32 %v3497, 0.0
        %v3582 = vmax.f32 %v3499, 0.0
        %v3583 = vmax.f32 %v3502, 0.0
        %v3584 = vmax.f32 %v3504, 0.0
        %v3585 = vmax.f32 %v3507, 0.0
        %v3586 = vmax.f32 %v3509, 0.0
        %v3587 = vmax.f32 %v3512, 0.0
        %v3588 = vmax.f32 %v3514, 0.0
        %v3589 = vmax.f32 %v3517, 0.0
        %v3590 = vmax.f32 %v3519, 0.0
        %v3591 = vmax.f32 %v3522, 0.0
        %v3592 = vmax.f32 %v3524, 0.0
        %v3593 = vmax.f32 %v3527, 0.0
        %v3594 = vmax.f32 %v3529, 0.0
        %v3595 = vpack.c.bf16 %v3531, %v3531
        %v3596 = vpack.c.bf16 %v3532, %v3532
        %v3597 = vpack.c.bf16 %v3533, %v3533
        %v3598 = vpack.c.bf16 %v3534, %v3534
        %v3599 = vpack.c.bf16 %v3535, %v3535
        %v3600 = vpack.c.bf16 %v3536, %v3536
        %v3601 = vpack.c.bf16 %v3537, %v3537
        %v3602 = vpack.c.bf16 %v3538, %v3538
        %v3603 = vpack.c.bf16 %v3539, %v3539
        %v3604 = vpack.c.bf16 %v3540, %v3540
        %v3605 = vpack.c.bf16 %v3541, %v3541
        %v3606 = vpack.c.bf16 %v3542, %v3542
        %v3607 = vpack.c.bf16 %v3543, %v3543
        %v3608 = vpack.c.bf16 %v3544, %v3544
        %v3609 = vpack.c.bf16 %v3545, %v3545
        %v3610 = vpack.c.bf16 %v3546, %v3546
        %v3611 = vpack.c.bf16 %v3547, %v3547
        %v3612 = vpack.c.bf16 %v3548, %v3548
        %v3613 = vpack.c.bf16 %v3549, %v3549
        %v3614 = vpack.c.bf16 %v3550, %v3550
        %v3615 = vpack.c.bf16 %v3551, %v3551
        %v3616 = vpack.c.bf16 %v3552, %v3552
        %v3617 = vpack.c.bf16 %v3553, %v3553
        %v3618 = vpack.c.bf16 %v3554, %v3554
        %v3619 = vpack.c.bf16 %v3555, %v3555
        %v3620 = vpack.c.bf16 %v3556, %v3556
        %v3621 = vpack.c.bf16 %v3557, %v3557
        %v3622 = vpack.c.bf16 %v3558, %v3558
        %v3623 = vpack.c.bf16 %v3559, %v3559
        %v3624 = vpack.c.bf16 %v3560, %v3560
        %v3625 = vpack.c.bf16 %v3561, %v3561
        %v3626 = vpack.c.bf16 %v3562, %v3562
        %v3627 = vpack.c.bf16 %v3563, %v3563
        %v3628 = vpack.c.bf16 %v3564, %v3564
        %v3629 = vpack.c.bf16 %v3565, %v3565
        %v3630 = vpack.c.bf16 %v3566, %v3566
        %v3631 = vpack.c.bf16 %v3567, %v3567
        %v3632 = vpack.c.bf16 %v3568, %v3568
        %v3633 = vpack.c.bf16 %v3569, %v3569
        %v3634 = vpack.c.bf16 %v3570, %v3570
        %v3635 = vpack.c.bf16 %v3571, %v3571
        %v3636 = vpack.c.bf16 %v3572, %v3572
        %v3637 = vpack.c.bf16 %v3573, %v3573
        %v3638 = vpack.c.bf16 %v3574, %v3574
        %v3639 = vpack.c.bf16 %v3575, %v3575
        %v3640 = vpack.c.bf16 %v3576, %v3576
        %v3641 = vpack.c.bf16 %v3577, %v3577
        %v3642 = vpack.c.bf16 %v3578, %v3578
        %v3643 = vpack.c.bf16 %v3579, %v3579
        %v3644 = vpack.c.bf16 %v3580, %v3580
        %v3645 = vpack.c.bf16 %v3581, %v3581
        %v3646 = vpack.c.bf16 %v3582, %v3582
        %v3647 = vpack.c.bf16 %v3583, %v3583
        %v3648 = vpack.c.bf16 %v3584, %v3584
        %v3649 = vpack.c.bf16 %v3585, %v3585
        %v3650 = vpack.c.bf16 %v3586, %v3586
        %v3651 = vpack.c.bf16 %v3587, %v3587
        %v3652 = vpack.c.bf16 %v3588, %v3588
        %v3653 = vpack.c.bf16 %v3589, %v3589
        %v3654 = vpack.c.bf16 %v3590, %v3590
        %v3655 = vpack.c.bf16 %v3591, %v3591
        %v3656 = vpack.c.bf16 %v3592, %v3592
        %v3657 = vpack.c.bf16 %v3593, %v3593
        %v3658 = vpack.c.bf16 %v3594, %v3594
        %v3659 = vpack.c.bf16 %v1882, %v1877
        %v3660 = vpack.c.bf16 %v1892, %v1887
        %v3661 = vpack.c.bf16 %v1902, %v1897
        %v3662 = vpack.c.bf16 %v1912, %v1907
        %v3663 = vpack.c.bf16 %v1922, %v1917
        %v3664 = vpack.c.bf16 %v1932, %v1927
        %v3665 = vpack.c.bf16 %v1942, %v1937
        %v3666 = vpack.c.bf16 %v1952, %v1947
        %v3667 = vpack.c.bf16 %v1962, %v1957
        %v3668 = vpack.c.bf16 %v1972, %v1967
        %v3669 = vpack.c.bf16 %v1982, %v1977
        %v3670 = vpack.c.bf16 %v1992, %v1987
        %v3671 = vpack.c.bf16 %v2002, %v1997
        %v3672 = vpack.c.bf16 %v2012, %v2007
        %v3673 = vpack.c.bf16 %v2022, %v2017
        %v3674 = vpack.c.bf16 %v2032, %v2027
        %v3675 = vpack.c.bf16 %v2042, %v2037
        %v3676 = vpack.c.bf16 %v2052, %v2047
        %v3677 = vpack.c.bf16 %v2062, %v2057
        %v3678 = vpack.c.bf16 %v2072, %v2067
        %v3679 = vpack.c.bf16 %v2082, %v2077
        %v3680 = vpack.c.bf16 %v2092, %v2087
        %v3681 = vpack.c.bf16 %v2102, %v2097
        %v3682 = vpack.c.bf16 %v2112, %v2107
        %v3683 = vpack.c.bf16 %v2122, %v2117
        %v3684 = vpack.c.bf16 %v2132, %v2127
        %v3685 = vpack.c.bf16 %v2142, %v2137
        %v3686 = vpack.c.bf16 %v2152, %v2147
        %v3687 = vpack.c.bf16 %v2162, %v2157
        %v3688 = vpack.c.bf16 %v2172, %v2167
        %v3689 = vpack.c.bf16 %v2182, %v2177
        %v3690 = vpack.c.bf16 %v2192, %v2187
        %s3691 = scalar_lea.vmem [#allocation8], 128
        %v3692 = vld [vmem:[%s3691] sm:$0xf]
        %v3693 = vld [vmem:[%s3691 + $0x4] sm:$0xf]
        %v3694 = vld [vmem:[%s3691 + $0x8] sm:$0xf]
        %v3695 = vld [vmem:[%s3691 + $0xc] sm:$0xf]
        %v3696 = vld [vmem:[%s3691 + $0x10] sm:$0xf]
        %v3697 = vld [vmem:[%s3691 + $0x14] sm:$0xf]
        %v3698 = vld [vmem:[%s3691 + $0x18] sm:$0xf]
        %v3699 = vld [vmem:[%s3691 + $0x1c] sm:$0xf]
        %v3700 = vld [vmem:[%s3691 + $0x20] sm:$0xf]
        %v3701 = vld [vmem:[%s3691 + $0x24] sm:$0xf]
        %v3702 = vld [vmem:[%s3691 + $0x28] sm:$0xf]
        %v3703 = vld [vmem:[%s3691 + $0x2c] sm:$0xf]
        %v3704 = vld [vmem:[%s3691 + $0x30] sm:$0xf]
        %v3705 = vld [vmem:[%s3691 + $0x34] sm:$0xf]
        %v3706 = vld [vmem:[%s3691 + $0x38] sm:$0xf]
        %v3707 = vld [vmem:[%s3691 + $0x3c] sm:$0xf]
        %s3708 = scalar_lea.vmem [#allocation10], 2
        %v3709 = vld [vmem:[%s3708] sm:$0x1]
        %v3711 = vperm.slane %v3709, 0
        %v3729 = vunpack.c.l.b16 %v3692
        %v3730 = vunpack.c.l.b16 %v3693
        %v3731 = vunpack.c.l.b16 %v3694
        %v3732 = vunpack.c.l.b16 %v3695
        %v3733 = vunpack.c.l.b16 %v3696
        %v3734 = vunpack.c.l.b16 %v3697
        %v3735 = vunpack.c.l.b16 %v3698
        %v3736 = vunpack.c.l.b16 %v3699
        %v3737 = vunpack.c.l.b16 %v3700
        %v3738 = vunpack.c.l.b16 %v3701
        %v3739 = vunpack.c.l.b16 %v3702
        %v3740 = vunpack.c.l.b16 %v3703
        %v3741 = vunpack.c.l.b16 %v3704
        %v3742 = vunpack.c.l.b16 %v3705
        %v3743 = vunpack.c.l.b16 %v3706
        %v3744 = vunpack.c.l.b16 %v3707
        %v3745 = vpack.c.b16 %v3730, %v3729
        %v3746 = vpack.c.b16 %v3732, %v3731
        %v3747 = vpack.c.b16 %v3734, %v3733
        %v3748 = vpack.c.b16 %v3736, %v3735
        %v3749 = vpack.c.b16 %v3738, %v3737
        %v3750 = vpack.c.b16 %v3740, %v3739
        %v3751 = vpack.c.b16 %v3742, %v3741
        %v3752 = vpack.c.b16 %v3744, %v3743
        %3761 = vmatpush.bf16.msra.mxu0 %v3752
        %3762 = vmatpush.bf16.msra.mxu0 %v3751
        %3763 = vmatpush.bf16.msra.mxu0 %v3750
        %3764 = vmatpush.bf16.msra.mxu0 %v3749
        %3765 = vmatpush.bf16.msra.mxu0 %v3748
        %3766 = vmatpush.bf16.msra.mxu0 %v3747
        %3767 = vmatpush.bf16.msra.mxu0 %v3746
        %3768 = vmatpush.bf16.msra.mxu0 %v3745
        %3769 = vmatmul.bf16.gmra.mxu0 %v3659
        %v3770 = vpop.f32.mrf.mxu0
        %v3771 = vadd.f32 %v3711, %v3770
        %v3772 = vpop.f32.mrf.mxu0
        %v3773 = vadd.f32 %v3711, %v3772
        %3774 = vmatmul.bf16.gmra.mxu0 %v3660
        %v3775 = vpop.f32.mrf.mxu0
        %v3776 = vadd.f32 %v3711, %v3775
        %v3777 = vpop.f32.mrf.mxu0
        %v3778 = vadd.f32 %v3711, %v3777
        %3779 = vmatmul.bf16.gmra.mxu0 %v3661
        %v3780 = vpop.f32.mrf.mxu0
        %v3781 = vadd.f32 %v3711, %v3780
        %v3782 = vpop.f32.mrf.mxu0
        %v3783 = vadd.f32 %v3711, %v3782
        %3784 = vmatmul.bf16.gmra.mxu0 %v3662
        %v3785 = vpop.f32.mrf.mxu0
        %v3786 = vadd.f32 %v3711, %v3785
        %v3787 = vpop.f32.mrf.mxu0
        %v3788 = vadd.f32 %v3711, %v3787
        %3789 = vmatmul.bf16.gmra.mxu0 %v3663
        %v3790 = vpop.f32.mrf.mxu0
        %v3791 = vadd.f32 %v3711, %v3790
        %v3792 = vpop.f32.mrf.mxu0
        %v3793 = vadd.f32 %v3711, %v3792
        %3794 = vmatmul.bf16.gmra.mxu0 %v3664
        %v3795 = vpop.f32.mrf.mxu0
        %v3796 = vadd.f32 %v3711, %v3795
        %v3797 = vpop.f32.mrf.mxu0
        %v3798 = vadd.f32 %v3711, %v3797
        %3799 = vmatmul.bf16.gmra.mxu0 %v3665
        %v3800 = vpop.f32.mrf.mxu0
        %v3801 = vadd.f32 %v3711, %v3800
        %v3802 = vpop.f32.mrf.mxu0
        %v3803 = vadd.f32 %v3711, %v3802
        %3804 = vmatmul.bf16.gmra.mxu0 %v3666
        %v3805 = vpop.f32.mrf.mxu0
        %v3806 = vadd.f32 %v3711, %v3805
        %v3807 = vpop.f32.mrf.mxu0
        %v3808 = vadd.f32 %v3711, %v3807
        %3809 = vmatmul.bf16.gmra.mxu0 %v3667
        %v3810 = vpop.f32.mrf.mxu0
        %v3811 = vadd.f32 %v3711, %v3810
        %v3812 = vpop.f32.mrf.mxu0
        %v3813 = vadd.f32 %v3711, %v3812
        %3814 = vmatmul.bf16.gmra.mxu0 %v3668
        %v3815 = vpop.f32.mrf.mxu0
        %v3816 = vadd.f32 %v3711, %v3815
        %v3817 = vpop.f32.mrf.mxu0
        %v3818 = vadd.f32 %v3711, %v3817
        %3819 = vmatmul.bf16.gmra.mxu0 %v3669
        %v3820 = vpop.f32.mrf.mxu0
        %v3821 = vadd.f32 %v3711, %v3820
        %v3822 = vpop.f32.mrf.mxu0
        %v3823 = vadd.f32 %v3711, %v3822
        %3824 = vmatmul.bf16.gmra.mxu0 %v3670
        %v3825 = vpop.f32.mrf.mxu0
        %v3826 = vadd.f32 %v3711, %v3825
        %v3827 = vpop.f32.mrf.mxu0
        %v3828 = vadd.f32 %v3711, %v3827
        %3829 = vmatmul.bf16.gmra.mxu0 %v3671
        %v3830 = vpop.f32.mrf.mxu0
        %v3831 = vadd.f32 %v3711, %v3830
        %v3832 = vpop.f32.mrf.mxu0
        %v3833 = vadd.f32 %v3711, %v3832
        %3834 = vmatmul.bf16.gmra.mxu0 %v3672
        %v3835 = vpop.f32.mrf.mxu0
        %v3836 = vadd.f32 %v3711, %v3835
        %v3837 = vpop.f32.mrf.mxu0
        %v3838 = vadd.f32 %v3711, %v3837
        %3839 = vmatmul.bf16.gmra.mxu0 %v3673
        %v3840 = vpop.f32.mrf.mxu0
        %v3841 = vadd.f32 %v3711, %v3840
        %v3842 = vpop.f32.mrf.mxu0
        %v3843 = vadd.f32 %v3711, %v3842
        %3844 = vmatmul.bf16.gmra.mxu0 %v3674
        %v3845 = vpop.f32.mrf.mxu0
        %v3846 = vadd.f32 %v3711, %v3845
        %v3847 = vpop.f32.mrf.mxu0
        %v3848 = vadd.f32 %v3711, %v3847
        %3849 = vmatmul.bf16.gmra.mxu0 %v3675
        %v3850 = vpop.f32.mrf.mxu0
        %v3851 = vadd.f32 %v3711, %v3850
        %v3852 = vpop.f32.mrf.mxu0
        %v3853 = vadd.f32 %v3711, %v3852
        %3854 = vmatmul.bf16.gmra.mxu0 %v3676
        %v3855 = vpop.f32.mrf.mxu0
        %v3856 = vadd.f32 %v3711, %v3855
        %v3857 = vpop.f32.mrf.mxu0
        %v3858 = vadd.f32 %v3711, %v3857
        %3859 = vmatmul.bf16.gmra.mxu0 %v3677
        %v3860 = vpop.f32.mrf.mxu0
        %v3861 = vadd.f32 %v3711, %v3860
        %v3862 = vpop.f32.mrf.mxu0
        %v3863 = vadd.f32 %v3711, %v3862
        %3864 = vmatmul.bf16.gmra.mxu0 %v3678
        %v3865 = vpop.f32.mrf.mxu0
        %v3866 = vadd.f32 %v3711, %v3865
        %v3867 = vpop.f32.mrf.mxu0
        %v3868 = vadd.f32 %v3711, %v3867
        %3869 = vmatmul.bf16.gmra.mxu0 %v3679
        %v3870 = vpop.f32.mrf.mxu0
        %v3871 = vadd.f32 %v3711, %v3870
        %v3872 = vpop.f32.mrf.mxu0
        %v3873 = vadd.f32 %v3711, %v3872
        %3874 = vmatmul.bf16.gmra.mxu0 %v3680
        %v3875 = vpop.f32.mrf.mxu0
        %v3876 = vadd.f32 %v3711, %v3875
        %v3877 = vpop.f32.mrf.mxu0
        %v3878 = vadd.f32 %v3711, %v3877
        %3879 = vmatmul.bf16.gmra.mxu0 %v3681
        %v3880 = vpop.f32.mrf.mxu0
        %v3881 = vadd.f32 %v3711, %v3880
        %v3882 = vpop.f32.mrf.mxu0
        %v3883 = vadd.f32 %v3711, %v3882
        %3884 = vmatmul.bf16.gmra.mxu0 %v3682
        %v3885 = vpop.f32.mrf.mxu0
        %v3886 = vadd.f32 %v3711, %v3885
        %v3887 = vpop.f32.mrf.mxu0
        %v3888 = vadd.f32 %v3711, %v3887
        %3889 = vmatmul.bf16.gmra.mxu0 %v3683
        %v3890 = vpop.f32.mrf.mxu0
        %v3891 = vadd.f32 %v3711, %v3890
        %v3892 = vpop.f32.mrf.mxu0
        %v3893 = vadd.f32 %v3711, %v3892
        %3894 = vmatmul.bf16.gmra.mxu0 %v3684
        %v3895 = vpop.f32.mrf.mxu0
        %v3896 = vadd.f32 %v3711, %v3895
        %v3897 = vpop.f32.mrf.mxu0
        %v3898 = vadd.f32 %v3711, %v3897
        %3899 = vmatmul.bf16.gmra.mxu0 %v3685
        %v3900 = vpop.f32.mrf.mxu0
        %v3901 = vadd.f32 %v3711, %v3900
        %v3902 = vpop.f32.mrf.mxu0
        %v3903 = vadd.f32 %v3711, %v3902
        %3904 = vmatmul.bf16.gmra.mxu0 %v3686
        %v3905 = vpop.f32.mrf.mxu0
        %v3906 = vadd.f32 %v3711, %v3905
        %v3907 = vpop.f32.mrf.mxu0
        %v3908 = vadd.f32 %v3711, %v3907
        %3909 = vmatmul.bf16.gmra.mxu0 %v3687
        %v3910 = vpop.f32.mrf.mxu0
        %v3911 = vadd.f32 %v3711, %v3910
        %v3912 = vpop.f32.mrf.mxu0
        %v3913 = vadd.f32 %v3711, %v3912
        %3914 = vmatmul.bf16.gmra.mxu0 %v3688
        %v3915 = vpop.f32.mrf.mxu0
        %v3916 = vadd.f32 %v3711, %v3915
        %v3917 = vpop.f32.mrf.mxu0
        %v3918 = vadd.f32 %v3711, %v3917
        %3919 = vmatmul.bf16.gmra.mxu0 %v3689
        %v3920 = vpop.f32.mrf.mxu0
        %v3921 = vadd.f32 %v3711, %v3920
        %v3922 = vpop.f32.mrf.mxu0
        %v3923 = vadd.f32 %v3711, %v3922
        %3924 = vmatmul.bf16.gmra.mxu0 %v3690
        %v3925 = vpop.f32.mrf.mxu0
        %v3926 = vadd.f32 %v3711, %v3925
        %v3927 = vpop.f32.mrf.mxu0
        %v3928 = vadd.f32 %v3711, %v3927
        %3929 = vdwg.mxu0
        %v3930 = vmax.f32 %v3771, 0.0
        %v3931 = vmax.f32 %v3773, 0.0
        %v3932 = vmax.f32 %v3776, 0.0
        %v3933 = vmax.f32 %v3778, 0.0
        %v3934 = vmax.f32 %v3781, 0.0
        %v3935 = vmax.f32 %v3783, 0.0
        %v3936 = vmax.f32 %v3786, 0.0
        %v3937 = vmax.f32 %v3788, 0.0
        %v3938 = vmax.f32 %v3791, 0.0
        %v3939 = vmax.f32 %v3793, 0.0
        %v3940 = vmax.f32 %v3796, 0.0
        %v3941 = vmax.f32 %v3798, 0.0
        %v3942 = vmax.f32 %v3801, 0.0
        %v3943 = vmax.f32 %v3803, 0.0
        %v3944 = vmax.f32 %v3806, 0.0
        %v3945 = vmax.f32 %v3808, 0.0
        %v3946 = vmax.f32 %v3811, 0.0
        %v3947 = vmax.f32 %v3813, 0.0
        %v3948 = vmax.f32 %v3816, 0.0
        %v3949 = vmax.f32 %v3818, 0.0
        %v3950 = vmax.f32 %v3821, 0.0
        %v3951 = vmax.f32 %v3823, 0.0
        %v3952 = vmax.f32 %v3826, 0.0
        %v3953 = vmax.f32 %v3828, 0.0
        %v3954 = vmax.f32 %v3831, 0.0
        %v3955 = vmax.f32 %v3833, 0.0
        %v3956 = vmax.f32 %v3836, 0.0
        %v3957 = vmax.f32 %v3838, 0.0
        %v3958 = vmax.f32 %v3841, 0.0
        %v3959 = vmax.f32 %v3843, 0.0
        %v3960 = vmax.f32 %v3846, 0.0
        %v3961 = vmax.f32 %v3848, 0.0
        %v3962 = vmax.f32 %v3851, 0.0
        %v3963 = vmax.f32 %v3853, 0.0
        %v3964 = vmax.f32 %v3856, 0.0
        %v3965 = vmax.f32 %v3858, 0.0
        %v3966 = vmax.f32 %v3861, 0.0
        %v3967 = vmax.f32 %v3863, 0.0
        %v3968 = vmax.f32 %v3866, 0.0
        %v3969 = vmax.f32 %v3868, 0.0
        %v3970 = vmax.f32 %v3871, 0.0
        %v3971 = vmax.f32 %v3873, 0.0
        %v3972 = vmax.f32 %v3876, 0.0
        %v3973 = vmax.f32 %v3878, 0.0
        %v3974 = vmax.f32 %v3881, 0.0
        %v3975 = vmax.f32 %v3883, 0.0
        %v3976 = vmax.f32 %v3886, 0.0
        %v3977 = vmax.f32 %v3888, 0.0
        %v3978 = vmax.f32 %v3891, 0.0
        %v3979 = vmax.f32 %v3893, 0.0
        %v3980 = vmax.f32 %v3896, 0.0
        %v3981 = vmax.f32 %v3898, 0.0
        %v3982 = vmax.f32 %v3901, 0.0
        %v3983 = vmax.f32 %v3903, 0.0
        %v3984 = vmax.f32 %v3906, 0.0
        %v3985 = vmax.f32 %v3908, 0.0
        %v3986 = vmax.f32 %v3911, 0.0
        %v3987 = vmax.f32 %v3913, 0.0
        %v3988 = vmax.f32 %v3916, 0.0
        %v3989 = vmax.f32 %v3918, 0.0
        %v3990 = vmax.f32 %v3921, 0.0
        %v3991 = vmax.f32 %v3923, 0.0
        %v3992 = vmax.f32 %v3926, 0.0
        %v3993 = vmax.f32 %v3928, 0.0
        %v3994 = vpack.c.bf16 %v3931, %v3930
        %v3995 = vpack.c.bf16 %v3933, %v3932
        %v3996 = vpack.c.bf16 %v3935, %v3934
        %v3997 = vpack.c.bf16 %v3937, %v3936
        %v3998 = vpack.c.bf16 %v3939, %v3938
        %v3999 = vpack.c.bf16 %v3941, %v3940
        %v4000 = vpack.c.bf16 %v3943, %v3942
        %v4001 = vpack.c.bf16 %v3945, %v3944
        %v4002 = vpack.c.bf16 %v3947, %v3946
        %v4003 = vpack.c.bf16 %v3949, %v3948
        %v4004 = vpack.c.bf16 %v3951, %v3950
        %v4005 = vpack.c.bf16 %v3953, %v3952
        %v4006 = vpack.c.bf16 %v3955, %v3954
        %v4007 = vpack.c.bf16 %v3957, %v3956
        %v4008 = vpack.c.bf16 %v3959, %v3958
        %v4009 = vpack.c.bf16 %v3961, %v3960
        %v4010 = vpack.c.bf16 %v3963, %v3962
        %v4011 = vpack.c.bf16 %v3965, %v3964
        %v4012 = vpack.c.bf16 %v3967, %v3966
        %v4013 = vpack.c.bf16 %v3969, %v3968
        %v4014 = vpack.c.bf16 %v3971, %v3970
        %v4015 = vpack.c.bf16 %v3973, %v3972
        %v4016 = vpack.c.bf16 %v3975, %v3974
        %v4017 = vpack.c.bf16 %v3977, %v3976
        %v4018 = vpack.c.bf16 %v3979, %v3978
        %v4019 = vpack.c.bf16 %v3981, %v3980
        %v4020 = vpack.c.bf16 %v3983, %v3982
        %v4021 = vpack.c.bf16 %v3985, %v3984
        %v4022 = vpack.c.bf16 %v3987, %v3986
        %v4023 = vpack.c.bf16 %v3989, %v3988
        %v4024 = vpack.c.bf16 %v3991, %v3990
        %v4025 = vpack.c.bf16 %v3993, %v3992
        %s4026 = scalar_lea.vmem [#allocation11], 128
        %v4027 = vld [vmem:[%s4026] sm:$0xf]
        %v4028 = vld [vmem:[%s4026 + $0x4] sm:$0xf]
        %v4029 = vld [vmem:[%s4026 + $0x8] sm:$0xf]
        %v4030 = vld [vmem:[%s4026 + $0xc] sm:$0xf]
        %v4031 = vld [vmem:[%s4026 + $0x10] sm:$0xf]
        %v4032 = vld [vmem:[%s4026 + $0x14] sm:$0xf]
        %v4033 = vld [vmem:[%s4026 + $0x18] sm:$0xf]
        %v4034 = vld [vmem:[%s4026 + $0x1c] sm:$0xf]
        %v4035 = vld [vmem:[%s4026 + $0x20] sm:$0xf]
        %v4036 = vld [vmem:[%s4026 + $0x24] sm:$0xf]
        %v4037 = vld [vmem:[%s4026 + $0x28] sm:$0xf]
        %v4038 = vld [vmem:[%s4026 + $0x2c] sm:$0xf]
        %v4039 = vld [vmem:[%s4026 + $0x30] sm:$0xf]
        %v4040 = vld [vmem:[%s4026 + $0x34] sm:$0xf]
        %v4041 = vld [vmem:[%s4026 + $0x38] sm:$0xf]
        %v4042 = vld [vmem:[%s4026 + $0x3c] sm:$0xf]
        %s4043 = scalar_lea.vmem %s6, 2
        %v4044 = vld [vmem:[%s4043] sm:$0x1]
        %v4046 = vperm.slane %v4044, 0
        %v4064 = vunpack.c.l.b16 %v4027
        %v4065 = vunpack.c.l.b16 %v4028
        %v4066 = vunpack.c.l.b16 %v4029
        %v4067 = vunpack.c.l.b16 %v4030
        %v4068 = vunpack.c.l.b16 %v4031
        %v4069 = vunpack.c.l.b16 %v4032
        %v4070 = vunpack.c.l.b16 %v4033
        %v4071 = vunpack.c.l.b16 %v4034
        %v4072 = vunpack.c.l.b16 %v4035
        %v4073 = vunpack.c.l.b16 %v4036
        %v4074 = vunpack.c.l.b16 %v4037
        %v4075 = vunpack.c.l.b16 %v4038
        %v4076 = vunpack.c.l.b16 %v4039
        %v4077 = vunpack.c.l.b16 %v4040
        %v4078 = vunpack.c.l.b16 %v4041
        %v4079 = vunpack.c.l.b16 %v4042
        %v4080 = vpack.c.b16 %v4065, %v4064
        %v4081 = vpack.c.b16 %v4067, %v4066
        %v4082 = vpack.c.b16 %v4069, %v4068
        %v4083 = vpack.c.b16 %v4071, %v4070
        %v4084 = vpack.c.b16 %v4073, %v4072
        %v4085 = vpack.c.b16 %v4075, %v4074
        %v4086 = vpack.c.b16 %v4077, %v4076
        %v4087 = vpack.c.b16 %v4079, %v4078
        %4096 = vmatpush.bf16.msra.mxu0 %v4087
        %4097 = vmatpush.bf16.msra.mxu0 %v4086
        %4098 = vmatpush.bf16.msra.mxu0 %v4085
        %4099 = vmatpush.bf16.msra.mxu0 %v4084
        %4100 = vmatpush.bf16.msra.mxu0 %v4083
        %4101 = vmatpush.bf16.msra.mxu0 %v4082
        %4102 = vmatpush.bf16.msra.mxu0 %v4081
        %4103 = vmatpush.bf16.msra.mxu0 %v4080
        %4104 = vmatmul.bf16.gmra.mxu0 %v3994
        %v4105 = vpop.f32.mrf.mxu0
        %v4106 = vadd.f32 %v4046, %v4105
        %v4107 = vpop.f32.mrf.mxu0
        %v4108 = vadd.f32 %v4046, %v4107
        %4109 = vmatmul.bf16.gmra.mxu0 %v3995
        %v4110 = vpop.f32.mrf.mxu0
        %v4111 = vadd.f32 %v4046, %v4110
        %v4112 = vpop.f32.mrf.mxu0
        %v4113 = vadd.f32 %v4046, %v4112
        %4114 = vmatmul.bf16.gmra.mxu0 %v3996
        %v4115 = vpop.f32.mrf.mxu0
        %v4116 = vadd.f32 %v4046, %v4115
        %v4117 = vpop.f32.mrf.mxu0
        %v4118 = vadd.f32 %v4046, %v4117
        %4119 = vmatmul.bf16.gmra.mxu0 %v3997
        %v4120 = vpop.f32.mrf.mxu0
        %v4121 = vadd.f32 %v4046, %v4120
        %v4122 = vpop.f32.mrf.mxu0
        %v4123 = vadd.f32 %v4046, %v4122
        %4124 = vmatmul.bf16.gmra.mxu0 %v3998
        %v4125 = vpop.f32.mrf.mxu0
        %v4126 = vadd.f32 %v4046, %v4125
        %v4127 = vpop.f32.mrf.mxu0
        %v4128 = vadd.f32 %v4046, %v4127
        %4129 = vmatmul.bf16.gmra.mxu0 %v3999
        %v4130 = vpop.f32.mrf.mxu0
        %v4131 = vadd.f32 %v4046, %v4130
        %v4132 = vpop.f32.mrf.mxu0
        %v4133 = vadd.f32 %v4046, %v4132
        %4134 = vmatmul.bf16.gmra.mxu0 %v4000
        %v4135 = vpop.f32.mrf.mxu0
        %v4136 = vadd.f32 %v4046, %v4135
        %v4137 = vpop.f32.mrf.mxu0
        %v4138 = vadd.f32 %v4046, %v4137
        %4139 = vmatmul.bf16.gmra.mxu0 %v4001
        %v4140 = vpop.f32.mrf.mxu0
        %v4141 = vadd.f32 %v4046, %v4140
        %v4142 = vpop.f32.mrf.mxu0
        %v4143 = vadd.f32 %v4046, %v4142
        %4144 = vmatmul.bf16.gmra.mxu0 %v4002
        %v4145 = vpop.f32.mrf.mxu0
        %v4146 = vadd.f32 %v4046, %v4145
        %v4147 = vpop.f32.mrf.mxu0
        %v4148 = vadd.f32 %v4046, %v4147
        %4149 = vmatmul.bf16.gmra.mxu0 %v4003
        %v4150 = vpop.f32.mrf.mxu0
        %v4151 = vadd.f32 %v4046, %v4150
        %v4152 = vpop.f32.mrf.mxu0
        %v4153 = vadd.f32 %v4046, %v4152
        %4154 = vmatmul.bf16.gmra.mxu0 %v4004
        %v4155 = vpop.f32.mrf.mxu0
        %v4156 = vadd.f32 %v4046, %v4155
        %v4157 = vpop.f32.mrf.mxu0
        %v4158 = vadd.f32 %v4046, %v4157
        %4159 = vmatmul.bf16.gmra.mxu0 %v4005
        %v4160 = vpop.f32.mrf.mxu0
        %v4161 = vadd.f32 %v4046, %v4160
        %v4162 = vpop.f32.mrf.mxu0
        %v4163 = vadd.f32 %v4046, %v4162
        %4164 = vmatmul.bf16.gmra.mxu0 %v4006
        %v4165 = vpop.f32.mrf.mxu0
        %v4166 = vadd.f32 %v4046, %v4165
        %v4167 = vpop.f32.mrf.mxu0
        %v4168 = vadd.f32 %v4046, %v4167
        %4169 = vmatmul.bf16.gmra.mxu0 %v4007
        %v4170 = vpop.f32.mrf.mxu0
        %v4171 = vadd.f32 %v4046, %v4170
        %v4172 = vpop.f32.mrf.mxu0
        %v4173 = vadd.f32 %v4046, %v4172
        %4174 = vmatmul.bf16.gmra.mxu0 %v4008
        %v4175 = vpop.f32.mrf.mxu0
        %v4176 = vadd.f32 %v4046, %v4175
        %v4177 = vpop.f32.mrf.mxu0
        %v4178 = vadd.f32 %v4046, %v4177
        %4179 = vmatmul.bf16.gmra.mxu0 %v4009
        %v4180 = vpop.f32.mrf.mxu0
        %v4181 = vadd.f32 %v4046, %v4180
        %v4182 = vpop.f32.mrf.mxu0
        %v4183 = vadd.f32 %v4046, %v4182
        %4184 = vmatmul.bf16.gmra.mxu0 %v4010
        %v4185 = vpop.f32.mrf.mxu0
        %v4186 = vadd.f32 %v4046, %v4185
        %v4187 = vpop.f32.mrf.mxu0
        %v4188 = vadd.f32 %v4046, %v4187
        %4189 = vmatmul.bf16.gmra.mxu0 %v4011
        %v4190 = vpop.f32.mrf.mxu0
        %v4191 = vadd.f32 %v4046, %v4190
        %v4192 = vpop.f32.mrf.mxu0
        %v4193 = vadd.f32 %v4046, %v4192
        %4194 = vmatmul.bf16.gmra.mxu0 %v4012
        %v4195 = vpop.f32.mrf.mxu0
        %v4196 = vadd.f32 %v4046, %v4195
        %v4197 = vpop.f32.mrf.mxu0
        %v4198 = vadd.f32 %v4046, %v4197
        %4199 = vmatmul.bf16.gmra.mxu0 %v4013
        %v4200 = vpop.f32.mrf.mxu0
        %v4201 = vadd.f32 %v4046, %v4200
        %v4202 = vpop.f32.mrf.mxu0
        %v4203 = vadd.f32 %v4046, %v4202
        %4204 = vmatmul.bf16.gmra.mxu0 %v4014
        %v4205 = vpop.f32.mrf.mxu0
        %v4206 = vadd.f32 %v4046, %v4205
        %v4207 = vpop.f32.mrf.mxu0
        %v4208 = vadd.f32 %v4046, %v4207
        %4209 = vmatmul.bf16.gmra.mxu0 %v4015
        %v4210 = vpop.f32.mrf.mxu0
        %v4211 = vadd.f32 %v4046, %v4210
        %v4212 = vpop.f32.mrf.mxu0
        %v4213 = vadd.f32 %v4046, %v4212
        %4214 = vmatmul.bf16.gmra.mxu0 %v4016
        %v4215 = vpop.f32.mrf.mxu0
        %v4216 = vadd.f32 %v4046, %v4215
        %v4217 = vpop.f32.mrf.mxu0
        %v4218 = vadd.f32 %v4046, %v4217
        %4219 = vmatmul.bf16.gmra.mxu0 %v4017
        %v4220 = vpop.f32.mrf.mxu0
        %v4221 = vadd.f32 %v4046, %v4220
        %v4222 = vpop.f32.mrf.mxu0
        %v4223 = vadd.f32 %v4046, %v4222
        %4224 = vmatmul.bf16.gmra.mxu0 %v4018
        %v4225 = vpop.f32.mrf.mxu0
        %v4226 = vadd.f32 %v4046, %v4225
        %v4227 = vpop.f32.mrf.mxu0
        %v4228 = vadd.f32 %v4046, %v4227
        %4229 = vmatmul.bf16.gmra.mxu0 %v4019
        %v4230 = vpop.f32.mrf.mxu0
        %v4231 = vadd.f32 %v4046, %v4230
        %v4232 = vpop.f32.mrf.mxu0
        %v4233 = vadd.f32 %v4046, %v4232
        %4234 = vmatmul.bf16.gmra.mxu0 %v4020
        %v4235 = vpop.f32.mrf.mxu0
        %v4236 = vadd.f32 %v4046, %v4235
        %v4237 = vpop.f32.mrf.mxu0
        %v4238 = vadd.f32 %v4046, %v4237
        %4239 = vmatmul.bf16.gmra.mxu0 %v4021
        %v4240 = vpop.f32.mrf.mxu0
        %v4241 = vadd.f32 %v4046, %v4240
        %v4242 = vpop.f32.mrf.mxu0
        %v4243 = vadd.f32 %v4046, %v4242
        %4244 = vmatmul.bf16.gmra.mxu0 %v4022
        %v4245 = vpop.f32.mrf.mxu0
        %v4246 = vadd.f32 %v4046, %v4245
        %v4247 = vpop.f32.mrf.mxu0
        %v4248 = vadd.f32 %v4046, %v4247
        %4249 = vmatmul.bf16.gmra.mxu0 %v4023
        %v4250 = vpop.f32.mrf.mxu0
        %v4251 = vadd.f32 %v4046, %v4250
        %v4252 = vpop.f32.mrf.mxu0
        %v4253 = vadd.f32 %v4046, %v4252
        %4254 = vmatmul.bf16.gmra.mxu0 %v4024
        %v4255 = vpop.f32.mrf.mxu0
        %v4256 = vadd.f32 %v4046, %v4255
        %v4257 = vpop.f32.mrf.mxu0
        %v4258 = vadd.f32 %v4046, %v4257
        %4259 = vmatmul.bf16.gmra.mxu0 %v4025
        %v4260 = vpop.f32.mrf.mxu0
        %v4261 = vadd.f32 %v4046, %v4260
        %v4262 = vpop.f32.mrf.mxu0
        %v4263 = vadd.f32 %v4046, %v4262
        %4264 = vdwg.mxu0
        %v4265 = vmax.f32 %v4106, 0.0
        %v4266 = vmax.f32 %v4108, 0.0
        %v4267 = vmax.f32 %v4111, 0.0
        %v4268 = vmax.f32 %v4113, 0.0
        %v4269 = vmax.f32 %v4116, 0.0
        %v4270 = vmax.f32 %v4118, 0.0
        %v4271 = vmax.f32 %v4121, 0.0
        %v4272 = vmax.f32 %v4123, 0.0
        %v4273 = vmax.f32 %v4126, 0.0
        %v4274 = vmax.f32 %v4128, 0.0
        %v4275 = vmax.f32 %v4131, 0.0
        %v4276 = vmax.f32 %v4133, 0.0
        %v4277 = vmax.f32 %v4136, 0.0
        %v4278 = vmax.f32 %v4138, 0.0
        %v4279 = vmax.f32 %v4141, 0.0
        %v4280 = vmax.f32 %v4143, 0.0
        %v4281 = vmax.f32 %v4146, 0.0
        %v4282 = vmax.f32 %v4148, 0.0
        %v4283 = vmax.f32 %v4151, 0.0
        %v4284 = vmax.f32 %v4153, 0.0
        %v4285 = vmax.f32 %v4156, 0.0
        %v4286 = vmax.f32 %v4158, 0.0
        %v4287 = vmax.f32 %v4161, 0.0
        %v4288 = vmax.f32 %v4163, 0.0
        %v4289 = vmax.f32 %v4166, 0.0
        %v4290 = vmax.f32 %v4168, 0.0
        %v4291 = vmax.f32 %v4171, 0.0
        %v4292 = vmax.f32 %v4173, 0.0
        %v4293 = vmax.f32 %v4176, 0.0
        %v4294 = vmax.f32 %v4178, 0.0
        %v4295 = vmax.f32 %v4181, 0.0
        %v4296 = vmax.f32 %v4183, 0.0
        %v4297 = vmax.f32 %v4186, 0.0
        %v4298 = vmax.f32 %v4188, 0.0
        %v4299 = vmax.f32 %v4191, 0.0
        %v4300 = vmax.f32 %v4193, 0.0
        %v4301 = vmax.f32 %v4196, 0.0
        %v4302 = vmax.f32 %v4198, 0.0
        %v4303 = vmax.f32 %v4201, 0.0
        %v4304 = vmax.f32 %v4203, 0.0
        %v4305 = vmax.f32 %v4206, 0.0
        %v4306 = vmax.f32 %v4208, 0.0
        %v4307 = vmax.f32 %v4211, 0.0
        %v4308 = vmax.f32 %v4213, 0.0
        %v4309 = vmax.f32 %v4216, 0.0
        %v4310 = vmax.f32 %v4218, 0.0
        %v4311 = vmax.f32 %v4221, 0.0
        %v4312 = vmax.f32 %v4223, 0.0
        %v4313 = vmax.f32 %v4226, 0.0
        %v4314 = vmax.f32 %v4228, 0.0
        %v4315 = vmax.f32 %v4231, 0.0
        %v4316 = vmax.f32 %v4233, 0.0
        %v4317 = vmax.f32 %v4236, 0.0
        %v4318 = vmax.f32 %v4238, 0.0
        %v4319 = vmax.f32 %v4241, 0.0
        %v4320 = vmax.f32 %v4243, 0.0
        %v4321 = vmax.f32 %v4246, 0.0
        %v4322 = vmax.f32 %v4248, 0.0
        %v4323 = vmax.f32 %v4251, 0.0
        %v4324 = vmax.f32 %v4253, 0.0
        %v4325 = vmax.f32 %v4256, 0.0
        %v4326 = vmax.f32 %v4258, 0.0
        %v4327 = vmax.f32 %v4261, 0.0
        %v4328 = vmax.f32 %v4263, 0.0
        %v4329 = vpack.c.bf16 %v4265, %v4265
        %v4330 = vpack.c.bf16 %v4266, %v4266
        %v4331 = vpack.c.bf16 %v4267, %v4267
        %v4332 = vpack.c.bf16 %v4268, %v4268
        %v4333 = vpack.c.bf16 %v4269, %v4269
        %v4334 = vpack.c.bf16 %v4270, %v4270
        %v4335 = vpack.c.bf16 %v4271, %v4271
        %v4336 = vpack.c.bf16 %v4272, %v4272
        %v4337 = vpack.c.bf16 %v4273, %v4273
        %v4338 = vpack.c.bf16 %v4274, %v4274
        %v4339 = vpack.c.bf16 %v4275, %v4275
        %v4340 = vpack.c.bf16 %v4276, %v4276
        %v4341 = vpack.c.bf16 %v4277, %v4277
        %v4342 = vpack.c.bf16 %v4278, %v4278
        %v4343 = vpack.c.bf16 %v4279, %v4279
        %v4344 = vpack.c.bf16 %v4280, %v4280
        %v4345 = vpack.c.bf16 %v4281, %v4281
        %v4346 = vpack.c.bf16 %v4282, %v4282
        %v4347 = vpack.c.bf16 %v4283, %v4283
        %v4348 = vpack.c.bf16 %v4284, %v4284
        %v4349 = vpack.c.bf16 %v4285, %v4285
        %v4350 = vpack.c.bf16 %v4286, %v4286
        %v4351 = vpack.c.bf16 %v4287, %v4287
        %v4352 = vpack.c.bf16 %v4288, %v4288
        %v4353 = vpack.c.bf16 %v4289, %v4289
        %v4354 = vpack.c.bf16 %v4290, %v4290
        %v4355 = vpack.c.bf16 %v4291, %v4291
        %v4356 = vpack.c.bf16 %v4292, %v4292
        %v4357 = vpack.c.bf16 %v4293, %v4293
        %v4358 = vpack.c.bf16 %v4294, %v4294
        %v4359 = vpack.c.bf16 %v4295, %v4295
        %v4360 = vpack.c.bf16 %v4296, %v4296
        %v4361 = vpack.c.bf16 %v4297, %v4297
        %v4362 = vpack.c.bf16 %v4298, %v4298
        %v4363 = vpack.c.bf16 %v4299, %v4299
        %v4364 = vpack.c.bf16 %v4300, %v4300
        %v4365 = vpack.c.bf16 %v4301, %v4301
        %v4366 = vpack.c.bf16 %v4302, %v4302
        %v4367 = vpack.c.bf16 %v4303, %v4303
        %v4368 = vpack.c.bf16 %v4304, %v4304
        %v4369 = vpack.c.bf16 %v4305, %v4305
        %v4370 = vpack.c.bf16 %v4306, %v4306
        %v4371 = vpack.c.bf16 %v4307, %v4307
        %v4372 = vpack.c.bf16 %v4308, %v4308
        %v4373 = vpack.c.bf16 %v4309, %v4309
        %v4374 = vpack.c.bf16 %v4310, %v4310
        %v4375 = vpack.c.bf16 %v4311, %v4311
        %v4376 = vpack.c.bf16 %v4312, %v4312
        %v4377 = vpack.c.bf16 %v4313, %v4313
        %v4378 = vpack.c.bf16 %v4314, %v4314
        %v4379 = vpack.c.bf16 %v4315, %v4315
        %v4380 = vpack.c.bf16 %v4316, %v4316
        %v4381 = vpack.c.bf16 %v4317, %v4317
        %v4382 = vpack.c.bf16 %v4318, %v4318
        %v4383 = vpack.c.bf16 %v4319, %v4319
        %v4384 = vpack.c.bf16 %v4320, %v4320
        %v4385 = vpack.c.bf16 %v4321, %v4321
        %v4386 = vpack.c.bf16 %v4322, %v4322
        %v4387 = vpack.c.bf16 %v4323, %v4323
        %v4388 = vpack.c.bf16 %v4324, %v4324
        %v4389 = vpack.c.bf16 %v4325, %v4325
        %v4390 = vpack.c.bf16 %v4326, %v4326
        %v4391 = vpack.c.bf16 %v4327, %v4327
        %v4392 = vpack.c.bf16 %v4328, %v4328
        %v4393 = vpack.c.bf16 %v1883, %v1878
        %v4394 = vpack.c.bf16 %v1893, %v1888
        %v4395 = vpack.c.bf16 %v1903, %v1898
        %v4396 = vpack.c.bf16 %v1913, %v1908
        %v4397 = vpack.c.bf16 %v1923, %v1918
        %v4398 = vpack.c.bf16 %v1933, %v1928
        %v4399 = vpack.c.bf16 %v1943, %v1938
        %v4400 = vpack.c.bf16 %v1953, %v1948
        %v4401 = vpack.c.bf16 %v1963, %v1958
        %v4402 = vpack.c.bf16 %v1973, %v1968
        %v4403 = vpack.c.bf16 %v1983, %v1978
        %v4404 = vpack.c.bf16 %v1993, %v1988
        %v4405 = vpack.c.bf16 %v2003, %v1998
        %v4406 = vpack.c.bf16 %v2013, %v2008
        %v4407 = vpack.c.bf16 %v2023, %v2018
        %v4408 = vpack.c.bf16 %v2033, %v2028
        %v4409 = vpack.c.bf16 %v2043, %v2038
        %v4410 = vpack.c.bf16 %v2053, %v2048
        %v4411 = vpack.c.bf16 %v2063, %v2058
        %v4412 = vpack.c.bf16 %v2073, %v2068
        %v4413 = vpack.c.bf16 %v2083, %v2078
        %v4414 = vpack.c.bf16 %v2093, %v2088
        %v4415 = vpack.c.bf16 %v2103, %v2098
        %v4416 = vpack.c.bf16 %v2113, %v2108
        %v4417 = vpack.c.bf16 %v2123, %v2118
        %v4418 = vpack.c.bf16 %v2133, %v2128
        %v4419 = vpack.c.bf16 %v2143, %v2138
        %v4420 = vpack.c.bf16 %v2153, %v2148
        %v4421 = vpack.c.bf16 %v2163, %v2158
        %v4422 = vpack.c.bf16 %v2173, %v2168
        %v4423 = vpack.c.bf16 %v2183, %v2178
        %v4424 = vpack.c.bf16 %v2193, %v2188
        %s4425 = scalar_lea.vmem [#allocation8], 192
        %v4426 = vld [vmem:[%s4425] sm:$0xf]
        %v4427 = vld [vmem:[%s4425 + $0x4] sm:$0xf]
        %v4428 = vld [vmem:[%s4425 + $0x8] sm:$0xf]
        %v4429 = vld [vmem:[%s4425 + $0xc] sm:$0xf]
        %v4430 = vld [vmem:[%s4425 + $0x10] sm:$0xf]
        %v4431 = vld [vmem:[%s4425 + $0x14] sm:$0xf]
        %v4432 = vld [vmem:[%s4425 + $0x18] sm:$0xf]
        %v4433 = vld [vmem:[%s4425 + $0x1c] sm:$0xf]
        %v4434 = vld [vmem:[%s4425 + $0x20] sm:$0xf]
        %v4435 = vld [vmem:[%s4425 + $0x24] sm:$0xf]
        %v4436 = vld [vmem:[%s4425 + $0x28] sm:$0xf]
        %v4437 = vld [vmem:[%s4425 + $0x2c] sm:$0xf]
        %v4438 = vld [vmem:[%s4425 + $0x30] sm:$0xf]
        %v4439 = vld [vmem:[%s4425 + $0x34] sm:$0xf]
        %v4440 = vld [vmem:[%s4425 + $0x38] sm:$0xf]
        %v4441 = vld [vmem:[%s4425 + $0x3c] sm:$0xf]
        %s4442 = scalar_lea.vmem [#allocation10], 3
        %v4443 = vld [vmem:[%s4442] sm:$0x1]
        %v4445 = vperm.slane %v4443, 0
        %v4463 = vunpack.c.l.b16 %v4426
        %v4464 = vunpack.c.l.b16 %v4427
        %v4465 = vunpack.c.l.b16 %v4428
        %v4466 = vunpack.c.l.b16 %v4429
        %v4467 = vunpack.c.l.b16 %v4430
        %v4468 = vunpack.c.l.b16 %v4431
        %v4469 = vunpack.c.l.b16 %v4432
        %v4470 = vunpack.c.l.b16 %v4433
        %v4471 = vunpack.c.l.b16 %v4434
        %v4472 = vunpack.c.l.b16 %v4435
        %v4473 = vunpack.c.l.b16 %v4436
        %v4474 = vunpack.c.l.b16 %v4437
        %v4475 = vunpack.c.l.b16 %v4438
        %v4476 = vunpack.c.l.b16 %v4439
        %v4477 = vunpack.c.l.b16 %v4440
        %v4478 = vunpack.c.l.b16 %v4441
        %v4479 = vpack.c.b16 %v4464, %v4463
        %v4480 = vpack.c.b16 %v4466, %v4465
        %v4481 = vpack.c.b16 %v4468, %v4467
        %v4482 = vpack.c.b16 %v4470, %v4469
        %v4483 = vpack.c.b16 %v4472, %v4471
        %v4484 = vpack.c.b16 %v4474, %v4473
        %v4485 = vpack.c.b16 %v4476, %v4475
        %v4486 = vpack.c.b16 %v4478, %v4477
        %4495 = vmatpush.bf16.msra.mxu0 %v4486
        %4496 = vmatpush.bf16.msra.mxu0 %v4485
        %4497 = vmatpush.bf16.msra.mxu0 %v4484
        %4498 = vmatpush.bf16.msra.mxu0 %v4483
        %4499 = vmatpush.bf16.msra.mxu0 %v4482
        %4500 = vmatpush.bf16.msra.mxu0 %v4481
        %4501 = vmatpush.bf16.msra.mxu0 %v4480
        %4502 = vmatpush.bf16.msra.mxu0 %v4479
        %4503 = vmatmul.bf16.gmra.mxu0 %v4393
        %v4504 = vpop.f32.mrf.mxu0
        %v4505 = vadd.f32 %v4445, %v4504
        %v4506 = vpop.f32.mrf.mxu0
        %v4507 = vadd.f32 %v4445, %v4506
        %4508 = vmatmul.bf16.gmra.mxu0 %v4394
        %v4509 = vpop.f32.mrf.mxu0
        %v4510 = vadd.f32 %v4445, %v4509
        %v4511 = vpop.f32.mrf.mxu0
        %v4512 = vadd.f32 %v4445, %v4511
        %4513 = vmatmul.bf16.gmra.mxu0 %v4395
        %v4514 = vpop.f32.mrf.mxu0
        %v4515 = vadd.f32 %v4445, %v4514
        %v4516 = vpop.f32.mrf.mxu0
        %v4517 = vadd.f32 %v4445, %v4516
        %4518 = vmatmul.bf16.gmra.mxu0 %v4396
        %v4519 = vpop.f32.mrf.mxu0
        %v4520 = vadd.f32 %v4445, %v4519
        %v4521 = vpop.f32.mrf.mxu0
        %v4522 = vadd.f32 %v4445, %v4521
        %4523 = vmatmul.bf16.gmra.mxu0 %v4397
        %v4524 = vpop.f32.mrf.mxu0
        %v4525 = vadd.f32 %v4445, %v4524
        %v4526 = vpop.f32.mrf.mxu0
        %v4527 = vadd.f32 %v4445, %v4526
        %4528 = vmatmul.bf16.gmra.mxu0 %v4398
        %v4529 = vpop.f32.mrf.mxu0
        %v4530 = vadd.f32 %v4445, %v4529
        %v4531 = vpop.f32.mrf.mxu0
        %v4532 = vadd.f32 %v4445, %v4531
        %4533 = vmatmul.bf16.gmra.mxu0 %v4399
        %v4534 = vpop.f32.mrf.mxu0
        %v4535 = vadd.f32 %v4445, %v4534
        %v4536 = vpop.f32.mrf.mxu0
        %v4537 = vadd.f32 %v4445, %v4536
        %4538 = vmatmul.bf16.gmra.mxu0 %v4400
        %v4539 = vpop.f32.mrf.mxu0
        %v4540 = vadd.f32 %v4445, %v4539
        %v4541 = vpop.f32.mrf.mxu0
        %v4542 = vadd.f32 %v4445, %v4541
        %4543 = vmatmul.bf16.gmra.mxu0 %v4401
        %v4544 = vpop.f32.mrf.mxu0
        %v4545 = vadd.f32 %v4445, %v4544
        %v4546 = vpop.f32.mrf.mxu0
        %v4547 = vadd.f32 %v4445, %v4546
        %4548 = vmatmul.bf16.gmra.mxu0 %v4402
        %v4549 = vpop.f32.mrf.mxu0
        %v4550 = vadd.f32 %v4445, %v4549
        %v4551 = vpop.f32.mrf.mxu0
        %v4552 = vadd.f32 %v4445, %v4551
        %4553 = vmatmul.bf16.gmra.mxu0 %v4403
        %v4554 = vpop.f32.mrf.mxu0
        %v4555 = vadd.f32 %v4445, %v4554
        %v4556 = vpop.f32.mrf.mxu0
        %v4557 = vadd.f32 %v4445, %v4556
        %4558 = vmatmul.bf16.gmra.mxu0 %v4404
        %v4559 = vpop.f32.mrf.mxu0
        %v4560 = vadd.f32 %v4445, %v4559
        %v4561 = vpop.f32.mrf.mxu0
        %v4562 = vadd.f32 %v4445, %v4561
        %4563 = vmatmul.bf16.gmra.mxu0 %v4405
        %v4564 = vpop.f32.mrf.mxu0
        %v4565 = vadd.f32 %v4445, %v4564
        %v4566 = vpop.f32.mrf.mxu0
        %v4567 = vadd.f32 %v4445, %v4566
        %4568 = vmatmul.bf16.gmra.mxu0 %v4406
        %v4569 = vpop.f32.mrf.mxu0
        %v4570 = vadd.f32 %v4445, %v4569
        %v4571 = vpop.f32.mrf.mxu0
        %v4572 = vadd.f32 %v4445, %v4571
        %4573 = vmatmul.bf16.gmra.mxu0 %v4407
        %v4574 = vpop.f32.mrf.mxu0
        %v4575 = vadd.f32 %v4445, %v4574
        %v4576 = vpop.f32.mrf.mxu0
        %v4577 = vadd.f32 %v4445, %v4576
        %4578 = vmatmul.bf16.gmra.mxu0 %v4408
        %v4579 = vpop.f32.mrf.mxu0
        %v4580 = vadd.f32 %v4445, %v4579
        %v4581 = vpop.f32.mrf.mxu0
        %v4582 = vadd.f32 %v4445, %v4581
        %4583 = vmatmul.bf16.gmra.mxu0 %v4409
        %v4584 = vpop.f32.mrf.mxu0
        %v4585 = vadd.f32 %v4445, %v4584
        %v4586 = vpop.f32.mrf.mxu0
        %v4587 = vadd.f32 %v4445, %v4586
        %4588 = vmatmul.bf16.gmra.mxu0 %v4410
        %v4589 = vpop.f32.mrf.mxu0
        %v4590 = vadd.f32 %v4445, %v4589
        %v4591 = vpop.f32.mrf.mxu0
        %v4592 = vadd.f32 %v4445, %v4591
        %4593 = vmatmul.bf16.gmra.mxu0 %v4411
        %v4594 = vpop.f32.mrf.mxu0
        %v4595 = vadd.f32 %v4445, %v4594
        %v4596 = vpop.f32.mrf.mxu0
        %v4597 = vadd.f32 %v4445, %v4596
        %4598 = vmatmul.bf16.gmra.mxu0 %v4412
        %v4599 = vpop.f32.mrf.mxu0
        %v4600 = vadd.f32 %v4445, %v4599
        %v4601 = vpop.f32.mrf.mxu0
        %v4602 = vadd.f32 %v4445, %v4601
        %4603 = vmatmul.bf16.gmra.mxu0 %v4413
        %v4604 = vpop.f32.mrf.mxu0
        %v4605 = vadd.f32 %v4445, %v4604
        %v4606 = vpop.f32.mrf.mxu0
        %v4607 = vadd.f32 %v4445, %v4606
        %4608 = vmatmul.bf16.gmra.mxu0 %v4414
        %v4609 = vpop.f32.mrf.mxu0
        %v4610 = vadd.f32 %v4445, %v4609
        %v4611 = vpop.f32.mrf.mxu0
        %v4612 = vadd.f32 %v4445, %v4611
        %4613 = vmatmul.bf16.gmra.mxu0 %v4415
        %v4614 = vpop.f32.mrf.mxu0
        %v4615 = vadd.f32 %v4445, %v4614
        %v4616 = vpop.f32.mrf.mxu0
        %v4617 = vadd.f32 %v4445, %v4616
        %4618 = vmatmul.bf16.gmra.mxu0 %v4416
        %v4619 = vpop.f32.mrf.mxu0
        %v4620 = vadd.f32 %v4445, %v4619
        %v4621 = vpop.f32.mrf.mxu0
        %v4622 = vadd.f32 %v4445, %v4621
        %4623 = vmatmul.bf16.gmra.mxu0 %v4417
        %v4624 = vpop.f32.mrf.mxu0
        %v4625 = vadd.f32 %v4445, %v4624
        %v4626 = vpop.f32.mrf.mxu0
        %v4627 = vadd.f32 %v4445, %v4626
        %4628 = vmatmul.bf16.gmra.mxu0 %v4418
        %v4629 = vpop.f32.mrf.mxu0
        %v4630 = vadd.f32 %v4445, %v4629
        %v4631 = vpop.f32.mrf.mxu0
        %v4632 = vadd.f32 %v4445, %v4631
        %4633 = vmatmul.bf16.gmra.mxu0 %v4419
        %v4634 = vpop.f32.mrf.mxu0
        %v4635 = vadd.f32 %v4445, %v4634
        %v4636 = vpop.f32.mrf.mxu0
        %v4637 = vadd.f32 %v4445, %v4636
        %4638 = vmatmul.bf16.gmra.mxu0 %v4420
        %v4639 = vpop.f32.mrf.mxu0
        %v4640 = vadd.f32 %v4445, %v4639
        %v4641 = vpop.f32.mrf.mxu0
        %v4642 = vadd.f32 %v4445, %v4641
        %4643 = vmatmul.bf16.gmra.mxu0 %v4421
        %v4644 = vpop.f32.mrf.mxu0
        %v4645 = vadd.f32 %v4445, %v4644
        %v4646 = vpop.f32.mrf.mxu0
        %v4647 = vadd.f32 %v4445, %v4646
        %4648 = vmatmul.bf16.gmra.mxu0 %v4422
        %v4649 = vpop.f32.mrf.mxu0
        %v4650 = vadd.f32 %v4445, %v4649
        %v4651 = vpop.f32.mrf.mxu0
        %v4652 = vadd.f32 %v4445, %v4651
        %4653 = vmatmul.bf16.gmra.mxu0 %v4423
        %v4654 = vpop.f32.mrf.mxu0
        %v4655 = vadd.f32 %v4445, %v4654
        %v4656 = vpop.f32.mrf.mxu0
        %v4657 = vadd.f32 %v4445, %v4656
        %4658 = vmatmul.bf16.gmra.mxu0 %v4424
        %v4659 = vpop.f32.mrf.mxu0
        %v4660 = vadd.f32 %v4445, %v4659
        %v4661 = vpop.f32.mrf.mxu0
        %v4662 = vadd.f32 %v4445, %v4661
        %4663 = vdwg.mxu0
        %v4664 = vmax.f32 %v4505, 0.0
        %v4665 = vmax.f32 %v4507, 0.0
        %v4666 = vmax.f32 %v4510, 0.0
        %v4667 = vmax.f32 %v4512, 0.0
        %v4668 = vmax.f32 %v4515, 0.0
        %v4669 = vmax.f32 %v4517, 0.0
        %v4670 = vmax.f32 %v4520, 0.0
        %v4671 = vmax.f32 %v4522, 0.0
        %v4672 = vmax.f32 %v4525, 0.0
        %v4673 = vmax.f32 %v4527, 0.0
        %v4674 = vmax.f32 %v4530, 0.0
        %v4675 = vmax.f32 %v4532, 0.0
        %v4676 = vmax.f32 %v4535, 0.0
        %v4677 = vmax.f32 %v4537, 0.0
        %v4678 = vmax.f32 %v4540, 0.0
        %v4679 = vmax.f32 %v4542, 0.0
        %v4680 = vmax.f32 %v4545, 0.0
        %v4681 = vmax.f32 %v4547, 0.0
        %v4682 = vmax.f32 %v4550, 0.0
        %v4683 = vmax.f32 %v4552, 0.0
        %v4684 = vmax.f32 %v4555, 0.0
        %v4685 = vmax.f32 %v4557, 0.0
        %v4686 = vmax.f32 %v4560, 0.0
        %v4687 = vmax.f32 %v4562, 0.0
        %v4688 = vmax.f32 %v4565, 0.0
        %v4689 = vmax.f32 %v4567, 0.0
        %v4690 = vmax.f32 %v4570, 0.0
        %v4691 = vmax.f32 %v4572, 0.0
        %v4692 = vmax.f32 %v4575, 0.0
        %v4693 = vmax.f32 %v4577, 0.0
        %v4694 = vmax.f32 %v4580, 0.0
        %v4695 = vmax.f32 %v4582, 0.0
        %v4696 = vmax.f32 %v4585, 0.0
        %v4697 = vmax.f32 %v4587, 0.0
        %v4698 = vmax.f32 %v4590, 0.0
        %v4699 = vmax.f32 %v4592, 0.0
        %v4700 = vmax.f32 %v4595, 0.0
        %v4701 = vmax.f32 %v4597, 0.0
        %v4702 = vmax.f32 %v4600, 0.0
        %v4703 = vmax.f32 %v4602, 0.0
        %v4704 = vmax.f32 %v4605, 0.0
        %v4705 = vmax.f32 %v4607, 0.0
        %v4706 = vmax.f32 %v4610, 0.0
        %v4707 = vmax.f32 %v4612, 0.0
        %v4708 = vmax.f32 %v4615, 0.0
        %v4709 = vmax.f32 %v4617, 0.0
        %v4710 = vmax.f32 %v4620, 0.0
        %v4711 = vmax.f32 %v4622, 0.0
        %v4712 = vmax.f32 %v4625, 0.0
        %v4713 = vmax.f32 %v4627, 0.0
        %v4714 = vmax.f32 %v4630, 0.0
        %v4715 = vmax.f32 %v4632, 0.0
        %v4716 = vmax.f32 %v4635, 0.0
        %v4717 = vmax.f32 %v4637, 0.0
        %v4718 = vmax.f32 %v4640, 0.0
        %v4719 = vmax.f32 %v4642, 0.0
        %v4720 = vmax.f32 %v4645, 0.0
        %v4721 = vmax.f32 %v4647, 0.0
        %v4722 = vmax.f32 %v4650, 0.0
        %v4723 = vmax.f32 %v4652, 0.0
        %v4724 = vmax.f32 %v4655, 0.0
        %v4725 = vmax.f32 %v4657, 0.0
        %v4726 = vmax.f32 %v4660, 0.0
        %v4727 = vmax.f32 %v4662, 0.0
        %v4728 = vpack.c.bf16 %v4665, %v4664
        %v4729 = vpack.c.bf16 %v4667, %v4666
        %v4730 = vpack.c.bf16 %v4669, %v4668
        %v4731 = vpack.c.bf16 %v4671, %v4670
        %v4732 = vpack.c.bf16 %v4673, %v4672
        %v4733 = vpack.c.bf16 %v4675, %v4674
        %v4734 = vpack.c.bf16 %v4677, %v4676
        %v4735 = vpack.c.bf16 %v4679, %v4678
        %v4736 = vpack.c.bf16 %v4681, %v4680
        %v4737 = vpack.c.bf16 %v4683, %v4682
        %v4738 = vpack.c.bf16 %v4685, %v4684
        %v4739 = vpack.c.bf16 %v4687, %v4686
        %v4740 = vpack.c.bf16 %v4689, %v4688
        %v4741 = vpack.c.bf16 %v4691, %v4690
        %v4742 = vpack.c.bf16 %v4693, %v4692
        %v4743 = vpack.c.bf16 %v4695, %v4694
        %v4744 = vpack.c.bf16 %v4697, %v4696
        %v4745 = vpack.c.bf16 %v4699, %v4698
        %v4746 = vpack.c.bf16 %v4701, %v4700
        %v4747 = vpack.c.bf16 %v4703, %v4702
        %v4748 = vpack.c.bf16 %v4705, %v4704
        %v4749 = vpack.c.bf16 %v4707, %v4706
        %v4750 = vpack.c.bf16 %v4709, %v4708
        %v4751 = vpack.c.bf16 %v4711, %v4710
        %v4752 = vpack.c.bf16 %v4713, %v4712
        %v4753 = vpack.c.bf16 %v4715, %v4714
        %v4754 = vpack.c.bf16 %v4717, %v4716
        %v4755 = vpack.c.bf16 %v4719, %v4718
        %v4756 = vpack.c.bf16 %v4721, %v4720
        %v4757 = vpack.c.bf16 %v4723, %v4722
        %v4758 = vpack.c.bf16 %v4725, %v4724
        %v4759 = vpack.c.bf16 %v4727, %v4726
        %s4760 = scalar_lea.vmem [#allocation11], 192
        %v4761 = vld [vmem:[%s4760] sm:$0xf]
        %v4762 = vld [vmem:[%s4760 + $0x4] sm:$0xf]
        %v4763 = vld [vmem:[%s4760 + $0x8] sm:$0xf]
        %v4764 = vld [vmem:[%s4760 + $0xc] sm:$0xf]
        %v4765 = vld [vmem:[%s4760 + $0x10] sm:$0xf]
        %v4766 = vld [vmem:[%s4760 + $0x14] sm:$0xf]
        %v4767 = vld [vmem:[%s4760 + $0x18] sm:$0xf]
        %v4768 = vld [vmem:[%s4760 + $0x1c] sm:$0xf]
        %v4769 = vld [vmem:[%s4760 + $0x20] sm:$0xf]
        %v4770 = vld [vmem:[%s4760 + $0x24] sm:$0xf]
        %v4771 = vld [vmem:[%s4760 + $0x28] sm:$0xf]
        %v4772 = vld [vmem:[%s4760 + $0x2c] sm:$0xf]
        %v4773 = vld [vmem:[%s4760 + $0x30] sm:$0xf]
        %v4774 = vld [vmem:[%s4760 + $0x34] sm:$0xf]
        %v4775 = vld [vmem:[%s4760 + $0x38] sm:$0xf]
        %v4776 = vld [vmem:[%s4760 + $0x3c] sm:$0xf]
        %s4777 = scalar_lea.vmem %s6, 3
        %v4778 = vld [vmem:[%s4777] sm:$0x1]
        %v4780 = vperm.slane %v4778, 0
        %v4798 = vunpack.c.l.b16 %v4761
        %v4799 = vunpack.c.l.b16 %v4762
        %v4800 = vunpack.c.l.b16 %v4763
        %v4801 = vunpack.c.l.b16 %v4764
        %v4802 = vunpack.c.l.b16 %v4765
        %v4803 = vunpack.c.l.b16 %v4766
        %v4804 = vunpack.c.l.b16 %v4767
        %v4805 = vunpack.c.l.b16 %v4768
        %v4806 = vunpack.c.l.b16 %v4769
        %v4807 = vunpack.c.l.b16 %v4770
        %v4808 = vunpack.c.l.b16 %v4771
        %v4809 = vunpack.c.l.b16 %v4772
        %v4810 = vunpack.c.l.b16 %v4773
        %v4811 = vunpack.c.l.b16 %v4774
        %v4812 = vunpack.c.l.b16 %v4775
        %v4813 = vunpack.c.l.b16 %v4776
        %v4814 = vpack.c.b16 %v4799, %v4798
        %v4815 = vpack.c.b16 %v4801, %v4800
        %v4816 = vpack.c.b16 %v4803, %v4802
        %v4817 = vpack.c.b16 %v4805, %v4804
        %v4818 = vpack.c.b16 %v4807, %v4806
        %v4819 = vpack.c.b16 %v4809, %v4808
        %v4820 = vpack.c.b16 %v4811, %v4810
        %v4821 = vpack.c.b16 %v4813, %v4812
        %4830 = vmatpush.bf16.msra.mxu0 %v4821
        %4831 = vmatpush.bf16.msra.mxu0 %v4820
        %4832 = vmatpush.bf16.msra.mxu0 %v4819
        %4833 = vmatpush.bf16.msra.mxu0 %v4818
        %4834 = vmatpush.bf16.msra.mxu0 %v4817
        %4835 = vmatpush.bf16.msra.mxu0 %v4816
        %4836 = vmatpush.bf16.msra.mxu0 %v4815
        %4837 = vmatpush.bf16.msra.mxu0 %v4814
        %4838 = vmatmul.bf16.gmra.mxu0 %v4728
        %v4839 = vpop.f32.mrf.mxu0
        %v4840 = vadd.f32 %v4780, %v4839
        %v4841 = vpop.f32.mrf.mxu0
        %v4842 = vadd.f32 %v4780, %v4841
        %4843 = vmatmul.bf16.gmra.mxu0 %v4729
        %v4844 = vpop.f32.mrf.mxu0
        %v4845 = vadd.f32 %v4780, %v4844
        %v4846 = vpop.f32.mrf.mxu0
        %v4847 = vadd.f32 %v4780, %v4846
        %4848 = vmatmul.bf16.gmra.mxu0 %v4730
        %v4849 = vpop.f32.mrf.mxu0
        %v4850 = vadd.f32 %v4780, %v4849
        %v4851 = vpop.f32.mrf.mxu0
        %v4852 = vadd.f32 %v4780, %v4851
        %4853 = vmatmul.bf16.gmra.mxu0 %v4731
        %v4854 = vpop.f32.mrf.mxu0
        %v4855 = vadd.f32 %v4780, %v4854
        %v4856 = vpop.f32.mrf.mxu0
        %v4857 = vadd.f32 %v4780, %v4856
        %4858 = vmatmul.bf16.gmra.mxu0 %v4732
        %v4859 = vpop.f32.mrf.mxu0
        %v4860 = vadd.f32 %v4780, %v4859
        %v4861 = vpop.f32.mrf.mxu0
        %v4862 = vadd.f32 %v4780, %v4861
        %4863 = vmatmul.bf16.gmra.mxu0 %v4733
        %v4864 = vpop.f32.mrf.mxu0
        %v4865 = vadd.f32 %v4780, %v4864
        %v4866 = vpop.f32.mrf.mxu0
        %v4867 = vadd.f32 %v4780, %v4866
        %4868 = vmatmul.bf16.gmra.mxu0 %v4734
        %v4869 = vpop.f32.mrf.mxu0
        %v4870 = vadd.f32 %v4780, %v4869
        %v4871 = vpop.f32.mrf.mxu0
        %v4872 = vadd.f32 %v4780, %v4871
        %4873 = vmatmul.bf16.gmra.mxu0 %v4735
        %v4874 = vpop.f32.mrf.mxu0
        %v4875 = vadd.f32 %v4780, %v4874
        %v4876 = vpop.f32.mrf.mxu0
        %v4877 = vadd.f32 %v4780, %v4876
        %4878 = vmatmul.bf16.gmra.mxu0 %v4736
        %v4879 = vpop.f32.mrf.mxu0
        %v4880 = vadd.f32 %v4780, %v4879
        %v4881 = vpop.f32.mrf.mxu0
        %v4882 = vadd.f32 %v4780, %v4881
        %4883 = vmatmul.bf16.gmra.mxu0 %v4737
        %v4884 = vpop.f32.mrf.mxu0
        %v4885 = vadd.f32 %v4780, %v4884
        %v4886 = vpop.f32.mrf.mxu0
        %v4887 = vadd.f32 %v4780, %v4886
        %4888 = vmatmul.bf16.gmra.mxu0 %v4738
        %v4889 = vpop.f32.mrf.mxu0
        %v4890 = vadd.f32 %v4780, %v4889
        %v4891 = vpop.f32.mrf.mxu0
        %v4892 = vadd.f32 %v4780, %v4891
        %4893 = vmatmul.bf16.gmra.mxu0 %v4739
        %v4894 = vpop.f32.mrf.mxu0
        %v4895 = vadd.f32 %v4780, %v4894
        %v4896 = vpop.f32.mrf.mxu0
        %v4897 = vadd.f32 %v4780, %v4896
        %4898 = vmatmul.bf16.gmra.mxu0 %v4740
        %v4899 = vpop.f32.mrf.mxu0
        %v4900 = vadd.f32 %v4780, %v4899
        %v4901 = vpop.f32.mrf.mxu0
        %v4902 = vadd.f32 %v4780, %v4901
        %4903 = vmatmul.bf16.gmra.mxu0 %v4741
        %v4904 = vpop.f32.mrf.mxu0
        %v4905 = vadd.f32 %v4780, %v4904
        %v4906 = vpop.f32.mrf.mxu0
        %v4907 = vadd.f32 %v4780, %v4906
        %4908 = vmatmul.bf16.gmra.mxu0 %v4742
        %v4909 = vpop.f32.mrf.mxu0
        %v4910 = vadd.f32 %v4780, %v4909
        %v4911 = vpop.f32.mrf.mxu0
        %v4912 = vadd.f32 %v4780, %v4911
        %4913 = vmatmul.bf16.gmra.mxu0 %v4743
        %v4914 = vpop.f32.mrf.mxu0
        %v4915 = vadd.f32 %v4780, %v4914
        %v4916 = vpop.f32.mrf.mxu0
        %v4917 = vadd.f32 %v4780, %v4916
        %4918 = vmatmul.bf16.gmra.mxu0 %v4744
        %v4919 = vpop.f32.mrf.mxu0
        %v4920 = vadd.f32 %v4780, %v4919
        %v4921 = vpop.f32.mrf.mxu0
        %v4922 = vadd.f32 %v4780, %v4921
        %4923 = vmatmul.bf16.gmra.mxu0 %v4745
        %v4924 = vpop.f32.mrf.mxu0
        %v4925 = vadd.f32 %v4780, %v4924
        %v4926 = vpop.f32.mrf.mxu0
        %v4927 = vadd.f32 %v4780, %v4926
        %4928 = vmatmul.bf16.gmra.mxu0 %v4746
        %v4929 = vpop.f32.mrf.mxu0
        %v4930 = vadd.f32 %v4780, %v4929
        %v4931 = vpop.f32.mrf.mxu0
        %v4932 = vadd.f32 %v4780, %v4931
        %4933 = vmatmul.bf16.gmra.mxu0 %v4747
        %v4934 = vpop.f32.mrf.mxu0
        %v4935 = vadd.f32 %v4780, %v4934
        %v4936 = vpop.f32.mrf.mxu0
        %v4937 = vadd.f32 %v4780, %v4936
        %4938 = vmatmul.bf16.gmra.mxu0 %v4748
        %v4939 = vpop.f32.mrf.mxu0
        %v4940 = vadd.f32 %v4780, %v4939
        %v4941 = vpop.f32.mrf.mxu0
        %v4942 = vadd.f32 %v4780, %v4941
        %4943 = vmatmul.bf16.gmra.mxu0 %v4749
        %v4944 = vpop.f32.mrf.mxu0
        %v4945 = vadd.f32 %v4780, %v4944
        %v4946 = vpop.f32.mrf.mxu0
        %v4947 = vadd.f32 %v4780, %v4946
        %4948 = vmatmul.bf16.gmra.mxu0 %v4750
        %v4949 = vpop.f32.mrf.mxu0
        %v4950 = vadd.f32 %v4780, %v4949
        %v4951 = vpop.f32.mrf.mxu0
        %v4952 = vadd.f32 %v4780, %v4951
        %4953 = vmatmul.bf16.gmra.mxu0 %v4751
        %v4954 = vpop.f32.mrf.mxu0
        %v4955 = vadd.f32 %v4780, %v4954
        %v4956 = vpop.f32.mrf.mxu0
        %v4957 = vadd.f32 %v4780, %v4956
        %4958 = vmatmul.bf16.gmra.mxu0 %v4752
        %v4959 = vpop.f32.mrf.mxu0
        %v4960 = vadd.f32 %v4780, %v4959
        %v4961 = vpop.f32.mrf.mxu0
        %v4962 = vadd.f32 %v4780, %v4961
        %4963 = vmatmul.bf16.gmra.mxu0 %v4753
        %v4964 = vpop.f32.mrf.mxu0
        %v4965 = vadd.f32 %v4780, %v4964
        %v4966 = vpop.f32.mrf.mxu0
        %v4967 = vadd.f32 %v4780, %v4966
        %4968 = vmatmul.bf16.gmra.mxu0 %v4754
        %v4969 = vpop.f32.mrf.mxu0
        %v4970 = vadd.f32 %v4780, %v4969
        %v4971 = vpop.f32.mrf.mxu0
        %v4972 = vadd.f32 %v4780, %v4971
        %4973 = vmatmul.bf16.gmra.mxu0 %v4755
        %v4974 = vpop.f32.mrf.mxu0
        %v4975 = vadd.f32 %v4780, %v4974
        %v4976 = vpop.f32.mrf.mxu0
        %v4977 = vadd.f32 %v4780, %v4976
        %4978 = vmatmul.bf16.gmra.mxu0 %v4756
        %v4979 = vpop.f32.mrf.mxu0
        %v4980 = vadd.f32 %v4780, %v4979
        %v4981 = vpop.f32.mrf.mxu0
        %v4982 = vadd.f32 %v4780, %v4981
        %4983 = vmatmul.bf16.gmra.mxu0 %v4757
        %v4984 = vpop.f32.mrf.mxu0
        %v4985 = vadd.f32 %v4780, %v4984
        %v4986 = vpop.f32.mrf.mxu0
        %v4987 = vadd.f32 %v4780, %v4986
        %4988 = vmatmul.bf16.gmra.mxu0 %v4758
        %v4989 = vpop.f32.mrf.mxu0
        %v4990 = vadd.f32 %v4780, %v4989
        %v4991 = vpop.f32.mrf.mxu0
        %v4992 = vadd.f32 %v4780, %v4991
        %4993 = vmatmul.bf16.gmra.mxu0 %v4759
        %v4994 = vpop.f32.mrf.mxu0
        %v4995 = vadd.f32 %v4780, %v4994
        %v4996 = vpop.f32.mrf.mxu0
        %v4997 = vadd.f32 %v4780, %v4996
        %4998 = vdwg.mxu0
        %v4999 = vmax.f32 %v4840, 0.0
        %v5000 = vmax.f32 %v4842, 0.0
        %v5001 = vmax.f32 %v4845, 0.0
        %v5002 = vmax.f32 %v4847, 0.0
        %v5003 = vmax.f32 %v4850, 0.0
        %v5004 = vmax.f32 %v4852, 0.0
        %v5005 = vmax.f32 %v4855, 0.0
        %v5006 = vmax.f32 %v4857, 0.0
        %v5007 = vmax.f32 %v4860, 0.0
        %v5008 = vmax.f32 %v4862, 0.0
        %v5009 = vmax.f32 %v4865, 0.0
        %v5010 = vmax.f32 %v4867, 0.0
        %v5011 = vmax.f32 %v4870, 0.0
        %v5012 = vmax.f32 %v4872, 0.0
        %v5013 = vmax.f32 %v4875, 0.0
        %v5014 = vmax.f32 %v4877, 0.0
        %v5015 = vmax.f32 %v4880, 0.0
        %v5016 = vmax.f32 %v4882, 0.0
        %v5017 = vmax.f32 %v4885, 0.0
        %v5018 = vmax.f32 %v4887, 0.0
        %v5019 = vmax.f32 %v4890, 0.0
        %v5020 = vmax.f32 %v4892, 0.0
        %v5021 = vmax.f32 %v4895, 0.0
        %v5022 = vmax.f32 %v4897, 0.0
        %v5023 = vmax.f32 %v4900, 0.0
        %v5024 = vmax.f32 %v4902, 0.0
        %v5025 = vmax.f32 %v4905, 0.0
        %v5026 = vmax.f32 %v4907, 0.0
        %v5027 = vmax.f32 %v4910, 0.0
        %v5028 = vmax.f32 %v4912, 0.0
        %v5029 = vmax.f32 %v4915, 0.0
        %v5030 = vmax.f32 %v4917, 0.0
        %v5031 = vmax.f32 %v4920, 0.0
        %v5032 = vmax.f32 %v4922, 0.0
        %v5033 = vmax.f32 %v4925, 0.0
        %v5034 = vmax.f32 %v4927, 0.0
        %v5035 = vmax.f32 %v4930, 0.0
        %v5036 = vmax.f32 %v4932, 0.0
        %v5037 = vmax.f32 %v4935, 0.0
        %v5038 = vmax.f32 %v4937, 0.0
        %v5039 = vmax.f32 %v4940, 0.0
        %v5040 = vmax.f32 %v4942, 0.0
        %v5041 = vmax.f32 %v4945, 0.0
        %v5042 = vmax.f32 %v4947, 0.0
        %v5043 = vmax.f32 %v4950, 0.0
        %v5044 = vmax.f32 %v4952, 0.0
        %v5045 = vmax.f32 %v4955, 0.0
        %v5046 = vmax.f32 %v4957, 0.0
        %v5047 = vmax.f32 %v4960, 0.0
        %v5048 = vmax.f32 %v4962, 0.0
        %v5049 = vmax.f32 %v4965, 0.0
        %v5050 = vmax.f32 %v4967, 0.0
        %v5051 = vmax.f32 %v4970, 0.0
        %v5052 = vmax.f32 %v4972, 0.0
        %v5053 = vmax.f32 %v4975, 0.0
        %v5054 = vmax.f32 %v4977, 0.0
        %v5055 = vmax.f32 %v4980, 0.0
        %v5056 = vmax.f32 %v4982, 0.0
        %v5057 = vmax.f32 %v4985, 0.0
        %v5058 = vmax.f32 %v4987, 0.0
        %v5059 = vmax.f32 %v4990, 0.0
        %v5060 = vmax.f32 %v4992, 0.0
        %v5061 = vmax.f32 %v4995, 0.0
        %v5062 = vmax.f32 %v4997, 0.0
        %v5063 = vpack.c.bf16 %v4999, %v4999
        %v5064 = vpack.c.bf16 %v5000, %v5000
        %v5065 = vpack.c.bf16 %v5001, %v5001
        %v5066 = vpack.c.bf16 %v5002, %v5002
        %v5067 = vpack.c.bf16 %v5003, %v5003
        %v5068 = vpack.c.bf16 %v5004, %v5004
        %v5069 = vpack.c.bf16 %v5005, %v5005
        %v5070 = vpack.c.bf16 %v5006, %v5006
        %v5071 = vpack.c.bf16 %v5007, %v5007
        %v5072 = vpack.c.bf16 %v5008, %v5008
        %v5073 = vpack.c.bf16 %v5009, %v5009
        %v5074 = vpack.c.bf16 %v5010, %v5010
        %v5075 = vpack.c.bf16 %v5011, %v5011
        %v5076 = vpack.c.bf16 %v5012, %v5012
        %v5077 = vpack.c.bf16 %v5013, %v5013
        %v5078 = vpack.c.bf16 %v5014, %v5014
        %v5079 = vpack.c.bf16 %v5015, %v5015
        %v5080 = vpack.c.bf16 %v5016, %v5016
        %v5081 = vpack.c.bf16 %v5017, %v5017
        %v5082 = vpack.c.bf16 %v5018, %v5018
        %v5083 = vpack.c.bf16 %v5019, %v5019
        %v5084 = vpack.c.bf16 %v5020, %v5020
        %v5085 = vpack.c.bf16 %v5021, %v5021
        %v5086 = vpack.c.bf16 %v5022, %v5022
        %v5087 = vpack.c.bf16 %v5023, %v5023
        %v5088 = vpack.c.bf16 %v5024, %v5024
        %v5089 = vpack.c.bf16 %v5025, %v5025
        %v5090 = vpack.c.bf16 %v5026, %v5026
        %v5091 = vpack.c.bf16 %v5027, %v5027
        %v5092 = vpack.c.bf16 %v5028, %v5028
        %v5093 = vpack.c.bf16 %v5029, %v5029
        %v5094 = vpack.c.bf16 %v5030, %v5030
        %v5095 = vpack.c.bf16 %v5031, %v5031
        %v5096 = vpack.c.bf16 %v5032, %v5032
        %v5097 = vpack.c.bf16 %v5033, %v5033
        %v5098 = vpack.c.bf16 %v5034, %v5034
        %v5099 = vpack.c.bf16 %v5035, %v5035
        %v5100 = vpack.c.bf16 %v5036, %v5036
        %v5101 = vpack.c.bf16 %v5037, %v5037
        %v5102 = vpack.c.bf16 %v5038, %v5038
        %v5103 = vpack.c.bf16 %v5039, %v5039
        %v5104 = vpack.c.bf16 %v5040, %v5040
        %v5105 = vpack.c.bf16 %v5041, %v5041
        %v5106 = vpack.c.bf16 %v5042, %v5042
        %v5107 = vpack.c.bf16 %v5043, %v5043
        %v5108 = vpack.c.bf16 %v5044, %v5044
        %v5109 = vpack.c.bf16 %v5045, %v5045
        %v5110 = vpack.c.bf16 %v5046, %v5046
        %v5111 = vpack.c.bf16 %v5047, %v5047
        %v5112 = vpack.c.bf16 %v5048, %v5048
        %v5113 = vpack.c.bf16 %v5049, %v5049
        %v5114 = vpack.c.bf16 %v5050, %v5050
        %v5115 = vpack.c.bf16 %v5051, %v5051
        %v5116 = vpack.c.bf16 %v5052, %v5052
        %v5117 = vpack.c.bf16 %v5053, %v5053
        %v5118 = vpack.c.bf16 %v5054, %v5054
        %v5119 = vpack.c.bf16 %v5055, %v5055
        %v5120 = vpack.c.bf16 %v5056, %v5056
        %v5121 = vpack.c.bf16 %v5057, %v5057
        %v5122 = vpack.c.bf16 %v5058, %v5058
        %v5123 = vpack.c.bf16 %v5059, %v5059
        %v5124 = vpack.c.bf16 %v5060, %v5060
        %v5125 = vpack.c.bf16 %v5061, %v5061
        %v5126 = vpack.c.bf16 %v5062, %v5062
        %v5127 = vpack.c.bf16 %v1884, %v1879
        %v5128 = vpack.c.bf16 %v1894, %v1889
        %v5129 = vpack.c.bf16 %v1904, %v1899
        %v5130 = vpack.c.bf16 %v1914, %v1909
        %v5131 = vpack.c.bf16 %v1924, %v1919
        %v5132 = vpack.c.bf16 %v1934, %v1929
        %v5133 = vpack.c.bf16 %v1944, %v1939
        %v5134 = vpack.c.bf16 %v1954, %v1949
        %v5135 = vpack.c.bf16 %v1964, %v1959
        %v5136 = vpack.c.bf16 %v1974, %v1969
        %v5137 = vpack.c.bf16 %v1984, %v1979
        %v5138 = vpack.c.bf16 %v1994, %v1989
        %v5139 = vpack.c.bf16 %v2004, %v1999
        %v5140 = vpack.c.bf16 %v2014, %v2009
        %v5141 = vpack.c.bf16 %v2024, %v2019
        %v5142 = vpack.c.bf16 %v2034, %v2029
        %v5143 = vpack.c.bf16 %v2044, %v2039
        %v5144 = vpack.c.bf16 %v2054, %v2049
        %v5145 = vpack.c.bf16 %v2064, %v2059
        %v5146 = vpack.c.bf16 %v2074, %v2069
        %v5147 = vpack.c.bf16 %v2084, %v2079
        %v5148 = vpack.c.bf16 %v2094, %v2089
        %v5149 = vpack.c.bf16 %v2104, %v2099
        %v5150 = vpack.c.bf16 %v2114, %v2109
        %v5151 = vpack.c.bf16 %v2124, %v2119
        %v5152 = vpack.c.bf16 %v2134, %v2129
        %v5153 = vpack.c.bf16 %v2144, %v2139
        %v5154 = vpack.c.bf16 %v2154, %v2149
        %v5155 = vpack.c.bf16 %v2164, %v2159
        %v5156 = vpack.c.bf16 %v2174, %v2169
        %v5157 = vpack.c.bf16 %v2184, %v2179
        %v5158 = vpack.c.bf16 %v2194, %v2189
        %s5159 = scalar_lea.vmem [#allocation8], 256
        %v5160 = vld [vmem:[%s5159] sm:$0xf]
        %v5161 = vld [vmem:[%s5159 + $0x4] sm:$0xf]
        %v5162 = vld [vmem:[%s5159 + $0x8] sm:$0xf]
        %v5163 = vld [vmem:[%s5159 + $0xc] sm:$0xf]
        %v5164 = vld [vmem:[%s5159 + $0x10] sm:$0xf]
        %v5165 = vld [vmem:[%s5159 + $0x14] sm:$0xf]
        %v5166 = vld [vmem:[%s5159 + $0x18] sm:$0xf]
        %v5167 = vld [vmem:[%s5159 + $0x1c] sm:$0xf]
        %v5168 = vld [vmem:[%s5159 + $0x20] sm:$0xf]
        %v5169 = vld [vmem:[%s5159 + $0x24] sm:$0xf]
        %v5170 = vld [vmem:[%s5159 + $0x28] sm:$0xf]
        %v5171 = vld [vmem:[%s5159 + $0x2c] sm:$0xf]
        %v5172 = vld [vmem:[%s5159 + $0x30] sm:$0xf]
        %v5173 = vld [vmem:[%s5159 + $0x34] sm:$0xf]
        %v5174 = vld [vmem:[%s5159 + $0x38] sm:$0xf]
        %v5175 = vld [vmem:[%s5159 + $0x3c] sm:$0xf]
        %s5176 = scalar_lea.vmem [#allocation10], 4
        %v5177 = vld [vmem:[%s5176] sm:$0x1]
        %v5179 = vperm.slane %v5177, 0
        %v5197 = vunpack.c.l.b16 %v5160
        %v5198 = vunpack.c.l.b16 %v5161
        %v5199 = vunpack.c.l.b16 %v5162
        %v5200 = vunpack.c.l.b16 %v5163
        %v5201 = vunpack.c.l.b16 %v5164
        %v5202 = vunpack.c.l.b16 %v5165
        %v5203 = vunpack.c.l.b16 %v5166
        %v5204 = vunpack.c.l.b16 %v5167
        %v5205 = vunpack.c.l.b16 %v5168
        %v5206 = vunpack.c.l.b16 %v5169
        %v5207 = vunpack.c.l.b16 %v5170
        %v5208 = vunpack.c.l.b16 %v5171
        %v5209 = vunpack.c.l.b16 %v5172
        %v5210 = vunpack.c.l.b16 %v5173
        %v5211 = vunpack.c.l.b16 %v5174
        %v5212 = vunpack.c.l.b16 %v5175
        %v5213 = vpack.c.b16 %v5198, %v5197
        %v5214 = vpack.c.b16 %v5200, %v5199
        %v5215 = vpack.c.b16 %v5202, %v5201
        %v5216 = vpack.c.b16 %v5204, %v5203
        %v5217 = vpack.c.b16 %v5206, %v5205
        %v5218 = vpack.c.b16 %v5208, %v5207
        %v5219 = vpack.c.b16 %v5210, %v5209
        %v5220 = vpack.c.b16 %v5212, %v5211
        %5229 = vmatpush.bf16.msra.mxu0 %v5220
        %5230 = vmatpush.bf16.msra.mxu0 %v5219
        %5231 = vmatpush.bf16.msra.mxu0 %v5218
        %5232 = vmatpush.bf16.msra.mxu0 %v5217
        %5233 = vmatpush.bf16.msra.mxu0 %v5216
        %5234 = vmatpush.bf16.msra.mxu0 %v5215
        %5235 = vmatpush.bf16.msra.mxu0 %v5214
        %5236 = vmatpush.bf16.msra.mxu0 %v5213
        %5237 = vmatmul.bf16.gmra.mxu0 %v5127
        %v5238 = vpop.f32.mrf.mxu0
        %v5239 = vadd.f32 %v5179, %v5238
        %v5240 = vpop.f32.mrf.mxu0
        %v5241 = vadd.f32 %v5179, %v5240
        %5242 = vmatmul.bf16.gmra.mxu0 %v5128
        %v5243 = vpop.f32.mrf.mxu0
        %v5244 = vadd.f32 %v5179, %v5243
        %v5245 = vpop.f32.mrf.mxu0
        %v5246 = vadd.f32 %v5179, %v5245
        %5247 = vmatmul.bf16.gmra.mxu0 %v5129
        %v5248 = vpop.f32.mrf.mxu0
        %v5249 = vadd.f32 %v5179, %v5248
        %v5250 = vpop.f32.mrf.mxu0
        %v5251 = vadd.f32 %v5179, %v5250
        %5252 = vmatmul.bf16.gmra.mxu0 %v5130
        %v5253 = vpop.f32.mrf.mxu0
        %v5254 = vadd.f32 %v5179, %v5253
        %v5255 = vpop.f32.mrf.mxu0
        %v5256 = vadd.f32 %v5179, %v5255
        %5257 = vmatmul.bf16.gmra.mxu0 %v5131
        %v5258 = vpop.f32.mrf.mxu0
        %v5259 = vadd.f32 %v5179, %v5258
        %v5260 = vpop.f32.mrf.mxu0
        %v5261 = vadd.f32 %v5179, %v5260
        %5262 = vmatmul.bf16.gmra.mxu0 %v5132
        %v5263 = vpop.f32.mrf.mxu0
        %v5264 = vadd.f32 %v5179, %v5263
        %v5265 = vpop.f32.mrf.mxu0
        %v5266 = vadd.f32 %v5179, %v5265
        %5267 = vmatmul.bf16.gmra.mxu0 %v5133
        %v5268 = vpop.f32.mrf.mxu0
        %v5269 = vadd.f32 %v5179, %v5268
        %v5270 = vpop.f32.mrf.mxu0
        %v5271 = vadd.f32 %v5179, %v5270
        %5272 = vmatmul.bf16.gmra.mxu0 %v5134
        %v5273 = vpop.f32.mrf.mxu0
        %v5274 = vadd.f32 %v5179, %v5273
        %v5275 = vpop.f32.mrf.mxu0
        %v5276 = vadd.f32 %v5179, %v5275
        %5277 = vmatmul.bf16.gmra.mxu0 %v5135
        %v5278 = vpop.f32.mrf.mxu0
        %v5279 = vadd.f32 %v5179, %v5278
        %v5280 = vpop.f32.mrf.mxu0
        %v5281 = vadd.f32 %v5179, %v5280
        %5282 = vmatmul.bf16.gmra.mxu0 %v5136
        %v5283 = vpop.f32.mrf.mxu0
        %v5284 = vadd.f32 %v5179, %v5283
        %v5285 = vpop.f32.mrf.mxu0
        %v5286 = vadd.f32 %v5179, %v5285
        %5287 = vmatmul.bf16.gmra.mxu0 %v5137
        %v5288 = vpop.f32.mrf.mxu0
        %v5289 = vadd.f32 %v5179, %v5288
        %v5290 = vpop.f32.mrf.mxu0
        %v5291 = vadd.f32 %v5179, %v5290
        %5292 = vmatmul.bf16.gmra.mxu0 %v5138
        %v5293 = vpop.f32.mrf.mxu0
        %v5294 = vadd.f32 %v5179, %v5293
        %v5295 = vpop.f32.mrf.mxu0
        %v5296 = vadd.f32 %v5179, %v5295
        %5297 = vmatmul.bf16.gmra.mxu0 %v5139
        %v5298 = vpop.f32.mrf.mxu0
        %v5299 = vadd.f32 %v5179, %v5298
        %v5300 = vpop.f32.mrf.mxu0
        %v5301 = vadd.f32 %v5179, %v5300
        %5302 = vmatmul.bf16.gmra.mxu0 %v5140
        %v5303 = vpop.f32.mrf.mxu0
        %v5304 = vadd.f32 %v5179, %v5303
        %v5305 = vpop.f32.mrf.mxu0
        %v5306 = vadd.f32 %v5179, %v5305
        %5307 = vmatmul.bf16.gmra.mxu0 %v5141
        %v5308 = vpop.f32.mrf.mxu0
        %v5309 = vadd.f32 %v5179, %v5308
        %v5310 = vpop.f32.mrf.mxu0
        %v5311 = vadd.f32 %v5179, %v5310
        %5312 = vmatmul.bf16.gmra.mxu0 %v5142
        %v5313 = vpop.f32.mrf.mxu0
        %v5314 = vadd.f32 %v5179, %v5313
        %v5315 = vpop.f32.mrf.mxu0
        %v5316 = vadd.f32 %v5179, %v5315
        %5317 = vmatmul.bf16.gmra.mxu0 %v5143
        %v5318 = vpop.f32.mrf.mxu0
        %v5319 = vadd.f32 %v5179, %v5318
        %v5320 = vpop.f32.mrf.mxu0
        %v5321 = vadd.f32 %v5179, %v5320
        %5322 = vmatmul.bf16.gmra.mxu0 %v5144
        %v5323 = vpop.f32.mrf.mxu0
        %v5324 = vadd.f32 %v5179, %v5323
        %v5325 = vpop.f32.mrf.mxu0
        %v5326 = vadd.f32 %v5179, %v5325
        %5327 = vmatmul.bf16.gmra.mxu0 %v5145
        %v5328 = vpop.f32.mrf.mxu0
        %v5329 = vadd.f32 %v5179, %v5328
        %v5330 = vpop.f32.mrf.mxu0
        %v5331 = vadd.f32 %v5179, %v5330
        %5332 = vmatmul.bf16.gmra.mxu0 %v5146
        %v5333 = vpop.f32.mrf.mxu0
        %v5334 = vadd.f32 %v5179, %v5333
        %v5335 = vpop.f32.mrf.mxu0
        %v5336 = vadd.f32 %v5179, %v5335
        %5337 = vmatmul.bf16.gmra.mxu0 %v5147
        %v5338 = vpop.f32.mrf.mxu0
        %v5339 = vadd.f32 %v5179, %v5338
        %v5340 = vpop.f32.mrf.mxu0
        %v5341 = vadd.f32 %v5179, %v5340
        %5342 = vmatmul.bf16.gmra.mxu0 %v5148
        %v5343 = vpop.f32.mrf.mxu0
        %v5344 = vadd.f32 %v5179, %v5343
        %v5345 = vpop.f32.mrf.mxu0
        %v5346 = vadd.f32 %v5179, %v5345
        %5347 = vmatmul.bf16.gmra.mxu0 %v5149
        %v5348 = vpop.f32.mrf.mxu0
        %v5349 = vadd.f32 %v5179, %v5348
        %v5350 = vpop.f32.mrf.mxu0
        %v5351 = vadd.f32 %v5179, %v5350
        %5352 = vmatmul.bf16.gmra.mxu0 %v5150
        %v5353 = vpop.f32.mrf.mxu0
        %v5354 = vadd.f32 %v5179, %v5353
        %v5355 = vpop.f32.mrf.mxu0
        %v5356 = vadd.f32 %v5179, %v5355
        %5357 = vmatmul.bf16.gmra.mxu0 %v5151
        %v5358 = vpop.f32.mrf.mxu0
        %v5359 = vadd.f32 %v5179, %v5358
        %v5360 = vpop.f32.mrf.mxu0
        %v5361 = vadd.f32 %v5179, %v5360
        %5362 = vmatmul.bf16.gmra.mxu0 %v5152
        %v5363 = vpop.f32.mrf.mxu0
        %v5364 = vadd.f32 %v5179, %v5363
        %v5365 = vpop.f32.mrf.mxu0
        %v5366 = vadd.f32 %v5179, %v5365
        %5367 = vmatmul.bf16.gmra.mxu0 %v5153
        %v5368 = vpop.f32.mrf.mxu0
        %v5369 = vadd.f32 %v5179, %v5368
        %v5370 = vpop.f32.mrf.mxu0
        %v5371 = vadd.f32 %v5179, %v5370
        %5372 = vmatmul.bf16.gmra.mxu0 %v5154
        %v5373 = vpop.f32.mrf.mxu0
        %v5374 = vadd.f32 %v5179, %v5373
        %v5375 = vpop.f32.mrf.mxu0
        %v5376 = vadd.f32 %v5179, %v5375
        %5377 = vmatmul.bf16.gmra.mxu0 %v5155
        %v5378 = vpop.f32.mrf.mxu0
        %v5379 = vadd.f32 %v5179, %v5378
        %v5380 = vpop.f32.mrf.mxu0
        %v5381 = vadd.f32 %v5179, %v5380
        %5382 = vmatmul.bf16.gmra.mxu0 %v5156
        %v5383 = vpop.f32.mrf.mxu0
        %v5384 = vadd.f32 %v5179, %v5383
        %v5385 = vpop.f32.mrf.mxu0
        %v5386 = vadd.f32 %v5179, %v5385
        %5387 = vmatmul.bf16.gmra.mxu0 %v5157
        %v5388 = vpop.f32.mrf.mxu0
        %v5389 = vadd.f32 %v5179, %v5388
        %v5390 = vpop.f32.mrf.mxu0
        %v5391 = vadd.f32 %v5179, %v5390
        %5392 = vmatmul.bf16.gmra.mxu0 %v5158
        %v5393 = vpop.f32.mrf.mxu0
        %v5394 = vadd.f32 %v5179, %v5393
        %v5395 = vpop.f32.mrf.mxu0
        %v5396 = vadd.f32 %v5179, %v5395
        %5397 = vdwg.mxu0
        %v5398 = vmax.f32 %v5239, 0.0
        %v5399 = vmax.f32 %v5241, 0.0
        %v5400 = vmax.f32 %v5244, 0.0
        %v5401 = vmax.f32 %v5246, 0.0
        %v5402 = vmax.f32 %v5249, 0.0
        %v5403 = vmax.f32 %v5251, 0.0
        %v5404 = vmax.f32 %v5254, 0.0
        %v5405 = vmax.f32 %v5256, 0.0
        %v5406 = vmax.f32 %v5259, 0.0
        %v5407 = vmax.f32 %v5261, 0.0
        %v5408 = vmax.f32 %v5264, 0.0
        %v5409 = vmax.f32 %v5266, 0.0
        %v5410 = vmax.f32 %v5269, 0.0
        %v5411 = vmax.f32 %v5271, 0.0
        %v5412 = vmax.f32 %v5274, 0.0
        %v5413 = vmax.f32 %v5276, 0.0
        %v5414 = vmax.f32 %v5279, 0.0
        %v5415 = vmax.f32 %v5281, 0.0
        %v5416 = vmax.f32 %v5284, 0.0
        %v5417 = vmax.f32 %v5286, 0.0
        %v5418 = vmax.f32 %v5289, 0.0
        %v5419 = vmax.f32 %v5291, 0.0
        %v5420 = vmax.f32 %v5294, 0.0
        %v5421 = vmax.f32 %v5296, 0.0
        %v5422 = vmax.f32 %v5299, 0.0
        %v5423 = vmax.f32 %v5301, 0.0
        %v5424 = vmax.f32 %v5304, 0.0
        %v5425 = vmax.f32 %v5306, 0.0
        %v5426 = vmax.f32 %v5309, 0.0
        %v5427 = vmax.f32 %v5311, 0.0
        %v5428 = vmax.f32 %v5314, 0.0
        %v5429 = vmax.f32 %v5316, 0.0
        %v5430 = vmax.f32 %v5319, 0.0
        %v5431 = vmax.f32 %v5321, 0.0
        %v5432 = vmax.f32 %v5324, 0.0
        %v5433 = vmax.f32 %v5326, 0.0
        %v5434 = vmax.f32 %v5329, 0.0
        %v5435 = vmax.f32 %v5331, 0.0
        %v5436 = vmax.f32 %v5334, 0.0
        %v5437 = vmax.f32 %v5336, 0.0
        %v5438 = vmax.f32 %v5339, 0.0
        %v5439 = vmax.f32 %v5341, 0.0
        %v5440 = vmax.f32 %v5344, 0.0
        %v5441 = vmax.f32 %v5346, 0.0
        %v5442 = vmax.f32 %v5349, 0.0
        %v5443 = vmax.f32 %v5351, 0.0
        %v5444 = vmax.f32 %v5354, 0.0
        %v5445 = vmax.f32 %v5356, 0.0
        %v5446 = vmax.f32 %v5359, 0.0
        %v5447 = vmax.f32 %v5361, 0.0
        %v5448 = vmax.f32 %v5364, 0.0
        %v5449 = vmax.f32 %v5366, 0.0
        %v5450 = vmax.f32 %v5369, 0.0
        %v5451 = vmax.f32 %v5371, 0.0
        %v5452 = vmax.f32 %v5374, 0.0
        %v5453 = vmax.f32 %v5376, 0.0
        %v5454 = vmax.f32 %v5379, 0.0
        %v5455 = vmax.f32 %v5381, 0.0
        %v5456 = vmax.f32 %v5384, 0.0
        %v5457 = vmax.f32 %v5386, 0.0
        %v5458 = vmax.f32 %v5389, 0.0
        %v5459 = vmax.f32 %v5391, 0.0
        %v5460 = vmax.f32 %v5394, 0.0
        %v5461 = vmax.f32 %v5396, 0.0
        %v5462 = vpack.c.bf16 %v5399, %v5398
        %v5463 = vpack.c.bf16 %v5401, %v5400
        %v5464 = vpack.c.bf16 %v5403, %v5402
        %v5465 = vpack.c.bf16 %v5405, %v5404
        %v5466 = vpack.c.bf16 %v5407, %v5406
        %v5467 = vpack.c.bf16 %v5409, %v5408
        %v5468 = vpack.c.bf16 %v5411, %v5410
        %v5469 = vpack.c.bf16 %v5413, %v5412
        %v5470 = vpack.c.bf16 %v5415, %v5414
        %v5471 = vpack.c.bf16 %v5417, %v5416
        %v5472 = vpack.c.bf16 %v5419, %v5418
        %v5473 = vpack.c.bf16 %v5421, %v5420
        %v5474 = vpack.c.bf16 %v5423, %v5422
        %v5475 = vpack.c.bf16 %v5425, %v5424
        %v5476 = vpack.c.bf16 %v5427, %v5426
        %v5477 = vpack.c.bf16 %v5429, %v5428
        %v5478 = vpack.c.bf16 %v5431, %v5430
        %v5479 = vpack.c.bf16 %v5433, %v5432
        %v5480 = vpack.c.bf16 %v5435, %v5434
        %v5481 = vpack.c.bf16 %v5437, %v5436
        %v5482 = vpack.c.bf16 %v5439, %v5438
        %v5483 = vpack.c.bf16 %v5441, %v5440
        %v5484 = vpack.c.bf16 %v5443, %v5442
        %v5485 = vpack.c.bf16 %v5445, %v5444
        %v5486 = vpack.c.bf16 %v5447, %v5446
        %v5487 = vpack.c.bf16 %v5449, %v5448
        %v5488 = vpack.c.bf16 %v5451, %v5450
        %v5489 = vpack.c.bf16 %v5453, %v5452
        %v5490 = vpack.c.bf16 %v5455, %v5454
        %v5491 = vpack.c.bf16 %v5457, %v5456
        %v5492 = vpack.c.bf16 %v5459, %v5458
        %v5493 = vpack.c.bf16 %v5461, %v5460
        %s5494 = scalar_lea.vmem [#allocation11], 256
        %v5495 = vld [vmem:[%s5494] sm:$0xf]
        %v5496 = vld [vmem:[%s5494 + $0x4] sm:$0xf]
        %v5497 = vld [vmem:[%s5494 + $0x8] sm:$0xf]
        %v5498 = vld [vmem:[%s5494 + $0xc] sm:$0xf]
        %v5499 = vld [vmem:[%s5494 + $0x10] sm:$0xf]
        %v5500 = vld [vmem:[%s5494 + $0x14] sm:$0xf]
        %v5501 = vld [vmem:[%s5494 + $0x18] sm:$0xf]
        %v5502 = vld [vmem:[%s5494 + $0x1c] sm:$0xf]
        %v5503 = vld [vmem:[%s5494 + $0x20] sm:$0xf]
        %v5504 = vld [vmem:[%s5494 + $0x24] sm:$0xf]
        %v5505 = vld [vmem:[%s5494 + $0x28] sm:$0xf]
        %v5506 = vld [vmem:[%s5494 + $0x2c] sm:$0xf]
        %v5507 = vld [vmem:[%s5494 + $0x30] sm:$0xf]
        %v5508 = vld [vmem:[%s5494 + $0x34] sm:$0xf]
        %v5509 = vld [vmem:[%s5494 + $0x38] sm:$0xf]
        %v5510 = vld [vmem:[%s5494 + $0x3c] sm:$0xf]
        %s5511 = scalar_lea.vmem %s6, 4
        %v5512 = vld [vmem:[%s5511] sm:$0x1]
        %v5514 = vperm.slane %v5512, 0
        %v5532 = vunpack.c.l.b16 %v5495
        %v5533 = vunpack.c.l.b16 %v5496
        %v5534 = vunpack.c.l.b16 %v5497
        %v5535 = vunpack.c.l.b16 %v5498
        %v5536 = vunpack.c.l.b16 %v5499
        %v5537 = vunpack.c.l.b16 %v5500
        %v5538 = vunpack.c.l.b16 %v5501
        %v5539 = vunpack.c.l.b16 %v5502
        %v5540 = vunpack.c.l.b16 %v5503
        %v5541 = vunpack.c.l.b16 %v5504
        %v5542 = vunpack.c.l.b16 %v5505
        %v5543 = vunpack.c.l.b16 %v5506
        %v5544 = vunpack.c.l.b16 %v5507
        %v5545 = vunpack.c.l.b16 %v5508
        %v5546 = vunpack.c.l.b16 %v5509
        %v5547 = vunpack.c.l.b16 %v5510
        %v5548 = vpack.c.b16 %v5533, %v5532
        %v5549 = vpack.c.b16 %v5535, %v5534
        %v5550 = vpack.c.b16 %v5537, %v5536
        %v5551 = vpack.c.b16 %v5539, %v5538
        %v5552 = vpack.c.b16 %v5541, %v5540
        %v5553 = vpack.c.b16 %v5543, %v5542
        %v5554 = vpack.c.b16 %v5545, %v5544
        %v5555 = vpack.c.b16 %v5547, %v5546
        %5564 = vmatpush.bf16.msra.mxu0 %v5555
        %5565 = vmatpush.bf16.msra.mxu0 %v5554
        %5566 = vmatpush.bf16.msra.mxu0 %v5553
        %5567 = vmatpush.bf16.msra.mxu0 %v5552
        %5568 = vmatpush.bf16.msra.mxu0 %v5551
        %5569 = vmatpush.bf16.msra.mxu0 %v5550
        %5570 = vmatpush.bf16.msra.mxu0 %v5549
        %5571 = vmatpush.bf16.msra.mxu0 %v5548
        %5572 = vmatmul.bf16.gmra.mxu0 %v5462
        %v5573 = vpop.f32.mrf.mxu0
        %v5574 = vadd.f32 %v5514, %v5573
        %v5575 = vpop.f32.mrf.mxu0
        %v5576 = vadd.f32 %v5514, %v5575
        %5577 = vmatmul.bf16.gmra.mxu0 %v5463
        %v5578 = vpop.f32.mrf.mxu0
        %v5579 = vadd.f32 %v5514, %v5578
        %v5580 = vpop.f32.mrf.mxu0
        %v5581 = vadd.f32 %v5514, %v5580
        %5582 = vmatmul.bf16.gmra.mxu0 %v5464
        %v5583 = vpop.f32.mrf.mxu0
        %v5584 = vadd.f32 %v5514, %v5583
        %v5585 = vpop.f32.mrf.mxu0
        %v5586 = vadd.f32 %v5514, %v5585
        %5587 = vmatmul.bf16.gmra.mxu0 %v5465
        %v5588 = vpop.f32.mrf.mxu0
        %v5589 = vadd.f32 %v5514, %v5588
        %v5590 = vpop.f32.mrf.mxu0
        %v5591 = vadd.f32 %v5514, %v5590
        %5592 = vmatmul.bf16.gmra.mxu0 %v5466
        %v5593 = vpop.f32.mrf.mxu0
        %v5594 = vadd.f32 %v5514, %v5593
        %v5595 = vpop.f32.mrf.mxu0
        %v5596 = vadd.f32 %v5514, %v5595
        %5597 = vmatmul.bf16.gmra.mxu0 %v5467
        %v5598 = vpop.f32.mrf.mxu0
        %v5599 = vadd.f32 %v5514, %v5598
        %v5600 = vpop.f32.mrf.mxu0
        %v5601 = vadd.f32 %v5514, %v5600
        %5602 = vmatmul.bf16.gmra.mxu0 %v5468
        %v5603 = vpop.f32.mrf.mxu0
        %v5604 = vadd.f32 %v5514, %v5603
        %v5605 = vpop.f32.mrf.mxu0
        %v5606 = vadd.f32 %v5514, %v5605
        %5607 = vmatmul.bf16.gmra.mxu0 %v5469
        %v5608 = vpop.f32.mrf.mxu0
        %v5609 = vadd.f32 %v5514, %v5608
        %v5610 = vpop.f32.mrf.mxu0
        %v5611 = vadd.f32 %v5514, %v5610
        %5612 = vmatmul.bf16.gmra.mxu0 %v5470
        %v5613 = vpop.f32.mrf.mxu0
        %v5614 = vadd.f32 %v5514, %v5613
        %v5615 = vpop.f32.mrf.mxu0
        %v5616 = vadd.f32 %v5514, %v5615
        %5617 = vmatmul.bf16.gmra.mxu0 %v5471
        %v5618 = vpop.f32.mrf.mxu0
        %v5619 = vadd.f32 %v5514, %v5618
        %v5620 = vpop.f32.mrf.mxu0
        %v5621 = vadd.f32 %v5514, %v5620
        %5622 = vmatmul.bf16.gmra.mxu0 %v5472
        %v5623 = vpop.f32.mrf.mxu0
        %v5624 = vadd.f32 %v5514, %v5623
        %v5625 = vpop.f32.mrf.mxu0
        %v5626 = vadd.f32 %v5514, %v5625
        %5627 = vmatmul.bf16.gmra.mxu0 %v5473
        %v5628 = vpop.f32.mrf.mxu0
        %v5629 = vadd.f32 %v5514, %v5628
        %v5630 = vpop.f32.mrf.mxu0
        %v5631 = vadd.f32 %v5514, %v5630
        %5632 = vmatmul.bf16.gmra.mxu0 %v5474
        %v5633 = vpop.f32.mrf.mxu0
        %v5634 = vadd.f32 %v5514, %v5633
        %v5635 = vpop.f32.mrf.mxu0
        %v5636 = vadd.f32 %v5514, %v5635
        %5637 = vmatmul.bf16.gmra.mxu0 %v5475
        %v5638 = vpop.f32.mrf.mxu0
        %v5639 = vadd.f32 %v5514, %v5638
        %v5640 = vpop.f32.mrf.mxu0
        %v5641 = vadd.f32 %v5514, %v5640
        %5642 = vmatmul.bf16.gmra.mxu0 %v5476
        %v5643 = vpop.f32.mrf.mxu0
        %v5644 = vadd.f32 %v5514, %v5643
        %v5645 = vpop.f32.mrf.mxu0
        %v5646 = vadd.f32 %v5514, %v5645
        %5647 = vmatmul.bf16.gmra.mxu0 %v5477
        %v5648 = vpop.f32.mrf.mxu0
        %v5649 = vadd.f32 %v5514, %v5648
        %v5650 = vpop.f32.mrf.mxu0
        %v5651 = vadd.f32 %v5514, %v5650
        %5652 = vmatmul.bf16.gmra.mxu0 %v5478
        %v5653 = vpop.f32.mrf.mxu0
        %v5654 = vadd.f32 %v5514, %v5653
        %v5655 = vpop.f32.mrf.mxu0
        %v5656 = vadd.f32 %v5514, %v5655
        %5657 = vmatmul.bf16.gmra.mxu0 %v5479
        %v5658 = vpop.f32.mrf.mxu0
        %v5659 = vadd.f32 %v5514, %v5658
        %v5660 = vpop.f32.mrf.mxu0
        %v5661 = vadd.f32 %v5514, %v5660
        %5662 = vmatmul.bf16.gmra.mxu0 %v5480
        %v5663 = vpop.f32.mrf.mxu0
        %v5664 = vadd.f32 %v5514, %v5663
        %v5665 = vpop.f32.mrf.mxu0
        %v5666 = vadd.f32 %v5514, %v5665
        %5667 = vmatmul.bf16.gmra.mxu0 %v5481
        %v5668 = vpop.f32.mrf.mxu0
        %v5669 = vadd.f32 %v5514, %v5668
        %v5670 = vpop.f32.mrf.mxu0
        %v5671 = vadd.f32 %v5514, %v5670
        %5672 = vmatmul.bf16.gmra.mxu0 %v5482
        %v5673 = vpop.f32.mrf.mxu0
        %v5674 = vadd.f32 %v5514, %v5673
        %v5675 = vpop.f32.mrf.mxu0
        %v5676 = vadd.f32 %v5514, %v5675
        %5677 = vmatmul.bf16.gmra.mxu0 %v5483
        %v5678 = vpop.f32.mrf.mxu0
        %v5679 = vadd.f32 %v5514, %v5678
        %v5680 = vpop.f32.mrf.mxu0
        %v5681 = vadd.f32 %v5514, %v5680
        %5682 = vmatmul.bf16.gmra.mxu0 %v5484
        %v5683 = vpop.f32.mrf.mxu0
        %v5684 = vadd.f32 %v5514, %v5683
        %v5685 = vpop.f32.mrf.mxu0
        %v5686 = vadd.f32 %v5514, %v5685
        %5687 = vmatmul.bf16.gmra.mxu0 %v5485
        %v5688 = vpop.f32.mrf.mxu0
        %v5689 = vadd.f32 %v5514, %v5688
        %v5690 = vpop.f32.mrf.mxu0
        %v5691 = vadd.f32 %v5514, %v5690
        %5692 = vmatmul.bf16.gmra.mxu0 %v5486
        %v5693 = vpop.f32.mrf.mxu0
        %v5694 = vadd.f32 %v5514, %v5693
        %v5695 = vpop.f32.mrf.mxu0
        %v5696 = vadd.f32 %v5514, %v5695
        %5697 = vmatmul.bf16.gmra.mxu0 %v5487
        %v5698 = vpop.f32.mrf.mxu0
        %v5699 = vadd.f32 %v5514, %v5698
        %v5700 = vpop.f32.mrf.mxu0
        %v5701 = vadd.f32 %v5514, %v5700
        %5702 = vmatmul.bf16.gmra.mxu0 %v5488
        %v5703 = vpop.f32.mrf.mxu0
        %v5704 = vadd.f32 %v5514, %v5703
        %v5705 = vpop.f32.mrf.mxu0
        %v5706 = vadd.f32 %v5514, %v5705
        %5707 = vmatmul.bf16.gmra.mxu0 %v5489
        %v5708 = vpop.f32.mrf.mxu0
        %v5709 = vadd.f32 %v5514, %v5708
        %v5710 = vpop.f32.mrf.mxu0
        %v5711 = vadd.f32 %v5514, %v5710
        %5712 = vmatmul.bf16.gmra.mxu0 %v5490
        %v5713 = vpop.f32.mrf.mxu0
        %v5714 = vadd.f32 %v5514, %v5713
        %v5715 = vpop.f32.mrf.mxu0
        %v5716 = vadd.f32 %v5514, %v5715
        %5717 = vmatmul.bf16.gmra.mxu0 %v5491
        %v5718 = vpop.f32.mrf.mxu0
        %v5719 = vadd.f32 %v5514, %v5718
        %v5720 = vpop.f32.mrf.mxu0
        %v5721 = vadd.f32 %v5514, %v5720
        %5722 = vmatmul.bf16.gmra.mxu0 %v5492
        %v5723 = vpop.f32.mrf.mxu0
        %v5724 = vadd.f32 %v5514, %v5723
        %v5725 = vpop.f32.mrf.mxu0
        %v5726 = vadd.f32 %v5514, %v5725
        %5727 = vmatmul.bf16.gmra.mxu0 %v5493
        %v5728 = vpop.f32.mrf.mxu0
        %v5729 = vadd.f32 %v5514, %v5728
        %v5730 = vpop.f32.mrf.mxu0
        %v5731 = vadd.f32 %v5514, %v5730
        %5732 = vdwg.mxu0
        %v5733 = vmax.f32 %v5574, 0.0
        %v5734 = vmax.f32 %v5576, 0.0
        %v5735 = vmax.f32 %v5579, 0.0
        %v5736 = vmax.f32 %v5581, 0.0
        %v5737 = vmax.f32 %v5584, 0.0
        %v5738 = vmax.f32 %v5586, 0.0
        %v5739 = vmax.f32 %v5589, 0.0
        %v5740 = vmax.f32 %v5591, 0.0
        %v5741 = vmax.f32 %v5594, 0.0
        %v5742 = vmax.f32 %v5596, 0.0
        %v5743 = vmax.f32 %v5599, 0.0
        %v5744 = vmax.f32 %v5601, 0.0
        %v5745 = vmax.f32 %v5604, 0.0
        %v5746 = vmax.f32 %v5606, 0.0
        %v5747 = vmax.f32 %v5609, 0.0
        %v5748 = vmax.f32 %v5611, 0.0
        %v5749 = vmax.f32 %v5614, 0.0
        %v5750 = vmax.f32 %v5616, 0.0
        %v5751 = vmax.f32 %v5619, 0.0
        %v5752 = vmax.f32 %v5621, 0.0
        %v5753 = vmax.f32 %v5624, 0.0
        %v5754 = vmax.f32 %v5626, 0.0
        %v5755 = vmax.f32 %v5629, 0.0
        %v5756 = vmax.f32 %v5631, 0.0
        %v5757 = vmax.f32 %v5634, 0.0
        %v5758 = vmax.f32 %v5636, 0.0
        %v5759 = vmax.f32 %v5639, 0.0
        %v5760 = vmax.f32 %v5641, 0.0
        %v5761 = vmax.f32 %v5644, 0.0
        %v5762 = vmax.f32 %v5646, 0.0
        %v5763 = vmax.f32 %v5649, 0.0
        %v5764 = vmax.f32 %v5651, 0.0
        %v5765 = vmax.f32 %v5654, 0.0
        %v5766 = vmax.f32 %v5656, 0.0
        %v5767 = vmax.f32 %v5659, 0.0
        %v5768 = vmax.f32 %v5661, 0.0
        %v5769 = vmax.f32 %v5664, 0.0
        %v5770 = vmax.f32 %v5666, 0.0
        %v5771 = vmax.f32 %v5669, 0.0
        %v5772 = vmax.f32 %v5671, 0.0
        %v5773 = vmax.f32 %v5674, 0.0
        %v5774 = vmax.f32 %v5676, 0.0
        %v5775 = vmax.f32 %v5679, 0.0
        %v5776 = vmax.f32 %v5681, 0.0
        %v5777 = vmax.f32 %v5684, 0.0
        %v5778 = vmax.f32 %v5686, 0.0
        %v5779 = vmax.f32 %v5689, 0.0
        %v5780 = vmax.f32 %v5691, 0.0
        %v5781 = vmax.f32 %v5694, 0.0
        %v5782 = vmax.f32 %v5696, 0.0
        %v5783 = vmax.f32 %v5699, 0.0
        %v5784 = vmax.f32 %v5701, 0.0
        %v5785 = vmax.f32 %v5704, 0.0
        %v5786 = vmax.f32 %v5706, 0.0
        %v5787 = vmax.f32 %v5709, 0.0
        %v5788 = vmax.f32 %v5711, 0.0
        %v5789 = vmax.f32 %v5714, 0.0
        %v5790 = vmax.f32 %v5716, 0.0
        %v5791 = vmax.f32 %v5719, 0.0
        %v5792 = vmax.f32 %v5721, 0.0
        %v5793 = vmax.f32 %v5724, 0.0
        %v5794 = vmax.f32 %v5726, 0.0
        %v5795 = vmax.f32 %v5729, 0.0
        %v5796 = vmax.f32 %v5731, 0.0
        %v5797 = vpack.c.bf16 %v5733, %v5733
        %v5798 = vpack.c.bf16 %v5734, %v5734
        %v5799 = vpack.c.bf16 %v5735, %v5735
        %v5800 = vpack.c.bf16 %v5736, %v5736
        %v5801 = vpack.c.bf16 %v5737, %v5737
        %v5802 = vpack.c.bf16 %v5738, %v5738
        %v5803 = vpack.c.bf16 %v5739, %v5739
        %v5804 = vpack.c.bf16 %v5740, %v5740
        %v5805 = vpack.c.bf16 %v5741, %v5741
        %v5806 = vpack.c.bf16 %v5742, %v5742
        %v5807 = vpack.c.bf16 %v5743, %v5743
        %v5808 = vpack.c.bf16 %v5744, %v5744
        %v5809 = vpack.c.bf16 %v5745, %v5745
        %v5810 = vpack.c.bf16 %v5746, %v5746
        %v5811 = vpack.c.bf16 %v5747, %v5747
        %v5812 = vpack.c.bf16 %v5748, %v5748
        %v5813 = vpack.c.bf16 %v5749, %v5749
        %v5814 = vpack.c.bf16 %v5750, %v5750
        %v5815 = vpack.c.bf16 %v5751, %v5751
        %v5816 = vpack.c.bf16 %v5752, %v5752
        %v5817 = vpack.c.bf16 %v5753, %v5753
        %v5818 = vpack.c.bf16 %v5754, %v5754
        %v5819 = vpack.c.bf16 %v5755, %v5755
        %v5820 = vpack.c.bf16 %v5756, %v5756
        %v5821 = vpack.c.bf16 %v5757, %v5757
        %v5822 = vpack.c.bf16 %v5758, %v5758
        %v5823 = vpack.c.bf16 %v5759, %v5759
        %v5824 = vpack.c.bf16 %v5760, %v5760
        %v5825 = vpack.c.bf16 %v5761, %v5761
        %v5826 = vpack.c.bf16 %v5762, %v5762
        %v5827 = vpack.c.bf16 %v5763, %v5763
        %v5828 = vpack.c.bf16 %v5764, %v5764
        %v5829 = vpack.c.bf16 %v5765, %v5765
        %v5830 = vpack.c.bf16 %v5766, %v5766
        %v5831 = vpack.c.bf16 %v5767, %v5767
        %v5832 = vpack.c.bf16 %v5768, %v5768
        %v5833 = vpack.c.bf16 %v5769, %v5769
        %v5834 = vpack.c.bf16 %v5770, %v5770
        %v5835 = vpack.c.bf16 %v5771, %v5771
        %v5836 = vpack.c.bf16 %v5772, %v5772
        %v5837 = vpack.c.bf16 %v5773, %v5773
        %v5838 = vpack.c.bf16 %v5774, %v5774
        %v5839 = vpack.c.bf16 %v5775, %v5775
        %v5840 = vpack.c.bf16 %v5776, %v5776
        %v5841 = vpack.c.bf16 %v5777, %v5777
        %v5842 = vpack.c.bf16 %v5778, %v5778
        %v5843 = vpack.c.bf16 %v5779, %v5779
        %v5844 = vpack.c.bf16 %v5780, %v5780
        %v5845 = vpack.c.bf16 %v5781, %v5781
        %v5846 = vpack.c.bf16 %v5782, %v5782
        %v5847 = vpack.c.bf16 %v5783, %v5783
        %v5848 = vpack.c.bf16 %v5784, %v5784
        %v5849 = vpack.c.bf16 %v5785, %v5785
        %v5850 = vpack.c.bf16 %v5786, %v5786
        %v5851 = vpack.c.bf16 %v5787, %v5787
        %v5852 = vpack.c.bf16 %v5788, %v5788
        %v5853 = vpack.c.bf16 %v5789, %v5789
        %v5854 = vpack.c.bf16 %v5790, %v5790
        %v5855 = vpack.c.bf16 %v5791, %v5791
        %v5856 = vpack.c.bf16 %v5792, %v5792
        %v5857 = vpack.c.bf16 %v5793, %v5793
        %v5858 = vpack.c.bf16 %v5794, %v5794
        %v5859 = vpack.c.bf16 %v5795, %v5795
        %v5860 = vpack.c.bf16 %v5796, %v5796
        %v5925 = vunpack.c.l.b16 %v2861
        %v5926 = vunpack.c.l.b16 %v2862
        %v5927 = vunpack.c.l.b16 %v2863
        %v5928 = vunpack.c.l.b16 %v2864
        %v5929 = vunpack.c.l.b16 %v2865
        %v5930 = vunpack.c.l.b16 %v2866
        %v5931 = vunpack.c.l.b16 %v2867
        %v5932 = vunpack.c.l.b16 %v2868
        %v5933 = vunpack.c.l.b16 %v2869
        %v5934 = vunpack.c.l.b16 %v2870
        %v5935 = vunpack.c.l.b16 %v2871
        %v5936 = vunpack.c.l.b16 %v2872
        %v5937 = vunpack.c.l.b16 %v2873
        %v5938 = vunpack.c.l.b16 %v2874
        %v5939 = vunpack.c.l.b16 %v2875
        %v5940 = vunpack.c.l.b16 %v2876
        %v5941 = vunpack.c.l.b16 %v2877
        %v5942 = vunpack.c.l.b16 %v2878
        %v5943 = vunpack.c.l.b16 %v2879
        %v5944 = vunpack.c.l.b16 %v2880
        %v5945 = vunpack.c.l.b16 %v2881
        %v5946 = vunpack.c.l.b16 %v2882
        %v5947 = vunpack.c.l.b16 %v2883
        %v5948 = vunpack.c.l.b16 %v2884
        %v5949 = vunpack.c.l.b16 %v2885
        %v5950 = vunpack.c.l.b16 %v2886
        %v5951 = vunpack.c.l.b16 %v2887
        %v5952 = vunpack.c.l.b16 %v2888
        %v5953 = vunpack.c.l.b16 %v2889
        %v5954 = vunpack.c.l.b16 %v2890
        %v5955 = vunpack.c.l.b16 %v2891
        %v5956 = vunpack.c.l.b16 %v2892
        %v5957 = vunpack.c.l.b16 %v2893
        %v5958 = vunpack.c.l.b16 %v2894
        %v5959 = vunpack.c.l.b16 %v2895
        %v5960 = vunpack.c.l.b16 %v2896
        %v5961 = vunpack.c.l.b16 %v2897
        %v5962 = vunpack.c.l.b16 %v2898
        %v5963 = vunpack.c.l.b16 %v2899
        %v5964 = vunpack.c.l.b16 %v2900
        %v5965 = vunpack.c.l.b16 %v2901
        %v5966 = vunpack.c.l.b16 %v2902
        %v5967 = vunpack.c.l.b16 %v2903
        %v5968 = vunpack.c.l.b16 %v2904
        %v5969 = vunpack.c.l.b16 %v2905
        %v5970 = vunpack.c.l.b16 %v2906
        %v5971 = vunpack.c.l.b16 %v2907
        %v5972 = vunpack.c.l.b16 %v2908
        %v5973 = vunpack.c.l.b16 %v2909
        %v5974 = vunpack.c.l.b16 %v2910
        %v5975 = vunpack.c.l.b16 %v2911
        %v5976 = vunpack.c.l.b16 %v2912
        %v5977 = vunpack.c.l.b16 %v2913
        %v5978 = vunpack.c.l.b16 %v2914
        %v5979 = vunpack.c.l.b16 %v2915
        %v5980 = vunpack.c.l.b16 %v2916
        %v5981 = vunpack.c.l.b16 %v2917
        %v5982 = vunpack.c.l.b16 %v2918
        %v5983 = vunpack.c.l.b16 %v2919
        %v5984 = vunpack.c.l.b16 %v2920
        %v5985 = vunpack.c.l.b16 %v2921
        %v5986 = vunpack.c.l.b16 %v2922
        %v5987 = vunpack.c.l.b16 %v2923
        %v5988 = vunpack.c.l.b16 %v2924
        %v5989 = vpack.c.b16 %v5926, %v5925
        %v5990 = vpack.c.b16 %v5928, %v5927
        %v5991 = vpack.c.b16 %v5930, %v5929
        %v5992 = vpack.c.b16 %v5932, %v5931
        %v5993 = vpack.c.b16 %v5934, %v5933
        %v5994 = vpack.c.b16 %v5936, %v5935
        %v5995 = vpack.c.b16 %v5938, %v5937
        %v5996 = vpack.c.b16 %v5940, %v5939
        %v5997 = vpack.c.b16 %v5942, %v5941
        %v5998 = vpack.c.b16 %v5944, %v5943
        %v5999 = vpack.c.b16 %v5946, %v5945
        %v6000 = vpack.c.b16 %v5948, %v5947
        %v6001 = vpack.c.b16 %v5950, %v5949
        %v6002 = vpack.c.b16 %v5952, %v5951
        %v6003 = vpack.c.b16 %v5954, %v5953
        %v6004 = vpack.c.b16 %v5956, %v5955
        %v6005 = vpack.c.b16 %v5958, %v5957
        %v6006 = vpack.c.b16 %v5960, %v5959
        %v6007 = vpack.c.b16 %v5962, %v5961
        %v6008 = vpack.c.b16 %v5964, %v5963
        %v6009 = vpack.c.b16 %v5966, %v5965
        %v6010 = vpack.c.b16 %v5968, %v5967
        %v6011 = vpack.c.b16 %v5970, %v5969
        %v6012 = vpack.c.b16 %v5972, %v5971
        %v6013 = vpack.c.b16 %v5974, %v5973
        %v6014 = vpack.c.b16 %v5976, %v5975
        %v6015 = vpack.c.b16 %v5978, %v5977
        %v6016 = vpack.c.b16 %v5980, %v5979
        %v6017 = vpack.c.b16 %v5982, %v5981
        %v6018 = vpack.c.b16 %v5984, %v5983
        %v6019 = vpack.c.b16 %v5986, %v5985
        %v6020 = vpack.c.b16 %v5988, %v5987
        %v6117 = vunpack.c.l.b16 %v3595
        %v6118 = vunpack.c.l.b16 %v3596
        %v6119 = vunpack.c.l.b16 %v3597
        %v6120 = vunpack.c.l.b16 %v3598
        %v6121 = vunpack.c.l.b16 %v3599
        %v6122 = vunpack.c.l.b16 %v3600
        %v6123 = vunpack.c.l.b16 %v3601
        %v6124 = vunpack.c.l.b16 %v3602
        %v6125 = vunpack.c.l.b16 %v3603
        %v6126 = vunpack.c.l.b16 %v3604
        %v6127 = vunpack.c.l.b16 %v3605
        %v6128 = vunpack.c.l.b16 %v3606
        %v6129 = vunpack.c.l.b16 %v3607
        %v6130 = vunpack.c.l.b16 %v3608
        %v6131 = vunpack.c.l.b16 %v3609
        %v6132 = vunpack.c.l.b16 %v3610
        %v6133 = vunpack.c.l.b16 %v3611
        %v6134 = vunpack.c.l.b16 %v3612
        %v6135 = vunpack.c.l.b16 %v3613
        %v6136 = vunpack.c.l.b16 %v3614
        %v6137 = vunpack.c.l.b16 %v3615
        %v6138 = vunpack.c.l.b16 %v3616
        %v6139 = vunpack.c.l.b16 %v3617
        %v6140 = vunpack.c.l.b16 %v3618
        %v6141 = vunpack.c.l.b16 %v3619
        %v6142 = vunpack.c.l.b16 %v3620
        %v6143 = vunpack.c.l.b16 %v3621
        %v6144 = vunpack.c.l.b16 %v3622
        %v6145 = vunpack.c.l.b16 %v3623
        %v6146 = vunpack.c.l.b16 %v3624
        %v6147 = vunpack.c.l.b16 %v3625
        %v6148 = vunpack.c.l.b16 %v3626
        %v6149 = vunpack.c.l.b16 %v3627
        %v6150 = vunpack.c.l.b16 %v3628
        %v6151 = vunpack.c.l.b16 %v3629
        %v6152 = vunpack.c.l.b16 %v3630
        %v6153 = vunpack.c.l.b16 %v3631
        %v6154 = vunpack.c.l.b16 %v3632
        %v6155 = vunpack.c.l.b16 %v3633
        %v6156 = vunpack.c.l.b16 %v3634
        %v6157 = vunpack.c.l.b16 %v3635
        %v6158 = vunpack.c.l.b16 %v3636
        %v6159 = vunpack.c.l.b16 %v3637
        %v6160 = vunpack.c.l.b16 %v3638
        %v6161 = vunpack.c.l.b16 %v3639
        %v6162 = vunpack.c.l.b16 %v3640
        %v6163 = vunpack.c.l.b16 %v3641
        %v6164 = vunpack.c.l.b16 %v3642
        %v6165 = vunpack.c.l.b16 %v3643
        %v6166 = vunpack.c.l.b16 %v3644
        %v6167 = vunpack.c.l.b16 %v3645
        %v6168 = vunpack.c.l.b16 %v3646
        %v6169 = vunpack.c.l.b16 %v3647
        %v6170 = vunpack.c.l.b16 %v3648
        %v6171 = vunpack.c.l.b16 %v3649
        %v6172 = vunpack.c.l.b16 %v3650
        %v6173 = vunpack.c.l.b16 %v3651
        %v6174 = vunpack.c.l.b16 %v3652
        %v6175 = vunpack.c.l.b16 %v3653
        %v6176 = vunpack.c.l.b16 %v3654
        %v6177 = vunpack.c.l.b16 %v3655
        %v6178 = vunpack.c.l.b16 %v3656
        %v6179 = vunpack.c.l.b16 %v3657
        %v6180 = vunpack.c.l.b16 %v3658
        %v6181 = vpack.c.b16 %v6118, %v6117
        %v6182 = vpack.c.b16 %v6120, %v6119
        %v6183 = vpack.c.b16 %v6122, %v6121
        %v6184 = vpack.c.b16 %v6124, %v6123
        %v6185 = vpack.c.b16 %v6126, %v6125
        %v6186 = vpack.c.b16 %v6128, %v6127
        %v6187 = vpack.c.b16 %v6130, %v6129
        %v6188 = vpack.c.b16 %v6132, %v6131
        %v6189 = vpack.c.b16 %v6134, %v6133
        %v6190 = vpack.c.b16 %v6136, %v6135
        %v6191 = vpack.c.b16 %v6138, %v6137
        %v6192 = vpack.c.b16 %v6140, %v6139
        %v6193 = vpack.c.b16 %v6142, %v6141
        %v6194 = vpack.c.b16 %v6144, %v6143
        %v6195 = vpack.c.b16 %v6146, %v6145
        %v6196 = vpack.c.b16 %v6148, %v6147
        %v6197 = vpack.c.b16 %v6150, %v6149
        %v6198 = vpack.c.b16 %v6152, %v6151
        %v6199 = vpack.c.b16 %v6154, %v6153
        %v6200 = vpack.c.b16 %v6156, %v6155
        %v6201 = vpack.c.b16 %v6158, %v6157
        %v6202 = vpack.c.b16 %v6160, %v6159
        %v6203 = vpack.c.b16 %v6162, %v6161
        %v6204 = vpack.c.b16 %v6164, %v6163
        %v6205 = vpack.c.b16 %v6166, %v6165
        %v6206 = vpack.c.b16 %v6168, %v6167
        %v6207 = vpack.c.b16 %v6170, %v6169
        %v6208 = vpack.c.b16 %v6172, %v6171
        %v6209 = vpack.c.b16 %v6174, %v6173
        %v6210 = vpack.c.b16 %v6176, %v6175
        %v6211 = vpack.c.b16 %v6178, %v6177
        %v6212 = vpack.c.b16 %v6180, %v6179
        %v6309 = vunpack.c.l.b16 %v4329
        %v6310 = vunpack.c.l.b16 %v4330
        %v6311 = vunpack.c.l.b16 %v4331
        %v6312 = vunpack.c.l.b16 %v4332
        %v6313 = vunpack.c.l.b16 %v4333
        %v6314 = vunpack.c.l.b16 %v4334
        %v6315 = vunpack.c.l.b16 %v4335
        %v6316 = vunpack.c.l.b16 %v4336
        %v6317 = vunpack.c.l.b16 %v4337
        %v6318 = vunpack.c.l.b16 %v4338
        %v6319 = vunpack.c.l.b16 %v4339
        %v6320 = vunpack.c.l.b16 %v4340
        %v6321 = vunpack.c.l.b16 %v4341
        %v6322 = vunpack.c.l.b16 %v4342
        %v6323 = vunpack.c.l.b16 %v4343
        %v6324 = vunpack.c.l.b16 %v4344
        %v6325 = vunpack.c.l.b16 %v4345
        %v6326 = vunpack.c.l.b16 %v4346
        %v6327 = vunpack.c.l.b16 %v4347
        %v6328 = vunpack.c.l.b16 %v4348
        %v6329 = vunpack.c.l.b16 %v4349
        %v6330 = vunpack.c.l.b16 %v4350
        %v6331 = vunpack.c.l.b16 %v4351
        %v6332 = vunpack.c.l.b16 %v4352
        %v6333 = vunpack.c.l.b16 %v4353
        %v6334 = vunpack.c.l.b16 %v4354
        %v6335 = vunpack.c.l.b16 %v4355
        %v6336 = vunpack.c.l.b16 %v4356
        %v6337 = vunpack.c.l.b16 %v4357
        %v6338 = vunpack.c.l.b16 %v4358
        %v6339 = vunpack.c.l.b16 %v4359
        %v6340 = vunpack.c.l.b16 %v4360
        %v6341 = vunpack.c.l.b16 %v4361
        %v6342 = vunpack.c.l.b16 %v4362
        %v6343 = vunpack.c.l.b16 %v4363
        %v6344 = vunpack.c.l.b16 %v4364
        %v6345 = vunpack.c.l.b16 %v4365
        %v6346 = vunpack.c.l.b16 %v4366
        %v6347 = vunpack.c.l.b16 %v4367
        %v6348 = vunpack.c.l.b16 %v4368
        %v6349 = vunpack.c.l.b16 %v4369
        %v6350 = vunpack.c.l.b16 %v4370
        %v6351 = vunpack.c.l.b16 %v4371
        %v6352 = vunpack.c.l.b16 %v4372
        %v6353 = vunpack.c.l.b16 %v4373
        %v6354 = vunpack.c.l.b16 %v4374
        %v6355 = vunpack.c.l.b16 %v4375
        %v6356 = vunpack.c.l.b16 %v4376
        %v6357 = vunpack.c.l.b16 %v4377
        %v6358 = vunpack.c.l.b16 %v4378
        %v6359 = vunpack.c.l.b16 %v4379
        %v6360 = vunpack.c.l.b16 %v4380
        %v6361 = vunpack.c.l.b16 %v4381
        %v6362 = vunpack.c.l.b16 %v4382
        %v6363 = vunpack.c.l.b16 %v4383
        %v6364 = vunpack.c.l.b16 %v4384
        %v6365 = vunpack.c.l.b16 %v4385
        %v6366 = vunpack.c.l.b16 %v4386
        %v6367 = vunpack.c.l.b16 %v4387
        %v6368 = vunpack.c.l.b16 %v4388
        %v6369 = vunpack.c.l.b16 %v4389
        %v6370 = vunpack.c.l.b16 %v4390
        %v6371 = vunpack.c.l.b16 %v4391
        %v6372 = vunpack.c.l.b16 %v4392
        %v6373 = vpack.c.b16 %v6310, %v6309
        %v6374 = vpack.c.b16 %v6312, %v6311
        %v6375 = vpack.c.b16 %v6314, %v6313
        %v6376 = vpack.c.b16 %v6316, %v6315
        %v6377 = vpack.c.b16 %v6318, %v6317
        %v6378 = vpack.c.b16 %v6320, %v6319
        %v6379 = vpack.c.b16 %v6322, %v6321
        %v6380 = vpack.c.b16 %v6324, %v6323
        %v6381 = vpack.c.b16 %v6326, %v6325
        %v6382 = vpack.c.b16 %v6328, %v6327
        %v6383 = vpack.c.b16 %v6330, %v6329
        %v6384 = vpack.c.b16 %v6332, %v6331
        %v6385 = vpack.c.b16 %v6334, %v6333
        %v6386 = vpack.c.b16 %v6336, %v6335
        %v6387 = vpack.c.b16 %v6338, %v6337
        %v6388 = vpack.c.b16 %v6340, %v6339
        %v6389 = vpack.c.b16 %v6342, %v6341
        %v6390 = vpack.c.b16 %v6344, %v6343
        %v6391 = vpack.c.b16 %v6346, %v6345
        %v6392 = vpack.c.b16 %v6348, %v6347
        %v6393 = vpack.c.b16 %v6350, %v6349
        %v6394 = vpack.c.b16 %v6352, %v6351
        %v6395 = vpack.c.b16 %v6354, %v6353
        %v6396 = vpack.c.b16 %v6356, %v6355
        %v6397 = vpack.c.b16 %v6358, %v6357
        %v6398 = vpack.c.b16 %v6360, %v6359
        %v6399 = vpack.c.b16 %v6362, %v6361
        %v6400 = vpack.c.b16 %v6364, %v6363
        %v6401 = vpack.c.b16 %v6366, %v6365
        %v6402 = vpack.c.b16 %v6368, %v6367
        %v6403 = vpack.c.b16 %v6370, %v6369
        %v6404 = vpack.c.b16 %v6372, %v6371
        %v6501 = vunpack.c.l.b16 %v5063
        %v6502 = vunpack.c.l.b16 %v5064
        %v6503 = vunpack.c.l.b16 %v5065
        %v6504 = vunpack.c.l.b16 %v5066
        %v6505 = vunpack.c.l.b16 %v5067
        %v6506 = vunpack.c.l.b16 %v5068
        %v6507 = vunpack.c.l.b16 %v5069
        %v6508 = vunpack.c.l.b16 %v5070
        %v6509 = vunpack.c.l.b16 %v5071
        %v6510 = vunpack.c.l.b16 %v5072
        %v6511 = vunpack.c.l.b16 %v5073
        %v6512 = vunpack.c.l.b16 %v5074
        %v6513 = vunpack.c.l.b16 %v5075
        %v6514 = vunpack.c.l.b16 %v5076
        %v6515 = vunpack.c.l.b16 %v5077
        %v6516 = vunpack.c.l.b16 %v5078
        %v6517 = vunpack.c.l.b16 %v5079
        %v6518 = vunpack.c.l.b16 %v5080
        %v6519 = vunpack.c.l.b16 %v5081
        %v6520 = vunpack.c.l.b16 %v5082
        %v6521 = vunpack.c.l.b16 %v5083
        %v6522 = vunpack.c.l.b16 %v5084
        %v6523 = vunpack.c.l.b16 %v5085
        %v6524 = vunpack.c.l.b16 %v5086
        %v6525 = vunpack.c.l.b16 %v5087
        %v6526 = vunpack.c.l.b16 %v5088
        %v6527 = vunpack.c.l.b16 %v5089
        %v6528 = vunpack.c.l.b16 %v5090
        %v6529 = vunpack.c.l.b16 %v5091
        %v6530 = vunpack.c.l.b16 %v5092
        %v6531 = vunpack.c.l.b16 %v5093
        %v6532 = vunpack.c.l.b16 %v5094
        %v6533 = vunpack.c.l.b16 %v5095
        %v6534 = vunpack.c.l.b16 %v5096
        %v6535 = vunpack.c.l.b16 %v5097
        %v6536 = vunpack.c.l.b16 %v5098
        %v6537 = vunpack.c.l.b16 %v5099
        %v6538 = vunpack.c.l.b16 %v5100
        %v6539 = vunpack.c.l.b16 %v5101
        %v6540 = vunpack.c.l.b16 %v5102
        %v6541 = vunpack.c.l.b16 %v5103
        %v6542 = vunpack.c.l.b16 %v5104
        %v6543 = vunpack.c.l.b16 %v5105
        %v6544 = vunpack.c.l.b16 %v5106
        %v6545 = vunpack.c.l.b16 %v5107
        %v6546 = vunpack.c.l.b16 %v5108
        %v6547 = vunpack.c.l.b16 %v5109
        %v6548 = vunpack.c.l.b16 %v5110
        %v6549 = vunpack.c.l.b16 %v5111
        %v6550 = vunpack.c.l.b16 %v5112
        %v6551 = vunpack.c.l.b16 %v5113
        %v6552 = vunpack.c.l.b16 %v5114
        %v6553 = vunpack.c.l.b16 %v5115
        %v6554 = vunpack.c.l.b16 %v5116
        %v6555 = vunpack.c.l.b16 %v5117
        %v6556 = vunpack.c.l.b16 %v5118
        %v6557 = vunpack.c.l.b16 %v5119
        %v6558 = vunpack.c.l.b16 %v5120
        %v6559 = vunpack.c.l.b16 %v5121
        %v6560 = vunpack.c.l.b16 %v5122
        %v6561 = vunpack.c.l.b16 %v5123
        %v6562 = vunpack.c.l.b16 %v5124
        %v6563 = vunpack.c.l.b16 %v5125
        %v6564 = vunpack.c.l.b16 %v5126
        %v6565 = vpack.c.b16 %v6502, %v6501
        %v6566 = vpack.c.b16 %v6504, %v6503
        %v6567 = vpack.c.b16 %v6506, %v6505
        %v6568 = vpack.c.b16 %v6508, %v6507
        %v6569 = vpack.c.b16 %v6510, %v6509
        %v6570 = vpack.c.b16 %v6512, %v6511
        %v6571 = vpack.c.b16 %v6514, %v6513
        %v6572 = vpack.c.b16 %v6516, %v6515
        %v6573 = vpack.c.b16 %v6518, %v6517
        %v6574 = vpack.c.b16 %v6520, %v6519
        %v6575 = vpack.c.b16 %v6522, %v6521
        %v6576 = vpack.c.b16 %v6524, %v6523
        %v6577 = vpack.c.b16 %v6526, %v6525
        %v6578 = vpack.c.b16 %v6528, %v6527
        %v6579 = vpack.c.b16 %v6530, %v6529
        %v6580 = vpack.c.b16 %v6532, %v6531
        %v6581 = vpack.c.b16 %v6534, %v6533
        %v6582 = vpack.c.b16 %v6536, %v6535
        %v6583 = vpack.c.b16 %v6538, %v6537
        %v6584 = vpack.c.b16 %v6540, %v6539
        %v6585 = vpack.c.b16 %v6542, %v6541
        %v6586 = vpack.c.b16 %v6544, %v6543
        %v6587 = vpack.c.b16 %v6546, %v6545
        %v6588 = vpack.c.b16 %v6548, %v6547
        %v6589 = vpack.c.b16 %v6550, %v6549
        %v6590 = vpack.c.b16 %v6552, %v6551
        %v6591 = vpack.c.b16 %v6554, %v6553
        %v6592 = vpack.c.b16 %v6556, %v6555
        %v6593 = vpack.c.b16 %v6558, %v6557
        %v6594 = vpack.c.b16 %v6560, %v6559
        %v6595 = vpack.c.b16 %v6562, %v6561
        %v6596 = vpack.c.b16 %v6564, %v6563
        %v6693 = vunpack.c.l.b16 %v5797
        %v6694 = vunpack.c.l.b16 %v5798
        %v6695 = vunpack.c.l.b16 %v5799
        %v6696 = vunpack.c.l.b16 %v5800
        %v6697 = vunpack.c.l.b16 %v5801
        %v6698 = vunpack.c.l.b16 %v5802
        %v6699 = vunpack.c.l.b16 %v5803
        %v6700 = vunpack.c.l.b16 %v5804
        %v6701 = vunpack.c.l.b16 %v5805
        %v6702 = vunpack.c.l.b16 %v5806
        %v6703 = vunpack.c.l.b16 %v5807
        %v6704 = vunpack.c.l.b16 %v5808
        %v6705 = vunpack.c.l.b16 %v5809
        %v6706 = vunpack.c.l.b16 %v5810
        %v6707 = vunpack.c.l.b16 %v5811
        %v6708 = vunpack.c.l.b16 %v5812
        %v6709 = vunpack.c.l.b16 %v5813
        %v6710 = vunpack.c.l.b16 %v5814
        %v6711 = vunpack.c.l.b16 %v5815
        %v6712 = vunpack.c.l.b16 %v5816
        %v6713 = vunpack.c.l.b16 %v5817
        %v6714 = vunpack.c.l.b16 %v5818
        %v6715 = vunpack.c.l.b16 %v5819
        %v6716 = vunpack.c.l.b16 %v5820
        %v6717 = vunpack.c.l.b16 %v5821
        %v6718 = vunpack.c.l.b16 %v5822
        %v6719 = vunpack.c.l.b16 %v5823
        %v6720 = vunpack.c.l.b16 %v5824
        %v6721 = vunpack.c.l.b16 %v5825
        %v6722 = vunpack.c.l.b16 %v5826
        %v6723 = vunpack.c.l.b16 %v5827
        %v6724 = vunpack.c.l.b16 %v5828
        %v6725 = vunpack.c.l.b16 %v5829
        %v6726 = vunpack.c.l.b16 %v5830
        %v6727 = vunpack.c.l.b16 %v5831
        %v6728 = vunpack.c.l.b16 %v5832
        %v6729 = vunpack.c.l.b16 %v5833
        %v6730 = vunpack.c.l.b16 %v5834
        %v6731 = vunpack.c.l.b16 %v5835
        %v6732 = vunpack.c.l.b16 %v5836
        %v6733 = vunpack.c.l.b16 %v5837
        %v6734 = vunpack.c.l.b16 %v5838
        %v6735 = vunpack.c.l.b16 %v5839
        %v6736 = vunpack.c.l.b16 %v5840
        %v6737 = vunpack.c.l.b16 %v5841
        %v6738 = vunpack.c.l.b16 %v5842
        %v6739 = vunpack.c.l.b16 %v5843
        %v6740 = vunpack.c.l.b16 %v5844
        %v6741 = vunpack.c.l.b16 %v5845
        %v6742 = vunpack.c.l.b16 %v5846
        %v6743 = vunpack.c.l.b16 %v5847
        %v6744 = vunpack.c.l.b16 %v5848
        %v6745 = vunpack.c.l.b16 %v5849
        %v6746 = vunpack.c.l.b16 %v5850
        %v6747 = vunpack.c.l.b16 %v5851
        %v6748 = vunpack.c.l.b16 %v5852
        %v6749 = vunpack.c.l.b16 %v5853
        %v6750 = vunpack.c.l.b16 %v5854
        %v6751 = vunpack.c.l.b16 %v5855
        %v6752 = vunpack.c.l.b16 %v5856
        %v6753 = vunpack.c.l.b16 %v5857
        %v6754 = vunpack.c.l.b16 %v5858
        %v6755 = vunpack.c.l.b16 %v5859
        %v6756 = vunpack.c.l.b16 %v5860
        %v6757 = vpack.c.b16 %v6694, %v6693
        %v6758 = vpack.c.b16 %v6696, %v6695
        %v6759 = vpack.c.b16 %v6698, %v6697
        %v6760 = vpack.c.b16 %v6700, %v6699
        %v6761 = vpack.c.b16 %v6702, %v6701
        %v6762 = vpack.c.b16 %v6704, %v6703
        %v6763 = vpack.c.b16 %v6706, %v6705
        %v6764 = vpack.c.b16 %v6708, %v6707
        %v6765 = vpack.c.b16 %v6710, %v6709
        %v6766 = vpack.c.b16 %v6712, %v6711
        %v6767 = vpack.c.b16 %v6714, %v6713
        %v6768 = vpack.c.b16 %v6716, %v6715
        %v6769 = vpack.c.b16 %v6718, %v6717
        %v6770 = vpack.c.b16 %v6720, %v6719
        %v6771 = vpack.c.b16 %v6722, %v6721
        %v6772 = vpack.c.b16 %v6724, %v6723
        %v6773 = vpack.c.b16 %v6726, %v6725
        %v6774 = vpack.c.b16 %v6728, %v6727
        %v6775 = vpack.c.b16 %v6730, %v6729
        %v6776 = vpack.c.b16 %v6732, %v6731
        %v6777 = vpack.c.b16 %v6734, %v6733
        %v6778 = vpack.c.b16 %v6736, %v6735
        %v6779 = vpack.c.b16 %v6738, %v6737
        %v6780 = vpack.c.b16 %v6740, %v6739
        %v6781 = vpack.c.b16 %v6742, %v6741
        %v6782 = vpack.c.b16 %v6744, %v6743
        %v6783 = vpack.c.b16 %v6746, %v6745
        %v6784 = vpack.c.b16 %v6748, %v6747
        %v6785 = vpack.c.b16 %v6750, %v6749
        %v6786 = vpack.c.b16 %v6752, %v6751
        %v6787 = vpack.c.b16 %v6754, %v6753
        %v6788 = vpack.c.b16 %v6756, %v6755
        %v6821 = vld [vmem:[#allocation13] sm:$0xf]
        %v6822 = vld [vmem:[#allocation13 + $0x4] sm:$0xf]
        %v6823 = vld [vmem:[#allocation13 + $0x8] sm:$0xf]
        %v6824 = vld [vmem:[#allocation13 + $0xc] sm:$0xf]
        %v6825 = vld [vmem:[#allocation13 + $0x10] sm:$0xf]
        %v6826 = vld [vmem:[#allocation13 + $0x14] sm:$0xf]
        %v6827 = vld [vmem:[#allocation13 + $0x18] sm:$0xf]
        %v6828 = vld [vmem:[#allocation13 + $0x1c] sm:$0xf]
        %v6829 = vld [vmem:[#allocation13 + $0x20] sm:$0xf]
        %v6830 = vld [vmem:[#allocation13 + $0x24] sm:$0xf]
        %v6831 = vld [vmem:[#allocation13 + $0x28] sm:$0xf]
        %v6832 = vld [vmem:[#allocation13 + $0x2c] sm:$0xf]
        %v6833 = vld [vmem:[#allocation13 + $0x30] sm:$0xf]
        %v6834 = vld [vmem:[#allocation13 + $0x34] sm:$0xf]
        %v6835 = vld [vmem:[#allocation13 + $0x38] sm:$0xf]
        %v6836 = vld [vmem:[#allocation13 + $0x3c] sm:$0xf]
        %v6837 = vld [vmem:[#allocation13 + $0x40] sm:$0xf]
        %v6838 = vld [vmem:[#allocation13 + $0x44] sm:$0xf]
        %v6839 = vld [vmem:[#allocation13 + $0x48] sm:$0xf]
        %v6840 = vld [vmem:[#allocation13 + $0x4c] sm:$0xf]
        %v6841 = vld [vmem:[#allocation13 + $0x50] sm:$0xf]
        %v6842 = vld [vmem:[#allocation13 + $0x54] sm:$0xf]
        %v6843 = vld [vmem:[#allocation13 + $0x58] sm:$0xf]
        %v6844 = vld [vmem:[#allocation13 + $0x5c] sm:$0xf]
        %v6845 = vld [vmem:[#allocation13 + $0x60] sm:$0xf]
        %v6846 = vld [vmem:[#allocation13 + $0x64] sm:$0xf]
        %v6847 = vld [vmem:[#allocation13 + $0x68] sm:$0xf]
        %v6848 = vld [vmem:[#allocation13 + $0x6c] sm:$0xf]
        %v6849 = vld [vmem:[#allocation13 + $0x70] sm:$0xf]
        %v6850 = vld [vmem:[#allocation13 + $0x74] sm:$0xf]
        %v6851 = vld [vmem:[#allocation13 + $0x78] sm:$0xf]
        %v6852 = vld [vmem:[#allocation13 + $0x7c] sm:$0xf]
        %v6853 = vld [vmem:[#allocation13 + $0x80] sm:$0xf]
        %v6854 = vld [vmem:[#allocation13 + $0x84] sm:$0xf]
        %v6855 = vld [vmem:[#allocation13 + $0x88] sm:$0xf]
        %v6856 = vld [vmem:[#allocation13 + $0x8c] sm:$0xf]
        %v6857 = vld [vmem:[#allocation13 + $0x90] sm:$0xf]
        %v6858 = vld [vmem:[#allocation13 + $0x94] sm:$0xf]
        %v6859 = vld [vmem:[#allocation13 + $0x98] sm:$0xf]
        %v6860 = vld [vmem:[#allocation13 + $0x9c] sm:$0xf]
        %v6861 = vld [vmem:[#allocation13 + $0xa0] sm:$0xf]
        %v6862 = vld [vmem:[#allocation13 + $0xa4] sm:$0xf]
        %v6863 = vld [vmem:[#allocation13 + $0xa8] sm:$0xf]
        %v6864 = vld [vmem:[#allocation13 + $0xac] sm:$0xf]
        %v6865 = vld [vmem:[#allocation13 + $0xb0] sm:$0xf]
        %v6866 = vld [vmem:[#allocation13 + $0xb4] sm:$0xf]
        %v6867 = vld [vmem:[#allocation13 + $0xb8] sm:$0xf]
        %v6868 = vld [vmem:[#allocation13 + $0xbc] sm:$0xf]
        %v6869 = vld [vmem:[#allocation13 + $0xc0] sm:$0xf]
        %v6870 = vld [vmem:[#allocation13 + $0xc4] sm:$0xf]
        %v6871 = vld [vmem:[#allocation13 + $0xc8] sm:$0xf]
        %v6872 = vld [vmem:[#allocation13 + $0xcc] sm:$0xf]
        %v6873 = vld [vmem:[#allocation13 + $0xd0] sm:$0xf]
        %v6874 = vld [vmem:[#allocation13 + $0xd4] sm:$0xf]
        %v6875 = vld [vmem:[#allocation13 + $0xd8] sm:$0xf]
        %v6876 = vld [vmem:[#allocation13 + $0xdc] sm:$0xf]
        %v6877 = vld [vmem:[#allocation13 + $0xe0] sm:$0xf]
        %v6878 = vld [vmem:[#allocation13 + $0xe4] sm:$0xf]
        %v6879 = vld [vmem:[#allocation13 + $0xe8] sm:$0xf]
        %v6880 = vld [vmem:[#allocation13 + $0xec] sm:$0xf]
        %v6881 = vld [vmem:[#allocation13 + $0xf0] sm:$0xf]
        %v6882 = vld [vmem:[#allocation13 + $0xf4] sm:$0xf]
        %v6883 = vld [vmem:[#allocation13 + $0xf8] sm:$0xf]
        %v6884 = vld [vmem:[#allocation13 + $0xfc] sm:$0xf]
        %v6885 = vld [vmem:[#allocation13 + $0x100] sm:$0xf]
        %v6886 = vld [vmem:[#allocation13 + $0x104] sm:$0xf]
        %v6887 = vld [vmem:[#allocation13 + $0x108] sm:$0xf]
        %v6888 = vld [vmem:[#allocation13 + $0x10c] sm:$0xf]
        %v6889 = vld [vmem:[#allocation13 + $0x110] sm:$0xf]
        %v6890 = vld [vmem:[#allocation13 + $0x114] sm:$0xf]
        %v6891 = vld [vmem:[#allocation13 + $0x118] sm:$0xf]
        %v6892 = vld [vmem:[#allocation13 + $0x11c] sm:$0xf]
        %v6893 = vld [vmem:[#allocation13 + $0x120] sm:$0xf]
        %v6894 = vld [vmem:[#allocation13 + $0x124] sm:$0xf]
        %v6895 = vld [vmem:[#allocation13 + $0x128] sm:$0xf]
        %v6896 = vld [vmem:[#allocation13 + $0x12c] sm:$0xf]
        %v6897 = vld [vmem:[#allocation13 + $0x130] sm:$0xf]
        %v6898 = vld [vmem:[#allocation13 + $0x134] sm:$0xf]
        %v6899 = vld [vmem:[#allocation13 + $0x138] sm:$0xf]
        %v6900 = vld [vmem:[#allocation13 + $0x13c] sm:$0xf]
        %v6901 = vld [vmem:[%s8] sm:$0x1]
        %v6903 = vperm.slane %v6901, 0
        %v6985 = vunpack.c.l.b16 %v6821
        %v6986 = vunpack.c.l.b16 %v6822
        %v6987 = vunpack.c.l.b16 %v6823
        %v6988 = vunpack.c.l.b16 %v6824
        %v6989 = vunpack.c.l.b16 %v6825
        %v6990 = vunpack.c.l.b16 %v6826
        %v6991 = vunpack.c.l.b16 %v6827
        %v6992 = vunpack.c.l.b16 %v6828
        %v6993 = vunpack.c.l.b16 %v6829
        %v6994 = vunpack.c.l.b16 %v6830
        %v6995 = vunpack.c.l.b16 %v6831
        %v6996 = vunpack.c.l.b16 %v6832
        %v6997 = vunpack.c.l.b16 %v6833
        %v6998 = vunpack.c.l.b16 %v6834
        %v6999 = vunpack.c.l.b16 %v6835
        %v7000 = vunpack.c.l.b16 %v6836
        %v7001 = vunpack.c.l.b16 %v6837
        %v7002 = vunpack.c.l.b16 %v6838
        %v7003 = vunpack.c.l.b16 %v6839
        %v7004 = vunpack.c.l.b16 %v6840
        %v7005 = vunpack.c.l.b16 %v6841
        %v7006 = vunpack.c.l.b16 %v6842
        %v7007 = vunpack.c.l.b16 %v6843
        %v7008 = vunpack.c.l.b16 %v6844
        %v7009 = vunpack.c.l.b16 %v6845
        %v7010 = vunpack.c.l.b16 %v6846
        %v7011 = vunpack.c.l.b16 %v6847
        %v7012 = vunpack.c.l.b16 %v6848
        %v7013 = vunpack.c.l.b16 %v6849
        %v7014 = vunpack.c.l.b16 %v6850
        %v7015 = vunpack.c.l.b16 %v6851
        %v7016 = vunpack.c.l.b16 %v6852
        %v7017 = vunpack.c.l.b16 %v6853
        %v7018 = vunpack.c.l.b16 %v6854
        %v7019 = vunpack.c.l.b16 %v6855
        %v7020 = vunpack.c.l.b16 %v6856
        %v7021 = vunpack.c.l.b16 %v6857
        %v7022 = vunpack.c.l.b16 %v6858
        %v7023 = vunpack.c.l.b16 %v6859
        %v7024 = vunpack.c.l.b16 %v6860
        %v7025 = vunpack.c.l.b16 %v6861
        %v7026 = vunpack.c.l.b16 %v6862
        %v7027 = vunpack.c.l.b16 %v6863
        %v7028 = vunpack.c.l.b16 %v6864
        %v7029 = vunpack.c.l.b16 %v6865
        %v7030 = vunpack.c.l.b16 %v6866
        %v7031 = vunpack.c.l.b16 %v6867
        %v7032 = vunpack.c.l.b16 %v6868
        %v7033 = vunpack.c.l.b16 %v6869
        %v7034 = vunpack.c.l.b16 %v6870
        %v7035 = vunpack.c.l.b16 %v6871
        %v7036 = vunpack.c.l.b16 %v6872
        %v7037 = vunpack.c.l.b16 %v6873
        %v7038 = vunpack.c.l.b16 %v6874
        %v7039 = vunpack.c.l.b16 %v6875
        %v7040 = vunpack.c.l.b16 %v6876
        %v7041 = vunpack.c.l.b16 %v6877
        %v7042 = vunpack.c.l.b16 %v6878
        %v7043 = vunpack.c.l.b16 %v6879
        %v7044 = vunpack.c.l.b16 %v6880
        %v7045 = vunpack.c.l.b16 %v6881
        %v7046 = vunpack.c.l.b16 %v6882
        %v7047 = vunpack.c.l.b16 %v6883
        %v7048 = vunpack.c.l.b16 %v6884
        %v7049 = vunpack.c.l.b16 %v6885
        %v7050 = vunpack.c.l.b16 %v6886
        %v7051 = vunpack.c.l.b16 %v6887
        %v7052 = vunpack.c.l.b16 %v6888
        %v7053 = vunpack.c.l.b16 %v6889
        %v7054 = vunpack.c.l.b16 %v6890
        %v7055 = vunpack.c.l.b16 %v6891
        %v7056 = vunpack.c.l.b16 %v6892
        %v7057 = vunpack.c.l.b16 %v6893
        %v7058 = vunpack.c.l.b16 %v6894
        %v7059 = vunpack.c.l.b16 %v6895
        %v7060 = vunpack.c.l.b16 %v6896
        %v7061 = vunpack.c.l.b16 %v6897
        %v7062 = vunpack.c.l.b16 %v6898
        %v7063 = vunpack.c.l.b16 %v6899
        %v7064 = vunpack.c.l.b16 %v6900
        %v7065 = vpack.c.b16 %v6986, %v6985
        %v7066 = vpack.c.b16 %v6988, %v6987
        %v7067 = vpack.c.b16 %v6990, %v6989
        %v7068 = vpack.c.b16 %v6992, %v6991
        %v7069 = vpack.c.b16 %v6994, %v6993
        %v7070 = vpack.c.b16 %v6996, %v6995
        %v7071 = vpack.c.b16 %v6998, %v6997
        %v7072 = vpack.c.b16 %v7000, %v6999
        %v7073 = vpack.c.b16 %v7002, %v7001
        %v7074 = vpack.c.b16 %v7004, %v7003
        %v7075 = vpack.c.b16 %v7006, %v7005
        %v7076 = vpack.c.b16 %v7008, %v7007
        %v7077 = vpack.c.b16 %v7010, %v7009
        %v7078 = vpack.c.b16 %v7012, %v7011
        %v7079 = vpack.c.b16 %v7014, %v7013
        %v7080 = vpack.c.b16 %v7016, %v7015
        %v7081 = vpack.c.b16 %v7018, %v7017
        %v7082 = vpack.c.b16 %v7020, %v7019
        %v7083 = vpack.c.b16 %v7022, %v7021
        %v7084 = vpack.c.b16 %v7024, %v7023
        %v7085 = vpack.c.b16 %v7026, %v7025
        %v7086 = vpack.c.b16 %v7028, %v7027
        %v7087 = vpack.c.b16 %v7030, %v7029
        %v7088 = vpack.c.b16 %v7032, %v7031
        %v7089 = vpack.c.b16 %v7034, %v7033
        %v7090 = vpack.c.b16 %v7036, %v7035
        %v7091 = vpack.c.b16 %v7038, %v7037
        %v7092 = vpack.c.b16 %v7040, %v7039
        %v7093 = vpack.c.b16 %v7042, %v7041
        %v7094 = vpack.c.b16 %v7044, %v7043
        %v7095 = vpack.c.b16 %v7046, %v7045
        %v7096 = vpack.c.b16 %v7048, %v7047
        %v7097 = vpack.c.b16 %v7050, %v7049
        %v7098 = vpack.c.b16 %v7052, %v7051
        %v7099 = vpack.c.b16 %v7054, %v7053
        %v7100 = vpack.c.b16 %v7056, %v7055
        %v7101 = vpack.c.b16 %v7058, %v7057
        %v7102 = vpack.c.b16 %v7060, %v7059
        %v7103 = vpack.c.b16 %v7062, %v7061
        %v7104 = vpack.c.b16 %v7064, %v7063
        %7145 = vmatpush.bf16.msra.mxu0 %v7072
        %7146 = vmatpush.bf16.msra.mxu0 %v7071
        %7147 = vmatpush.bf16.msra.mxu0 %v7070
        %7148 = vmatpush.bf16.msra.mxu0 %v7069
        %7149 = vmatpush.bf16.msra.mxu0 %v7068
        %7150 = vmatpush.bf16.msra.mxu0 %v7067
        %7151 = vmatpush.bf16.msra.mxu0 %v7066
        %7152 = vmatpush.bf16.msra.mxu0 %v7065
        %7153 = vmatmul.bf16.gmra.mxu0 %v5989
        %v7154 = vpop.f32.mrf.mxu0
        %v7155 = vadd.f32 %v6903, %v7154
        %v7156 = vpop.f32.mrf.mxu0
        %v7157 = vadd.f32 %v6903, %v7156
        %7158 = vmatmul.bf16.gmra.mxu0 %v5990
        %v7159 = vpop.f32.mrf.mxu0
        %v7160 = vadd.f32 %v6903, %v7159
        %v7161 = vpop.f32.mrf.mxu0
        %v7162 = vadd.f32 %v6903, %v7161
        %7163 = vmatmul.bf16.gmra.mxu0 %v5991
        %v7164 = vpop.f32.mrf.mxu0
        %v7165 = vadd.f32 %v6903, %v7164
        %v7166 = vpop.f32.mrf.mxu0
        %v7167 = vadd.f32 %v6903, %v7166
        %7168 = vmatmul.bf16.gmra.mxu0 %v5992
        %v7169 = vpop.f32.mrf.mxu0
        %v7170 = vadd.f32 %v6903, %v7169
        %v7171 = vpop.f32.mrf.mxu0
        %v7172 = vadd.f32 %v6903, %v7171
        %7173 = vmatmul.bf16.gmra.mxu0 %v5993
        %v7174 = vpop.f32.mrf.mxu0
        %v7175 = vadd.f32 %v6903, %v7174
        %v7176 = vpop.f32.mrf.mxu0
        %v7177 = vadd.f32 %v6903, %v7176
        %7178 = vmatmul.bf16.gmra.mxu0 %v5994
        %v7179 = vpop.f32.mrf.mxu0
        %v7180 = vadd.f32 %v6903, %v7179
        %v7181 = vpop.f32.mrf.mxu0
        %v7182 = vadd.f32 %v6903, %v7181
        %7183 = vmatmul.bf16.gmra.mxu0 %v5995
        %v7184 = vpop.f32.mrf.mxu0
        %v7185 = vadd.f32 %v6903, %v7184
        %v7186 = vpop.f32.mrf.mxu0
        %v7187 = vadd.f32 %v6903, %v7186
        %7188 = vmatmul.bf16.gmra.mxu0 %v5996
        %v7189 = vpop.f32.mrf.mxu0
        %v7190 = vadd.f32 %v6903, %v7189
        %v7191 = vpop.f32.mrf.mxu0
        %v7192 = vadd.f32 %v6903, %v7191
        %7193 = vmatmul.bf16.gmra.mxu0 %v5997
        %v7194 = vpop.f32.mrf.mxu0
        %v7195 = vadd.f32 %v6903, %v7194
        %v7196 = vpop.f32.mrf.mxu0
        %v7197 = vadd.f32 %v6903, %v7196
        %7198 = vmatmul.bf16.gmra.mxu0 %v5998
        %v7199 = vpop.f32.mrf.mxu0
        %v7200 = vadd.f32 %v6903, %v7199
        %v7201 = vpop.f32.mrf.mxu0
        %v7202 = vadd.f32 %v6903, %v7201
        %7203 = vmatmul.bf16.gmra.mxu0 %v5999
        %v7204 = vpop.f32.mrf.mxu0
        %v7205 = vadd.f32 %v6903, %v7204
        %v7206 = vpop.f32.mrf.mxu0
        %v7207 = vadd.f32 %v6903, %v7206
        %7208 = vmatmul.bf16.gmra.mxu0 %v6000
        %v7209 = vpop.f32.mrf.mxu0
        %v7210 = vadd.f32 %v6903, %v7209
        %v7211 = vpop.f32.mrf.mxu0
        %v7212 = vadd.f32 %v6903, %v7211
        %7213 = vmatmul.bf16.gmra.mxu0 %v6001
        %v7214 = vpop.f32.mrf.mxu0
        %v7215 = vadd.f32 %v6903, %v7214
        %v7216 = vpop.f32.mrf.mxu0
        %v7217 = vadd.f32 %v6903, %v7216
        %7218 = vmatmul.bf16.gmra.mxu0 %v6002
        %v7219 = vpop.f32.mrf.mxu0
        %v7220 = vadd.f32 %v6903, %v7219
        %v7221 = vpop.f32.mrf.mxu0
        %v7222 = vadd.f32 %v6903, %v7221
        %7223 = vmatmul.bf16.gmra.mxu0 %v6003
        %v7224 = vpop.f32.mrf.mxu0
        %v7225 = vadd.f32 %v6903, %v7224
        %v7226 = vpop.f32.mrf.mxu0
        %v7227 = vadd.f32 %v6903, %v7226
        %7228 = vmatmul.bf16.gmra.mxu0 %v6004
        %v7229 = vpop.f32.mrf.mxu0
        %v7230 = vadd.f32 %v6903, %v7229
        %v7231 = vpop.f32.mrf.mxu0
        %v7232 = vadd.f32 %v6903, %v7231
        %7233 = vmatmul.bf16.gmra.mxu0 %v6005
        %v7234 = vpop.f32.mrf.mxu0
        %v7235 = vadd.f32 %v6903, %v7234
        %v7236 = vpop.f32.mrf.mxu0
        %v7237 = vadd.f32 %v6903, %v7236
        %7238 = vmatmul.bf16.gmra.mxu0 %v6006
        %v7239 = vpop.f32.mrf.mxu0
        %v7240 = vadd.f32 %v6903, %v7239
        %v7241 = vpop.f32.mrf.mxu0
        %v7242 = vadd.f32 %v6903, %v7241
        %7243 = vmatmul.bf16.gmra.mxu0 %v6007
        %v7244 = vpop.f32.mrf.mxu0
        %v7245 = vadd.f32 %v6903, %v7244
        %v7246 = vpop.f32.mrf.mxu0
        %v7247 = vadd.f32 %v6903, %v7246
        %7248 = vmatmul.bf16.gmra.mxu0 %v6008
        %v7249 = vpop.f32.mrf.mxu0
        %v7250 = vadd.f32 %v6903, %v7249
        %v7251 = vpop.f32.mrf.mxu0
        %v7252 = vadd.f32 %v6903, %v7251
        %7253 = vmatmul.bf16.gmra.mxu0 %v6009
        %v7254 = vpop.f32.mrf.mxu0
        %v7255 = vadd.f32 %v6903, %v7254
        %v7256 = vpop.f32.mrf.mxu0
        %v7257 = vadd.f32 %v6903, %v7256
        %7258 = vmatmul.bf16.gmra.mxu0 %v6010
        %v7259 = vpop.f32.mrf.mxu0
        %v7260 = vadd.f32 %v6903, %v7259
        %v7261 = vpop.f32.mrf.mxu0
        %v7262 = vadd.f32 %v6903, %v7261
        %7263 = vmatmul.bf16.gmra.mxu0 %v6011
        %v7264 = vpop.f32.mrf.mxu0
        %v7265 = vadd.f32 %v6903, %v7264
        %v7266 = vpop.f32.mrf.mxu0
        %v7267 = vadd.f32 %v6903, %v7266
        %7268 = vmatmul.bf16.gmra.mxu0 %v6012
        %v7269 = vpop.f32.mrf.mxu0
        %v7270 = vadd.f32 %v6903, %v7269
        %v7271 = vpop.f32.mrf.mxu0
        %v7272 = vadd.f32 %v6903, %v7271
        %7273 = vmatmul.bf16.gmra.mxu0 %v6013
        %v7274 = vpop.f32.mrf.mxu0
        %v7275 = vadd.f32 %v6903, %v7274
        %v7276 = vpop.f32.mrf.mxu0
        %v7277 = vadd.f32 %v6903, %v7276
        %7278 = vmatmul.bf16.gmra.mxu0 %v6014
        %v7279 = vpop.f32.mrf.mxu0
        %v7280 = vadd.f32 %v6903, %v7279
        %v7281 = vpop.f32.mrf.mxu0
        %v7282 = vadd.f32 %v6903, %v7281
        %7283 = vmatmul.bf16.gmra.mxu0 %v6015
        %v7284 = vpop.f32.mrf.mxu0
        %v7285 = vadd.f32 %v6903, %v7284
        %v7286 = vpop.f32.mrf.mxu0
        %v7287 = vadd.f32 %v6903, %v7286
        %7288 = vmatmul.bf16.gmra.mxu0 %v6016
        %v7289 = vpop.f32.mrf.mxu0
        %v7290 = vadd.f32 %v6903, %v7289
        %v7291 = vpop.f32.mrf.mxu0
        %v7292 = vadd.f32 %v6903, %v7291
        %7293 = vmatmul.bf16.gmra.mxu0 %v6017
        %v7294 = vpop.f32.mrf.mxu0
        %v7295 = vadd.f32 %v6903, %v7294
        %v7296 = vpop.f32.mrf.mxu0
        %v7297 = vadd.f32 %v6903, %v7296
        %7298 = vmatmul.bf16.gmra.mxu0 %v6018
        %v7299 = vpop.f32.mrf.mxu0
        %v7300 = vadd.f32 %v6903, %v7299
        %v7301 = vpop.f32.mrf.mxu0
        %v7302 = vadd.f32 %v6903, %v7301
        %7303 = vmatmul.bf16.gmra.mxu0 %v6019
        %v7304 = vpop.f32.mrf.mxu0
        %v7305 = vadd.f32 %v6903, %v7304
        %v7306 = vpop.f32.mrf.mxu0
        %v7307 = vadd.f32 %v6903, %v7306
        %7308 = vmatmul.bf16.gmra.mxu0 %v6020
        %v7309 = vpop.f32.mrf.mxu0
        %v7310 = vadd.f32 %v6903, %v7309
        %v7311 = vpop.f32.mrf.mxu0
        %v7312 = vadd.f32 %v6903, %v7311
        %7313 = vdwg.mxu0
        %7314 = vmatpush.bf16.msra.mxu0 %v7080
        %7315 = vmatpush.bf16.msra.mxu0 %v7079
        %7316 = vmatpush.bf16.msra.mxu0 %v7078
        %7317 = vmatpush.bf16.msra.mxu0 %v7077
        %7318 = vmatpush.bf16.msra.mxu0 %v7076
        %7319 = vmatpush.bf16.msra.mxu0 %v7075
        %7320 = vmatpush.bf16.msra.mxu0 %v7074
        %7321 = vmatpush.bf16.msra.mxu0 %v7073
        %7322 = vmatmul.bf16.gmra.mxu0 %v6181
        %v7323 = vpop.f32.mrf.mxu0
        %v7324 = vadd.f32 %v7155, %v7323
        %v7325 = vpop.f32.mrf.mxu0
        %v7326 = vadd.f32 %v7157, %v7325
        %7327 = vmatmul.bf16.gmra.mxu0 %v6182
        %v7328 = vpop.f32.mrf.mxu0
        %v7329 = vadd.f32 %v7160, %v7328
        %v7330 = vpop.f32.mrf.mxu0
        %v7331 = vadd.f32 %v7162, %v7330
        %7332 = vmatmul.bf16.gmra.mxu0 %v6183
        %v7333 = vpop.f32.mrf.mxu0
        %v7334 = vadd.f32 %v7165, %v7333
        %v7335 = vpop.f32.mrf.mxu0
        %v7336 = vadd.f32 %v7167, %v7335
        %7337 = vmatmul.bf16.gmra.mxu0 %v6184
        %v7338 = vpop.f32.mrf.mxu0
        %v7339 = vadd.f32 %v7170, %v7338
        %v7340 = vpop.f32.mrf.mxu0
        %v7341 = vadd.f32 %v7172, %v7340
        %7342 = vmatmul.bf16.gmra.mxu0 %v6185
        %v7343 = vpop.f32.mrf.mxu0
        %v7344 = vadd.f32 %v7175, %v7343
        %v7345 = vpop.f32.mrf.mxu0
        %v7346 = vadd.f32 %v7177, %v7345
        %7347 = vmatmul.bf16.gmra.mxu0 %v6186
        %v7348 = vpop.f32.mrf.mxu0
        %v7349 = vadd.f32 %v7180, %v7348
        %v7350 = vpop.f32.mrf.mxu0
        %v7351 = vadd.f32 %v7182, %v7350
        %7352 = vmatmul.bf16.gmra.mxu0 %v6187
        %v7353 = vpop.f32.mrf.mxu0
        %v7354 = vadd.f32 %v7185, %v7353
        %v7355 = vpop.f32.mrf.mxu0
        %v7356 = vadd.f32 %v7187, %v7355
        %7357 = vmatmul.bf16.gmra.mxu0 %v6188
        %v7358 = vpop.f32.mrf.mxu0
        %v7359 = vadd.f32 %v7190, %v7358
        %v7360 = vpop.f32.mrf.mxu0
        %v7361 = vadd.f32 %v7192, %v7360
        %7362 = vmatmul.bf16.gmra.mxu0 %v6189
        %v7363 = vpop.f32.mrf.mxu0
        %v7364 = vadd.f32 %v7195, %v7363
        %v7365 = vpop.f32.mrf.mxu0
        %v7366 = vadd.f32 %v7197, %v7365
        %7367 = vmatmul.bf16.gmra.mxu0 %v6190
        %v7368 = vpop.f32.mrf.mxu0
        %v7369 = vadd.f32 %v7200, %v7368
        %v7370 = vpop.f32.mrf.mxu0
        %v7371 = vadd.f32 %v7202, %v7370
        %7372 = vmatmul.bf16.gmra.mxu0 %v6191
        %v7373 = vpop.f32.mrf.mxu0
        %v7374 = vadd.f32 %v7205, %v7373
        %v7375 = vpop.f32.mrf.mxu0
        %v7376 = vadd.f32 %v7207, %v7375
        %7377 = vmatmul.bf16.gmra.mxu0 %v6192
        %v7378 = vpop.f32.mrf.mxu0
        %v7379 = vadd.f32 %v7210, %v7378
        %v7380 = vpop.f32.mrf.mxu0
        %v7381 = vadd.f32 %v7212, %v7380
        %7382 = vmatmul.bf16.gmra.mxu0 %v6193
        %v7383 = vpop.f32.mrf.mxu0
        %v7384 = vadd.f32 %v7215, %v7383
        %v7385 = vpop.f32.mrf.mxu0
        %v7386 = vadd.f32 %v7217, %v7385
        %7387 = vmatmul.bf16.gmra.mxu0 %v6194
        %v7388 = vpop.f32.mrf.mxu0
        %v7389 = vadd.f32 %v7220, %v7388
        %v7390 = vpop.f32.mrf.mxu0
        %v7391 = vadd.f32 %v7222, %v7390
        %7392 = vmatmul.bf16.gmra.mxu0 %v6195
        %v7393 = vpop.f32.mrf.mxu0
        %v7394 = vadd.f32 %v7225, %v7393
        %v7395 = vpop.f32.mrf.mxu0
        %v7396 = vadd.f32 %v7227, %v7395
        %7397 = vmatmul.bf16.gmra.mxu0 %v6196
        %v7398 = vpop.f32.mrf.mxu0
        %v7399 = vadd.f32 %v7230, %v7398
        %v7400 = vpop.f32.mrf.mxu0
        %v7401 = vadd.f32 %v7232, %v7400
        %7402 = vmatmul.bf16.gmra.mxu0 %v6197
        %v7403 = vpop.f32.mrf.mxu0
        %v7404 = vadd.f32 %v7235, %v7403
        %v7405 = vpop.f32.mrf.mxu0
        %v7406 = vadd.f32 %v7237, %v7405
        %7407 = vmatmul.bf16.gmra.mxu0 %v6198
        %v7408 = vpop.f32.mrf.mxu0
        %v7409 = vadd.f32 %v7240, %v7408
        %v7410 = vpop.f32.mrf.mxu0
        %v7411 = vadd.f32 %v7242, %v7410
        %7412 = vmatmul.bf16.gmra.mxu0 %v6199
        %v7413 = vpop.f32.mrf.mxu0
        %v7414 = vadd.f32 %v7245, %v7413
        %v7415 = vpop.f32.mrf.mxu0
        %v7416 = vadd.f32 %v7247, %v7415
        %7417 = vmatmul.bf16.gmra.mxu0 %v6200
        %v7418 = vpop.f32.mrf.mxu0
        %v7419 = vadd.f32 %v7250, %v7418
        %v7420 = vpop.f32.mrf.mxu0
        %v7421 = vadd.f32 %v7252, %v7420
        %7422 = vmatmul.bf16.gmra.mxu0 %v6201
        %v7423 = vpop.f32.mrf.mxu0
        %v7424 = vadd.f32 %v7255, %v7423
        %v7425 = vpop.f32.mrf.mxu0
        %v7426 = vadd.f32 %v7257, %v7425
        %7427 = vmatmul.bf16.gmra.mxu0 %v6202
        %v7428 = vpop.f32.mrf.mxu0
        %v7429 = vadd.f32 %v7260, %v7428
        %v7430 = vpop.f32.mrf.mxu0
        %v7431 = vadd.f32 %v7262, %v7430
        %7432 = vmatmul.bf16.gmra.mxu0 %v6203
        %v7433 = vpop.f32.mrf.mxu0
        %v7434 = vadd.f32 %v7265, %v7433
        %v7435 = vpop.f32.mrf.mxu0
        %v7436 = vadd.f32 %v7267, %v7435
        %7437 = vmatmul.bf16.gmra.mxu0 %v6204
        %v7438 = vpop.f32.mrf.mxu0
        %v7439 = vadd.f32 %v7270, %v7438
        %v7440 = vpop.f32.mrf.mxu0
        %v7441 = vadd.f32 %v7272, %v7440
        %7442 = vmatmul.bf16.gmra.mxu0 %v6205
        %v7443 = vpop.f32.mrf.mxu0
        %v7444 = vadd.f32 %v7275, %v7443
        %v7445 = vpop.f32.mrf.mxu0
        %v7446 = vadd.f32 %v7277, %v7445
        %7447 = vmatmul.bf16.gmra.mxu0 %v6206
        %v7448 = vpop.f32.mrf.mxu0
        %v7449 = vadd.f32 %v7280, %v7448
        %v7450 = vpop.f32.mrf.mxu0
        %v7451 = vadd.f32 %v7282, %v7450
        %7452 = vmatmul.bf16.gmra.mxu0 %v6207
        %v7453 = vpop.f32.mrf.mxu0
        %v7454 = vadd.f32 %v7285, %v7453
        %v7455 = vpop.f32.mrf.mxu0
        %v7456 = vadd.f32 %v7287, %v7455
        %7457 = vmatmul.bf16.gmra.mxu0 %v6208
        %v7458 = vpop.f32.mrf.mxu0
        %v7459 = vadd.f32 %v7290, %v7458
        %v7460 = vpop.f32.mrf.mxu0
        %v7461 = vadd.f32 %v7292, %v7460
        %7462 = vmatmul.bf16.gmra.mxu0 %v6209
        %v7463 = vpop.f32.mrf.mxu0
        %v7464 = vadd.f32 %v7295, %v7463
        %v7465 = vpop.f32.mrf.mxu0
        %v7466 = vadd.f32 %v7297, %v7465
        %7467 = vmatmul.bf16.gmra.mxu0 %v6210
        %v7468 = vpop.f32.mrf.mxu0
        %v7469 = vadd.f32 %v7300, %v7468
        %v7470 = vpop.f32.mrf.mxu0
        %v7471 = vadd.f32 %v7302, %v7470
        %7472 = vmatmul.bf16.gmra.mxu0 %v6211
        %v7473 = vpop.f32.mrf.mxu0
        %v7474 = vadd.f32 %v7305, %v7473
        %v7475 = vpop.f32.mrf.mxu0
        %v7476 = vadd.f32 %v7307, %v7475
        %7477 = vmatmul.bf16.gmra.mxu0 %v6212
        %v7478 = vpop.f32.mrf.mxu0
        %v7479 = vadd.f32 %v7310, %v7478
        %v7480 = vpop.f32.mrf.mxu0
        %v7481 = vadd.f32 %v7312, %v7480
        %7482 = vdwg.mxu0
        %7483 = vmatpush.bf16.msra.mxu0 %v7088
        %7484 = vmatpush.bf16.msra.mxu0 %v7087
        %7485 = vmatpush.bf16.msra.mxu0 %v7086
        %7486 = vmatpush.bf16.msra.mxu0 %v7085
        %7487 = vmatpush.bf16.msra.mxu0 %v7084
        %7488 = vmatpush.bf16.msra.mxu0 %v7083
        %7489 = vmatpush.bf16.msra.mxu0 %v7082
        %7490 = vmatpush.bf16.msra.mxu0 %v7081
        %7491 = vmatmul.bf16.gmra.mxu0 %v6373
        %v7492 = vpop.f32.mrf.mxu0
        %v7493 = vadd.f32 %v7324, %v7492
        %v7494 = vpop.f32.mrf.mxu0
        %v7495 = vadd.f32 %v7326, %v7494
        %7496 = vmatmul.bf16.gmra.mxu0 %v6374
        %v7497 = vpop.f32.mrf.mxu0
        %v7498 = vadd.f32 %v7329, %v7497
        %v7499 = vpop.f32.mrf.mxu0
        %v7500 = vadd.f32 %v7331, %v7499
        %7501 = vmatmul.bf16.gmra.mxu0 %v6375
        %v7502 = vpop.f32.mrf.mxu0
        %v7503 = vadd.f32 %v7334, %v7502
        %v7504 = vpop.f32.mrf.mxu0
        %v7505 = vadd.f32 %v7336, %v7504
        %7506 = vmatmul.bf16.gmra.mxu0 %v6376
        %v7507 = vpop.f32.mrf.mxu0
        %v7508 = vadd.f32 %v7339, %v7507
        %v7509 = vpop.f32.mrf.mxu0
        %v7510 = vadd.f32 %v7341, %v7509
        %7511 = vmatmul.bf16.gmra.mxu0 %v6377
        %v7512 = vpop.f32.mrf.mxu0
        %v7513 = vadd.f32 %v7344, %v7512
        %v7514 = vpop.f32.mrf.mxu0
        %v7515 = vadd.f32 %v7346, %v7514
        %7516 = vmatmul.bf16.gmra.mxu0 %v6378
        %v7517 = vpop.f32.mrf.mxu0
        %v7518 = vadd.f32 %v7349, %v7517
        %v7519 = vpop.f32.mrf.mxu0
        %v7520 = vadd.f32 %v7351, %v7519
        %7521 = vmatmul.bf16.gmra.mxu0 %v6379
        %v7522 = vpop.f32.mrf.mxu0
        %v7523 = vadd.f32 %v7354, %v7522
        %v7524 = vpop.f32.mrf.mxu0
        %v7525 = vadd.f32 %v7356, %v7524
        %7526 = vmatmul.bf16.gmra.mxu0 %v6380
        %v7527 = vpop.f32.mrf.mxu0
        %v7528 = vadd.f32 %v7359, %v7527
        %v7529 = vpop.f32.mrf.mxu0
        %v7530 = vadd.f32 %v7361, %v7529
        %7531 = vmatmul.bf16.gmra.mxu0 %v6381
        %v7532 = vpop.f32.mrf.mxu0
        %v7533 = vadd.f32 %v7364, %v7532
        %v7534 = vpop.f32.mrf.mxu0
        %v7535 = vadd.f32 %v7366, %v7534
        %7536 = vmatmul.bf16.gmra.mxu0 %v6382
        %v7537 = vpop.f32.mrf.mxu0
        %v7538 = vadd.f32 %v7369, %v7537
        %v7539 = vpop.f32.mrf.mxu0
        %v7540 = vadd.f32 %v7371, %v7539
        %7541 = vmatmul.bf16.gmra.mxu0 %v6383
        %v7542 = vpop.f32.mrf.mxu0
        %v7543 = vadd.f32 %v7374, %v7542
        %v7544 = vpop.f32.mrf.mxu0
        %v7545 = vadd.f32 %v7376, %v7544
        %7546 = vmatmul.bf16.gmra.mxu0 %v6384
        %v7547 = vpop.f32.mrf.mxu0
        %v7548 = vadd.f32 %v7379, %v7547
        %v7549 = vpop.f32.mrf.mxu0
        %v7550 = vadd.f32 %v7381, %v7549
        %7551 = vmatmul.bf16.gmra.mxu0 %v6385
        %v7552 = vpop.f32.mrf.mxu0
        %v7553 = vadd.f32 %v7384, %v7552
        %v7554 = vpop.f32.mrf.mxu0
        %v7555 = vadd.f32 %v7386, %v7554
        %7556 = vmatmul.bf16.gmra.mxu0 %v6386
        %v7557 = vpop.f32.mrf.mxu0
        %v7558 = vadd.f32 %v7389, %v7557
        %v7559 = vpop.f32.mrf.mxu0
        %v7560 = vadd.f32 %v7391, %v7559
        %7561 = vmatmul.bf16.gmra.mxu0 %v6387
        %v7562 = vpop.f32.mrf.mxu0
        %v7563 = vadd.f32 %v7394, %v7562
        %v7564 = vpop.f32.mrf.mxu0
        %v7565 = vadd.f32 %v7396, %v7564
        %7566 = vmatmul.bf16.gmra.mxu0 %v6388
        %v7567 = vpop.f32.mrf.mxu0
        %v7568 = vadd.f32 %v7399, %v7567
        %v7569 = vpop.f32.mrf.mxu0
        %v7570 = vadd.f32 %v7401, %v7569
        %7571 = vmatmul.bf16.gmra.mxu0 %v6389
        %v7572 = vpop.f32.mrf.mxu0
        %v7573 = vadd.f32 %v7404, %v7572
        %v7574 = vpop.f32.mrf.mxu0
        %v7575 = vadd.f32 %v7406, %v7574
        %7576 = vmatmul.bf16.gmra.mxu0 %v6390
        %v7577 = vpop.f32.mrf.mxu0
        %v7578 = vadd.f32 %v7409, %v7577
        %v7579 = vpop.f32.mrf.mxu0
        %v7580 = vadd.f32 %v7411, %v7579
        %7581 = vmatmul.bf16.gmra.mxu0 %v6391
        %v7582 = vpop.f32.mrf.mxu0
        %v7583 = vadd.f32 %v7414, %v7582
        %v7584 = vpop.f32.mrf.mxu0
        %v7585 = vadd.f32 %v7416, %v7584
        %7586 = vmatmul.bf16.gmra.mxu0 %v6392
        %v7587 = vpop.f32.mrf.mxu0
        %v7588 = vadd.f32 %v7419, %v7587
        %v7589 = vpop.f32.mrf.mxu0
        %v7590 = vadd.f32 %v7421, %v7589
        %7591 = vmatmul.bf16.gmra.mxu0 %v6393
        %v7592 = vpop.f32.mrf.mxu0
        %v7593 = vadd.f32 %v7424, %v7592
        %v7594 = vpop.f32.mrf.mxu0
        %v7595 = vadd.f32 %v7426, %v7594
        %7596 = vmatmul.bf16.gmra.mxu0 %v6394
        %v7597 = vpop.f32.mrf.mxu0
        %v7598 = vadd.f32 %v7429, %v7597
        %v7599 = vpop.f32.mrf.mxu0
        %v7600 = vadd.f32 %v7431, %v7599
        %7601 = vmatmul.bf16.gmra.mxu0 %v6395
        %v7602 = vpop.f32.mrf.mxu0
        %v7603 = vadd.f32 %v7434, %v7602
        %v7604 = vpop.f32.mrf.mxu0
        %v7605 = vadd.f32 %v7436, %v7604
        %7606 = vmatmul.bf16.gmra.mxu0 %v6396
        %v7607 = vpop.f32.mrf.mxu0
        %v7608 = vadd.f32 %v7439, %v7607
        %v7609 = vpop.f32.mrf.mxu0
        %v7610 = vadd.f32 %v7441, %v7609
        %7611 = vmatmul.bf16.gmra.mxu0 %v6397
        %v7612 = vpop.f32.mrf.mxu0
        %v7613 = vadd.f32 %v7444, %v7612
        %v7614 = vpop.f32.mrf.mxu0
        %v7615 = vadd.f32 %v7446, %v7614
        %7616 = vmatmul.bf16.gmra.mxu0 %v6398
        %v7617 = vpop.f32.mrf.mxu0
        %v7618 = vadd.f32 %v7449, %v7617
        %v7619 = vpop.f32.mrf.mxu0
        %v7620 = vadd.f32 %v7451, %v7619
        %7621 = vmatmul.bf16.gmra.mxu0 %v6399
        %v7622 = vpop.f32.mrf.mxu0
        %v7623 = vadd.f32 %v7454, %v7622
        %v7624 = vpop.f32.mrf.mxu0
        %v7625 = vadd.f32 %v7456, %v7624
        %7626 = vmatmul.bf16.gmra.mxu0 %v6400
        %v7627 = vpop.f32.mrf.mxu0
        %v7628 = vadd.f32 %v7459, %v7627
        %v7629 = vpop.f32.mrf.mxu0
        %v7630 = vadd.f32 %v7461, %v7629
        %7631 = vmatmul.bf16.gmra.mxu0 %v6401
        %v7632 = vpop.f32.mrf.mxu0
        %v7633 = vadd.f32 %v7464, %v7632
        %v7634 = vpop.f32.mrf.mxu0
        %v7635 = vadd.f32 %v7466, %v7634
        %7636 = vmatmul.bf16.gmra.mxu0 %v6402
        %v7637 = vpop.f32.mrf.mxu0
        %v7638 = vadd.f32 %v7469, %v7637
        %v7639 = vpop.f32.mrf.mxu0
        %v7640 = vadd.f32 %v7471, %v7639
        %7641 = vmatmul.bf16.gmra.mxu0 %v6403
        %v7642 = vpop.f32.mrf.mxu0
        %v7643 = vadd.f32 %v7474, %v7642
        %v7644 = vpop.f32.mrf.mxu0
        %v7645 = vadd.f32 %v7476, %v7644
        %7646 = vmatmul.bf16.gmra.mxu0 %v6404
        %v7647 = vpop.f32.mrf.mxu0
        %v7648 = vadd.f32 %v7479, %v7647
        %v7649 = vpop.f32.mrf.mxu0
        %v7650 = vadd.f32 %v7481, %v7649
        %7651 = vdwg.mxu0
        %7652 = vmatpush.bf16.msra.mxu0 %v7096
        %7653 = vmatpush.bf16.msra.mxu0 %v7095
        %7654 = vmatpush.bf16.msra.mxu0 %v7094
        %7655 = vmatpush.bf16.msra.mxu0 %v7093
        %7656 = vmatpush.bf16.msra.mxu0 %v7092
        %7657 = vmatpush.bf16.msra.mxu0 %v7091
        %7658 = vmatpush.bf16.msra.mxu0 %v7090
        %7659 = vmatpush.bf16.msra.mxu0 %v7089
        %7660 = vmatmul.bf16.gmra.mxu0 %v6565
        %v7661 = vpop.f32.mrf.mxu0
        %v7662 = vadd.f32 %v7493, %v7661
        %v7663 = vpop.f32.mrf.mxu0
        %v7664 = vadd.f32 %v7495, %v7663
        %7665 = vmatmul.bf16.gmra.mxu0 %v6566
        %v7666 = vpop.f32.mrf.mxu0
        %v7667 = vadd.f32 %v7498, %v7666
        %v7668 = vpop.f32.mrf.mxu0
        %v7669 = vadd.f32 %v7500, %v7668
        %7670 = vmatmul.bf16.gmra.mxu0 %v6567
        %v7671 = vpop.f32.mrf.mxu0
        %v7672 = vadd.f32 %v7503, %v7671
        %v7673 = vpop.f32.mrf.mxu0
        %v7674 = vadd.f32 %v7505, %v7673
        %7675 = vmatmul.bf16.gmra.mxu0 %v6568
        %v7676 = vpop.f32.mrf.mxu0
        %v7677 = vadd.f32 %v7508, %v7676
        %v7678 = vpop.f32.mrf.mxu0
        %v7679 = vadd.f32 %v7510, %v7678
        %7680 = vmatmul.bf16.gmra.mxu0 %v6569
        %v7681 = vpop.f32.mrf.mxu0
        %v7682 = vadd.f32 %v7513, %v7681
        %v7683 = vpop.f32.mrf.mxu0
        %v7684 = vadd.f32 %v7515, %v7683
        %7685 = vmatmul.bf16.gmra.mxu0 %v6570
        %v7686 = vpop.f32.mrf.mxu0
        %v7687 = vadd.f32 %v7518, %v7686
        %v7688 = vpop.f32.mrf.mxu0
        %v7689 = vadd.f32 %v7520, %v7688
        %7690 = vmatmul.bf16.gmra.mxu0 %v6571
        %v7691 = vpop.f32.mrf.mxu0
        %v7692 = vadd.f32 %v7523, %v7691
        %v7693 = vpop.f32.mrf.mxu0
        %v7694 = vadd.f32 %v7525, %v7693
        %7695 = vmatmul.bf16.gmra.mxu0 %v6572
        %v7696 = vpop.f32.mrf.mxu0
        %v7697 = vadd.f32 %v7528, %v7696
        %v7698 = vpop.f32.mrf.mxu0
        %v7699 = vadd.f32 %v7530, %v7698
        %7700 = vmatmul.bf16.gmra.mxu0 %v6573
        %v7701 = vpop.f32.mrf.mxu0
        %v7702 = vadd.f32 %v7533, %v7701
        %v7703 = vpop.f32.mrf.mxu0
        %v7704 = vadd.f32 %v7535, %v7703
        %7705 = vmatmul.bf16.gmra.mxu0 %v6574
        %v7706 = vpop.f32.mrf.mxu0
        %v7707 = vadd.f32 %v7538, %v7706
        %v7708 = vpop.f32.mrf.mxu0
        %v7709 = vadd.f32 %v7540, %v7708
        %7710 = vmatmul.bf16.gmra.mxu0 %v6575
        %v7711 = vpop.f32.mrf.mxu0
        %v7712 = vadd.f32 %v7543, %v7711
        %v7713 = vpop.f32.mrf.mxu0
        %v7714 = vadd.f32 %v7545, %v7713
        %7715 = vmatmul.bf16.gmra.mxu0 %v6576
        %v7716 = vpop.f32.mrf.mxu0
        %v7717 = vadd.f32 %v7548, %v7716
        %v7718 = vpop.f32.mrf.mxu0
        %v7719 = vadd.f32 %v7550, %v7718
        %7720 = vmatmul.bf16.gmra.mxu0 %v6577
        %v7721 = vpop.f32.mrf.mxu0
        %v7722 = vadd.f32 %v7553, %v7721
        %v7723 = vpop.f32.mrf.mxu0
        %v7724 = vadd.f32 %v7555, %v7723
        %7725 = vmatmul.bf16.gmra.mxu0 %v6578
        %v7726 = vpop.f32.mrf.mxu0
        %v7727 = vadd.f32 %v7558, %v7726
        %v7728 = vpop.f32.mrf.mxu0
        %v7729 = vadd.f32 %v7560, %v7728
        %7730 = vmatmul.bf16.gmra.mxu0 %v6579
        %v7731 = vpop.f32.mrf.mxu0
        %v7732 = vadd.f32 %v7563, %v7731
        %v7733 = vpop.f32.mrf.mxu0
        %v7734 = vadd.f32 %v7565, %v7733
        %7735 = vmatmul.bf16.gmra.mxu0 %v6580
        %v7736 = vpop.f32.mrf.mxu0
        %v7737 = vadd.f32 %v7568, %v7736
        %v7738 = vpop.f32.mrf.mxu0
        %v7739 = vadd.f32 %v7570, %v7738
        %7740 = vmatmul.bf16.gmra.mxu0 %v6581
        %v7741 = vpop.f32.mrf.mxu0
        %v7742 = vadd.f32 %v7573, %v7741
        %v7743 = vpop.f32.mrf.mxu0
        %v7744 = vadd.f32 %v7575, %v7743
        %7745 = vmatmul.bf16.gmra.mxu0 %v6582
        %v7746 = vpop.f32.mrf.mxu0
        %v7747 = vadd.f32 %v7578, %v7746
        %v7748 = vpop.f32.mrf.mxu0
        %v7749 = vadd.f32 %v7580, %v7748
        %7750 = vmatmul.bf16.gmra.mxu0 %v6583
        %v7751 = vpop.f32.mrf.mxu0
        %v7752 = vadd.f32 %v7583, %v7751
        %v7753 = vpop.f32.mrf.mxu0
        %v7754 = vadd.f32 %v7585, %v7753
        %7755 = vmatmul.bf16.gmra.mxu0 %v6584
        %v7756 = vpop.f32.mrf.mxu0
        %v7757 = vadd.f32 %v7588, %v7756
        %v7758 = vpop.f32.mrf.mxu0
        %v7759 = vadd.f32 %v7590, %v7758
        %7760 = vmatmul.bf16.gmra.mxu0 %v6585
        %v7761 = vpop.f32.mrf.mxu0
        %v7762 = vadd.f32 %v7593, %v7761
        %v7763 = vpop.f32.mrf.mxu0
        %v7764 = vadd.f32 %v7595, %v7763
        %7765 = vmatmul.bf16.gmra.mxu0 %v6586
        %v7766 = vpop.f32.mrf.mxu0
        %v7767 = vadd.f32 %v7598, %v7766
        %v7768 = vpop.f32.mrf.mxu0
        %v7769 = vadd.f32 %v7600, %v7768
        %7770 = vmatmul.bf16.gmra.mxu0 %v6587
        %v7771 = vpop.f32.mrf.mxu0
        %v7772 = vadd.f32 %v7603, %v7771
        %v7773 = vpop.f32.mrf.mxu0
        %v7774 = vadd.f32 %v7605, %v7773
        %7775 = vmatmul.bf16.gmra.mxu0 %v6588
        %v7776 = vpop.f32.mrf.mxu0
        %v7777 = vadd.f32 %v7608, %v7776
        %v7778 = vpop.f32.mrf.mxu0
        %v7779 = vadd.f32 %v7610, %v7778
        %7780 = vmatmul.bf16.gmra.mxu0 %v6589
        %v7781 = vpop.f32.mrf.mxu0
        %v7782 = vadd.f32 %v7613, %v7781
        %v7783 = vpop.f32.mrf.mxu0
        %v7784 = vadd.f32 %v7615, %v7783
        %7785 = vmatmul.bf16.gmra.mxu0 %v6590
        %v7786 = vpop.f32.mrf.mxu0
        %v7787 = vadd.f32 %v7618, %v7786
        %v7788 = vpop.f32.mrf.mxu0
        %v7789 = vadd.f32 %v7620, %v7788
        %7790 = vmatmul.bf16.gmra.mxu0 %v6591
        %v7791 = vpop.f32.mrf.mxu0
        %v7792 = vadd.f32 %v7623, %v7791
        %v7793 = vpop.f32.mrf.mxu0
        %v7794 = vadd.f32 %v7625, %v7793
        %7795 = vmatmul.bf16.gmra.mxu0 %v6592
        %v7796 = vpop.f32.mrf.mxu0
        %v7797 = vadd.f32 %v7628, %v7796
        %v7798 = vpop.f32.mrf.mxu0
        %v7799 = vadd.f32 %v7630, %v7798
        %7800 = vmatmul.bf16.gmra.mxu0 %v6593
        %v7801 = vpop.f32.mrf.mxu0
        %v7802 = vadd.f32 %v7633, %v7801
        %v7803 = vpop.f32.mrf.mxu0
        %v7804 = vadd.f32 %v7635, %v7803
        %7805 = vmatmul.bf16.gmra.mxu0 %v6594
        %v7806 = vpop.f32.mrf.mxu0
        %v7807 = vadd.f32 %v7638, %v7806
        %v7808 = vpop.f32.mrf.mxu0
        %v7809 = vadd.f32 %v7640, %v7808
        %7810 = vmatmul.bf16.gmra.mxu0 %v6595
        %v7811 = vpop.f32.mrf.mxu0
        %v7812 = vadd.f32 %v7643, %v7811
        %v7813 = vpop.f32.mrf.mxu0
        %v7814 = vadd.f32 %v7645, %v7813
        %7815 = vmatmul.bf16.gmra.mxu0 %v6596
        %v7816 = vpop.f32.mrf.mxu0
        %v7817 = vadd.f32 %v7648, %v7816
        %v7818 = vpop.f32.mrf.mxu0
        %v7819 = vadd.f32 %v7650, %v7818
        %7820 = vdwg.mxu0
        %7821 = vmatpush.bf16.msra.mxu0 %v7104
        %7822 = vmatpush.bf16.msra.mxu0 %v7103
        %7823 = vmatpush.bf16.msra.mxu0 %v7102
        %7824 = vmatpush.bf16.msra.mxu0 %v7101
        %7825 = vmatpush.bf16.msra.mxu0 %v7100
        %7826 = vmatpush.bf16.msra.mxu0 %v7099
        %7827 = vmatpush.bf16.msra.mxu0 %v7098
        %7828 = vmatpush.bf16.msra.mxu0 %v7097
        %7829 = vmatmul.bf16.gmra.mxu0 %v6757
        %v7830 = vpop.f32.mrf.mxu0
        %v7831 = vadd.f32 %v7662, %v7830
        %v7832 = vpop.f32.mrf.mxu0
        %v7833 = vadd.f32 %v7664, %v7832
        %7834 = vmatmul.bf16.gmra.mxu0 %v6758
        %v7835 = vpop.f32.mrf.mxu0
        %v7836 = vadd.f32 %v7667, %v7835
        %v7837 = vpop.f32.mrf.mxu0
        %v7838 = vadd.f32 %v7669, %v7837
        %7839 = vmatmul.bf16.gmra.mxu0 %v6759
        %v7840 = vpop.f32.mrf.mxu0
        %v7841 = vadd.f32 %v7672, %v7840
        %v7842 = vpop.f32.mrf.mxu0
        %v7843 = vadd.f32 %v7674, %v7842
        %7844 = vmatmul.bf16.gmra.mxu0 %v6760
        %v7845 = vpop.f32.mrf.mxu0
        %v7846 = vadd.f32 %v7677, %v7845
        %v7847 = vpop.f32.mrf.mxu0
        %v7848 = vadd.f32 %v7679, %v7847
        %7849 = vmatmul.bf16.gmra.mxu0 %v6761
        %v7850 = vpop.f32.mrf.mxu0
        %v7851 = vadd.f32 %v7682, %v7850
        %v7852 = vpop.f32.mrf.mxu0
        %v7853 = vadd.f32 %v7684, %v7852
        %7854 = vmatmul.bf16.gmra.mxu0 %v6762
        %v7855 = vpop.f32.mrf.mxu0
        %v7856 = vadd.f32 %v7687, %v7855
        %v7857 = vpop.f32.mrf.mxu0
        %v7858 = vadd.f32 %v7689, %v7857
        %7859 = vmatmul.bf16.gmra.mxu0 %v6763
        %v7860 = vpop.f32.mrf.mxu0
        %v7861 = vadd.f32 %v7692, %v7860
        %v7862 = vpop.f32.mrf.mxu0
        %v7863 = vadd.f32 %v7694, %v7862
        %7864 = vmatmul.bf16.gmra.mxu0 %v6764
        %v7865 = vpop.f32.mrf.mxu0
        %v7866 = vadd.f32 %v7697, %v7865
        %v7867 = vpop.f32.mrf.mxu0
        %v7868 = vadd.f32 %v7699, %v7867
        %7869 = vmatmul.bf16.gmra.mxu0 %v6765
        %v7870 = vpop.f32.mrf.mxu0
        %v7871 = vadd.f32 %v7702, %v7870
        %v7872 = vpop.f32.mrf.mxu0
        %v7873 = vadd.f32 %v7704, %v7872
        %7874 = vmatmul.bf16.gmra.mxu0 %v6766
        %v7875 = vpop.f32.mrf.mxu0
        %v7876 = vadd.f32 %v7707, %v7875
        %v7877 = vpop.f32.mrf.mxu0
        %v7878 = vadd.f32 %v7709, %v7877
        %7879 = vmatmul.bf16.gmra.mxu0 %v6767
        %v7880 = vpop.f32.mrf.mxu0
        %v7881 = vadd.f32 %v7712, %v7880
        %v7882 = vpop.f32.mrf.mxu0
        %v7883 = vadd.f32 %v7714, %v7882
        %7884 = vmatmul.bf16.gmra.mxu0 %v6768
        %v7885 = vpop.f32.mrf.mxu0
        %v7886 = vadd.f32 %v7717, %v7885
        %v7887 = vpop.f32.mrf.mxu0
        %v7888 = vadd.f32 %v7719, %v7887
        %7889 = vmatmul.bf16.gmra.mxu0 %v6769
        %v7890 = vpop.f32.mrf.mxu0
        %v7891 = vadd.f32 %v7722, %v7890
        %v7892 = vpop.f32.mrf.mxu0
        %v7893 = vadd.f32 %v7724, %v7892
        %7894 = vmatmul.bf16.gmra.mxu0 %v6770
        %v7895 = vpop.f32.mrf.mxu0
        %v7896 = vadd.f32 %v7727, %v7895
        %v7897 = vpop.f32.mrf.mxu0
        %v7898 = vadd.f32 %v7729, %v7897
        %7899 = vmatmul.bf16.gmra.mxu0 %v6771
        %v7900 = vpop.f32.mrf.mxu0
        %v7901 = vadd.f32 %v7732, %v7900
        %v7902 = vpop.f32.mrf.mxu0
        %v7903 = vadd.f32 %v7734, %v7902
        %7904 = vmatmul.bf16.gmra.mxu0 %v6772
        %v7905 = vpop.f32.mrf.mxu0
        %v7906 = vadd.f32 %v7737, %v7905
        %v7907 = vpop.f32.mrf.mxu0
        %v7908 = vadd.f32 %v7739, %v7907
        %7909 = vmatmul.bf16.gmra.mxu0 %v6773
        %v7910 = vpop.f32.mrf.mxu0
        %v7911 = vadd.f32 %v7742, %v7910
        %v7912 = vpop.f32.mrf.mxu0
        %v7913 = vadd.f32 %v7744, %v7912
        %7914 = vmatmul.bf16.gmra.mxu0 %v6774
        %v7915 = vpop.f32.mrf.mxu0
        %v7916 = vadd.f32 %v7747, %v7915
        %v7917 = vpop.f32.mrf.mxu0
        %v7918 = vadd.f32 %v7749, %v7917
        %7919 = vmatmul.bf16.gmra.mxu0 %v6775
        %v7920 = vpop.f32.mrf.mxu0
        %v7921 = vadd.f32 %v7752, %v7920
        %v7922 = vpop.f32.mrf.mxu0
        %v7923 = vadd.f32 %v7754, %v7922
        %7924 = vmatmul.bf16.gmra.mxu0 %v6776
        %v7925 = vpop.f32.mrf.mxu0
        %v7926 = vadd.f32 %v7757, %v7925
        %v7927 = vpop.f32.mrf.mxu0
        %v7928 = vadd.f32 %v7759, %v7927
        %7929 = vmatmul.bf16.gmra.mxu0 %v6777
        %v7930 = vpop.f32.mrf.mxu0
        %v7931 = vadd.f32 %v7762, %v7930
        %v7932 = vpop.f32.mrf.mxu0
        %v7933 = vadd.f32 %v7764, %v7932
        %7934 = vmatmul.bf16.gmra.mxu0 %v6778
        %v7935 = vpop.f32.mrf.mxu0
        %v7936 = vadd.f32 %v7767, %v7935
        %v7937 = vpop.f32.mrf.mxu0
        %v7938 = vadd.f32 %v7769, %v7937
        %7939 = vmatmul.bf16.gmra.mxu0 %v6779
        %v7940 = vpop.f32.mrf.mxu0
        %v7941 = vadd.f32 %v7772, %v7940
        %v7942 = vpop.f32.mrf.mxu0
        %v7943 = vadd.f32 %v7774, %v7942
        %7944 = vmatmul.bf16.gmra.mxu0 %v6780
        %v7945 = vpop.f32.mrf.mxu0
        %v7946 = vadd.f32 %v7777, %v7945
        %v7947 = vpop.f32.mrf.mxu0
        %v7948 = vadd.f32 %v7779, %v7947
        %7949 = vmatmul.bf16.gmra.mxu0 %v6781
        %v7950 = vpop.f32.mrf.mxu0
        %v7951 = vadd.f32 %v7782, %v7950
        %v7952 = vpop.f32.mrf.mxu0
        %v7953 = vadd.f32 %v7784, %v7952
        %7954 = vmatmul.bf16.gmra.mxu0 %v6782
        %v7955 = vpop.f32.mrf.mxu0
        %v7956 = vadd.f32 %v7787, %v7955
        %v7957 = vpop.f32.mrf.mxu0
        %v7958 = vadd.f32 %v7789, %v7957
        %7959 = vmatmul.bf16.gmra.mxu0 %v6783
        %v7960 = vpop.f32.mrf.mxu0
        %v7961 = vadd.f32 %v7792, %v7960
        %v7962 = vpop.f32.mrf.mxu0
        %v7963 = vadd.f32 %v7794, %v7962
        %7964 = vmatmul.bf16.gmra.mxu0 %v6784
        %v7965 = vpop.f32.mrf.mxu0
        %v7966 = vadd.f32 %v7797, %v7965
        %v7967 = vpop.f32.mrf.mxu0
        %v7968 = vadd.f32 %v7799, %v7967
        %7969 = vmatmul.bf16.gmra.mxu0 %v6785
        %v7970 = vpop.f32.mrf.mxu0
        %v7971 = vadd.f32 %v7802, %v7970
        %v7972 = vpop.f32.mrf.mxu0
        %v7973 = vadd.f32 %v7804, %v7972
        %7974 = vmatmul.bf16.gmra.mxu0 %v6786
        %v7975 = vpop.f32.mrf.mxu0
        %v7976 = vadd.f32 %v7807, %v7975
        %v7977 = vpop.f32.mrf.mxu0
        %v7978 = vadd.f32 %v7809, %v7977
        %7979 = vmatmul.bf16.gmra.mxu0 %v6787
        %v7980 = vpop.f32.mrf.mxu0
        %v7981 = vadd.f32 %v7812, %v7980
        %v7982 = vpop.f32.mrf.mxu0
        %v7983 = vadd.f32 %v7814, %v7982
        %7984 = vmatmul.bf16.gmra.mxu0 %v6788
        %v7985 = vpop.f32.mrf.mxu0
        %v7986 = vadd.f32 %v7817, %v7985
        %v7987 = vpop.f32.mrf.mxu0
        %v7988 = vadd.f32 %v7819, %v7987
        %7989 = vdwg.mxu0
        %v7990 = vsub.f32 0.0, %v7831
        %v7991 = vsub.f32 0.0, %v7833
        %v7992 = vsub.f32 0.0, %v7836
        %v7993 = vsub.f32 0.0, %v7838
        %v7994 = vsub.f32 0.0, %v7841
        %v7995 = vsub.f32 0.0, %v7843
        %v7996 = vsub.f32 0.0, %v7846
        %v7997 = vsub.f32 0.0, %v7848
        %v7998 = vsub.f32 0.0, %v7851
        %v7999 = vsub.f32 0.0, %v7853
        %v8000 = vsub.f32 0.0, %v7856
        %v8001 = vsub.f32 0.0, %v7858
        %v8002 = vsub.f32 0.0, %v7861
        %v8003 = vsub.f32 0.0, %v7863
        %v8004 = vsub.f32 0.0, %v7866
        %v8005 = vsub.f32 0.0, %v7868
        %v8006 = vsub.f32 0.0, %v7871
        %v8007 = vsub.f32 0.0, %v7873
        %v8008 = vsub.f32 0.0, %v7876
        %v8009 = vsub.f32 0.0, %v7878
        %v8010 = vsub.f32 0.0, %v7881
        %v8011 = vsub.f32 0.0, %v7883
        %v8012 = vsub.f32 0.0, %v7886
        %v8013 = vsub.f32 0.0, %v7888
        %v8014 = vsub.f32 0.0, %v7891
        %v8015 = vsub.f32 0.0, %v7893
        %v8016 = vsub.f32 0.0, %v7896
        %v8017 = vsub.f32 0.0, %v7898
        %v8018 = vsub.f32 0.0, %v7901
        %v8019 = vsub.f32 0.0, %v7903
        %v8020 = vsub.f32 0.0, %v7906
        %v8021 = vsub.f32 0.0, %v7908
        %v8022 = vsub.f32 0.0, %v7911
        %v8023 = vsub.f32 0.0, %v7913
        %v8024 = vsub.f32 0.0, %v7916
        %v8025 = vsub.f32 0.0, %v7918
        %v8026 = vsub.f32 0.0, %v7921
        %v8027 = vsub.f32 0.0, %v7923
        %v8028 = vsub.f32 0.0, %v7926
        %v8029 = vsub.f32 0.0, %v7928
        %v8030 = vsub.f32 0.0, %v7931
        %v8031 = vsub.f32 0.0, %v7933
        %v8032 = vsub.f32 0.0, %v7936
        %v8033 = vsub.f32 0.0, %v7938
        %v8034 = vsub.f32 0.0, %v7941
        %v8035 = vsub.f32 0.0, %v7943
        %v8036 = vsub.f32 0.0, %v7946
        %v8037 = vsub.f32 0.0, %v7948
        %v8038 = vsub.f32 0.0, %v7951
        %v8039 = vsub.f32 0.0, %v7953
        %v8040 = vsub.f32 0.0, %v7956
        %v8041 = vsub.f32 0.0, %v7958
        %v8042 = vsub.f32 0.0, %v7961
        %v8043 = vsub.f32 0.0, %v7963
        %v8044 = vsub.f32 0.0, %v7966
        %v8045 = vsub.f32 0.0, %v7968
        %v8046 = vsub.f32 0.0, %v7971
        %v8047 = vsub.f32 0.0, %v7973
        %v8048 = vsub.f32 0.0, %v7976
        %v8049 = vsub.f32 0.0, %v7978
        %v8050 = vsub.f32 0.0, %v7981
        %v8051 = vsub.f32 0.0, %v7983
        %v8052 = vsub.f32 0.0, %v7986
        %v8053 = vsub.f32 0.0, %v7988
        %v8054 = vmul.f32 %v7990, 1.442695
        %v8055 = vpow.pop %v8054
        %v8056 = vmul.f32 %v7991, 1.442695
        %v8057 = vpow.pop %v8056
        %v8058 = vmul.f32 %v7992, 1.442695
        %v8059 = vpow.pop %v8058
        %v8060 = vmul.f32 %v7993, 1.442695
        %v8061 = vpow.pop %v8060
        %v8062 = vmul.f32 %v7994, 1.442695
        %v8063 = vpow.pop %v8062
        %v8064 = vmul.f32 %v7995, 1.442695
        %v8065 = vpow.pop %v8064
        %v8066 = vmul.f32 %v7996, 1.442695
        %v8067 = vpow.pop %v8066
        %v8068 = vmul.f32 %v7997, 1.442695
        %v8069 = vpow.pop %v8068
        %v8070 = vmul.f32 %v7998, 1.442695
        %v8071 = vpow.pop %v8070
        %v8072 = vmul.f32 %v7999, 1.442695
        %v8073 = vpow.pop %v8072
        %v8074 = vmul.f32 %v8000, 1.442695
        %v8075 = vpow.pop %v8074
        %v8076 = vmul.f32 %v8001, 1.442695
        %v8077 = vpow.pop %v8076
        %v8078 = vmul.f32 %v8002, 1.442695
        %v8079 = vpow.pop %v8078
        %v8080 = vmul.f32 %v8003, 1.442695
        %v8081 = vpow.pop %v8080
        %v8082 = vmul.f32 %v8004, 1.442695
        %v8083 = vpow.pop %v8082
        %v8084 = vmul.f32 %v8005, 1.442695
        %v8085 = vpow.pop %v8084
        %v8086 = vmul.f32 %v8006, 1.442695
        %v8087 = vpow.pop %v8086
        %v8088 = vmul.f32 %v8007, 1.442695
        %v8089 = vpow.pop %v8088
        %v8090 = vmul.f32 %v8008, 1.442695
        %v8091 = vpow.pop %v8090
        %v8092 = vmul.f32 %v8009, 1.442695
        %v8093 = vpow.pop %v8092
        %v8094 = vmul.f32 %v8010, 1.442695
        %v8095 = vpow.pop %v8094
        %v8096 = vmul.f32 %v8011, 1.442695
        %v8097 = vpow.pop %v8096
        %v8098 = vmul.f32 %v8012, 1.442695
        %v8099 = vpow.pop %v8098
        %v8100 = vmul.f32 %v8013, 1.442695
        %v8101 = vpow.pop %v8100
        %v8102 = vmul.f32 %v8014, 1.442695
        %v8103 = vpow.pop %v8102
        %v8104 = vmul.f32 %v8015, 1.442695
        %v8105 = vpow.pop %v8104
        %v8106 = vmul.f32 %v8016, 1.442695
        %v8107 = vpow.pop %v8106
        %v8108 = vmul.f32 %v8017, 1.442695
        %v8109 = vpow.pop %v8108
        %v8110 = vmul.f32 %v8018, 1.442695
        %v8111 = vpow.pop %v8110
        %v8112 = vmul.f32 %v8019, 1.442695
        %v8113 = vpow.pop %v8112
        %v8114 = vmul.f32 %v8020, 1.442695
        %v8115 = vpow.pop %v8114
        %v8116 = vmul.f32 %v8021, 1.442695
        %v8117 = vpow.pop %v8116
        %v8118 = vmul.f32 %v8022, 1.442695
        %v8119 = vpow.pop %v8118
        %v8120 = vmul.f32 %v8023, 1.442695
        %v8121 = vpow.pop %v8120
        %v8122 = vmul.f32 %v8024, 1.442695
        %v8123 = vpow.pop %v8122
        %v8124 = vmul.f32 %v8025, 1.442695
        %v8125 = vpow.pop %v8124
        %v8126 = vmul.f32 %v8026, 1.442695
        %v8127 = vpow.pop %v8126
        %v8128 = vmul.f32 %v8027, 1.442695
        %v8129 = vpow.pop %v8128
        %v8130 = vmul.f32 %v8028, 1.442695
        %v8131 = vpow.pop %v8130
        %v8132 = vmul.f32 %v8029, 1.442695
        %v8133 = vpow.pop %v8132
        %v8134 = vmul.f32 %v8030, 1.442695
        %v8135 = vpow.pop %v8134
        %v8136 = vmul.f32 %v8031, 1.442695
        %v8137 = vpow.pop %v8136
        %v8138 = vmul.f32 %v8032, 1.442695
        %v8139 = vpow.pop %v8138
        %v8140 = vmul.f32 %v8033, 1.442695
        %v8141 = vpow.pop %v8140
        %v8142 = vmul.f32 %v8034, 1.442695
        %v8143 = vpow.pop %v8142
        %v8144 = vmul.f32 %v8035, 1.442695
        %v8145 = vpow.pop %v8144
        %v8146 = vmul.f32 %v8036, 1.442695
        %v8147 = vpow.pop %v8146
        %v8148 = vmul.f32 %v8037, 1.442695
        %v8149 = vpow.pop %v8148
        %v8150 = vmul.f32 %v8038, 1.442695
        %v8151 = vpow.pop %v8150
        %v8152 = vmul.f32 %v8039, 1.442695
        %v8153 = vpow.pop %v8152
        %v8154 = vmul.f32 %v8040, 1.442695
        %v8155 = vpow.pop %v8154
        %v8156 = vmul.f32 %v8041, 1.442695
        %v8157 = vpow.pop %v8156
        %v8158 = vmul.f32 %v8042, 1.442695
        %v8159 = vpow.pop %v8158
        %v8160 = vmul.f32 %v8043, 1.442695
        %v8161 = vpow.pop %v8160
        %v8162 = vmul.f32 %v8044, 1.442695
        %v8163 = vpow.pop %v8162
        %v8164 = vmul.f32 %v8045, 1.442695
        %v8165 = vpow.pop %v8164
        %v8166 = vmul.f32 %v8046, 1.442695
        %v8167 = vpow.pop %v8166
        %v8168 = vmul.f32 %v8047, 1.442695
        %v8169 = vpow.pop %v8168
        %v8170 = vmul.f32 %v8048, 1.442695
        %v8171 = vpow.pop %v8170
        %v8172 = vmul.f32 %v8049, 1.442695
        %v8173 = vpow.pop %v8172
        %v8174 = vmul.f32 %v8050, 1.442695
        %v8175 = vpow.pop %v8174
        %v8176 = vmul.f32 %v8051, 1.442695
        %v8177 = vpow.pop %v8176
        %v8178 = vmul.f32 %v8052, 1.442695
        %v8179 = vpow.pop %v8178
        %v8180 = vmul.f32 %v8053, 1.442695
        %v8181 = vpow.pop %v8180
        %v8182 = vadd.f32 %v8055, 1.0
        %v8183 = vadd.f32 %v8057, 1.0
        %v8184 = vadd.f32 %v8059, 1.0
        %v8185 = vadd.f32 %v8061, 1.0
        %v8186 = vadd.f32 %v8063, 1.0
        %v8187 = vadd.f32 %v8065, 1.0
        %v8188 = vadd.f32 %v8067, 1.0
        %v8189 = vadd.f32 %v8069, 1.0
        %v8190 = vadd.f32 %v8071, 1.0
        %v8191 = vadd.f32 %v8073, 1.0
        %v8192 = vadd.f32 %v8075, 1.0
        %v8193 = vadd.f32 %v8077, 1.0
        %v8194 = vadd.f32 %v8079, 1.0
        %v8195 = vadd.f32 %v8081, 1.0
        %v8196 = vadd.f32 %v8083, 1.0
        %v8197 = vadd.f32 %v8085, 1.0
        %v8198 = vadd.f32 %v8087, 1.0
        %v8199 = vadd.f32 %v8089, 1.0
        %v8200 = vadd.f32 %v8091, 1.0
        %v8201 = vadd.f32 %v8093, 1.0
        %v8202 = vadd.f32 %v8095, 1.0
        %v8203 = vadd.f32 %v8097, 1.0
        %v8204 = vadd.f32 %v8099, 1.0
        %v8205 = vadd.f32 %v8101, 1.0
        %v8206 = vadd.f32 %v8103, 1.0
        %v8207 = vadd.f32 %v8105, 1.0
        %v8208 = vadd.f32 %v8107, 1.0
        %v8209 = vadd.f32 %v8109, 1.0
        %v8210 = vadd.f32 %v8111, 1.0
        %v8211 = vadd.f32 %v8113, 1.0
        %v8212 = vadd.f32 %v8115, 1.0
        %v8213 = vadd.f32 %v8117, 1.0
        %v8214 = vadd.f32 %v8119, 1.0
        %v8215 = vadd.f32 %v8121, 1.0
        %v8216 = vadd.f32 %v8123, 1.0
        %v8217 = vadd.f32 %v8125, 1.0
        %v8218 = vadd.f32 %v8127, 1.0
        %v8219 = vadd.f32 %v8129, 1.0
        %v8220 = vadd.f32 %v8131, 1.0
        %v8221 = vadd.f32 %v8133, 1.0
        %v8222 = vadd.f32 %v8135, 1.0
        %v8223 = vadd.f32 %v8137, 1.0
        %v8224 = vadd.f32 %v8139, 1.0
        %v8225 = vadd.f32 %v8141, 1.0
        %v8226 = vadd.f32 %v8143, 1.0
        %v8227 = vadd.f32 %v8145, 1.0
        %v8228 = vadd.f32 %v8147, 1.0
        %v8229 = vadd.f32 %v8149, 1.0
        %v8230 = vadd.f32 %v8151, 1.0
        %v8231 = vadd.f32 %v8153, 1.0
        %v8232 = vadd.f32 %v8155, 1.0
        %v8233 = vadd.f32 %v8157, 1.0
        %v8234 = vadd.f32 %v8159, 1.0
        %v8235 = vadd.f32 %v8161, 1.0
        %v8236 = vadd.f32 %v8163, 1.0
        %v8237 = vadd.f32 %v8165, 1.0
        %v8238 = vadd.f32 %v8167, 1.0
        %v8239 = vadd.f32 %v8169, 1.0
        %v8240 = vadd.f32 %v8171, 1.0
        %v8241 = vadd.f32 %v8173, 1.0
        %v8242 = vadd.f32 %v8175, 1.0
        %v8243 = vadd.f32 %v8177, 1.0
        %v8244 = vadd.f32 %v8179, 1.0
        %v8245 = vadd.f32 %v8181, 1.0
        %v8246 = vrcp.pop %v8182
        %v8247 = vrcp.pop %v8183
        %v8248 = vrcp.pop %v8184
        %v8249 = vrcp.pop %v8185
        %v8250 = vrcp.pop %v8186
        %v8251 = vrcp.pop %v8187
        %v8252 = vrcp.pop %v8188
        %v8253 = vrcp.pop %v8189
        %v8254 = vrcp.pop %v8190
        %v8255 = vrcp.pop %v8191
        %v8256 = vrcp.pop %v8192
        %v8257 = vrcp.pop %v8193
        %v8258 = vrcp.pop %v8194
        %v8259 = vrcp.pop %v8195
        %v8260 = vrcp.pop %v8196
        %v8261 = vrcp.pop %v8197
        %v8262 = vrcp.pop %v8198
        %v8263 = vrcp.pop %v8199
        %v8264 = vrcp.pop %v8200
        %v8265 = vrcp.pop %v8201
        %v8266 = vrcp.pop %v8202
        %v8267 = vrcp.pop %v8203
        %v8268 = vrcp.pop %v8204
        %v8269 = vrcp.pop %v8205
        %v8270 = vrcp.pop %v8206
        %v8271 = vrcp.pop %v8207
        %v8272 = vrcp.pop %v8208
        %v8273 = vrcp.pop %v8209
        %v8274 = vrcp.pop %v8210
        %v8275 = vrcp.pop %v8211
        %v8276 = vrcp.pop %v8212
        %v8277 = vrcp.pop %v8213
        %v8278 = vrcp.pop %v8214
        %v8279 = vrcp.pop %v8215
        %v8280 = vrcp.pop %v8216
        %v8281 = vrcp.pop %v8217
        %v8282 = vrcp.pop %v8218
        %v8283 = vrcp.pop %v8219
        %v8284 = vrcp.pop %v8220
        %v8285 = vrcp.pop %v8221
        %v8286 = vrcp.pop %v8222
        %v8287 = vrcp.pop %v8223
        %v8288 = vrcp.pop %v8224
        %v8289 = vrcp.pop %v8225
        %v8290 = vrcp.pop %v8226
        %v8291 = vrcp.pop %v8227
        %v8292 = vrcp.pop %v8228
        %v8293 = vrcp.pop %v8229
        %v8294 = vrcp.pop %v8230
        %v8295 = vrcp.pop %v8231
        %v8296 = vrcp.pop %v8232
        %v8297 = vrcp.pop %v8233
        %v8298 = vrcp.pop %v8234
        %v8299 = vrcp.pop %v8235
        %v8300 = vrcp.pop %v8236
        %v8301 = vrcp.pop %v8237
        %v8302 = vrcp.pop %v8238
        %v8303 = vrcp.pop %v8239
        %v8304 = vrcp.pop %v8240
        %v8305 = vrcp.pop %v8241
        %v8306 = vrcp.pop %v8242
        %v8307 = vrcp.pop %v8243
        %v8308 = vrcp.pop %v8244
        %v8309 = vrcp.pop %v8245
        %v8310 = vld [vmem:[%s9] sm:$0x1]
        %v8312 = vperm.slane %v8310, 0
        %v8314 = vmul.f32 %v8246, %v8312
        %v8315 = vmul.f32 %v8247, %v8312
        %v8316 = vmul.f32 %v8248, %v8312
        %v8317 = vmul.f32 %v8249, %v8312
        %v8318 = vmul.f32 %v8250, %v8312
        %v8319 = vmul.f32 %v8251, %v8312
        %v8320 = vmul.f32 %v8252, %v8312
        %v8321 = vmul.f32 %v8253, %v8312
        %v8322 = vmul.f32 %v8254, %v8312
        %v8323 = vmul.f32 %v8255, %v8312
        %v8324 = vmul.f32 %v8256, %v8312
        %v8325 = vmul.f32 %v8257, %v8312
        %v8326 = vmul.f32 %v8258, %v8312
        %v8327 = vmul.f32 %v8259, %v8312
        %v8328 = vmul.f32 %v8260, %v8312
        %v8329 = vmul.f32 %v8261, %v8312
        %v8330 = vmul.f32 %v8262, %v8312
        %v8331 = vmul.f32 %v8263, %v8312
        %v8332 = vmul.f32 %v8264, %v8312
        %v8333 = vmul.f32 %v8265, %v8312
        %v8334 = vmul.f32 %v8266, %v8312
        %v8335 = vmul.f32 %v8267, %v8312
        %v8336 = vmul.f32 %v8268, %v8312
        %v8337 = vmul.f32 %v8269, %v8312
        %v8338 = vmul.f32 %v8270, %v8312
        %v8339 = vmul.f32 %v8271, %v8312
        %v8340 = vmul.f32 %v8272, %v8312
        %v8341 = vmul.f32 %v8273, %v8312
        %v8342 = vmul.f32 %v8274, %v8312
        %v8343 = vmul.f32 %v8275, %v8312
        %v8344 = vmul.f32 %v8276, %v8312
        %v8345 = vmul.f32 %v8277, %v8312
        %v8346 = vmul.f32 %v8278, %v8312
        %v8347 = vmul.f32 %v8279, %v8312
        %v8348 = vmul.f32 %v8280, %v8312
        %v8349 = vmul.f32 %v8281, %v8312
        %v8350 = vmul.f32 %v8282, %v8312
        %v8351 = vmul.f32 %v8283, %v8312
        %v8352 = vmul.f32 %v8284, %v8312
        %v8353 = vmul.f32 %v8285, %v8312
        %v8354 = vmul.f32 %v8286, %v8312
        %v8355 = vmul.f32 %v8287, %v8312
        %v8356 = vmul.f32 %v8288, %v8312
        %v8357 = vmul.f32 %v8289, %v8312
        %v8358 = vmul.f32 %v8290, %v8312
        %v8359 = vmul.f32 %v8291, %v8312
        %v8360 = vmul.f32 %v8292, %v8312
        %v8361 = vmul.f32 %v8293, %v8312
        %v8362 = vmul.f32 %v8294, %v8312
        %v8363 = vmul.f32 %v8295, %v8312
        %v8364 = vmul.f32 %v8296, %v8312
        %v8365 = vmul.f32 %v8297, %v8312
        %v8366 = vmul.f32 %v8298, %v8312
        %v8367 = vmul.f32 %v8299, %v8312
        %v8368 = vmul.f32 %v8300, %v8312
        %v8369 = vmul.f32 %v8301, %v8312
        %v8370 = vmul.f32 %v8302, %v8312
        %v8371 = vmul.f32 %v8303, %v8312
        %v8372 = vmul.f32 %v8304, %v8312
        %v8373 = vmul.f32 %v8305, %v8312
        %v8374 = vmul.f32 %v8306, %v8312
        %v8375 = vmul.f32 %v8307, %v8312
        %v8376 = vmul.f32 %v8308, %v8312
        %v8377 = vmul.f32 %v8309, %v8312
        %v8378 = vld [vmem:[%s10] sm:$0x1]
        %v8380 = vperm.slane %v8378, 0
        %v8382 = vadd.f32 %v8314, %v8380
        %v8383 = vadd.f32 %v8315, %v8380
        %v8384 = vadd.f32 %v8316, %v8380
        %v8385 = vadd.f32 %v8317, %v8380
        %v8386 = vadd.f32 %v8318, %v8380
        %v8387 = vadd.f32 %v8319, %v8380
        %v8388 = vadd.f32 %v8320, %v8380
        %v8389 = vadd.f32 %v8321, %v8380
        %v8390 = vadd.f32 %v8322, %v8380
        %v8391 = vadd.f32 %v8323, %v8380
        %v8392 = vadd.f32 %v8324, %v8380
        %v8393 = vadd.f32 %v8325, %v8380
        %v8394 = vadd.f32 %v8326, %v8380
        %v8395 = vadd.f32 %v8327, %v8380
        %v8396 = vadd.f32 %v8328, %v8380
        %v8397 = vadd.f32 %v8329, %v8380
        %v8398 = vadd.f32 %v8330, %v8380
        %v8399 = vadd.f32 %v8331, %v8380
        %v8400 = vadd.f32 %v8332, %v8380
        %v8401 = vadd.f32 %v8333, %v8380
        %v8402 = vadd.f32 %v8334, %v8380
        %v8403 = vadd.f32 %v8335, %v8380
        %v8404 = vadd.f32 %v8336, %v8380
        %v8405 = vadd.f32 %v8337, %v8380
        %v8406 = vadd.f32 %v8338, %v8380
        %v8407 = vadd.f32 %v8339, %v8380
        %v8408 = vadd.f32 %v8340, %v8380
        %v8409 = vadd.f32 %v8341, %v8380
        %v8410 = vadd.f32 %v8342, %v8380
        %v8411 = vadd.f32 %v8343, %v8380
        %v8412 = vadd.f32 %v8344, %v8380
        %v8413 = vadd.f32 %v8345, %v8380
        %v8414 = vadd.f32 %v8346, %v8380
        %v8415 = vadd.f32 %v8347, %v8380
        %v8416 = vadd.f32 %v8348, %v8380
        %v8417 = vadd.f32 %v8349, %v8380
        %v8418 = vadd.f32 %v8350, %v8380
        %v8419 = vadd.f32 %v8351, %v8380
        %v8420 = vadd.f32 %v8352, %v8380
        %v8421 = vadd.f32 %v8353, %v8380
        %v8422 = vadd.f32 %v8354, %v8380
        %v8423 = vadd.f32 %v8355, %v8380
        %v8424 = vadd.f32 %v8356, %v8380
        %v8425 = vadd.f32 %v8357, %v8380
        %v8426 = vadd.f32 %v8358, %v8380
        %v8427 = vadd.f32 %v8359, %v8380
        %v8428 = vadd.f32 %v8360, %v8380
        %v8429 = vadd.f32 %v8361, %v8380
        %v8430 = vadd.f32 %v8362, %v8380
        %v8431 = vadd.f32 %v8363, %v8380
        %v8432 = vadd.f32 %v8364, %v8380
        %v8433 = vadd.f32 %v8365, %v8380
        %v8434 = vadd.f32 %v8366, %v8380
        %v8435 = vadd.f32 %v8367, %v8380
        %v8436 = vadd.f32 %v8368, %v8380
        %v8437 = vadd.f32 %v8369, %v8380
        %v8438 = vadd.f32 %v8370, %v8380
        %v8439 = vadd.f32 %v8371, %v8380
        %v8440 = vadd.f32 %v8372, %v8380
        %v8441 = vadd.f32 %v8373, %v8380
        %v8442 = vadd.f32 %v8374, %v8380
        %v8443 = vadd.f32 %v8375, %v8380
        %v8444 = vadd.f32 %v8376, %v8380
        %v8445 = vadd.f32 %v8377, %v8380
        %8446 = vst [vmem:[%s503] sm:$0xff] %v8382
        %8447 = vst [vmem:[%s503 + $0x8] sm:$0xff] %v8383
        %8448 = vst [vmem:[%s503 + $0x10] sm:$0xff] %v8384
        %8449 = vst [vmem:[%s503 + $0x18] sm:$0xff] %v8385
        %8450 = vst [vmem:[%s503 + $0x20] sm:$0xff] %v8386
        %8451 = vst [vmem:[%s503 + $0x28] sm:$0xff] %v8387
        %8452 = vst [vmem:[%s503 + $0x30] sm:$0xff] %v8388
        %8453 = vst [vmem:[%s503 + $0x38] sm:$0xff] %v8389
        %8454 = vst [vmem:[%s503 + $0x40] sm:$0xff] %v8390
        %8455 = vst [vmem:[%s503 + $0x48] sm:$0xff] %v8391
        %8456 = vst [vmem:[%s503 + $0x50] sm:$0xff] %v8392
        %8457 = vst [vmem:[%s503 + $0x58] sm:$0xff] %v8393
        %8458 = vst [vmem:[%s503 + $0x60] sm:$0xff] %v8394
        %8459 = vst [vmem:[%s503 + $0x68] sm:$0xff] %v8395
        %8460 = vst [vmem:[%s503 + $0x70] sm:$0xff] %v8396
        %8461 = vst [vmem:[%s503 + $0x78] sm:$0xff] %v8397
        %8462 = vst [vmem:[%s503 + $0x80] sm:$0xff] %v8398
        %8463 = vst [vmem:[%s503 + $0x88] sm:$0xff] %v8399
        %8464 = vst [vmem:[%s503 + $0x90] sm:$0xff] %v8400
        %8465 = vst [vmem:[%s503 + $0x98] sm:$0xff] %v8401
        %8466 = vst [vmem:[%s503 + $0xa0] sm:$0xff] %v8402
        %8467 = vst [vmem:[%s503 + $0xa8] sm:$0xff] %v8403
        %8468 = vst [vmem:[%s503 + $0xb0] sm:$0xff] %v8404
        %8469 = vst [vmem:[%s503 + $0xb8] sm:$0xff] %v8405
        %8470 = vst [vmem:[%s503 + $0xc0] sm:$0xff] %v8406
        %8471 = vst [vmem:[%s503 + $0xc8] sm:$0xff] %v8407
        %8472 = vst [vmem:[%s503 + $0xd0] sm:$0xff] %v8408
        %8473 = vst [vmem:[%s503 + $0xd8] sm:$0xff] %v8409
        %8474 = vst [vmem:[%s503 + $0xe0] sm:$0xff] %v8410
        %8475 = vst [vmem:[%s503 + $0xe8] sm:$0xff] %v8411
        %8476 = vst [vmem:[%s503 + $0xf0] sm:$0xff] %v8412
        %8477 = vst [vmem:[%s503 + $0xf8] sm:$0xff] %v8413
        %8478 = vst [vmem:[%s503 + $0x100] sm:$0xff] %v8414
        %8479 = vst [vmem:[%s503 + $0x108] sm:$0xff] %v8415
        %8480 = vst [vmem:[%s503 + $0x110] sm:$0xff] %v8416
        %8481 = vst [vmem:[%s503 + $0x118] sm:$0xff] %v8417
        %8482 = vst [vmem:[%s503 + $0x120] sm:$0xff] %v8418
        %8483 = vst [vmem:[%s503 + $0x128] sm:$0xff] %v8419
        %8484 = vst [vmem:[%s503 + $0x130] sm:$0xff] %v8420
        %8485 = vst [vmem:[%s503 + $0x138] sm:$0xff] %v8421
        %8486 = vst [vmem:[%s503 + $0x140] sm:$0xff] %v8422
        %8487 = vst [vmem:[%s503 + $0x148] sm:$0xff] %v8423
        %8488 = vst [vmem:[%s503 + $0x150] sm:$0xff] %v8424
        %8489 = vst [vmem:[%s503 + $0x158] sm:$0xff] %v8425
        %8490 = vst [vmem:[%s503 + $0x160] sm:$0xff] %v8426
        %8491 = vst [vmem:[%s503 + $0x168] sm:$0xff] %v8427
        %8492 = vst [vmem:[%s503 + $0x170] sm:$0xff] %v8428
        %8493 = vst [vmem:[%s503 + $0x178] sm:$0xff] %v8429
        %8494 = vst [vmem:[%s503 + $0x180] sm:$0xff] %v8430
        %8495 = vst [vmem:[%s503 + $0x188] sm:$0xff] %v8431
        %8496 = vst [vmem:[%s503 + $0x190] sm:$0xff] %v8432
        %8497 = vst [vmem:[%s503 + $0x198] sm:$0xff] %v8433
        %8498 = vst [vmem:[%s503 + $0x1a0] sm:$0xff] %v8434
        %8499 = vst [vmem:[%s503 + $0x1a8] sm:$0xff] %v8435
        %8500 = vst [vmem:[%s503 + $0x1b0] sm:$0xff] %v8436
        %8501 = vst [vmem:[%s503 + $0x1b8] sm:$0xff] %v8437
        %8502 = vst [vmem:[%s503 + $0x1c0] sm:$0xff] %v8438
        %8503 = vst [vmem:[%s503 + $0x1c8] sm:$0xff] %v8439
        %8504 = vst [vmem:[%s503 + $0x1d0] sm:$0xff] %v8440
        %8505 = vst [vmem:[%s503 + $0x1d8] sm:$0xff] %v8441
        %8506 = vst [vmem:[%s503 + $0x1e0] sm:$0xff] %v8442
        %8507 = vst [vmem:[%s503 + $0x1e8] sm:$0xff] %v8443
        %8508 = vst [vmem:[%s503 + $0x1f0] sm:$0xff] %v8444
        %8509 = vst [vmem:[%s503 + $0x1f8] sm:$0xff] %v8445
        %s8510 = sand.u32 %s275, 1
        %s8511 = scalar_lea.sflag [#allocation4], %s8510
        %s8512 = sand.u32 %s275, 1
        %s8513 = smul.addr %s8512, 512
        %s8514 = scalar_lea.vmem [#allocation14], %s8513
        // Predicated region
        $region93: #{tpu_custom_call.1} parent=63 // pred_check
          %p8515 = pneg %p285
        $region94: #{tpu_custom_call.1} parent=63 // pred_check_branch
          %8517 = sbr.rel (%p8515) target = $region96
        $region95: #{tpu_custom_call.1} parent=63 // pred_region
          %s8518 = smul.u32 64, %s31
          %8520 = vsyncadd %s8511, 0
          %s8521 = smul.addr %s8518, 8
          %s8522 = scalar_lea.hbm %s11, %s8521
          %s8523 = sshll.u32 %s8514, 4
          %s8524 = int_to_ptr.vmem [resolvable:$true] %s8523
          %s8525 = sshll.u32 %s8522, 4
          %s8526 = int_to_ptr.hbm [resolvable:$true] %s8525
          %8531 = dma.vmem_to_hbm [thread:$0]  %s8524, 8192, %s8526, %s8511, 128, 128, 8
        $region96: #{tpu_custom_call.1} parent=63 // pred_fallthru
          _
      $region64: #{tpu_custom_call.1} parent=5 // pred_fallthru
        _
      %p8532 = scmp.le.s32.totalorder 2, %s26
      // Predicated region
      $region97: #{tpu_custom_call.1} parent=5 // pred_check
        %p8533 = pneg %p8532
      $region98: #{tpu_custom_call.1} parent=5 // pred_check_branch
        %8535 = sbr.rel (%p8533) target = $region100
      $region99: #{tpu_custom_call.1} parent=5 // pred_region
        %s8536 = ssub.s32 %s26, 2
        // Predicated region
        $region101: #{tpu_custom_call.1} parent=99 // pred_check
          %p8537 = pneg %p291
        $region102: #{tpu_custom_call.1} parent=99 // pred_check_branch
          %8539 = sbr.rel (%p8537) target = $region104
        $region103: #{tpu_custom_call.1} parent=99 // pred_region
          %s8540 = sand.u32 %s276, 1
          %s8541 = scalar_lea.sflag [#allocation4], %s8540
          %s8542 = sand.u32 %s276, 1
          %s8543 = smul.addr %s8542, 512
          %s8544 = scalar_lea.vmem [#allocation14], %s8543
          %8546 = dma.done %s8541, 8192
        $region104: #{tpu_custom_call.1} parent=99 // pred_fallthru
          _
      $region100: #{tpu_custom_call.1} parent=5 // pred_fallthru
        _
    $region6: #{tpu_custom_call.1} parent=1 // loop_footer
      %s30 = sadd.s32 1, %s26
    $region7: #{tpu_custom_call.1} parent=1 // loop_footer_branch
      %25 = sbr.rel target = $region3
    $region8: #{tpu_custom_call.1} parent=1 // loop_exit
      _
    %8547 = vsyncpa [#allocation3], 1
    %s8548 = scalar_lea.sflag [#allocation3], 1
    %8549 = vsyncpa %s8548, 1
    %8550 = vsyncpa [#allocation6], 1
    %8551 = vsyncpa [#allocation9], 1
    %8552 = vsyncpa [#allocation12], 1
    %8553 = vsyncpa [#allocation4], 1
    %s8554 = scalar_lea.sflag [#allocation4], 1
    %8555 = vsyncpa %s8554, 1

</llo_original>
